<compile_context>
chip_gen: v7x
topology: tpu7x:2x2x1
jax: 0.10.0
libtpu: 0.0.40
codegen_flags: <defaults>
</compile_context>

<pallas_src>
import math
from functools import partial

import jax
import jax.numpy as jnp
from jax.experimental import pallas as pl
from jax.experimental.pallas import tpu as pltpu

D_MODEL = 32
FFN_EXP = 4
NUM_SPLITS = 2
EPS = 1e-5  # nn.LayerNorm default


# ---------------------------------------------------------------------------
# Fused Pallas kernel
# ---------------------------------------------------------------------------
def _layernorm(x, g, b):
    mu = jnp.mean(x, axis=-1, keepdims=True)
    var = jnp.mean((x - mu) ** 2, axis=-1, keepdims=True)
    return (x - mu) * jax.lax.rsqrt(var + EPS) * g + b


def _fused_layer_kernel(src_ref, tgt_ref, wq_ref, wkv_ref, wm_ref, g1_ref,
                        b1_ref, w1a_ref, w1b_ref, w2_ref, g2_ref, b2_ref,
                        o_ref, *, num_splits):
    # TODO(synk): with_shift=True (rolled windows + additive attn_mask) not
    # implemented; only the default with_shift=False swin path is covered.
    C = wq_ref.shape[0]
    H = src_ref.shape[1]
    W = src_ref.shape[2]
    wh = H // num_splits
    ww = W // num_splits
    L = wh * ww

    # Fold the 1/sqrt(C) softmax scale into the tiny q-projection weight.
    wq = wq_ref[...] * (1.0 / math.sqrt(C))
    wkv = wkv_ref[...]
    wm = wm_ref[...]
    g1 = g1_ref[...]
    b1 = b1_ref[...]
    w1a = w1a_ref[...]
    w1b = w1b_ref[...]
    w2 = w2_ref[...]
    g2 = g2_ref[...]
    b2 = b2_ref[...]
    inv_sqrt2 = 1.0 / math.sqrt(2.0)

    # All ns*ns swin windows of this batch element, unrolled (static slices).
    for i in range(num_splits):
        for j in range(num_splits):
            hs = i * wh
            ws = j * ww
            src = src_ref[0, hs:hs + wh, ws:ws + ww, :].reshape(L, C)
            tgt = tgt_ref[0, hs:hs + wh, ws:ws + ww, :].reshape(L, C)

            # projections (q already carries the 1/sqrt(C) scale); k|v fused
            q = jnp.dot(src, wq, preferred_element_type=jnp.float32)
            kv = jnp.dot(tgt, wkv, preferred_element_type=jnp.float32)
            k = kv[:, :C]
            v = kv[:, C:]

            # scores = q @ k^T without materializing k.T
            s = jax.lax.dot_general(q, k, (((1,), (1,)), ((), ())),
                                    preferred_element_type=jnp.float32)
            s = s - jnp.max(s, axis=-1, keepdims=True)
            p = jnp.exp(s)
            p = p * pl.reciprocal(jnp.sum(p, axis=-1, keepdims=True),
                                  approx=True)
            attn = jnp.dot(p, v, preferred_element_type=jnp.float32)

            # merge linear + LayerNorm
            msg = jnp.dot(attn, wm, preferred_element_type=jnp.float32)
            msg = _layernorm(msg, g1, b1)

            # FFN on cat([src, msg]):  src @ W1[:C] + msg @ W1[C:]
            h = (jnp.dot(src, w1a, preferred_element_type=jnp.float32) +
                 jnp.dot(msg, w1b, preferred_element_type=jnp.float32))
            h = 0.5 * h * (1.0 + jax.lax.erf(h * inv_sqrt2))  # exact GELU
            m2 = jnp.dot(h, w2, preferred_element_type=jnp.float32)
            y = _layernorm(m2, g2, b2)

            out = (src + y).astype(o_ref.dtype)
            o_ref[0, hs:hs + wh, ws:ws + ww, :] = out.reshape(wh, ww, C)


# ---------------------------------------------------------------------------
# Wrapper
# ---------------------------------------------------------------------------
@partial(jax.jit, static_argnames=("height", "width", "attn_num_splits"))
def transformer_layer_forward(source, target, params, *, height, width,
                              attn_num_splits=NUM_SPLITS):
    B, S, C = source.shape
    assert S == height * width
    ns = attn_num_splits
    hidden = 2 * C * FFN_EXP

    src4 = source.reshape(B, height, width, C)   # free row-major reshape
    tgt4 = target.reshape(B, height, width, C)

    def full(shape):
        return pl.BlockSpec(shape, lambda b: (0,) * len(shape))

    io_spec = pl.BlockSpec((1, height, width, C), lambda b: (b, 0, 0, 0))

    out = pl.pallas_call(
        partial(_fused_layer_kernel, num_splits=ns),
        grid=(B,),
        in_specs=[
            io_spec, io_spec,
            full((C, C)),                 # wq
            full((C, 2 * C)),             # wkv (fused k|v)
            full((C, C)),                 # wm
            full((1, C)), full((1, C)),   # g1, b1
            full((C, hidden)),            # w1a (rows of W1 hitting source)
            full((C, hidden)),            # w1b (rows of W1 hitting message)
            full((hidden, C)),            # w2
            full((1, C)), full((1, C)),   # g2, b2
        ],
        out_specs=io_spec,
        out_shape=jax.ShapeDtypeStruct((B, height, width, C), source.dtype),
        compiler_params=pltpu.CompilerParams(
            dimension_semantics=("parallel",)),
    )(src4, tgt4, params["wq"], params["wkv"], params["wm"],
      params["g1"], params["b1"], params["w1a"], params["w1b"],
      params["w2"], params["g2"], params["b2"])

    return out.reshape(B, S, C)


# ---------------------------------------------------------------------------
# Pure-JAX reference (mirrors the PyTorch forward) for a sanity check
# ---------------------------------------------------------------------------
def split_feature_cl(x, ns):
    b, h, w, c = x.shape
    x = x.reshape(b, ns, h // ns, ns, w // ns, c)
    x = x.transpose(0, 1, 3, 2, 4, 5)
    return x.reshape(b * ns * ns, h // ns, w // ns, c)


def merge_splits_cl(x, ns):
    bn, h, w, c = x.shape
    nb = bn // (ns * ns)
    x = x.reshape(nb, ns, ns, h, w, c)
    x = x.transpose(0, 1, 3, 2, 4, 5)
    return x.reshape(nb, ns * h, ns * w, c)


def reference_forward(source, target, params, height, width, ns=NUM_SPLITS):
    B, S, C = source.shape
    wk = params["wkv"][:, :C]
    wv = params["wkv"][:, C:]
    q = (source @ params["wq"]).reshape(B, height, width, C)
    k = (target @ wk).reshape(B, height, width, C)
    v = (target @ wv).reshape(B, height, width, C)
    L = (height // ns) * (width // ns)
    nw = B * ns * ns
    qw = split_feature_cl(q, ns).reshape(nw, L, C)
    kw = split_feature_cl(k, ns).reshape(nw, L, C)
    vw = split_feature_cl(v, ns).reshape(nw, L, C)
    scores = jnp.einsum("bqc,bkc->bqk", qw, kw) / (C ** 0.5)
    attn = jax.nn.softmax(scores, axis=-1)
    out = jnp.einsum("bqk,bkc->bqc", attn, vw)
    out = merge_splits_cl(out.reshape(nw, height // ns, width // ns, C), ns)
    message = out.reshape(B, S, C) @ params["wm"]

    def ln(x, g, b):
        mu = jnp.mean(x, -1, keepdims=True)
        var = jnp.mean((x - mu) ** 2, -1, keepdims=True)
        return (x - mu) / jnp.sqrt(var + EPS) * g + b

    message = ln(message, params["g1"], params["b1"])
    x = jnp.concatenate([source, message], axis=-1)
    w1 = jnp.concatenate([params["w1a"], params["w1b"]], axis=0)
    h = x @ w1
    h = 0.5 * h * (1.0 + jax.lax.erf(h / math.sqrt(2.0)))
    message = ln(h @ params["w2"], params["g2"], params["b2"])
    return source + message


# ---------------------------------------------------------------------------
def make_params(key, d_model=D_MODEL, ffn_exp=FFN_EXP):
    ks = jax.random.split(key, 6)
    hidden = 2 * d_model * ffn_exp
    scale = 0.02

    def w(k, shape):
        return (scale * jax.random.normal(k, shape)).astype(jnp.float32)

    return {
        "wq": w(ks[0], (d_model, d_model)),
        "wkv": w(ks[1], (d_model, 2 * d_model)),   # [wk | wv] fused
        "wm": w(ks[3], (d_model, d_model)),
        "g1": jnp.ones((1, d_model), jnp.float32),
        "b1": jnp.zeros((1, d_model), jnp.float32),
        "w1a": w(ks[4], (d_model, hidden)),        # W1 rows hitting `source`
        "w1b": w(ks[5], (d_model, hidden)),        # W1 rows hitting `message`
        "w2": w(jax.random.fold_in(key, 99), (hidden, d_model)),
        "g2": jnp.ones((1, d_model), jnp.float32),
        "b2": jnp.zeros((1, d_model), jnp.float32),
    }


if __name__ == "__main__":
    key = jax.random.PRNGKey(0)
    k_src, k_tgt, k_par = jax.random.split(key, 3)

    B, H, W, C = 2, 16, 16, D_MODEL
    S = H * W
    source = jax.random.normal(k_src, (B, S, C), jnp.float32)
    target = jax.random.normal(k_tgt, (B, S, C), jnp.float32)
    params = make_params(k_par)

    out = transformer_layer_forward(source, target, params, height=H, width=W,
                                    attn_num_splits=NUM_SPLITS)
    out = jax.block_until_ready(out)

    ref = reference_forward(source, target, params, H, W, ns=NUM_SPLITS)
    assert out.shape == (B, S, C)
    # tolerance loosened slightly for pl.reciprocal(approx=True) in the softmax
    assert jnp.allclose(out, ref, rtol=5e-3, atol=5e-3)

    print("KERNEL_OK")
</pallas_src>

<mosaic_0001>
module attributes {stable_mosaic.version = 11 : i64} {
  func.func @_fused_layer_kernel(%arg0: i32, %arg1: memref<1x16x16x32xf32, #tpu.memory_space<vmem>>, %arg2: memref<1x16x16x32xf32, #tpu.memory_space<vmem>>, %arg3: memref<32x32xf32, #tpu.memory_space<vmem>>, %arg4: memref<32x64xf32, #tpu.memory_space<vmem>>, %arg5: memref<32x32xf32, #tpu.memory_space<vmem>>, %arg6: memref<1x32xf32, #tpu.memory_space<vmem>>, %arg7: memref<1x32xf32, #tpu.memory_space<vmem>>, %arg8: memref<32x256xf32, #tpu.memory_space<vmem>>, %arg9: memref<32x256xf32, #tpu.memory_space<vmem>>, %arg10: memref<256x32xf32, #tpu.memory_space<vmem>>, %arg11: memref<1x32xf32, #tpu.memory_space<vmem>>, %arg12: memref<1x32xf32, #tpu.memory_space<vmem>>, %arg13: memref<1x16x16x32xf32, #tpu.memory_space<vmem>>) attributes {dimension_semantics = [#tpu.dimension_semantics<parallel>], iteration_bounds = array<i64: 2>, scalar_prefetch = 0 : i64, scratch_operands = 0 : i64, tpu.core_type = #tpu.core_type<tc>, window_params = [{transform_indices = @transform_0, window_bounds = array<i64: 1, 16, 16, 32>}, {transform_indices = @transform_1, window_bounds = array<i64: 1, 16, 16, 32>}, {pipeline_mode = #tpu.pipeline_mode<synchronous>, transform_indices = @transform_2, window_bounds = array<i64: 32, 32>}, {pipeline_mode = #tpu.pipeline_mode<synchronous>, transform_indices = @transform_3, window_bounds = array<i64: 32, 64>}, {pipeline_mode = #tpu.pipeline_mode<synchronous>, transform_indices = @transform_4, window_bounds = array<i64: 32, 32>}, {pipeline_mode = #tpu.pipeline_mode<synchronous>, transform_indices = @transform_5, window_bounds = array<i64: 1, 32>}, {pipeline_mode = #tpu.pipeline_mode<synchronous>, transform_indices = @transform_6, window_bounds = array<i64: 1, 32>}, {pipeline_mode = #tpu.pipeline_mode<synchronous>, transform_indices = @transform_7, window_bounds = array<i64: 32, 256>}, {pipeline_mode = #tpu.pipeline_mode<synchronous>, transform_indices = @transform_8, window_bounds = array<i64: 32, 256>}, {pipeline_mode = #tpu.pipeline_mode<synchronous>, transform_indices = @transform_9, window_bounds = array<i64: 256, 32>}, {pipeline_mode = #tpu.pipeline_mode<synchronous>, transform_indices = @transform_10, window_bounds = array<i64: 1, 32>}, {pipeline_mode = #tpu.pipeline_mode<synchronous>, transform_indices = @transform_11, window_bounds = array<i64: 1, 32>}, {transform_indices = @transform_12, window_bounds = array<i64: 1, 16, 16, 32>}]} {
    %c0 = arith.constant 0 : index
    %c0_0 = arith.constant 0 : index
    %0 = vector.load %arg3[%c0, %c0_0] : memref<32x32xf32, #tpu.memory_space<vmem>>, vector<32x32xf32>
    %cst = arith.constant 0.176776692 : f32
    %1 = vector.broadcast %cst : f32 to vector<32x32xf32>
    %2 = arith.mulf %0, %1 : vector<32x32xf32>
    %c0_1 = arith.constant 0 : index
    %c0_2 = arith.constant 0 : index
    %3 = vector.load %arg4[%c0_1, %c0_2] : memref<32x64xf32, #tpu.memory_space<vmem>>, vector<32x64xf32>
    %c0_3 = arith.constant 0 : index
    %c0_4 = arith.constant 0 : index
    %4 = vector.load %arg5[%c0_3, %c0_4] : memref<32x32xf32, #tpu.memory_space<vmem>>, vector<32x32xf32>
    %c0_5 = arith.constant 0 : index
    %c0_6 = arith.constant 0 : index
    %5 = vector.load %arg6[%c0_5, %c0_6] : memref<1x32xf32, #tpu.memory_space<vmem>>, vector<1x32xf32>
    %c0_7 = arith.constant 0 : index
    %c0_8 = arith.constant 0 : index
    %6 = vector.load %arg7[%c0_7, %c0_8] : memref<1x32xf32, #tpu.memory_space<vmem>>, vector<1x32xf32>
    %c0_9 = arith.constant 0 : index
    %c0_10 = arith.constant 0 : index
    %7 = vector.load %arg8[%c0_9, %c0_10] : memref<32x256xf32, #tpu.memory_space<vmem>>, vector<32x256xf32>
    %c0_11 = arith.constant 0 : index
    %c0_12 = arith.constant 0 : index
    %8 = vector.load %arg9[%c0_11, %c0_12] : memref<32x256xf32, #tpu.memory_space<vmem>>, vector<32x256xf32>
    %c0_13 = arith.constant 0 : index
    %c0_14 = arith.constant 0 : index
    %9 = vector.load %arg10[%c0_13, %c0_14] : memref<256x32xf32, #tpu.memory_space<vmem>>, vector<256x32xf32>
    %c0_15 = arith.constant 0 : index
    %c0_16 = arith.constant 0 : index
    %10 = vector.load %arg11[%c0_15, %c0_16] : memref<1x32xf32, #tpu.memory_space<vmem>>, vector<1x32xf32>
    %c0_17 = arith.constant 0 : index
    %c0_18 = arith.constant 0 : index
    %11 = vector.load %arg12[%c0_17, %c0_18] : memref<1x32xf32, #tpu.memory_space<vmem>>, vector<1x32xf32>
    %c0_19 = arith.constant 0 : index
    %c0_20 = arith.constant 0 : index
    %c0_21 = arith.constant 0 : index
    %c0_22 = arith.constant 0 : index
    %12 = vector.load %arg1[%c0_19, %c0_20, %c0_21, %c0_22] : memref<1x16x16x32xf32, #tpu.memory_space<vmem>>, vector<1x8x8x32xf32>
    %13 = vector.shape_cast %12 : vector<1x8x8x32xf32> to vector<8x8x32xf32>
    %14 = vector.shape_cast %13 : vector<8x8x32xf32> to vector<64x32xf32>
    %c0_23 = arith.constant 0 : index
    %c0_24 = arith.constant 0 : index
    %c0_25 = arith.constant 0 : index
    %c0_26 = arith.constant 0 : index
    %15 = vector.load %arg2[%c0_23, %c0_24, %c0_25, %c0_26] : memref<1x16x16x32xf32, #tpu.memory_space<vmem>>, vector<1x8x8x32xf32>
    %16 = vector.shape_cast %15 : vector<1x8x8x32xf32> to vector<8x8x32xf32>
    %17 = vector.shape_cast %16 : vector<8x8x32xf32> to vector<64x32xf32>
    %cst_27 = arith.constant dense<0.000000e+00> : vector<64x32xf32>
    %18 = tpu.matmul %14, %2, %cst_27 {dimension_numbers = #tpu.dot_dimension_numbers<[1], [0], [0], [1], [0, 0, 1, 1], [], []>} : vector<64x32xf32>, vector<32x32xf32>, vector<64x32xf32> -> vector<64x32xf32>
    %cst_28 = arith.constant dense<0.000000e+00> : vector<64x64xf32>
    %19 = tpu.matmul %17, %3, %cst_28 {dimension_numbers = #tpu.dot_dimension_numbers<[1], [0], [0], [1], [0, 0, 1, 1], [], []>} : vector<64x32xf32>, vector<32x64xf32>, vector<64x64xf32> -> vector<64x64xf32>
    %20 = vector.extract_strided_slice %19 {offsets = [0, 0], sizes = [64, 32], strides = [1, 1]} : vector<64x64xf32> to vector<64x32xf32>
    %21 = vector.extract_strided_slice %19 {offsets = [0, 32], sizes = [64, 32], strides = [1, 1]} : vector<64x64xf32> to vector<64x32xf32>
    %cst_29 = arith.constant dense<0.000000e+00> : vector<64x64xf32>
    %22 = tpu.matmul %18, %20, %cst_29 {dimension_numbers = #tpu.dot_dimension_numbers<[1], [1], [0], [0], [0, 0, 1, 0], [], []>} : vector<64x32xf32>, vector<64x32xf32>, vector<64x64xf32> -> vector<64x64xf32>
    %cst_30 = arith.constant dense<0xFF800000> : vector<64xf32>
    %23 = vector.multi_reduction <maximumf>, %22, %cst_30 [1] : vector<64x64xf32> to vector<64xf32>
    %24 = vector.shape_cast %23 : vector<64xf32> to vector<64x1xf32>
    %25 = vector.broadcast %24 : vector<64x1xf32> to vector<64x64xf32>
    %26 = arith.subf %22, %25 : vector<64x64xf32>
    %27 = math.exp %26 : vector<64x64xf32>
    %cst_31 = arith.constant dense<0.000000e+00> : vector<64xf32>
    %28 = vector.multi_reduction <add>, %27, %cst_31 [1] : vector<64x64xf32> to vector<64xf32>
    %29 = vector.shape_cast %28 : vector<64xf32> to vector<64x1xf32>
    %30 = tpu.reciprocal %29 {approx = true} : vector<64x1xf32> -> vector<64x1xf32>
    %31 = vector.broadcast %30 : vector<64x1xf32> to vector<64x64xf32>
    %32 = arith.mulf %27, %31 : vector<64x64xf32>
    %cst_32 = arith.constant dense<0.000000e+00> : vector<64x32xf32>
    %33 = tpu.matmul %32, %21, %cst_32 {dimension_numbers = #tpu.dot_dimension_numbers<[1], [0], [0], [1], [0, 0, 1, 1], [], []>} : vector<64x64xf32>, vector<64x32xf32>, vector<64x32xf32> -> vector<64x32xf32>
    %cst_33 = arith.constant dense<0.000000e+00> : vector<64x32xf32>
    %34 = tpu.matmul %33, %4, %cst_33 {dimension_numbers = #tpu.dot_dimension_numbers<[1], [0], [0], [1], [0, 0, 1, 1], [], []>} : vector<64x32xf32>, vector<32x32xf32>, vector<64x32xf32> -> vector<64x32xf32>
    %cst_34 = arith.constant dense<0.000000e+00> : vector<64xf32>
    %35 = vector.multi_reduction <add>, %34, %cst_34 [1] : vector<64x32xf32> to vector<64xf32>
    %36 = vector.shape_cast %35 : vector<64xf32> to vector<64x1xf32>
    %cst_35 = arith.constant 3.200000e+01 : f32
    %37 = vector.broadcast %cst_35 : f32 to vector<64x1xf32>
    %38 = arith.divf %36, %37 : vector<64x1xf32>
    %39 = vector.broadcast %38 : vector<64x1xf32> to vector<64x32xf32>
    %40 = arith.subf %34, %39 : vector<64x32xf32>
    %41 = arith.mulf %40, %40 : vector<64x32xf32>
    %cst_36 = arith.constant dense<0.000000e+00> : vector<64xf32>
    %42 = vector.multi_reduction <add>, %41, %cst_36 [1] : vector<64x32xf32> to vector<64xf32>
    %43 = vector.shape_cast %42 : vector<64xf32> to vector<64x1xf32>
    %cst_37 = arith.constant 3.200000e+01 : f32
    %44 = vector.broadcast %cst_37 : f32 to vector<64x1xf32>
    %45 = arith.divf %43, %44 : vector<64x1xf32>
    %46 = vector.broadcast %38 : vector<64x1xf32> to vector<64x32xf32>
    %47 = arith.subf %34, %46 : vector<64x32xf32>
    %cst_38 = arith.constant 9.99999974E-6 : f32
    %48 = vector.broadcast %cst_38 : f32 to vector<64x1xf32>
    %49 = arith.addf %45, %48 : vector<64x1xf32>
    %50 = math.rsqrt %49 : vector<64x1xf32>
    %51 = vector.broadcast %50 : vector<64x1xf32> to vector<64x32xf32>
    %52 = arith.mulf %47, %51 : vector<64x32xf32>
    %53 = vector.broadcast %5 : vector<1x32xf32> to vector<64x32xf32>
    %54 = arith.mulf %52, %53 : vector<64x32xf32>
    %55 = vector.broadcast %6 : vector<1x32xf32> to vector<64x32xf32>
    %56 = arith.addf %54, %55 : vector<64x32xf32>
    %cst_39 = arith.constant dense<0.000000e+00> : vector<64x256xf32>
    %57 = tpu.matmul %14, %7, %cst_39 {dimension_numbers = #tpu.dot_dimension_numbers<[1], [0], [0], [1], [0, 0, 1, 1], [], []>} : vector<64x32xf32>, vector<32x256xf32>, vector<64x256xf32> -> vector<64x256xf32>
    %cst_40 = arith.constant dense<0.000000e+00> : vector<64x256xf32>
    %58 = tpu.matmul %56, %8, %cst_40 {dimension_numbers = #tpu.dot_dimension_numbers<[1], [0], [0], [1], [0, 0, 1, 1], [], []>} : vector<64x32xf32>, vector<32x256xf32>, vector<64x256xf32> -> vector<64x256xf32>
    %59 = arith.addf %57, %58 : vector<64x256xf32>
    %cst_41 = arith.constant 5.000000e-01 : f32
    %60 = vector.broadcast %cst_41 : f32 to vector<64x256xf32>
    %61 = arith.mulf %60, %59 : vector<64x256xf32>
    %cst_42 = arith.constant 0.707106769 : f32
    %62 = vector.broadcast %cst_42 : f32 to vector<64x256xf32>
    %63 = arith.mulf %59, %62 : vector<64x256xf32>
    %64 = math.erf %63 : vector<64x256xf32>
    %cst_43 = arith.constant 1.000000e+00 : f32
    %65 = vector.broadcast %cst_43 : f32 to vector<64x256xf32>
    %66 = arith.addf %65, %64 : vector<64x256xf32>
    %67 = arith.mulf %61, %66 : vector<64x256xf32>
    %cst_44 = arith.constant dense<0.000000e+00> : vector<64x32xf32>
    %68 = tpu.matmul %67, %9, %cst_44 {dimension_numbers = #tpu.dot_dimension_numbers<[1], [0], [0], [1], [0, 0, 1, 1], [], []>} : vector<64x256xf32>, vector<256x32xf32>, vector<64x32xf32> -> vector<64x32xf32>
    %cst_45 = arith.constant dense<0.000000e+00> : vector<64xf32>
    %69 = vector.multi_reduction <add>, %68, %cst_45 [1] : vector<64x32xf32> to vector<64xf32>
    %70 = vector.shape_cast %69 : vector<64xf32> to vector<64x1xf32>
    %cst_46 = arith.constant 3.200000e+01 : f32
    %71 = vector.broadcast %cst_46 : f32 to vector<64x1xf32>
    %72 = arith.divf %70, %71 : vector<64x1xf32>
    %73 = vector.broadcast %72 : vector<64x1xf32> to vector<64x32xf32>
    %74 = arith.subf %68, %73 : vector<64x32xf32>
    %75 = arith.mulf %74, %74 : vector<64x32xf32>
    %cst_47 = arith.constant dense<0.000000e+00> : vector<64xf32>
    %76 = vector.multi_reduction <add>, %75, %cst_47 [1] : vector<64x32xf32> to vector<64xf32>
    %77 = vector.shape_cast %76 : vector<64xf32> to vector<64x1xf32>
    %cst_48 = arith.constant 3.200000e+01 : f32
    %78 = vector.broadcast %cst_48 : f32 to vector<64x1xf32>
    %79 = arith.divf %77, %78 : vector<64x1xf32>
    %80 = vector.broadcast %72 : vector<64x1xf32> to vector<64x32xf32>
    %81 = arith.subf %68, %80 : vector<64x32xf32>
    %cst_49 = arith.constant 9.99999974E-6 : f32
    %82 = vector.broadcast %cst_49 : f32 to vector<64x1xf32>
    %83 = arith.addf %79, %82 : vector<64x1xf32>
    %84 = math.rsqrt %83 : vector<64x1xf32>
    %85 = vector.broadcast %84 : vector<64x1xf32> to vector<64x32xf32>
    %86 = arith.mulf %81, %85 : vector<64x32xf32>
    %87 = vector.broadcast %10 : vector<1x32xf32> to vector<64x32xf32>
    %88 = arith.mulf %86, %87 : vector<64x32xf32>
    %89 = vector.broadcast %11 : vector<1x32xf32> to vector<64x32xf32>
    %90 = arith.addf %88, %89 : vector<64x32xf32>
    %91 = arith.addf %14, %90 : vector<64x32xf32>
    %92 = vector.shape_cast %91 : vector<64x32xf32> to vector<8x8x32xf32>
    %c0_50 = arith.constant 0 : index
    %c0_51 = arith.constant 0 : index
    %c0_52 = arith.constant 0 : index
    %c0_53 = arith.constant 0 : index
    %93 = vector.load %arg13[%c0_50, %c0_51, %c0_52, %c0_53] : memref<1x16x16x32xf32, #tpu.memory_space<vmem>>, vector<1x8x8x32xf32>
    %94 = vector.shape_cast %93 : vector<1x8x8x32xf32> to vector<8x8x32xf32>
    %95 = vector.shape_cast %92 : vector<8x8x32xf32> to vector<1x8x8x32xf32>
    tpu.vector_store %arg13[%c0_50, %c0_51, %c0_52, %c0_53], %95 {strides = array<i32>} : memref<1x16x16x32xf32, #tpu.memory_space<vmem>>, vector<1x8x8x32xf32>,
    %c0_54 = arith.constant 0 : index
    %c0_55 = arith.constant 0 : index
    %c8 = arith.constant 8 : index
    %c0_56 = arith.constant 0 : index
    %96 = vector.load %arg1[%c0_54, %c0_55, %c8, %c0_56] : memref<1x16x16x32xf32, #tpu.memory_space<vmem>>, vector<1x8x8x32xf32>
    %97 = vector.shape_cast %96 : vector<1x8x8x32xf32> to vector<8x8x32xf32>
    %98 = vector.shape_cast %97 : vector<8x8x32xf32> to vector<64x32xf32>
    %c0_57 = arith.constant 0 : index
    %c0_58 = arith.constant 0 : index
    %c8_59 = arith.constant 8 : index
    %c0_60 = arith.constant 0 : index
    %99 = vector.load %arg2[%c0_57, %c0_58, %c8_59, %c0_60] : memref<1x16x16x32xf32, #tpu.memory_space<vmem>>, vector<1x8x8x32xf32>
    %100 = vector.shape_cast %99 : vector<1x8x8x32xf32> to vector<8x8x32xf32>
    %101 = vector.shape_cast %100 : vector<8x8x32xf32> to vector<64x32xf32>
    %cst_61 = arith.constant dense<0.000000e+00> : vector<64x32xf32>
    %102 = tpu.matmul %98, %2, %cst_61 {dimension_numbers = #tpu.dot_dimension_numbers<[1], [0], [0], [1], [0, 0, 1, 1], [], []>} : vector<64x32xf32>, vector<32x32xf32>, vector<64x32xf32> -> vector<64x32xf32>
    %cst_62 = arith.constant dense<0.000000e+00> : vector<64x64xf32>
    %103 = tpu.matmul %101, %3, %cst_62 {dimension_numbers = #tpu.dot_dimension_numbers<[1], [0], [0], [1], [0, 0, 1, 1], [], []>} : vector<64x32xf32>, vector<32x64xf32>, vector<64x64xf32> -> vector<64x64xf32>
    %104 = vector.extract_strided_slice %103 {offsets = [0, 0], sizes = [64, 32], strides = [1, 1]} : vector<64x64xf32> to vector<64x32xf32>
    %105 = vector.extract_strided_slice %103 {offsets = [0, 32], sizes = [64, 32], strides = [1, 1]} : vector<64x64xf32> to vector<64x32xf32>
    %cst_63 = arith.constant dense<0.000000e+00> : vector<64x64xf32>
    %106 = tpu.matmul %102, %104, %cst_63 {dimension_numbers = #tpu.dot_dimension_numbers<[1], [1], [0], [0], [0, 0, 1, 0], [], []>} : vector<64x32xf32>, vector<64x32xf32>, vector<64x64xf32> -> vector<64x64xf32>
    %cst_64 = arith.constant dense<0xFF800000> : vector<64xf32>
    %107 = vector.multi_reduction <maximumf>, %106, %cst_64 [1] : vector<64x64xf32> to vector<64xf32>
    %108 = vector.shape_cast %107 : vector<64xf32> to vector<64x1xf32>
    %109 = vector.broadcast %108 : vector<64x1xf32> to vector<64x64xf32>
    %110 = arith.subf %106, %109 : vector<64x64xf32>
    %111 = math.exp %110 : vector<64x64xf32>
    %cst_65 = arith.constant dense<0.000000e+00> : vector<64xf32>
    %112 = vector.multi_reduction <add>, %111, %cst_65 [1] : vector<64x64xf32> to vector<64xf32>
    %113 = vector.shape_cast %112 : vector<64xf32> to vector<64x1xf32>
    %114 = tpu.reciprocal %113 {approx = true} : vector<64x1xf32> -> vector<64x1xf32>
    %115 = vector.broadcast %114 : vector<64x1xf32> to vector<64x64xf32>
    %116 = arith.mulf %111, %115 : vector<64x64xf32>
    %cst_66 = arith.constant dense<0.000000e+00> : vector<64x32xf32>
    %117 = tpu.matmul %116, %105, %cst_66 {dimension_numbers = #tpu.dot_dimension_numbers<[1], [0], [0], [1], [0, 0, 1, 1], [], []>} : vector<64x64xf32>, vector<64x32xf32>, vector<64x32xf32> -> vector<64x32xf32>
    %cst_67 = arith.constant dense<0.000000e+00> : vector<64x32xf32>
    %118 = tpu.matmul %117, %4, %cst_67 {dimension_numbers = #tpu.dot_dimension_numbers<[1], [0], [0], [1], [0, 0, 1, 1], [], []>} : vector<64x32xf32>, vector<32x32xf32>, vector<64x32xf32> -> vector<64x32xf32>
    %cst_68 = arith.constant dense<0.000000e+00> : vector<64xf32>
    %119 = vector.multi_reduction <add>, %118, %cst_68 [1] : vector<64x32xf32> to vector<64xf32>
    %120 = vector.shape_cast %119 : vector<64xf32> to vector<64x1xf32>
    %cst_69 = arith.constant 3.200000e+01 : f32
    %121 = vector.broadcast %cst_69 : f32 to vector<64x1xf32>
    %122 = arith.divf %120, %121 : vector<64x1xf32>
    %123 = vector.broadcast %122 : vector<64x1xf32> to vector<64x32xf32>
    %124 = arith.subf %118, %123 : vector<64x32xf32>
    %125 = arith.mulf %124, %124 : vector<64x32xf32>
    %cst_70 = arith.constant dense<0.000000e+00> : vector<64xf32>
    %126 = vector.multi_reduction <add>, %125, %cst_70 [1] : vector<64x32xf32> to vector<64xf32>
    %127 = vector.shape_cast %126 : vector<64xf32> to vector<64x1xf32>
    %cst_71 = arith.constant 3.200000e+01 : f32
    %128 = vector.broadcast %cst_71 : f32 to vector<64x1xf32>
    %129 = arith.divf %127, %128 : vector<64x1xf32>
    %130 = vector.broadcast %122 : vector<64x1xf32> to vector<64x32xf32>
    %131 = arith.subf %118, %130 : vector<64x32xf32>
    %cst_72 = arith.constant 9.99999974E-6 : f32
    %132 = vector.broadcast %cst_72 : f32 to vector<64x1xf32>
    %133 = arith.addf %129, %132 : vector<64x1xf32>
    %134 = math.rsqrt %133 : vector<64x1xf32>
    %135 = vector.broadcast %134 : vector<64x1xf32> to vector<64x32xf32>
    %136 = arith.mulf %131, %135 : vector<64x32xf32>
    %137 = vector.broadcast %5 : vector<1x32xf32> to vector<64x32xf32>
    %138 = arith.mulf %136, %137 : vector<64x32xf32>
    %139 = vector.broadcast %6 : vector<1x32xf32> to vector<64x32xf32>
    %140 = arith.addf %138, %139 : vector<64x32xf32>
    %cst_73 = arith.constant dense<0.000000e+00> : vector<64x256xf32>
    %141 = tpu.matmul %98, %7, %cst_73 {dimension_numbers = #tpu.dot_dimension_numbers<[1], [0], [0], [1], [0, 0, 1, 1], [], []>} : vector<64x32xf32>, vector<32x256xf32>, vector<64x256xf32> -> vector<64x256xf32>
    %cst_74 = arith.constant dense<0.000000e+00> : vector<64x256xf32>
    %142 = tpu.matmul %140, %8, %cst_74 {dimension_numbers = #tpu.dot_dimension_numbers<[1], [0], [0], [1], [0, 0, 1, 1], [], []>} : vector<64x32xf32>, vector<32x256xf32>, vector<64x256xf32> -> vector<64x256xf32>
    %143 = arith.addf %141, %142 : vector<64x256xf32>
    %cst_75 = arith.constant 5.000000e-01 : f32
    %144 = vector.broadcast %cst_75 : f32 to vector<64x256xf32>
    %145 = arith.mulf %144, %143 : vector<64x256xf32>
    %cst_76 = arith.constant 0.707106769 : f32
    %146 = vector.broadcast %cst_76 : f32 to vector<64x256xf32>
    %147 = arith.mulf %143, %146 : vector<64x256xf32>
    %148 = math.erf %147 : vector<64x256xf32>
    %cst_77 = arith.constant 1.000000e+00 : f32
    %149 = vector.broadcast %cst_77 : f32 to vector<64x256xf32>
    %150 = arith.addf %149, %148 : vector<64x256xf32>
    %151 = arith.mulf %145, %150 : vector<64x256xf32>
    %cst_78 = arith.constant dense<0.000000e+00> : vector<64x32xf32>
    %152 = tpu.matmul %151, %9, %cst_78 {dimension_numbers = #tpu.dot_dimension_numbers<[1], [0], [0], [1], [0, 0, 1, 1], [], []>} : vector<64x256xf32>, vector<256x32xf32>, vector<64x32xf32> -> vector<64x32xf32>
    %cst_79 = arith.constant dense<0.000000e+00> : vector<64xf32>
    %153 = vector.multi_reduction <add>, %152, %cst_79 [1] : vector<64x32xf32> to vector<64xf32>
    %154 = vector.shape_cast %153 : vector<64xf32> to vector<64x1xf32>
    %cst_80 = arith.constant 3.200000e+01 : f32
    %155 = vector.broadcast %cst_80 : f32 to vector<64x1xf32>
    %156 = arith.divf %154, %155 : vector<64x1xf32>
    %157 = vector.broadcast %156 : vector<64x1xf32> to vector<64x32xf32>
    %158 = arith.subf %152, %157 : vector<64x32xf32>
    %159 = arith.mulf %158, %158 : vector<64x32xf32>
    %cst_81 = arith.constant dense<0.000000e+00> : vector<64xf32>
    %160 = vector.multi_reduction <add>, %159, %cst_81 [1] : vector<64x32xf32> to vector<64xf32>
    %161 = vector.shape_cast %160 : vector<64xf32> to vector<64x1xf32>
    %cst_82 = arith.constant 3.200000e+01 : f32
    %162 = vector.broadcast %cst_82 : f32 to vector<64x1xf32>
    %163 = arith.divf %161, %162 : vector<64x1xf32>
    %164 = vector.broadcast %156 : vector<64x1xf32> to vector<64x32xf32>
    %165 = arith.subf %152, %164 : vector<64x32xf32>
    %cst_83 = arith.constant 9.99999974E-6 : f32
    %166 = vector.broadcast %cst_83 : f32 to vector<64x1xf32>
    %167 = arith.addf %163, %166 : vector<64x1xf32>
    %168 = math.rsqrt %167 : vector<64x1xf32>
    %169 = vector.broadcast %168 : vector<64x1xf32> to vector<64x32xf32>
    %170 = arith.mulf %165, %169 : vector<64x32xf32>
    %171 = vector.broadcast %10 : vector<1x32xf32> to vector<64x32xf32>
    %172 = arith.mulf %170, %171 : vector<64x32xf32>
    %173 = vector.broadcast %11 : vector<1x32xf32> to vector<64x32xf32>
    %174 = arith.addf %172, %173 : vector<64x32xf32>
    %175 = arith.addf %98, %174 : vector<64x32xf32>
    %176 = vector.shape_cast %175 : vector<64x32xf32> to vector<8x8x32xf32>
    %c0_84 = arith.constant 0 : index
    %c0_85 = arith.constant 0 : index
    %c8_86 = arith.constant 8 : index
    %c0_87 = arith.constant 0 : index
    %177 = vector.load %arg13[%c0_84, %c0_85, %c8_86, %c0_87] : memref<1x16x16x32xf32, #tpu.memory_space<vmem>>, vector<1x8x8x32xf32>
    %178 = vector.shape_cast %177 : vector<1x8x8x32xf32> to vector<8x8x32xf32>
    %179 = vector.shape_cast %176 : vector<8x8x32xf32> to vector<1x8x8x32xf32>
    tpu.vector_store %arg13[%c0_84, %c0_85, %c8_86, %c0_87], %179 {strides = array<i32>} : memref<1x16x16x32xf32, #tpu.memory_space<vmem>>, vector<1x8x8x32xf32>,
    %c0_88 = arith.constant 0 : index
    %c8_89 = arith.constant 8 : index
    %c0_90 = arith.constant 0 : index
    %c0_91 = arith.constant 0 : index
    %180 = vector.load %arg1[%c0_88, %c8_89, %c0_90, %c0_91] : memref<1x16x16x32xf32, #tpu.memory_space<vmem>>, vector<1x8x8x32xf32>
    %181 = vector.shape_cast %180 : vector<1x8x8x32xf32> to vector<8x8x32xf32>
    %182 = vector.shape_cast %181 : vector<8x8x32xf32> to vector<64x32xf32>
    %c0_92 = arith.constant 0 : index
    %c8_93 = arith.constant 8 : index
    %c0_94 = arith.constant 0 : index
    %c0_95 = arith.constant 0 : index
    %183 = vector.load %arg2[%c0_92, %c8_93, %c0_94, %c0_95] : memref<1x16x16x32xf32, #tpu.memory_space<vmem>>, vector<1x8x8x32xf32>
    %184 = vector.shape_cast %183 : vector<1x8x8x32xf32> to vector<8x8x32xf32>
    %185 = vector.shape_cast %184 : vector<8x8x32xf32> to vector<64x32xf32>
    %cst_96 = arith.constant dense<0.000000e+00> : vector<64x32xf32>
    %186 = tpu.matmul %182, %2, %cst_96 {dimension_numbers = #tpu.dot_dimension_numbers<[1], [0], [0], [1], [0, 0, 1, 1], [], []>} : vector<64x32xf32>, vector<32x32xf32>, vector<64x32xf32> -> vector<64x32xf32>
    %cst_97 = arith.constant dense<0.000000e+00> : vector<64x64xf32>
    %187 = tpu.matmul %185, %3, %cst_97 {dimension_numbers = #tpu.dot_dimension_numbers<[1], [0], [0], [1], [0, 0, 1, 1], [], []>} : vector<64x32xf32>, vector<32x64xf32>, vector<64x64xf32> -> vector<64x64xf32>
    %188 = vector.extract_strided_slice %187 {offsets = [0, 0], sizes = [64, 32], strides = [1, 1]} : vector<64x64xf32> to vector<64x32xf32>
    %189 = vector.extract_strided_slice %187 {offsets = [0, 32], sizes = [64, 32], strides = [1, 1]} : vector<64x64xf32> to vector<64x32xf32>
    %cst_98 = arith.constant dense<0.000000e+00> : vector<64x64xf32>
    %190 = tpu.matmul %186, %188, %cst_98 {dimension_numbers = #tpu.dot_dimension_numbers<[1], [1], [0], [0], [0, 0, 1, 0], [], []>} : vector<64x32xf32>, vector<64x32xf32>, vector<64x64xf32> -> vector<64x64xf32>
    %cst_99 = arith.constant dense<0xFF800000> : vector<64xf32>
    %191 = vector.multi_reduction <maximumf>, %190, %cst_99 [1] : vector<64x64xf32> to vector<64xf32>
    %192 = vector.shape_cast %191 : vector<64xf32> to vector<64x1xf32>
    %193 = vector.broadcast %192 : vector<64x1xf32> to vector<64x64xf32>
    %194 = arith.subf %190, %193 : vector<64x64xf32>
    %195 = math.exp %194 : vector<64x64xf32>
    %cst_100 = arith.constant dense<0.000000e+00> : vector<64xf32>
    %196 = vector.multi_reduction <add>, %195, %cst_100 [1] : vector<64x64xf32> to vector<64xf32>
    %197 = vector.shape_cast %196 : vector<64xf32> to vector<64x1xf32>
    %198 = tpu.reciprocal %197 {approx = true} : vector<64x1xf32> -> vector<64x1xf32>
    %199 = vector.broadcast %198 : vector<64x1xf32> to vector<64x64xf32>
    %200 = arith.mulf %195, %199 : vector<64x64xf32>
    %cst_101 = arith.constant dense<0.000000e+00> : vector<64x32xf32>
    %201 = tpu.matmul %200, %189, %cst_101 {dimension_numbers = #tpu.dot_dimension_numbers<[1], [0], [0], [1], [0, 0, 1, 1], [], []>} : vector<64x64xf32>, vector<64x32xf32>, vector<64x32xf32> -> vector<64x32xf32>
    %cst_102 = arith.constant dense<0.000000e+00> : vector<64x32xf32>
    %202 = tpu.matmul %201, %4, %cst_102 {dimension_numbers = #tpu.dot_dimension_numbers<[1], [0], [0], [1], [0, 0, 1, 1], [], []>} : vector<64x32xf32>, vector<32x32xf32>, vector<64x32xf32> -> vector<64x32xf32>
    %cst_103 = arith.constant dense<0.000000e+00> : vector<64xf32>
    %203 = vector.multi_reduction <add>, %202, %cst_103 [1] : vector<64x32xf32> to vector<64xf32>
    %204 = vector.shape_cast %203 : vector<64xf32> to vector<64x1xf32>
    %cst_104 = arith.constant 3.200000e+01 : f32
    %205 = vector.broadcast %cst_104 : f32 to vector<64x1xf32>
    %206 = arith.divf %204, %205 : vector<64x1xf32>
    %207 = vector.broadcast %206 : vector<64x1xf32> to vector<64x32xf32>
    %208 = arith.subf %202, %207 : vector<64x32xf32>
    %209 = arith.mulf %208, %208 : vector<64x32xf32>
    %cst_105 = arith.constant dense<0.000000e+00> : vector<64xf32>
    %210 = vector.multi_reduction <add>, %209, %cst_105 [1] : vector<64x32xf32> to vector<64xf32>
    %211 = vector.shape_cast %210 : vector<64xf32> to vector<64x1xf32>
    %cst_106 = arith.constant 3.200000e+01 : f32
    %212 = vector.broadcast %cst_106 : f32 to vector<64x1xf32>
    %213 = arith.divf %211, %212 : vector<64x1xf32>
    %214 = vector.broadcast %206 : vector<64x1xf32> to vector<64x32xf32>
    %215 = arith.subf %202, %214 : vector<64x32xf32>
    %cst_107 = arith.constant 9.99999974E-6 : f32
    %216 = vector.broadcast %cst_107 : f32 to vector<64x1xf32>
    %217 = arith.addf %213, %216 : vector<64x1xf32>
    %218 = math.rsqrt %217 : vector<64x1xf32>
    %219 = vector.broadcast %218 : vector<64x1xf32> to vector<64x32xf32>
    %220 = arith.mulf %215, %219 : vector<64x32xf32>
    %221 = vector.broadcast %5 : vector<1x32xf32> to vector<64x32xf32>
    %222 = arith.mulf %220, %221 : vector<64x32xf32>
    %223 = vector.broadcast %6 : vector<1x32xf32> to vector<64x32xf32>
    %224 = arith.addf %222, %223 : vector<64x32xf32>
    %cst_108 = arith.constant dense<0.000000e+00> : vector<64x256xf32>
    %225 = tpu.matmul %182, %7, %cst_108 {dimension_numbers = #tpu.dot_dimension_numbers<[1], [0], [0], [1], [0, 0, 1, 1], [], []>} : vector<64x32xf32>, vector<32x256xf32>, vector<64x256xf32> -> vector<64x256xf32>
    %cst_109 = arith.constant dense<0.000000e+00> : vector<64x256xf32>
    %226 = tpu.matmul %224, %8, %cst_109 {dimension_numbers = #tpu.dot_dimension_numbers<[1], [0], [0], [1], [0, 0, 1, 1], [], []>} : vector<64x32xf32>, vector<32x256xf32>, vector<64x256xf32> -> vector<64x256xf32>
    %227 = arith.addf %225, %226 : vector<64x256xf32>
    %cst_110 = arith.constant 5.000000e-01 : f32
    %228 = vector.broadcast %cst_110 : f32 to vector<64x256xf32>
    %229 = arith.mulf %228, %227 : vector<64x256xf32>
    %cst_111 = arith.constant 0.707106769 : f32
    %230 = vector.broadcast %cst_111 : f32 to vector<64x256xf32>
    %231 = arith.mulf %227, %230 : vector<64x256xf32>
    %232 = math.erf %231 : vector<64x256xf32>
    %cst_112 = arith.constant 1.000000e+00 : f32
    %233 = vector.broadcast %cst_112 : f32 to vector<64x256xf32>
    %234 = arith.addf %233, %232 : vector<64x256xf32>
    %235 = arith.mulf %229, %234 : vector<64x256xf32>
    %cst_113 = arith.constant dense<0.000000e+00> : vector<64x32xf32>
    %236 = tpu.matmul %235, %9, %cst_113 {dimension_numbers = #tpu.dot_dimension_numbers<[1], [0], [0], [1], [0, 0, 1, 1], [], []>} : vector<64x256xf32>, vector<256x32xf32>, vector<64x32xf32> -> vector<64x32xf32>
    %cst_114 = arith.constant dense<0.000000e+00> : vector<64xf32>
    %237 = vector.multi_reduction <add>, %236, %cst_114 [1] : vector<64x32xf32> to vector<64xf32>
    %238 = vector.shape_cast %237 : vector<64xf32> to vector<64x1xf32>
    %cst_115 = arith.constant 3.200000e+01 : f32
    %239 = vector.broadcast %cst_115 : f32 to vector<64x1xf32>
    %240 = arith.divf %238, %239 : vector<64x1xf32>
    %241 = vector.broadcast %240 : vector<64x1xf32> to vector<64x32xf32>
    %242 = arith.subf %236, %241 : vector<64x32xf32>
    %243 = arith.mulf %242, %242 : vector<64x32xf32>
    %cst_116 = arith.constant dense<0.000000e+00> : vector<64xf32>
    %244 = vector.multi_reduction <add>, %243, %cst_116 [1] : vector<64x32xf32> to vector<64xf32>
    %245 = vector.shape_cast %244 : vector<64xf32> to vector<64x1xf32>
    %cst_117 = arith.constant 3.200000e+01 : f32
    %246 = vector.broadcast %cst_117 : f32 to vector<64x1xf32>
    %247 = arith.divf %245, %246 : vector<64x1xf32>
    %248 = vector.broadcast %240 : vector<64x1xf32> to vector<64x32xf32>
    %249 = arith.subf %236, %248 : vector<64x32xf32>
    %cst_118 = arith.constant 9.99999974E-6 : f32
    %250 = vector.broadcast %cst_118 : f32 to vector<64x1xf32>
    %251 = arith.addf %247, %250 : vector<64x1xf32>
    %252 = math.rsqrt %251 : vector<64x1xf32>
    %253 = vector.broadcast %252 : vector<64x1xf32> to vector<64x32xf32>
    %254 = arith.mulf %249, %253 : vector<64x32xf32>
    %255 = vector.broadcast %10 : vector<1x32xf32> to vector<64x32xf32>
    %256 = arith.mulf %254, %255 : vector<64x32xf32>
    %257 = vector.broadcast %11 : vector<1x32xf32> to vector<64x32xf32>
    %258 = arith.addf %256, %257 : vector<64x32xf32>
    %259 = arith.addf %182, %258 : vector<64x32xf32>
    %260 = vector.shape_cast %259 : vector<64x32xf32> to vector<8x8x32xf32>
    %c0_119 = arith.constant 0 : index
    %c8_120 = arith.constant 8 : index
    %c0_121 = arith.constant 0 : index
    %c0_122 = arith.constant 0 : index
    %261 = vector.load %arg13[%c0_119, %c8_120, %c0_121, %c0_122] : memref<1x16x16x32xf32, #tpu.memory_space<vmem>>, vector<1x8x8x32xf32>
    %262 = vector.shape_cast %261 : vector<1x8x8x32xf32> to vector<8x8x32xf32>
    %263 = vector.shape_cast %260 : vector<8x8x32xf32> to vector<1x8x8x32xf32>
    tpu.vector_store %arg13[%c0_119, %c8_120, %c0_121, %c0_122], %263 {strides = array<i32>} : memref<1x16x16x32xf32, #tpu.memory_space<vmem>>, vector<1x8x8x32xf32>,
    %c0_123 = arith.constant 0 : index
    %c8_124 = arith.constant 8 : index
    %c8_125 = arith.constant 8 : index
    %c0_126 = arith.constant 0 : index
    %264 = vector.load %arg1[%c0_123, %c8_124, %c8_125, %c0_126] : memref<1x16x16x32xf32, #tpu.memory_space<vmem>>, vector<1x8x8x32xf32>
    %265 = vector.shape_cast %264 : vector<1x8x8x32xf32> to vector<8x8x32xf32>
    %266 = vector.shape_cast %265 : vector<8x8x32xf32> to vector<64x32xf32>
    %c0_127 = arith.constant 0 : index
    %c8_128 = arith.constant 8 : index
    %c8_129 = arith.constant 8 : index
    %c0_130 = arith.constant 0 : index
    %267 = vector.load %arg2[%c0_127, %c8_128, %c8_129, %c0_130] : memref<1x16x16x32xf32, #tpu.memory_space<vmem>>, vector<1x8x8x32xf32>
    %268 = vector.shape_cast %267 : vector<1x8x8x32xf32> to vector<8x8x32xf32>
    %269 = vector.shape_cast %268 : vector<8x8x32xf32> to vector<64x32xf32>
    %cst_131 = arith.constant dense<0.000000e+00> : vector<64x32xf32>
    %270 = tpu.matmul %266, %2, %cst_131 {dimension_numbers = #tpu.dot_dimension_numbers<[1], [0], [0], [1], [0, 0, 1, 1], [], []>} : vector<64x32xf32>, vector<32x32xf32>, vector<64x32xf32> -> vector<64x32xf32>
    %cst_132 = arith.constant dense<0.000000e+00> : vector<64x64xf32>
    %271 = tpu.matmul %269, %3, %cst_132 {dimension_numbers = #tpu.dot_dimension_numbers<[1], [0], [0], [1], [0, 0, 1, 1], [], []>} : vector<64x32xf32>, vector<32x64xf32>, vector<64x64xf32> -> vector<64x64xf32>
    %272 = vector.extract_strided_slice %271 {offsets = [0, 0], sizes = [64, 32], strides = [1, 1]} : vector<64x64xf32> to vector<64x32xf32>
    %273 = vector.extract_strided_slice %271 {offsets = [0, 32], sizes = [64, 32], strides = [1, 1]} : vector<64x64xf32> to vector<64x32xf32>
    %cst_133 = arith.constant dense<0.000000e+00> : vector<64x64xf32>
    %274 = tpu.matmul %270, %272, %cst_133 {dimension_numbers = #tpu.dot_dimension_numbers<[1], [1], [0], [0], [0, 0, 1, 0], [], []>} : vector<64x32xf32>, vector<64x32xf32>, vector<64x64xf32> -> vector<64x64xf32>
    %cst_134 = arith.constant dense<0xFF800000> : vector<64xf32>
    %275 = vector.multi_reduction <maximumf>, %274, %cst_134 [1] : vector<64x64xf32> to vector<64xf32>
    %276 = vector.shape_cast %275 : vector<64xf32> to vector<64x1xf32>
    %277 = vector.broadcast %276 : vector<64x1xf32> to vector<64x64xf32>
    %278 = arith.subf %274, %277 : vector<64x64xf32>
    %279 = math.exp %278 : vector<64x64xf32>
    %cst_135 = arith.constant dense<0.000000e+00> : vector<64xf32>
    %280 = vector.multi_reduction <add>, %279, %cst_135 [1] : vector<64x64xf32> to vector<64xf32>
    %281 = vector.shape_cast %280 : vector<64xf32> to vector<64x1xf32>
    %282 = tpu.reciprocal %281 {approx = true} : vector<64x1xf32> -> vector<64x1xf32>
    %283 = vector.broadcast %282 : vector<64x1xf32> to vector<64x64xf32>
    %284 = arith.mulf %279, %283 : vector<64x64xf32>
    %cst_136 = arith.constant dense<0.000000e+00> : vector<64x32xf32>
    %285 = tpu.matmul %284, %273, %cst_136 {dimension_numbers = #tpu.dot_dimension_numbers<[1], [0], [0], [1], [0, 0, 1, 1], [], []>} : vector<64x64xf32>, vector<64x32xf32>, vector<64x32xf32> -> vector<64x32xf32>
    %cst_137 = arith.constant dense<0.000000e+00> : vector<64x32xf32>
    %286 = tpu.matmul %285, %4, %cst_137 {dimension_numbers = #tpu.dot_dimension_numbers<[1], [0], [0], [1], [0, 0, 1, 1], [], []>} : vector<64x32xf32>, vector<32x32xf32>, vector<64x32xf32> -> vector<64x32xf32>
    %cst_138 = arith.constant dense<0.000000e+00> : vector<64xf32>
    %287 = vector.multi_reduction <add>, %286, %cst_138 [1] : vector<64x32xf32> to vector<64xf32>
    %288 = vector.shape_cast %287 : vector<64xf32> to vector<64x1xf32>
    %cst_139 = arith.constant 3.200000e+01 : f32
    %289 = vector.broadcast %cst_139 : f32 to vector<64x1xf32>
    %290 = arith.divf %288, %289 : vector<64x1xf32>
    %291 = vector.broadcast %290 : vector<64x1xf32> to vector<64x32xf32>
    %292 = arith.subf %286, %291 : vector<64x32xf32>
    %293 = arith.mulf %292, %292 : vector<64x32xf32>
    %cst_140 = arith.constant dense<0.000000e+00> : vector<64xf32>
    %294 = vector.multi_reduction <add>, %293, %cst_140 [1] : vector<64x32xf32> to vector<64xf32>
    %295 = vector.shape_cast %294 : vector<64xf32> to vector<64x1xf32>
    %cst_141 = arith.constant 3.200000e+01 : f32
    %296 = vector.broadcast %cst_141 : f32 to vector<64x1xf32>
    %297 = arith.divf %295, %296 : vector<64x1xf32>
    %298 = vector.broadcast %290 : vector<64x1xf32> to vector<64x32xf32>
    %299 = arith.subf %286, %298 : vector<64x32xf32>
    %cst_142 = arith.constant 9.99999974E-6 : f32
    %300 = vector.broadcast %cst_142 : f32 to vector<64x1xf32>
    %301 = arith.addf %297, %300 : vector<64x1xf32>
    %302 = math.rsqrt %301 : vector<64x1xf32>
    %303 = vector.broadcast %302 : vector<64x1xf32> to vector<64x32xf32>
    %304 = arith.mulf %299, %303 : vector<64x32xf32>
    %305 = vector.broadcast %5 : vector<1x32xf32> to vector<64x32xf32>
    %306 = arith.mulf %304, %305 : vector<64x32xf32>
    %307 = vector.broadcast %6 : vector<1x32xf32> to vector<64x32xf32>
    %308 = arith.addf %306, %307 : vector<64x32xf32>
    %cst_143 = arith.constant dense<0.000000e+00> : vector<64x256xf32>
    %309 = tpu.matmul %266, %7, %cst_143 {dimension_numbers = #tpu.dot_dimension_numbers<[1], [0], [0], [1], [0, 0, 1, 1], [], []>} : vector<64x32xf32>, vector<32x256xf32>, vector<64x256xf32> -> vector<64x256xf32>
    %cst_144 = arith.constant dense<0.000000e+00> : vector<64x256xf32>
    %310 = tpu.matmul %308, %8, %cst_144 {dimension_numbers = #tpu.dot_dimension_numbers<[1], [0], [0], [1], [0, 0, 1, 1], [], []>} : vector<64x32xf32>, vector<32x256xf32>, vector<64x256xf32> -> vector<64x256xf32>
    %311 = arith.addf %309, %310 : vector<64x256xf32>
    %cst_145 = arith.constant 5.000000e-01 : f32
    %312 = vector.broadcast %cst_145 : f32 to vector<64x256xf32>
    %313 = arith.mulf %312, %311 : vector<64x256xf32>
    %cst_146 = arith.constant 0.707106769 : f32
    %314 = vector.broadcast %cst_146 : f32 to vector<64x256xf32>
    %315 = arith.mulf %311, %314 : vector<64x256xf32>
    %316 = math.erf %315 : vector<64x256xf32>
    %cst_147 = arith.constant 1.000000e+00 : f32
    %317 = vector.broadcast %cst_147 : f32 to vector<64x256xf32>
    %318 = arith.addf %317, %316 : vector<64x256xf32>
    %319 = arith.mulf %313, %318 : vector<64x256xf32>
    %cst_148 = arith.constant dense<0.000000e+00> : vector<64x32xf32>
    %320 = tpu.matmul %319, %9, %cst_148 {dimension_numbers = #tpu.dot_dimension_numbers<[1], [0], [0], [1], [0, 0, 1, 1], [], []>} : vector<64x256xf32>, vector<256x32xf32>, vector<64x32xf32> -> vector<64x32xf32>
    %cst_149 = arith.constant dense<0.000000e+00> : vector<64xf32>
    %321 = vector.multi_reduction <add>, %320, %cst_149 [1] : vector<64x32xf32> to vector<64xf32>
    %322 = vector.shape_cast %321 : vector<64xf32> to vector<64x1xf32>
    %cst_150 = arith.constant 3.200000e+01 : f32
    %323 = vector.broadcast %cst_150 : f32 to vector<64x1xf32>
    %324 = arith.divf %322, %323 : vector<64x1xf32>
    %325 = vector.broadcast %324 : vector<64x1xf32> to vector<64x32xf32>
    %326 = arith.subf %320, %325 : vector<64x32xf32>
    %327 = arith.mulf %326, %326 : vector<64x32xf32>
    %cst_151 = arith.constant dense<0.000000e+00> : vector<64xf32>
    %328 = vector.multi_reduction <add>, %327, %cst_151 [1] : vector<64x32xf32> to vector<64xf32>
    %329 = vector.shape_cast %328 : vector<64xf32> to vector<64x1xf32>
    %cst_152 = arith.constant 3.200000e+01 : f32
    %330 = vector.broadcast %cst_152 : f32 to vector<64x1xf32>
    %331 = arith.divf %329, %330 : vector<64x1xf32>
    %332 = vector.broadcast %324 : vector<64x1xf32> to vector<64x32xf32>
    %333 = arith.subf %320, %332 : vector<64x32xf32>
    %cst_153 = arith.constant 9.99999974E-6 : f32
    %334 = vector.broadcast %cst_153 : f32 to vector<64x1xf32>
    %335 = arith.addf %331, %334 : vector<64x1xf32>
    %336 = math.rsqrt %335 : vector<64x1xf32>
    %337 = vector.broadcast %336 : vector<64x1xf32> to vector<64x32xf32>
    %338 = arith.mulf %333, %337 : vector<64x32xf32>
    %339 = vector.broadcast %10 : vector<1x32xf32> to vector<64x32xf32>
    %340 = arith.mulf %338, %339 : vector<64x32xf32>
    %341 = vector.broadcast %11 : vector<1x32xf32> to vector<64x32xf32>
    %342 = arith.addf %340, %341 : vector<64x32xf32>
    %343 = arith.addf %266, %342 : vector<64x32xf32>
    %344 = vector.shape_cast %343 : vector<64x32xf32> to vector<8x8x32xf32>
    %c0_154 = arith.constant 0 : index
    %c8_155 = arith.constant 8 : index
    %c8_156 = arith.constant 8 : index
    %c0_157 = arith.constant 0 : index
    %345 = vector.load %arg13[%c0_154, %c8_155, %c8_156, %c0_157] : memref<1x16x16x32xf32, #tpu.memory_space<vmem>>, vector<1x8x8x32xf32>
    %346 = vector.shape_cast %345 : vector<1x8x8x32xf32> to vector<8x8x32xf32>
    %347 = vector.shape_cast %344 : vector<8x8x32xf32> to vector<1x8x8x32xf32>
    tpu.vector_store %arg13[%c0_154, %c8_155, %c8_156, %c0_157], %347 {strides = array<i32>} : memref<1x16x16x32xf32, #tpu.memory_space<vmem>>, vector<1x8x8x32xf32>,
    return
  }
  func.func @transform_0(%arg0: i32) -> (i32, i32, i32, i32) {
    %c0_i32 = arith.constant 0 : i32
    %c0_i32_0 = arith.constant 0 : i32
    %c0_i32_1 = arith.constant 0 : i32
    %c0_i32_2 = arith.constant 0 : i32
    return %arg0, %c0_i32, %c0_i32_0, %c0_i32_1 : i32, i32, i32, i32
  }
  func.func @transform_1(%arg0: i32) -> (i32, i32, i32, i32) {
    %c0_i32 = arith.constant 0 : i32
    %c0_i32_0 = arith.constant 0 : i32
    %c0_i32_1 = arith.constant 0 : i32
    %c0_i32_2 = arith.constant 0 : i32
    return %arg0, %c0_i32, %c0_i32_0, %c0_i32_1 : i32, i32, i32, i32
  }
  func.func @transform_2(%arg0: i32) -> (i32, i32) {
    %c0_i32 = arith.constant 0 : i32
    %c0_i32_0 = arith.constant 0 : i32
    %c0_i32_1 = arith.constant 0 : i32
    return %c0_i32, %c0_i32_0 : i32, i32
  }
  func.func @transform_3(%arg0: i32) -> (i32, i32) {
    %c0_i32 = arith.constant 0 : i32
    %c0_i32_0 = arith.constant 0 : i32
    %c0_i32_1 = arith.constant 0 : i32
    return %c0_i32, %c0_i32_0 : i32, i32
  }
  func.func @transform_4(%arg0: i32) -> (i32, i32) {
    %c0_i32 = arith.constant 0 : i32
    %c0_i32_0 = arith.constant 0 : i32
    %c0_i32_1 = arith.constant 0 : i32
    return %c0_i32, %c0_i32_0 : i32, i32
  }
  func.func @transform_5(%arg0: i32) -> (i32, i32) {
    %c0_i32 = arith.constant 0 : i32
    %c0_i32_0 = arith.constant 0 : i32
    %c0_i32_1 = arith.constant 0 : i32
    return %c0_i32, %c0_i32_0 : i32, i32
  }
  func.func @transform_6(%arg0: i32) -> (i32, i32) {
    %c0_i32 = arith.constant 0 : i32
    %c0_i32_0 = arith.constant 0 : i32
    %c0_i32_1 = arith.constant 0 : i32
    return %c0_i32, %c0_i32_0 : i32, i32
  }
  func.func @transform_7(%arg0: i32) -> (i32, i32) {
    %c0_i32 = arith.constant 0 : i32
    %c0_i32_0 = arith.constant 0 : i32
    %c0_i32_1 = arith.constant 0 : i32
    return %c0_i32, %c0_i32_0 : i32, i32
  }
  func.func @transform_8(%arg0: i32) -> (i32, i32) {
    %c0_i32 = arith.constant 0 : i32
    %c0_i32_0 = arith.constant 0 : i32
    %c0_i32_1 = arith.constant 0 : i32
    return %c0_i32, %c0_i32_0 : i32, i32
  }
  func.func @transform_9(%arg0: i32) -> (i32, i32) {
    %c0_i32 = arith.constant 0 : i32
    %c0_i32_0 = arith.constant 0 : i32
    %c0_i32_1 = arith.constant 0 : i32
    return %c0_i32, %c0_i32_0 : i32, i32
  }
  func.func @transform_10(%arg0: i32) -> (i32, i32) {
    %c0_i32 = arith.constant 0 : i32
    %c0_i32_0 = arith.constant 0 : i32
    %c0_i32_1 = arith.constant 0 : i32
    return %c0_i32, %c0_i32_0 : i32, i32
  }
  func.func @transform_11(%arg0: i32) -> (i32, i32) {
    %c0_i32 = arith.constant 0 : i32
    %c0_i32_0 = arith.constant 0 : i32
    %c0_i32_1 = arith.constant 0 : i32
    return %c0_i32, %c0_i32_0 : i32, i32
  }
  func.func @transform_12(%arg0: i32) -> (i32, i32, i32, i32) {
    %c0_i32 = arith.constant 0 : i32
    %c0_i32_0 = arith.constant 0 : i32
    %c0_i32_1 = arith.constant 0 : i32
    %c0_i32_2 = arith.constant 0 : i32
    return %arg0, %c0_i32, %c0_i32_0, %c0_i32_1 : i32, i32, i32, i32
  }
}

</mosaic_0001>

<llo_original>
// kernel: transformer_layer_forward.1
$region0: #{transformer_layer_forward.1}
  #allocation0 [shape = 'u32[]', space=smem, size = 0x4, offset = 0x4, fixed_abs, tag = 'smem constant byte address 0x4 - core index']
  #allocation1 [shape = 'u32[144,128]{1,0:T(1,128)}', space=vmem, size = 0x12000, scoped, tag = 'internal scratch']
  %s0 = inlined_call_operand.vmem [shape: f32[2,16,16,32], index: 0, kind: input, shape index: {}]
  %s1 = inlined_call_operand.vmem [shape: f32[2,16,16,32], index: 1, kind: input, shape index: {}]
  %s2 = inlined_call_operand.vmem [shape: f32[32,32], index: 2, kind: input, shape index: {}]
  %s3 = inlined_call_operand.vmem [shape: f32[32,64], index: 3, kind: input, shape index: {}]
  %s4 = inlined_call_operand.vmem [shape: f32[32,32], index: 4, kind: input, shape index: {}]
  %s5 = inlined_call_operand.vmem [shape: f32[1,32], index: 5, kind: input, shape index: {}]
  %s6 = inlined_call_operand.vmem [shape: f32[1,32], index: 6, kind: input, shape index: {}]
  %s7 = inlined_call_operand.vmem [shape: f32[32,256], index: 7, kind: input, shape index: {}]
  %s8 = inlined_call_operand.vmem [shape: f32[32,256], index: 8, kind: input, shape index: {}]
  %s9 = inlined_call_operand.vmem [shape: f32[256,32], index: 9, kind: input, shape index: {}]
  %s10 = inlined_call_operand.vmem [shape: f32[1,32], index: 10, kind: input, shape index: {}]
  %s11 = inlined_call_operand.vmem [shape: f32[1,32], index: 11, kind: input, shape index: {}]
  %s12 = inlined_call_operand.vmem [shape: f32[2,16,16,32], index: 12, kind: output, shape index: {}]
  %s13 = sld [smem:[#allocation0]]
  $region81: #{transformer_layer_forward.1} parent=0
    _
  %s15 = ssub.s32 1, %s13
  %s16 = scalar_select 0, %s15, %s13
  loop: start=0, step=1, limit=4
  $region2: #{transformer_layer_forward.1} parent=0 // loop_pre_header
    _
  $region3: #{transformer_layer_forward.1} parent=0 // loop_header
    %s18 = sphi 0, %s22
    %p19 = scmp.ge.s32.totalorder %s18, 4
    %s28 = sphi 0, %s30
    %s31 = sphi 0, %s28
    %s32 = sphi 0, %s31
    %s48 = sphi 0, %s32
    %s54 = sphi 0, %s56
    %s57 = sphi 0, %s54
    %s58 = sphi 0, %s57
    %s74 = sphi 0, %s58
    %s78 = sphi 0, %s78
    %s80 = sphi 0, %s78
    %s81 = sphi 0, %s80
    %s95 = sphi 0, %s81
    %s99 = sphi 0, %s99
    %s101 = sphi 0, %s99
    %s102 = sphi 0, %s101
    %s116 = sphi 0, %s102
    %s120 = sphi 0, %s120
    %s122 = sphi 0, %s120
    %s123 = sphi 0, %s122
    %s137 = sphi 0, %s123
    %s141 = sphi 0, %s141
    %s143 = sphi 0, %s141
    %s144 = sphi 0, %s143
    %s158 = sphi 0, %s144
    %s162 = sphi 0, %s162
    %s164 = sphi 0, %s162
    %s165 = sphi 0, %s164
    %s179 = sphi 0, %s165
    %s183 = sphi 0, %s183
    %s185 = sphi 0, %s183
    %s186 = sphi 0, %s185
    %s200 = sphi 0, %s186
    %s204 = sphi 0, %s204
    %s206 = sphi 0, %s204
    %s207 = sphi 0, %s206
    %s221 = sphi 0, %s207
    %s225 = sphi 0, %s225
    %s227 = sphi 0, %s225
    %s228 = sphi 0, %s227
    %s242 = sphi 0, %s228
    %s246 = sphi 0, %s246
    %s248 = sphi 0, %s246
    %s249 = sphi 0, %s248
    %s263 = sphi 0, %s249
    %s267 = sphi 0, %s267
    %s269 = sphi 0, %s267
    %s270 = sphi 0, %s269
    %s284 = sphi 0, %s270
    %s290 = sphi 0, %s292
    %s293 = sphi 0, %s290
    %s294 = sphi 0, %s293
    %s310 = sphi 0, %s294
  $region4: #{transformer_layer_forward.1} parent=0 // loop_header_branch
    %21 = sbr.rel (%p19) target = $region8
  $region5: #{transformer_layer_forward.1} parent=0 // loop_body
    %s23 = ssub.s32 %s18, 1
    %s24 = ssub.s32 %s18, 2
    %s25 = sadd.s32 %s18, 1
    %s26 = ssub.s32 %s18, %s25
    %p27 = scmp.eq.s32.totalorder %s26, 0
    %s29 = sadd.s32 %s28, 1
    %s30 = scalar_select %p27, %s28, %s29
    %p33 = pneg %p27
    %p34 = scmp.eq.s32.totalorder %s18, 1
    %p35 = por %p33, %p34
    %p36 = scmp.ne.s32.totalorder %s28, %s31
    %p37 = scmp.eq.s32.totalorder %s18, 0
    %p38 = por %p36, %p37
    %p39 = scmp.ne.s32.totalorder %s28, %s31
    %p40 = scmp.eq.s32.totalorder %s23, 1
    %p41 = por %p39, %p40
    %p42 = scmp.ne.s32.totalorder %s31, %s32
    %p43 = scmp.eq.s32.totalorder %s23, 0
    %p44 = por %p42, %p43
    %p45 = scmp.ne.s32.totalorder %s31, %s32
    %p46 = scmp.eq.s32.totalorder %s24, 1
    %p47 = por %p45, %p46
    %p49 = scmp.ne.s32.totalorder %s32, %s48
    %p50 = scmp.eq.s32.totalorder %s24, 0
    %p51 = por %p49, %p50
    %s52 = ssub.s32 %s18, %s25
    %p53 = scmp.eq.s32.totalorder %s52, 0
    %s55 = sadd.s32 %s54, 1
    %s56 = scalar_select %p53, %s54, %s55
    %p59 = pneg %p53
    %p60 = scmp.eq.s32.totalorder %s18, 1
    %p61 = por %p59, %p60
    %p62 = scmp.ne.s32.totalorder %s54, %s57
    %p63 = scmp.eq.s32.totalorder %s18, 0
    %p64 = por %p62, %p63
    %p65 = scmp.ne.s32.totalorder %s54, %s57
    %p66 = scmp.eq.s32.totalorder %s23, 1
    %p67 = por %p65, %p66
    %p68 = scmp.ne.s32.totalorder %s57, %s58
    %p69 = scmp.eq.s32.totalorder %s23, 0
    %p70 = por %p68, %p69
    %p71 = scmp.ne.s32.totalorder %s57, %s58
    %p72 = scmp.eq.s32.totalorder %s24, 1
    %p73 = por %p71, %p72
    %p75 = scmp.ne.s32.totalorder %s58, %s74
    %p76 = scmp.eq.s32.totalorder %s24, 0
    %p77 = por %p75, %p76
    %s79 = sadd.s32 %s78, 1
    %p82 = scmp.eq.s32.totalorder %s18, 1
    %p83 = scmp.ne.s32.totalorder %s78, %s80
    %p84 = scmp.eq.s32.totalorder %s18, 0
    %p85 = por %p83, %p84
    %p86 = scmp.ne.s32.totalorder %s78, %s80
    %p87 = scmp.eq.s32.totalorder %s23, 1
    %p88 = por %p86, %p87
    %p89 = scmp.ne.s32.totalorder %s80, %s81
    %p90 = scmp.eq.s32.totalorder %s23, 0
    %p91 = por %p89, %p90
    %p92 = scmp.ne.s32.totalorder %s80, %s81
    %p93 = scmp.eq.s32.totalorder %s24, 1
    %p94 = por %p92, %p93
    %p96 = scmp.ne.s32.totalorder %s81, %s95
    %p97 = scmp.eq.s32.totalorder %s24, 0
    %p98 = por %p96, %p97
    %s100 = sadd.s32 %s99, 1
    %p103 = scmp.eq.s32.totalorder %s18, 1
    %p104 = scmp.ne.s32.totalorder %s99, %s101
    %p105 = scmp.eq.s32.totalorder %s18, 0
    %p106 = por %p104, %p105
    %p107 = scmp.ne.s32.totalorder %s99, %s101
    %p108 = scmp.eq.s32.totalorder %s23, 1
    %p109 = por %p107, %p108
    %p110 = scmp.ne.s32.totalorder %s101, %s102
    %p111 = scmp.eq.s32.totalorder %s23, 0
    %p112 = por %p110, %p111
    %p113 = scmp.ne.s32.totalorder %s101, %s102
    %p114 = scmp.eq.s32.totalorder %s24, 1
    %p115 = por %p113, %p114
    %p117 = scmp.ne.s32.totalorder %s102, %s116
    %p118 = scmp.eq.s32.totalorder %s24, 0
    %p119 = por %p117, %p118
    %s121 = sadd.s32 %s120, 1
    %p124 = scmp.eq.s32.totalorder %s18, 1
    %p125 = scmp.ne.s32.totalorder %s120, %s122
    %p126 = scmp.eq.s32.totalorder %s18, 0
    %p127 = por %p125, %p126
    %p128 = scmp.ne.s32.totalorder %s120, %s122
    %p129 = scmp.eq.s32.totalorder %s23, 1
    %p130 = por %p128, %p129
    %p131 = scmp.ne.s32.totalorder %s122, %s123
    %p132 = scmp.eq.s32.totalorder %s23, 0
    %p133 = por %p131, %p132
    %p134 = scmp.ne.s32.totalorder %s122, %s123
    %p135 = scmp.eq.s32.totalorder %s24, 1
    %p136 = por %p134, %p135
    %p138 = scmp.ne.s32.totalorder %s123, %s137
    %p139 = scmp.eq.s32.totalorder %s24, 0
    %p140 = por %p138, %p139
    %s142 = sadd.s32 %s141, 1
    %p145 = scmp.eq.s32.totalorder %s18, 1
    %p146 = scmp.ne.s32.totalorder %s141, %s143
    %p147 = scmp.eq.s32.totalorder %s18, 0
    %p148 = por %p146, %p147
    %p149 = scmp.ne.s32.totalorder %s141, %s143
    %p150 = scmp.eq.s32.totalorder %s23, 1
    %p151 = por %p149, %p150
    %p152 = scmp.ne.s32.totalorder %s143, %s144
    %p153 = scmp.eq.s32.totalorder %s23, 0
    %p154 = por %p152, %p153
    %p155 = scmp.ne.s32.totalorder %s143, %s144
    %p156 = scmp.eq.s32.totalorder %s24, 1
    %p157 = por %p155, %p156
    %p159 = scmp.ne.s32.totalorder %s144, %s158
    %p160 = scmp.eq.s32.totalorder %s24, 0
    %p161 = por %p159, %p160
    %s163 = sadd.s32 %s162, 1
    %p166 = scmp.eq.s32.totalorder %s18, 1
    %p167 = scmp.ne.s32.totalorder %s162, %s164
    %p168 = scmp.eq.s32.totalorder %s18, 0
    %p169 = por %p167, %p168
    %p170 = scmp.ne.s32.totalorder %s162, %s164
    %p171 = scmp.eq.s32.totalorder %s23, 1
    %p172 = por %p170, %p171
    %p173 = scmp.ne.s32.totalorder %s164, %s165
    %p174 = scmp.eq.s32.totalorder %s23, 0
    %p175 = por %p173, %p174
    %p176 = scmp.ne.s32.totalorder %s164, %s165
    %p177 = scmp.eq.s32.totalorder %s24, 1
    %p178 = por %p176, %p177
    %p180 = scmp.ne.s32.totalorder %s165, %s179
    %p181 = scmp.eq.s32.totalorder %s24, 0
    %p182 = por %p180, %p181
    %s184 = sadd.s32 %s183, 1
    %p187 = scmp.eq.s32.totalorder %s18, 1
    %p188 = scmp.ne.s32.totalorder %s183, %s185
    %p189 = scmp.eq.s32.totalorder %s18, 0
    %p190 = por %p188, %p189
    %p191 = scmp.ne.s32.totalorder %s183, %s185
    %p192 = scmp.eq.s32.totalorder %s23, 1
    %p193 = por %p191, %p192
    %p194 = scmp.ne.s32.totalorder %s185, %s186
    %p195 = scmp.eq.s32.totalorder %s23, 0
    %p196 = por %p194, %p195
    %p197 = scmp.ne.s32.totalorder %s185, %s186
    %p198 = scmp.eq.s32.totalorder %s24, 1
    %p199 = por %p197, %p198
    %p201 = scmp.ne.s32.totalorder %s186, %s200
    %p202 = scmp.eq.s32.totalorder %s24, 0
    %p203 = por %p201, %p202
    %s205 = sadd.s32 %s204, 1
    %p208 = scmp.eq.s32.totalorder %s18, 1
    %p209 = scmp.ne.s32.totalorder %s204, %s206
    %p210 = scmp.eq.s32.totalorder %s18, 0
    %p211 = por %p209, %p210
    %p212 = scmp.ne.s32.totalorder %s204, %s206
    %p213 = scmp.eq.s32.totalorder %s23, 1
    %p214 = por %p212, %p213
    %p215 = scmp.ne.s32.totalorder %s206, %s207
    %p216 = scmp.eq.s32.totalorder %s23, 0
    %p217 = por %p215, %p216
    %p218 = scmp.ne.s32.totalorder %s206, %s207
    %p219 = scmp.eq.s32.totalorder %s24, 1
    %p220 = por %p218, %p219
    %p222 = scmp.ne.s32.totalorder %s207, %s221
    %p223 = scmp.eq.s32.totalorder %s24, 0
    %p224 = por %p222, %p223
    %s226 = sadd.s32 %s225, 1
    %p229 = scmp.eq.s32.totalorder %s18, 1
    %p230 = scmp.ne.s32.totalorder %s225, %s227
    %p231 = scmp.eq.s32.totalorder %s18, 0
    %p232 = por %p230, %p231
    %p233 = scmp.ne.s32.totalorder %s225, %s227
    %p234 = scmp.eq.s32.totalorder %s23, 1
    %p235 = por %p233, %p234
    %p236 = scmp.ne.s32.totalorder %s227, %s228
    %p237 = scmp.eq.s32.totalorder %s23, 0
    %p238 = por %p236, %p237
    %p239 = scmp.ne.s32.totalorder %s227, %s228
    %p240 = scmp.eq.s32.totalorder %s24, 1
    %p241 = por %p239, %p240
    %p243 = scmp.ne.s32.totalorder %s228, %s242
    %p244 = scmp.eq.s32.totalorder %s24, 0
    %p245 = por %p243, %p244
    %s247 = sadd.s32 %s246, 1
    %p250 = scmp.eq.s32.totalorder %s18, 1
    %p251 = scmp.ne.s32.totalorder %s246, %s248
    %p252 = scmp.eq.s32.totalorder %s18, 0
    %p253 = por %p251, %p252
    %p254 = scmp.ne.s32.totalorder %s246, %s248
    %p255 = scmp.eq.s32.totalorder %s23, 1
    %p256 = por %p254, %p255
    %p257 = scmp.ne.s32.totalorder %s248, %s249
    %p258 = scmp.eq.s32.totalorder %s23, 0
    %p259 = por %p257, %p258
    %p260 = scmp.ne.s32.totalorder %s248, %s249
    %p261 = scmp.eq.s32.totalorder %s24, 1
    %p262 = por %p260, %p261
    %p264 = scmp.ne.s32.totalorder %s249, %s263
    %p265 = scmp.eq.s32.totalorder %s24, 0
    %p266 = por %p264, %p265
    %s268 = sadd.s32 %s267, 1
    %p271 = scmp.eq.s32.totalorder %s18, 1
    %p272 = scmp.ne.s32.totalorder %s267, %s269
    %p273 = scmp.eq.s32.totalorder %s18, 0
    %p274 = por %p272, %p273
    %p275 = scmp.ne.s32.totalorder %s267, %s269
    %p276 = scmp.eq.s32.totalorder %s23, 1
    %p277 = por %p275, %p276
    %p278 = scmp.ne.s32.totalorder %s269, %s270
    %p279 = scmp.eq.s32.totalorder %s23, 0
    %p280 = por %p278, %p279
    %p281 = scmp.ne.s32.totalorder %s269, %s270
    %p282 = scmp.eq.s32.totalorder %s24, 1
    %p283 = por %p281, %p282
    %p285 = scmp.ne.s32.totalorder %s270, %s284
    %p286 = scmp.eq.s32.totalorder %s24, 0
    %p287 = por %p285, %p286
    %s288 = ssub.s32 %s18, %s25
    %p289 = scmp.eq.s32.totalorder %s288, 0
    %s291 = sadd.s32 %s290, 1
    %s292 = scalar_select %p289, %s290, %s291
    %p295 = pneg %p289
    %p296 = scmp.eq.s32.totalorder %s18, 1
    %p297 = por %p295, %p296
    %p298 = scmp.ne.s32.totalorder %s290, %s293
    %p299 = scmp.eq.s32.totalorder %s18, 0
    %p300 = por %p298, %p299
    %p301 = scmp.ne.s32.totalorder %s290, %s293
    %p302 = scmp.eq.s32.totalorder %s23, 1
    %p303 = por %p301, %p302
    %p304 = scmp.ne.s32.totalorder %s293, %s294
    %p305 = scmp.eq.s32.totalorder %s23, 0
    %p306 = por %p304, %p305
    %p307 = scmp.ne.s32.totalorder %s293, %s294
    %p308 = scmp.eq.s32.totalorder %s24, 1
    %p309 = por %p307, %p308
    %p311 = scmp.ne.s32.totalorder %s294, %s310
    %p312 = scmp.eq.s32.totalorder %s24, 0
    %p313 = por %p311, %p312
    %p314 = scmp.le.s32.totalorder 1, %s18
    %p315 = scmp.lt.s32.totalorder %s18, 3
    %p316 = pnand %p314, %p315
    %p317 = pneg %p316
    // Predicated region
    $region9: #{transformer_layer_forward.1} parent=5 // pred_check
      _
    $region10: #{transformer_layer_forward.1} parent=5 // pred_check_branch
      %319 = sbr.rel (%p316) target = $region12
    $region11: #{transformer_layer_forward.1} parent=5 // pred_region
      %s320 = ssub.s32 %s18, 1
      // Predicated region
      $region13: #{transformer_layer_forward.1} parent=11 // pred_check
        %p321 = pneg %p91
      $region14: #{transformer_layer_forward.1} parent=11 // pred_check_branch
        %323 = sbr.rel (%p321) target = $region16
      $region15: #{transformer_layer_forward.1} parent=11 // pred_region
        _
      $region16: #{transformer_layer_forward.1} parent=11 // pred_fallthru
        _
      // Predicated region
      $region17: #{transformer_layer_forward.1} parent=11 // pred_check
        %p324 = pneg %p112
      $region18: #{transformer_layer_forward.1} parent=11 // pred_check_branch
        %326 = sbr.rel (%p324) target = $region20
      $region19: #{transformer_layer_forward.1} parent=11 // pred_region
        _
      $region20: #{transformer_layer_forward.1} parent=11 // pred_fallthru
        _
      // Predicated region
      $region21: #{transformer_layer_forward.1} parent=11 // pred_check
        %p327 = pneg %p133
      $region22: #{transformer_layer_forward.1} parent=11 // pred_check_branch
        %329 = sbr.rel (%p327) target = $region24
      $region23: #{transformer_layer_forward.1} parent=11 // pred_region
        _
      $region24: #{transformer_layer_forward.1} parent=11 // pred_fallthru
        _
      // Predicated region
      $region25: #{transformer_layer_forward.1} parent=11 // pred_check
        %p330 = pneg %p154
      $region26: #{transformer_layer_forward.1} parent=11 // pred_check_branch
        %332 = sbr.rel (%p330) target = $region28
      $region27: #{transformer_layer_forward.1} parent=11 // pred_region
        _
      $region28: #{transformer_layer_forward.1} parent=11 // pred_fallthru
        _
      // Predicated region
      $region29: #{transformer_layer_forward.1} parent=11 // pred_check
        %p333 = pneg %p175
      $region30: #{transformer_layer_forward.1} parent=11 // pred_check_branch
        %335 = sbr.rel (%p333) target = $region32
      $region31: #{transformer_layer_forward.1} parent=11 // pred_region
        _
      $region32: #{transformer_layer_forward.1} parent=11 // pred_fallthru
        _
      // Predicated region
      $region33: #{transformer_layer_forward.1} parent=11 // pred_check
        %p336 = pneg %p196
      $region34: #{transformer_layer_forward.1} parent=11 // pred_check_branch
        %338 = sbr.rel (%p336) target = $region36
      $region35: #{transformer_layer_forward.1} parent=11 // pred_region
        _
      $region36: #{transformer_layer_forward.1} parent=11 // pred_fallthru
        _
      // Predicated region
      $region37: #{transformer_layer_forward.1} parent=11 // pred_check
        %p339 = pneg %p217
      $region38: #{transformer_layer_forward.1} parent=11 // pred_check_branch
        %341 = sbr.rel (%p339) target = $region40
      $region39: #{transformer_layer_forward.1} parent=11 // pred_region
        _
      $region40: #{transformer_layer_forward.1} parent=11 // pred_fallthru
        _
      // Predicated region
      $region41: #{transformer_layer_forward.1} parent=11 // pred_check
        %p342 = pneg %p238
      $region42: #{transformer_layer_forward.1} parent=11 // pred_check_branch
        %344 = sbr.rel (%p342) target = $region44
      $region43: #{transformer_layer_forward.1} parent=11 // pred_region
        _
      $region44: #{transformer_layer_forward.1} parent=11 // pred_fallthru
        _
      // Predicated region
      $region45: #{transformer_layer_forward.1} parent=11 // pred_check
        %p345 = pneg %p259
      $region46: #{transformer_layer_forward.1} parent=11 // pred_check_branch
        %347 = sbr.rel (%p345) target = $region48
      $region47: #{transformer_layer_forward.1} parent=11 // pred_region
        _
      $region48: #{transformer_layer_forward.1} parent=11 // pred_fallthru
        _
      // Predicated region
      $region49: #{transformer_layer_forward.1} parent=11 // pred_check
        %p348 = pneg %p280
      $region50: #{transformer_layer_forward.1} parent=11 // pred_check_branch
        %350 = sbr.rel (%p348) target = $region52
      $region51: #{transformer_layer_forward.1} parent=11 // pred_region
        _
      $region52: #{transformer_layer_forward.1} parent=11 // pred_fallthru
        _
    $region12: #{transformer_layer_forward.1} parent=5 // pred_fallthru
      _
    %p351 = scmp.lt.s32.totalorder %s18, 2
    // Predicated region
    $region53: #{transformer_layer_forward.1} parent=5 // pred_check
      %p352 = pneg %p351
    $region54: #{transformer_layer_forward.1} parent=5 // pred_check_branch
      %354 = sbr.rel (%p352) target = $region56
    $region55: #{transformer_layer_forward.1} parent=5 // pred_region
      // Predicated region
      $region57: #{transformer_layer_forward.1} parent=55 // pred_check
        %p355 = pneg %p38
      $region58: #{transformer_layer_forward.1} parent=55 // pred_check_branch
        %357 = sbr.rel (%p355) target = $region60
      $region59: #{transformer_layer_forward.1} parent=55 // pred_region
        %p358 = scmp.lt.s32.totalorder %s18, 1
        %s359 = scalar_select %p358, %s18, 1
        %s360 = smul.addr %s359, 32
        %s361 = smul.addr %s360, 8
        %s362 = scalar_lea.vmem %s0, %s361
      $region60: #{transformer_layer_forward.1} parent=55 // pred_fallthru
        _
      // Predicated region
      $region61: #{transformer_layer_forward.1} parent=55 // pred_check
        %p363 = pneg %p64
      $region62: #{transformer_layer_forward.1} parent=55 // pred_check_branch
        %365 = sbr.rel (%p363) target = $region64
      $region63: #{transformer_layer_forward.1} parent=55 // pred_region
        %p366 = scmp.lt.s32.totalorder %s18, 1
        %s367 = scalar_select %p366, %s18, 1
        %s368 = smul.addr %s367, 32
        %s369 = smul.addr %s368, 8
        %s370 = scalar_lea.vmem %s1, %s369
      $region64: #{transformer_layer_forward.1} parent=55 // pred_fallthru
        _
    $region56: #{transformer_layer_forward.1} parent=5 // pred_fallthru
      _
    %p371 = scmp.le.s32.totalorder 1, %s18
    %p372 = scmp.lt.s32.totalorder %s18, 3
    %p373 = pnand %p371, %p372
    %p374 = pneg %p373
    // Predicated region
    $region65: #{transformer_layer_forward.1} parent=5 // pred_check
      _
    $region66: #{transformer_layer_forward.1} parent=5 // pred_check_branch
      %376 = sbr.rel (%p373) target = $region68
    $region67: #{transformer_layer_forward.1} parent=5 // pred_region
      %s377 = ssub.s32 %s18, 1
      %p378 = scmp.lt.s32.totalorder %s23, 1
      %s379 = scalar_select %p378, %s23, 1
      %s380 = smul.addr %s379, 32
      %s381 = smul.addr %s380, 8
      %s382 = scalar_lea.vmem %s0, %s381
      %p383 = pneg %p44
      %p384 = pneg %p41
      %p385 = scmp.lt.s32.totalorder %s23, 1
      %s386 = scalar_select %p385, %s23, 1
      %s387 = smul.addr %s386, 32
      %s388 = smul.addr %s387, 8
      %s389 = scalar_lea.vmem %s1, %s388
      %p390 = pneg %p70
      %p391 = pneg %p67
      %p392 = pneg %p91
      %p393 = pneg %p88
      %p394 = pneg %p112
      %p395 = pneg %p109
      %p396 = pneg %p133
      %p397 = pneg %p130
      %p398 = pneg %p154
      %p399 = pneg %p151
      %p400 = pneg %p175
      %p401 = pneg %p172
      %p402 = pneg %p196
      %p403 = pneg %p193
      %p404 = pneg %p217
      %p405 = pneg %p214
      %p406 = pneg %p238
      %p407 = pneg %p235
      %p408 = pneg %p259
      %p409 = pneg %p256
      %p410 = pneg %p280
      %p411 = pneg %p277
      %p412 = pneg %p306
      %p413 = pneg %p303
      %p414 = scmp.lt.s32.totalorder %s23, 1
      %s415 = scalar_select %p414, %s23, 1
      %s416 = smul.addr %s415, 32
      %s417 = smul.addr %s416, 8
      %s418 = scalar_lea.vmem %s12, %s417
      %p419 = scmp.lt.s32.totalorder %s23, 1
      %s420 = scalar_select %p419, %s23, 1
      %s421 = smul.addr %s420, 32
      %s422 = smul.addr %s421, 8
      %s423 = scalar_lea.vmem %s0, %s422
      %p424 = scmp.lt.s32.totalorder %s23, 1
      %s425 = scalar_select %p424, %s23, 1
      %s426 = smul.addr %s425, 32
      %s427 = smul.addr %s426, 8
      %s428 = scalar_lea.vmem %s1, %s427
      %p429 = scmp.lt.s32.totalorder %s23, 1
      %s430 = scalar_select %p429, %s23, 1
      %s431 = smul.addr %s430, 32
      %s432 = smul.addr %s431, 8
      %s433 = scalar_lea.vmem %s12, %s432
      %v434 = vld [vmem:[%s2] sm:$0xff]
      %v435 = vld [vmem:[%s2 + $0x8] sm:$0xff]
      %v436 = vld [vmem:[%s2 + $0x10] sm:$0xff]
      %v437 = vld [vmem:[%s2 + $0x18] sm:$0xff]
      %v438 = vmul.f32 %v434, 0.17677669
      %v439 = vmul.f32 %v435, 0.17677669
      %v440 = vmul.f32 %v436, 0.17677669
      %v441 = vmul.f32 %v437, 0.17677669
      %v442 = vld [vmem:[%s3] sm:$0xff]
      %v443 = vld [vmem:[%s3 + $0x8] sm:$0xff]
      %v444 = vld [vmem:[%s3 + $0x10] sm:$0xff]
      %v445 = vld [vmem:[%s3 + $0x18] sm:$0xff]
      %v446 = vld [vmem:[%s4] sm:$0xff]
      %v447 = vld [vmem:[%s4 + $0x8] sm:$0xff]
      %v448 = vld [vmem:[%s4 + $0x10] sm:$0xff]
      %v449 = vld [vmem:[%s4 + $0x18] sm:$0xff]
      %v450 = vld [vmem:[%s5] sm:$0x1]
      %v451 = vld [vmem:[%s6] sm:$0x1]
      %v452 = vld [vmem:[%s7] sm:$0xff]
      %v453 = vld [vmem:[%s7 + $0x8] sm:$0xff]
      %v454 = vld [vmem:[%s7 + $0x10] sm:$0xff]
      %v455 = vld [vmem:[%s7 + $0x18] sm:$0xff]
      %v456 = vld [vmem:[%s7 + $0x20] sm:$0xff]
      %v457 = vld [vmem:[%s7 + $0x28] sm:$0xff]
      %v458 = vld [vmem:[%s7 + $0x30] sm:$0xff]
      %v459 = vld [vmem:[%s7 + $0x38] sm:$0xff]
      %v460 = vld [vmem:[%s8] sm:$0xff]
      %v461 = vld [vmem:[%s8 + $0x8] sm:$0xff]
      %v462 = vld [vmem:[%s8 + $0x10] sm:$0xff]
      %v463 = vld [vmem:[%s8 + $0x18] sm:$0xff]
      %v464 = vld [vmem:[%s8 + $0x20] sm:$0xff]
      %v465 = vld [vmem:[%s8 + $0x28] sm:$0xff]
      %v466 = vld [vmem:[%s8 + $0x30] sm:$0xff]
      %v467 = vld [vmem:[%s8 + $0x38] sm:$0xff]
      %v468 = vld [vmem:[%s9] sm:$0xff]
      %v469 = vld [vmem:[%s9 + $0x8] sm:$0xff]
      %v470 = vld [vmem:[%s9 + $0x10] sm:$0xff]
      %v471 = vld [vmem:[%s9 + $0x18] sm:$0xff]
      %v472 = vld [vmem:[%s9 + $0x20] sm:$0xff]
      %v473 = vld [vmem:[%s9 + $0x28] sm:$0xff]
      %v474 = vld [vmem:[%s9 + $0x30] sm:$0xff]
      %v475 = vld [vmem:[%s9 + $0x38] sm:$0xff]
      %v476 = vld [vmem:[%s9 + $0x40] sm:$0xff]
      %v477 = vld [vmem:[%s9 + $0x48] sm:$0xff]
      %v478 = vld [vmem:[%s9 + $0x50] sm:$0xff]
      %v479 = vld [vmem:[%s9 + $0x58] sm:$0xff]
      %v480 = vld [vmem:[%s9 + $0x60] sm:$0xff]
      %v481 = vld [vmem:[%s9 + $0x68] sm:$0xff]
      %v482 = vld [vmem:[%s9 + $0x70] sm:$0xff]
      %v483 = vld [vmem:[%s9 + $0x78] sm:$0xff]
      %v484 = vld [vmem:[%s9 + $0x80] sm:$0xff]
      %v485 = vld [vmem:[%s9 + $0x88] sm:$0xff]
      %v486 = vld [vmem:[%s9 + $0x90] sm:$0xff]
      %v487 = vld [vmem:[%s9 + $0x98] sm:$0xff]
      %v488 = vld [vmem:[%s9 + $0xa0] sm:$0xff]
      %v489 = vld [vmem:[%s9 + $0xa8] sm:$0xff]
      %v490 = vld [vmem:[%s9 + $0xb0] sm:$0xff]
      %v491 = vld [vmem:[%s9 + $0xb8] sm:$0xff]
      %v492 = vld [vmem:[%s9 + $0xc0] sm:$0xff]
      %v493 = vld [vmem:[%s9 + $0xc8] sm:$0xff]
      %v494 = vld [vmem:[%s9 + $0xd0] sm:$0xff]
      %v495 = vld [vmem:[%s9 + $0xd8] sm:$0xff]
      %v496 = vld [vmem:[%s9 + $0xe0] sm:$0xff]
      %v497 = vld [vmem:[%s9 + $0xe8] sm:$0xff]
      %v498 = vld [vmem:[%s9 + $0xf0] sm:$0xff]
      %v499 = vld [vmem:[%s9 + $0xf8] sm:$0xff]
      %v500 = vld [vmem:[%s10] sm:$0x1]
      %v501 = vld [vmem:[%s11] sm:$0x1]
      %v502 = vld [vmem:[%s423] sm:$0xff]
      %v503 = vld [vmem:[%s423 + $0x10] sm:$0xff]
      %v504 = vld [vmem:[%s423 + $0x20] sm:$0xff]
      %v505 = vld [vmem:[%s423 + $0x30] sm:$0xff]
      %v506 = vld [vmem:[%s423 + $0x40] sm:$0xff]
      %v507 = vld [vmem:[%s423 + $0x50] sm:$0xff]
      %v508 = vld [vmem:[%s423 + $0x60] sm:$0xff]
      %v509 = vld [vmem:[%s423 + $0x70] sm:$0xff]
      %v510 = vld [vmem:[%s428] sm:$0xff]
      %v511 = vld [vmem:[%s428 + $0x10] sm:$0xff]
      %v512 = vld [vmem:[%s428 + $0x20] sm:$0xff]
      %v513 = vld [vmem:[%s428 + $0x30] sm:$0xff]
      %v514 = vld [vmem:[%s428 + $0x40] sm:$0xff]
      %v515 = vld [vmem:[%s428 + $0x50] sm:$0xff]
      %v516 = vld [vmem:[%s428 + $0x60] sm:$0xff]
      %v517 = vld [vmem:[%s428 + $0x70] sm:$0xff]
      %vm518 = vcmask 261120
      %v520 = vsel %vm518, %v502, 0
      %v523 = vsel %vm518, %v503, 0
      %v526 = vsel %vm518, %v504, 0
      %v529 = vsel %vm518, %v505, 0
      %v532 = vsel %vm518, %v506, 0
      %v535 = vsel %vm518, %v507, 0
      %v538 = vsel %vm518, %v508, 0
      %v541 = vsel %vm518, %v509, 0
      %543 = vmatprep.subr.mxu0 0.0
      %544 = vmatpush1.msra.mxu0 %v438
      %545 = vmatprep.subr.mxu0 0.0
      %546 = vmatpush1.msra.mxu0 %v439
      %547 = vmatprep.subr.mxu0 0.0
      %548 = vmatpush1.msra.mxu0 %v440
      %549 = vmatprep.subr.mxu0 0.0
      %550 = vmatpush1.msra.mxu0 %v441
      %551 = vmatprep.subr.mxu0 0.0
      %552 = vmatpush1.msra.mxu0 0.0
      %553 = vmatprep.subr.mxu0 0.0
      %554 = vmatpush1.msra.mxu0 0.0
      %555 = vmatprep.subr.mxu0 0.0
      %556 = vmatpush1.msra.mxu0 0.0
      %557 = vmatprep.subr.mxu0 0.0
      %558 = vmatpush1.msra.mxu0 0.0
      %559 = vmatprep.subr.mxu0 0.0
      %560 = vmatpush1.msra.mxu0 0.0
      %561 = vmatprep.subr.mxu0 0.0
      %562 = vmatpush1.msra.mxu0 0.0
      %563 = vmatprep.subr.mxu0 0.0
      %564 = vmatpush1.msra.mxu0 0.0
      %565 = vmatprep.subr.mxu0 0.0
      %566 = vmatpush1.msra.mxu0 0.0
      %567 = vmatprep.subr.mxu0 0.0
      %568 = vmatpush1.msra.mxu0 0.0
      %569 = vmatprep.subr.mxu0 0.0
      %570 = vmatpush1.msra.mxu0 0.0
      %571 = vmatprep.subr.mxu0 0.0
      %572 = vmatpush1.msra.mxu0 0.0
      %573 = vmatprep.subr.mxu0 0.0
      %574 = vmatpush1.msra.mxu0 0.0
      %575 = vmatprep.subr.mxu0 0.0
      %576 = vmatpush1.msra.mxu0 0.0
      %577 = vmatprep.subr.mxu0 0.0
      %578 = vmatpush1.msra.mxu0 0.0
      %579 = vmatprep.subr.mxu0 0.0
      %580 = vmatpush1.msra.mxu0 0.0
      %581 = vmatprep.subr.mxu0 0.0
      %582 = vmatpush1.msra.mxu0 0.0
      %583 = vmatprep.subr.mxu0 0.0
      %584 = vmatpush1.msra.mxu0 0.0
      %585 = vmatprep.subr.mxu0 0.0
      %586 = vmatpush1.msra.mxu0 0.0
      %587 = vmatprep.subr.mxu0 0.0
      %588 = vmatpush1.msra.mxu0 0.0
      %589 = vmatprep.subr.mxu0 0.0
      %590 = vmatpush1.msra.mxu0 0.0
      %591 = vmatprep.subr.mxu0 0.0
      %592 = vmatpush1.msra.mxu0 0.0
      %593 = vmatprep.subr.mxu0 0.0
      %594 = vmatpush1.msra.mxu0 0.0
      %595 = vmatprep.subr.mxu0 0.0
      %596 = vmatpush1.msra.mxu0 0.0
      %597 = vmatprep.subr.mxu0 0.0
      %598 = vmatpush1.msra.mxu0 0.0
      %599 = vmatprep.subr.mxu0 0.0
      %600 = vmatpush1.msra.mxu0 0.0
      %601 = vmatprep.subr.mxu0 0.0
      %602 = vmatpush1.msra.mxu0 0.0
      %603 = vmatprep.subr.mxu0 0.0
      %604 = vmatpush1.msra.mxu0 0.0
      %605 = vmatprep.subr.mxu0 0.0
      %606 = vmatpush1.msra.mxu0 0.0
      %607 = vmatprep.mubr.f32.mxu0 0.0
      %608 = vmatmul.mubr.f32.gmra.mrb[0].mxu0 %v520
      %v609 = vpop.f32.mrb[0].mxu0
      %v610 = vadd.f32 0.0, %v609
      %v611 = vpop.f32.mrb[0].mxu0
      %612 = vmatprep.mubr.f32.mxu0 0.0
      %613 = vmatmul.mubr.f32.gmra.mrb[0].mxu0 %v523
      %v614 = vpop.f32.mrb[0].mxu0
      %v615 = vadd.f32 0.0, %v614
      %v616 = vpop.f32.mrb[0].mxu0
      %617 = vmatprep.mubr.f32.mxu0 0.0
      %618 = vmatmul.mubr.f32.gmra.mrb[0].mxu0 %v526
      %v619 = vpop.f32.mrb[0].mxu0
      %v620 = vadd.f32 0.0, %v619
      %v621 = vpop.f32.mrb[0].mxu0
      %622 = vmatprep.mubr.f32.mxu0 0.0
      %623 = vmatmul.mubr.f32.gmra.mrb[0].mxu0 %v529
      %v624 = vpop.f32.mrb[0].mxu0
      %v625 = vadd.f32 0.0, %v624
      %v626 = vpop.f32.mrb[0].mxu0
      %627 = vmatprep.mubr.f32.mxu0 0.0
      %628 = vmatmul.mubr.f32.gmra.mrb[0].mxu0 %v532
      %v629 = vpop.f32.mrb[0].mxu0
      %v630 = vadd.f32 0.0, %v629
      %v631 = vpop.f32.mrb[0].mxu0
      %632 = vmatprep.mubr.f32.mxu0 0.0
      %633 = vmatmul.mubr.f32.gmra.mrb[0].mxu0 %v535
      %v634 = vpop.f32.mrb[0].mxu0
      %v635 = vadd.f32 0.0, %v634
      %v636 = vpop.f32.mrb[0].mxu0
      %637 = vmatprep.mubr.f32.mxu0 0.0
      %638 = vmatmul.mubr.f32.gmra.mrb[0].mxu0 %v538
      %v639 = vpop.f32.mrb[0].mxu0
      %v640 = vadd.f32 0.0, %v639
      %v641 = vpop.f32.mrb[0].mxu0
      %642 = vmatprep.mubr.f32.mxu0 0.0
      %643 = vmatmul.mubr.f32.gmra.mrb[0].mxu0 %v541
      %v644 = vpop.f32.mrb[0].mxu0
      %v645 = vadd.f32 0.0, %v644
      %v646 = vpop.f32.mrb[0].mxu0
      %647 = vdwg.mxu0
      %v649 = vsel %vm518, %v510, 0
      %v652 = vsel %vm518, %v511, 0
      %v655 = vsel %vm518, %v512, 0
      %v658 = vsel %vm518, %v513, 0
      %v661 = vsel %vm518, %v514, 0
      %v664 = vsel %vm518, %v515, 0
      %v667 = vsel %vm518, %v516, 0
      %v670 = vsel %vm518, %v517, 0
      %672 = vmatprep.subr.mxu0 0.0
      %673 = vmatpush1.msra.mxu0 %v442
      %674 = vmatprep.subr.mxu0 0.0
      %675 = vmatpush1.msra.mxu0 %v443
      %676 = vmatprep.subr.mxu0 0.0
      %677 = vmatpush1.msra.mxu0 %v444
      %678 = vmatprep.subr.mxu0 0.0
      %679 = vmatpush1.msra.mxu0 %v445
      %680 = vmatprep.subr.mxu0 0.0
      %681 = vmatpush1.msra.mxu0 0.0
      %682 = vmatprep.subr.mxu0 0.0
      %683 = vmatpush1.msra.mxu0 0.0
      %684 = vmatprep.subr.mxu0 0.0
      %685 = vmatpush1.msra.mxu0 0.0
      %686 = vmatprep.subr.mxu0 0.0
      %687 = vmatpush1.msra.mxu0 0.0
      %688 = vmatprep.subr.mxu0 0.0
      %689 = vmatpush1.msra.mxu0 0.0
      %690 = vmatprep.subr.mxu0 0.0
      %691 = vmatpush1.msra.mxu0 0.0
      %692 = vmatprep.subr.mxu0 0.0
      %693 = vmatpush1.msra.mxu0 0.0
      %694 = vmatprep.subr.mxu0 0.0
      %695 = vmatpush1.msra.mxu0 0.0
      %696 = vmatprep.subr.mxu0 0.0
      %697 = vmatpush1.msra.mxu0 0.0
      %698 = vmatprep.subr.mxu0 0.0
      %699 = vmatpush1.msra.mxu0 0.0
      %700 = vmatprep.subr.mxu0 0.0
      %701 = vmatpush1.msra.mxu0 0.0
      %702 = vmatprep.subr.mxu0 0.0
      %703 = vmatpush1.msra.mxu0 0.0
      %704 = vmatprep.subr.mxu0 0.0
      %705 = vmatpush1.msra.mxu0 0.0
      %706 = vmatprep.subr.mxu0 0.0
      %707 = vmatpush1.msra.mxu0 0.0
      %708 = vmatprep.subr.mxu0 0.0
      %709 = vmatpush1.msra.mxu0 0.0
      %710 = vmatprep.subr.mxu0 0.0
      %711 = vmatpush1.msra.mxu0 0.0
      %712 = vmatprep.subr.mxu0 0.0
      %713 = vmatpush1.msra.mxu0 0.0
      %714 = vmatprep.subr.mxu0 0.0
      %715 = vmatpush1.msra.mxu0 0.0
      %716 = vmatprep.subr.mxu0 0.0
      %717 = vmatpush1.msra.mxu0 0.0
      %718 = vmatprep.subr.mxu0 0.0
      %719 = vmatpush1.msra.mxu0 0.0
      %720 = vmatprep.subr.mxu0 0.0
      %721 = vmatpush1.msra.mxu0 0.0
      %722 = vmatprep.subr.mxu0 0.0
      %723 = vmatpush1.msra.mxu0 0.0
      %724 = vmatprep.subr.mxu0 0.0
      %725 = vmatpush1.msra.mxu0 0.0
      %726 = vmatprep.subr.mxu0 0.0
      %727 = vmatpush1.msra.mxu0 0.0
      %728 = vmatprep.subr.mxu0 0.0
      %729 = vmatpush1.msra.mxu0 0.0
      %730 = vmatprep.subr.mxu0 0.0
      %731 = vmatpush1.msra.mxu0 0.0
      %732 = vmatprep.subr.mxu0 0.0
      %733 = vmatpush1.msra.mxu0 0.0
      %734 = vmatprep.subr.mxu0 0.0
      %735 = vmatpush1.msra.mxu0 0.0
      %736 = vmatprep.mubr.f32.mxu0 0.0
      %737 = vmatmul.mubr.f32.gmra.mrb[0].mxu0 %v649
      %v738 = vpop.f32.mrb[0].mxu0
      %v739 = vadd.f32 0.0, %v738
      %v740 = vpop.f32.mrb[0].mxu0
      %741 = vmatprep.mubr.f32.mxu0 0.0
      %742 = vmatmul.mubr.f32.gmra.mrb[0].mxu0 %v652
      %v743 = vpop.f32.mrb[0].mxu0
      %v744 = vadd.f32 0.0, %v743
      %v745 = vpop.f32.mrb[0].mxu0
      %746 = vmatprep.mubr.f32.mxu0 0.0
      %747 = vmatmul.mubr.f32.gmra.mrb[0].mxu0 %v655
      %v748 = vpop.f32.mrb[0].mxu0
      %v749 = vadd.f32 0.0, %v748
      %v750 = vpop.f32.mrb[0].mxu0
      %751 = vmatprep.mubr.f32.mxu0 0.0
      %752 = vmatmul.mubr.f32.gmra.mrb[0].mxu0 %v658
      %v753 = vpop.f32.mrb[0].mxu0
      %v754 = vadd.f32 0.0, %v753
      %v755 = vpop.f32.mrb[0].mxu0
      %756 = vmatprep.mubr.f32.mxu0 0.0
      %757 = vmatmul.mubr.f32.gmra.mrb[0].mxu0 %v661
      %v758 = vpop.f32.mrb[0].mxu0
      %v759 = vadd.f32 0.0, %v758
      %v760 = vpop.f32.mrb[0].mxu0
      %761 = vmatprep.mubr.f32.mxu0 0.0
      %762 = vmatmul.mubr.f32.gmra.mrb[0].mxu0 %v664
      %v763 = vpop.f32.mrb[0].mxu0
      %v764 = vadd.f32 0.0, %v763
      %v765 = vpop.f32.mrb[0].mxu0
      %766 = vmatprep.mubr.f32.mxu0 0.0
      %767 = vmatmul.mubr.f32.gmra.mrb[0].mxu0 %v667
      %v768 = vpop.f32.mrb[0].mxu0
      %v769 = vadd.f32 0.0, %v768
      %v770 = vpop.f32.mrb[0].mxu0
      %771 = vmatprep.mubr.f32.mxu0 0.0
      %772 = vmatmul.mubr.f32.gmra.mrb[0].mxu0 %v670
      %v773 = vpop.f32.mrb[0].mxu0
      %v774 = vadd.f32 0.0, %v773
      %v775 = vpop.f32.mrb[0].mxu0
      %776 = vdwg.mxu0
      %v778 = vsel %vm518, %v610, 0
      %v781 = vsel %vm518, %v615, 0
      %v784 = vsel %vm518, %v620, 0
      %v787 = vsel %vm518, %v625, 0
      %v790 = vsel %vm518, %v630, 0
      %v793 = vsel %vm518, %v635, 0
      %v796 = vsel %vm518, %v640, 0
      %v799 = vsel %vm518, %v645, 0
      %v802 = vsel %vm518, %v739, 0
      %v805 = vsel %vm518, %v744, 0
      %v808 = vsel %vm518, %v749, 0
      %v811 = vsel %vm518, %v754, 0
      %v814 = vsel %vm518, %v759, 0
      %v817 = vsel %vm518, %v764, 0
      %v820 = vsel %vm518, %v769, 0
      %v823 = vsel %vm518, %v774, 0
      %825 = vmatprep.subr.mxu0 0.0
      %826 = vmatpush1.xpose.msra.mxu0 %v802
      %827 = vmatprep.subr.mxu0 0.0
      %828 = vmatpush1.xpose.msra.mxu0 %v805
      %829 = vmatprep.subr.mxu0 0.0
      %830 = vmatpush1.xpose.msra.mxu0 %v808
      %831 = vmatprep.subr.mxu0 0.0
      %832 = vmatpush1.xpose.msra.mxu0 %v811
      %833 = vmatprep.subr.mxu0 0.0
      %834 = vmatpush1.xpose.msra.mxu0 %v814
      %835 = vmatprep.subr.mxu0 0.0
      %836 = vmatpush1.xpose.msra.mxu0 %v817
      %837 = vmatprep.subr.mxu0 0.0
      %838 = vmatpush1.xpose.msra.mxu0 %v820
      %839 = vmatprep.subr.mxu0 0.0
      %840 = vmatpush1.xpose.msra.mxu0 %v823
      %841 = vmatprep.subr.mxu0 0.0
      %842 = vmatpush1.xpose.msra.mxu0 0.0
      %843 = vmatprep.subr.mxu0 0.0
      %844 = vmatpush1.xpose.msra.mxu0 0.0
      %845 = vmatprep.subr.mxu0 0.0
      %846 = vmatpush1.xpose.msra.mxu0 0.0
      %847 = vmatprep.subr.mxu0 0.0
      %848 = vmatpush1.xpose.msra.mxu0 0.0
      %849 = vmatprep.subr.mxu0 0.0
      %850 = vmatpush1.xpose.msra.mxu0 0.0
      %851 = vmatprep.subr.mxu0 0.0
      %852 = vmatpush1.xpose.msra.mxu0 0.0
      %853 = vmatprep.subr.mxu0 0.0
      %854 = vmatpush1.xpose.msra.mxu0 0.0
      %855 = vmatprep.subr.mxu0 0.0
      %856 = vmatpush1.xpose.msra.mxu0 0.0
      %857 = vmatprep.subr.mxu0 0.0
      %858 = vmatpush1.xpose.msra.mxu0 0.0
      %859 = vmatprep.subr.mxu0 0.0
      %860 = vmatpush1.xpose.msra.mxu0 0.0
      %861 = vmatprep.subr.mxu0 0.0
      %862 = vmatpush1.xpose.msra.mxu0 0.0
      %863 = vmatprep.subr.mxu0 0.0
      %864 = vmatpush1.xpose.msra.mxu0 0.0
      %865 = vmatprep.subr.mxu0 0.0
      %866 = vmatpush1.xpose.msra.mxu0 0.0
      %867 = vmatprep.subr.mxu0 0.0
      %868 = vmatpush1.xpose.msra.mxu0 0.0
      %869 = vmatprep.subr.mxu0 0.0
      %870 = vmatpush1.xpose.msra.mxu0 0.0
      %871 = vmatprep.subr.mxu0 0.0
      %872 = vmatpush1.xpose.msra.mxu0 0.0
      %873 = vmatprep.subr.mxu0 0.0
      %874 = vmatpush1.xpose.msra.mxu0 0.0
      %875 = vmatprep.subr.mxu0 0.0
      %876 = vmatpush1.xpose.msra.mxu0 0.0
      %877 = vmatprep.subr.mxu0 0.0
      %878 = vmatpush1.xpose.msra.mxu0 0.0
      %879 = vmatprep.subr.mxu0 0.0
      %880 = vmatpush1.xpose.msra.mxu0 0.0
      %881 = vmatprep.subr.mxu0 0.0
      %882 = vmatpush1.xpose.msra.mxu0 0.0
      %883 = vmatprep.subr.mxu0 0.0
      %884 = vmatpush1.xpose.msra.mxu0 0.0
      %885 = vmatprep.subr.mxu0 0.0
      %886 = vmatpush1.xpose.msra.mxu0 0.0
      %887 = vmatprep.subr.mxu0 0.0
      %888 = vmatpush1.xpose.msra.mxu0 0.0
      %889 = vmatprep.mubr.f32.mxu0 0.0
      %890 = vmatmul.mubr.f32.gmra.mrb[0].mxu0 %v778
      %v891 = vpop.f32.mrb[0].mxu0
      %v892 = vadd.f32 0.0, %v891
      %v893 = vpop.f32.mrb[0].mxu0
      %894 = vmatprep.mubr.f32.mxu0 0.0
      %895 = vmatmul.mubr.f32.gmra.mrb[0].mxu0 %v781
      %v896 = vpop.f32.mrb[0].mxu0
      %v897 = vadd.f32 0.0, %v896
      %v898 = vpop.f32.mrb[0].mxu0
      %899 = vmatprep.mubr.f32.mxu0 0.0
      %900 = vmatmul.mubr.f32.gmra.mrb[0].mxu0 %v784
      %v901 = vpop.f32.mrb[0].mxu0
      %v902 = vadd.f32 0.0, %v901
      %v903 = vpop.f32.mrb[0].mxu0
      %904 = vmatprep.mubr.f32.mxu0 0.0
      %905 = vmatmul.mubr.f32.gmra.mrb[0].mxu0 %v787
      %v906 = vpop.f32.mrb[0].mxu0
      %v907 = vadd.f32 0.0, %v906
      %v908 = vpop.f32.mrb[0].mxu0
      %909 = vmatprep.mubr.f32.mxu0 0.0
      %910 = vmatmul.mubr.f32.gmra.mrb[0].mxu0 %v790
      %v911 = vpop.f32.mrb[0].mxu0
      %v912 = vadd.f32 0.0, %v911
      %v913 = vpop.f32.mrb[0].mxu0
      %914 = vmatprep.mubr.f32.mxu0 0.0
      %915 = vmatmul.mubr.f32.gmra.mrb[0].mxu0 %v793
      %v916 = vpop.f32.mrb[0].mxu0
      %v917 = vadd.f32 0.0, %v916
      %v918 = vpop.f32.mrb[0].mxu0
      %919 = vmatprep.mubr.f32.mxu0 0.0
      %920 = vmatmul.mubr.f32.gmra.mrb[0].mxu0 %v796
      %v921 = vpop.f32.mrb[0].mxu0
      %v922 = vadd.f32 0.0, %v921
      %v923 = vpop.f32.mrb[0].mxu0
      %924 = vmatprep.mubr.f32.mxu0 0.0
      %925 = vmatmul.mubr.f32.gmra.mrb[0].mxu0 %v799
      %v926 = vpop.f32.mrb[0].mxu0
      %v927 = vadd.f32 0.0, %v926
      %v928 = vpop.f32.mrb[0].mxu0
      %929 = vdwg.mxu0
      %vm930 = vcmask 523264
      %v931 = vsel %vm930, %v892, -inf
      %932 = vmax.xlane.f32.xlu0 %v931
      %v933 = vpop.xlane.xlu0 %932
      %v934 = vsel %vm930, %v897, -inf
      %935 = vmax.xlane.f32.xlu0 %v934
      %v936 = vpop.xlane.xlu0 %935
      %v937 = vsel %vm930, %v902, -inf
      %938 = vmax.xlane.f32.xlu0 %v937
      %v939 = vpop.xlane.xlu0 %938
      %v940 = vsel %vm930, %v907, -inf
      %941 = vmax.xlane.f32.xlu0 %v940
      %v942 = vpop.xlane.xlu0 %941
      %v943 = vsel %vm930, %v912, -inf
      %944 = vmax.xlane.f32.xlu0 %v943
      %v945 = vpop.xlane.xlu0 %944
      %v946 = vsel %vm930, %v917, -inf
      %947 = vmax.xlane.f32.xlu0 %v946
      %v948 = vpop.xlane.xlu0 %947
      %v949 = vsel %vm930, %v922, -inf
      %950 = vmax.xlane.f32.xlu0 %v949
      %v951 = vpop.xlane.xlu0 %950
      %v952 = vsel %vm930, %v927, -inf
      %953 = vmax.xlane.f32.xlu0 %v952
      %v954 = vpop.xlane.xlu0 %953
      %v955 = vsub.f32 %v892, %v933
      %v956 = vsub.f32 %v897, %v936
      %v957 = vsub.f32 %v902, %v939
      %v958 = vsub.f32 %v907, %v942
      %v959 = vsub.f32 %v912, %v945
      %v960 = vsub.f32 %v917, %v948
      %v961 = vsub.f32 %v922, %v951
      %v962 = vsub.f32 %v927, %v954
      %v963 = vmul.f32 %v955, 1.442695
      %v964 = vpow.pop %v963
      %v965 = vmul.f32 %v956, 1.442695
      %v966 = vpow.pop %v965
      %v967 = vmul.f32 %v957, 1.442695
      %v968 = vpow.pop %v967
      %v969 = vmul.f32 %v958, 1.442695
      %v970 = vpow.pop %v969
      %v971 = vmul.f32 %v959, 1.442695
      %v972 = vpow.pop %v971
      %v973 = vmul.f32 %v960, 1.442695
      %v974 = vpow.pop %v973
      %v975 = vmul.f32 %v961, 1.442695
      %v976 = vpow.pop %v975
      %v977 = vmul.f32 %v962, 1.442695
      %v978 = vpow.pop %v977
      %v979 = vsel %vm930, %v964, 0.0
      %980 = vadd.xlane.f32.xlu0 %v979
      %v981 = vpop.xlane.xlu0 %980
      %v982 = vsel %vm930, %v966, 0.0
      %983 = vadd.xlane.f32.xlu0 %v982
      %v984 = vpop.xlane.xlu0 %983
      %v985 = vsel %vm930, %v968, 0.0
      %986 = vadd.xlane.f32.xlu0 %v985
      %v987 = vpop.xlane.xlu0 %986
      %v988 = vsel %vm930, %v970, 0.0
      %989 = vadd.xlane.f32.xlu0 %v988
      %v990 = vpop.xlane.xlu0 %989
      %v991 = vsel %vm930, %v972, 0.0
      %992 = vadd.xlane.f32.xlu0 %v991
      %v993 = vpop.xlane.xlu0 %992
      %v994 = vsel %vm930, %v974, 0.0
      %995 = vadd.xlane.f32.xlu0 %v994
      %v996 = vpop.xlane.xlu0 %995
      %v997 = vsel %vm930, %v976, 0.0
      %998 = vadd.xlane.f32.xlu0 %v997
      %v999 = vpop.xlane.xlu0 %998
      %v1000 = vsel %vm930, %v978, 0.0
      %1001 = vadd.xlane.f32.xlu0 %v1000
      %v1002 = vpop.xlane.xlu0 %1001
      %v1003 = vrcp.pop %v981
      %v1004 = vrcp.pop %v984
      %v1005 = vrcp.pop %v987
      %v1006 = vrcp.pop %v990
      %v1007 = vrcp.pop %v993
      %v1008 = vrcp.pop %v996
      %v1009 = vrcp.pop %v999
      %v1010 = vrcp.pop %v1002
      %v1011 = vmul.f32 %v964, %v1003
      %v1012 = vmul.f32 %v966, %v1004
      %v1013 = vmul.f32 %v968, %v1005
      %v1014 = vmul.f32 %v970, %v1006
      %v1015 = vmul.f32 %v972, %v1007
      %v1016 = vmul.f32 %v974, %v1008
      %v1017 = vmul.f32 %v976, %v1009
      %v1018 = vmul.f32 %v978, %v1010
      %1019 = vrot.lane.b32.xlu0 %v739, 96
      %v1020 = vpop.permute.xlu0 %1019
      %1021 = vrot.lane.b32.xlu0 %v744, 96
      %v1022 = vpop.permute.xlu0 %1021
      %1023 = vrot.lane.b32.xlu0 %v749, 96
      %v1024 = vpop.permute.xlu0 %1023
      %1025 = vrot.lane.b32.xlu0 %v754, 96
      %v1026 = vpop.permute.xlu0 %1025
      %1027 = vrot.lane.b32.xlu0 %v759, 96
      %v1028 = vpop.permute.xlu0 %1027
      %1029 = vrot.lane.b32.xlu0 %v764, 96
      %v1030 = vpop.permute.xlu0 %1029
      %1031 = vrot.lane.b32.xlu0 %v769, 96
      %v1032 = vpop.permute.xlu0 %1031
      %1033 = vrot.lane.b32.xlu0 %v774, 96
      %v1034 = vpop.permute.xlu0 %1033
      %v1044 = vsel %vm930, %v1011, 0
      %v1047 = vsel %vm930, %v1012, 0
      %v1050 = vsel %vm930, %v1013, 0
      %v1053 = vsel %vm930, %v1014, 0
      %v1056 = vsel %vm930, %v1015, 0
      %v1059 = vsel %vm930, %v1016, 0
      %v1062 = vsel %vm930, %v1017, 0
      %v1065 = vsel %vm930, %v1018, 0
      %1067 = vmatprep.subr.mxu0 0.0
      %1068 = vmatpush1.msra.mxu0 %v1020
      %1069 = vmatprep.subr.mxu0 0.0
      %1070 = vmatpush1.msra.mxu0 %v1022
      %1071 = vmatprep.subr.mxu0 0.0
      %1072 = vmatpush1.msra.mxu0 %v1024
      %1073 = vmatprep.subr.mxu0 0.0
      %1074 = vmatpush1.msra.mxu0 %v1026
      %1075 = vmatprep.subr.mxu0 0.0
      %1076 = vmatpush1.msra.mxu0 %v1028
      %1077 = vmatprep.subr.mxu0 0.0
      %1078 = vmatpush1.msra.mxu0 %v1030
      %1079 = vmatprep.subr.mxu0 0.0
      %1080 = vmatpush1.msra.mxu0 %v1032
      %1081 = vmatprep.subr.mxu0 0.0
      %1082 = vmatpush1.msra.mxu0 %v1034
      %1083 = vmatprep.subr.mxu0 0.0
      %1084 = vmatpush1.msra.mxu0 0.0
      %1085 = vmatprep.subr.mxu0 0.0
      %1086 = vmatpush1.msra.mxu0 0.0
      %1087 = vmatprep.subr.mxu0 0.0
      %1088 = vmatpush1.msra.mxu0 0.0
      %1089 = vmatprep.subr.mxu0 0.0
      %1090 = vmatpush1.msra.mxu0 0.0
      %1091 = vmatprep.subr.mxu0 0.0
      %1092 = vmatpush1.msra.mxu0 0.0
      %1093 = vmatprep.subr.mxu0 0.0
      %1094 = vmatpush1.msra.mxu0 0.0
      %1095 = vmatprep.subr.mxu0 0.0
      %1096 = vmatpush1.msra.mxu0 0.0
      %1097 = vmatprep.subr.mxu0 0.0
      %1098 = vmatpush1.msra.mxu0 0.0
      %1099 = vmatprep.subr.mxu0 0.0
      %1100 = vmatpush1.msra.mxu0 0.0
      %1101 = vmatprep.subr.mxu0 0.0
      %1102 = vmatpush1.msra.mxu0 0.0
      %1103 = vmatprep.subr.mxu0 0.0
      %1104 = vmatpush1.msra.mxu0 0.0
      %1105 = vmatprep.subr.mxu0 0.0
      %1106 = vmatpush1.msra.mxu0 0.0
      %1107 = vmatprep.subr.mxu0 0.0
      %1108 = vmatpush1.msra.mxu0 0.0
      %1109 = vmatprep.subr.mxu0 0.0
      %1110 = vmatpush1.msra.mxu0 0.0
      %1111 = vmatprep.subr.mxu0 0.0
      %1112 = vmatpush1.msra.mxu0 0.0
      %1113 = vmatprep.subr.mxu0 0.0
      %1114 = vmatpush1.msra.mxu0 0.0
      %1115 = vmatprep.subr.mxu0 0.0
      %1116 = vmatpush1.msra.mxu0 0.0
      %1117 = vmatprep.subr.mxu0 0.0
      %1118 = vmatpush1.msra.mxu0 0.0
      %1119 = vmatprep.subr.mxu0 0.0
      %1120 = vmatpush1.msra.mxu0 0.0
      %1121 = vmatprep.subr.mxu0 0.0
      %1122 = vmatpush1.msra.mxu0 0.0
      %1123 = vmatprep.subr.mxu0 0.0
      %1124 = vmatpush1.msra.mxu0 0.0
      %1125 = vmatprep.subr.mxu0 0.0
      %1126 = vmatpush1.msra.mxu0 0.0
      %1127 = vmatprep.subr.mxu0 0.0
      %1128 = vmatpush1.msra.mxu0 0.0
      %1129 = vmatprep.subr.mxu0 0.0
      %1130 = vmatpush1.msra.mxu0 0.0
      %1131 = vmatprep.mubr.f32.mxu0 0.0
      %1132 = vmatmul.mubr.f32.gmra.mrb[0].mxu0 %v1044
      %v1133 = vpop.f32.mrb[0].mxu0
      %v1134 = vadd.f32 0.0, %v1133
      %v1135 = vpop.f32.mrb[0].mxu0
      %1136 = vmatprep.mubr.f32.mxu0 0.0
      %1137 = vmatmul.mubr.f32.gmra.mrb[0].mxu0 %v1047
      %v1138 = vpop.f32.mrb[0].mxu0
      %v1139 = vadd.f32 0.0, %v1138
      %v1140 = vpop.f32.mrb[0].mxu0
      %1141 = vmatprep.mubr.f32.mxu0 0.0
      %1142 = vmatmul.mubr.f32.gmra.mrb[0].mxu0 %v1050
      %v1143 = vpop.f32.mrb[0].mxu0
      %v1144 = vadd.f32 0.0, %v1143
      %v1145 = vpop.f32.mrb[0].mxu0
      %1146 = vmatprep.mubr.f32.mxu0 0.0
      %1147 = vmatmul.mubr.f32.gmra.mrb[0].mxu0 %v1053
      %v1148 = vpop.f32.mrb[0].mxu0
      %v1149 = vadd.f32 0.0, %v1148
      %v1150 = vpop.f32.mrb[0].mxu0
      %1151 = vmatprep.mubr.f32.mxu0 0.0
      %1152 = vmatmul.mubr.f32.gmra.mrb[0].mxu0 %v1056
      %v1153 = vpop.f32.mrb[0].mxu0
      %v1154 = vadd.f32 0.0, %v1153
      %v1155 = vpop.f32.mrb[0].mxu0
      %1156 = vmatprep.mubr.f32.mxu0 0.0
      %1157 = vmatmul.mubr.f32.gmra.mrb[0].mxu0 %v1059
      %v1158 = vpop.f32.mrb[0].mxu0
      %v1159 = vadd.f32 0.0, %v1158
      %v1160 = vpop.f32.mrb[0].mxu0
      %1161 = vmatprep.mubr.f32.mxu0 0.0
      %1162 = vmatmul.mubr.f32.gmra.mrb[0].mxu0 %v1062
      %v1163 = vpop.f32.mrb[0].mxu0
      %v1164 = vadd.f32 0.0, %v1163
      %v1165 = vpop.f32.mrb[0].mxu0
      %1166 = vmatprep.mubr.f32.mxu0 0.0
      %1167 = vmatmul.mubr.f32.gmra.mrb[0].mxu0 %v1065
      %v1168 = vpop.f32.mrb[0].mxu0
      %v1169 = vadd.f32 0.0, %v1168
      %v1170 = vpop.f32.mrb[0].mxu0
      %1171 = vdwg.mxu0
      %v1173 = vsel %vm518, %v1134, 0
      %v1176 = vsel %vm518, %v1139, 0
      %v1179 = vsel %vm518, %v1144, 0
      %v1182 = vsel %vm518, %v1149, 0
      %v1185 = vsel %vm518, %v1154, 0
      %v1188 = vsel %vm518, %v1159, 0
      %v1191 = vsel %vm518, %v1164, 0
      %v1194 = vsel %vm518, %v1169, 0
      %1196 = vmatprep.subr.mxu0 0.0
      %1197 = vmatpush1.msra.mxu0 %v446
      %1198 = vmatprep.subr.mxu0 0.0
      %1199 = vmatpush1.msra.mxu0 %v447
      %1200 = vmatprep.subr.mxu0 0.0
      %1201 = vmatpush1.msra.mxu0 %v448
      %1202 = vmatprep.subr.mxu0 0.0
      %1203 = vmatpush1.msra.mxu0 %v449
      %1204 = vmatprep.subr.mxu0 0.0
      %1205 = vmatpush1.msra.mxu0 0.0
      %1206 = vmatprep.subr.mxu0 0.0
      %1207 = vmatpush1.msra.mxu0 0.0
      %1208 = vmatprep.subr.mxu0 0.0
      %1209 = vmatpush1.msra.mxu0 0.0
      %1210 = vmatprep.subr.mxu0 0.0
      %1211 = vmatpush1.msra.mxu0 0.0
      %1212 = vmatprep.subr.mxu0 0.0
      %1213 = vmatpush1.msra.mxu0 0.0
      %1214 = vmatprep.subr.mxu0 0.0
      %1215 = vmatpush1.msra.mxu0 0.0
      %1216 = vmatprep.subr.mxu0 0.0
      %1217 = vmatpush1.msra.mxu0 0.0
      %1218 = vmatprep.subr.mxu0 0.0
      %1219 = vmatpush1.msra.mxu0 0.0
      %1220 = vmatprep.subr.mxu0 0.0
      %1221 = vmatpush1.msra.mxu0 0.0
      %1222 = vmatprep.subr.mxu0 0.0
      %1223 = vmatpush1.msra.mxu0 0.0
      %1224 = vmatprep.subr.mxu0 0.0
      %1225 = vmatpush1.msra.mxu0 0.0
      %1226 = vmatprep.subr.mxu0 0.0
      %1227 = vmatpush1.msra.mxu0 0.0
      %1228 = vmatprep.subr.mxu0 0.0
      %1229 = vmatpush1.msra.mxu0 0.0
      %1230 = vmatprep.subr.mxu0 0.0
      %1231 = vmatpush1.msra.mxu0 0.0
      %1232 = vmatprep.subr.mxu0 0.0
      %1233 = vmatpush1.msra.mxu0 0.0
      %1234 = vmatprep.subr.mxu0 0.0
      %1235 = vmatpush1.msra.mxu0 0.0
      %1236 = vmatprep.subr.mxu0 0.0
      %1237 = vmatpush1.msra.mxu0 0.0
      %1238 = vmatprep.subr.mxu0 0.0
      %1239 = vmatpush1.msra.mxu0 0.0
      %1240 = vmatprep.subr.mxu0 0.0
      %1241 = vmatpush1.msra.mxu0 0.0
      %1242 = vmatprep.subr.mxu0 0.0
      %1243 = vmatpush1.msra.mxu0 0.0
      %1244 = vmatprep.subr.mxu0 0.0
      %1245 = vmatpush1.msra.mxu0 0.0
      %1246 = vmatprep.subr.mxu0 0.0
      %1247 = vmatpush1.msra.mxu0 0.0
      %1248 = vmatprep.subr.mxu0 0.0
      %1249 = vmatpush1.msra.mxu0 0.0
      %1250 = vmatprep.subr.mxu0 0.0
      %1251 = vmatpush1.msra.mxu0 0.0
      %1252 = vmatprep.subr.mxu0 0.0
      %1253 = vmatpush1.msra.mxu0 0.0
      %1254 = vmatprep.subr.mxu0 0.0
      %1255 = vmatpush1.msra.mxu0 0.0
      %1256 = vmatprep.subr.mxu0 0.0
      %1257 = vmatpush1.msra.mxu0 0.0
      %1258 = vmatprep.subr.mxu0 0.0
      %1259 = vmatpush1.msra.mxu0 0.0
      %1260 = vmatprep.mubr.f32.mxu0 0.0
      %1261 = vmatmul.mubr.f32.gmra.mrb[0].mxu0 %v1173
      %v1262 = vpop.f32.mrb[0].mxu0
      %v1263 = vadd.f32 0.0, %v1262
      %v1264 = vpop.f32.mrb[0].mxu0
      %1265 = vmatprep.mubr.f32.mxu0 0.0
      %1266 = vmatmul.mubr.f32.gmra.mrb[0].mxu0 %v1176
      %v1267 = vpop.f32.mrb[0].mxu0
      %v1268 = vadd.f32 0.0, %v1267
      %v1269 = vpop.f32.mrb[0].mxu0
      %1270 = vmatprep.mubr.f32.mxu0 0.0
      %1271 = vmatmul.mubr.f32.gmra.mrb[0].mxu0 %v1179
      %v1272 = vpop.f32.mrb[0].mxu0
      %v1273 = vadd.f32 0.0, %v1272
      %v1274 = vpop.f32.mrb[0].mxu0
      %1275 = vmatprep.mubr.f32.mxu0 0.0
      %1276 = vmatmul.mubr.f32.gmra.mrb[0].mxu0 %v1182
      %v1277 = vpop.f32.mrb[0].mxu0
      %v1278 = vadd.f32 0.0, %v1277
      %v1279 = vpop.f32.mrb[0].mxu0
      %1280 = vmatprep.mubr.f32.mxu0 0.0
      %1281 = vmatmul.mubr.f32.gmra.mrb[0].mxu0 %v1185
      %v1282 = vpop.f32.mrb[0].mxu0
      %v1283 = vadd.f32 0.0, %v1282
      %v1284 = vpop.f32.mrb[0].mxu0
      %1285 = vmatprep.mubr.f32.mxu0 0.0
      %1286 = vmatmul.mubr.f32.gmra.mrb[0].mxu0 %v1188
      %v1287 = vpop.f32.mrb[0].mxu0
      %v1288 = vadd.f32 0.0, %v1287
      %v1289 = vpop.f32.mrb[0].mxu0
      %1290 = vmatprep.mubr.f32.mxu0 0.0
      %1291 = vmatmul.mubr.f32.gmra.mrb[0].mxu0 %v1191
      %v1292 = vpop.f32.mrb[0].mxu0
      %v1293 = vadd.f32 0.0, %v1292
      %v1294 = vpop.f32.mrb[0].mxu0
      %1295 = vmatprep.mubr.f32.mxu0 0.0
      %1296 = vmatmul.mubr.f32.gmra.mrb[0].mxu0 %v1194
      %v1297 = vpop.f32.mrb[0].mxu0
      %v1298 = vadd.f32 0.0, %v1297
      %v1299 = vpop.f32.mrb[0].mxu0
      %1300 = vdwg.mxu0
      %v1301 = vsel %vm518, %v1263, 0.0
      %1302 = vadd.xlane.f32.xlu0 %v1301
      %v1303 = vpop.xlane.xlu0 %1302
      %v1304 = vsel %vm518, %v1268, 0.0
      %1305 = vadd.xlane.f32.xlu0 %v1304
      %v1306 = vpop.xlane.xlu0 %1305
      %v1307 = vsel %vm518, %v1273, 0.0
      %1308 = vadd.xlane.f32.xlu0 %v1307
      %v1309 = vpop.xlane.xlu0 %1308
      %v1310 = vsel %vm518, %v1278, 0.0
      %1311 = vadd.xlane.f32.xlu0 %v1310
      %v1312 = vpop.xlane.xlu0 %1311
      %v1313 = vsel %vm518, %v1283, 0.0
      %1314 = vadd.xlane.f32.xlu0 %v1313
      %v1315 = vpop.xlane.xlu0 %1314
      %v1316 = vsel %vm518, %v1288, 0.0
      %1317 = vadd.xlane.f32.xlu0 %v1316
      %v1318 = vpop.xlane.xlu0 %1317
      %v1319 = vsel %vm518, %v1293, 0.0
      %1320 = vadd.xlane.f32.xlu0 %v1319
      %v1321 = vpop.xlane.xlu0 %1320
      %v1322 = vsel %vm518, %v1298, 0.0
      %1323 = vadd.xlane.f32.xlu0 %v1322
      %v1324 = vpop.xlane.xlu0 %1323
      %v1325 = vrcp.pop 32.0
      %v1326 = vmul.f32 %v1303, %v1325
      %v1327 = vmul.f32 %v1306, %v1325
      %v1328 = vmul.f32 %v1309, %v1325
      %v1329 = vmul.f32 %v1312, %v1325
      %v1330 = vmul.f32 %v1315, %v1325
      %v1331 = vmul.f32 %v1318, %v1325
      %v1332 = vmul.f32 %v1321, %v1325
      %v1333 = vmul.f32 %v1324, %v1325
      %v1334 = vsub.f32 %v1263, %v1326
      %v1335 = vsub.f32 %v1268, %v1327
      %v1336 = vsub.f32 %v1273, %v1328
      %v1337 = vsub.f32 %v1278, %v1329
      %v1338 = vsub.f32 %v1283, %v1330
      %v1339 = vsub.f32 %v1288, %v1331
      %v1340 = vsub.f32 %v1293, %v1332
      %v1341 = vsub.f32 %v1298, %v1333
      %v1342 = vmul.f32 %v1334, %v1334
      %v1343 = vmul.f32 %v1335, %v1335
      %v1344 = vmul.f32 %v1336, %v1336
      %v1345 = vmul.f32 %v1337, %v1337
      %v1346 = vmul.f32 %v1338, %v1338
      %v1347 = vmul.f32 %v1339, %v1339
      %v1348 = vmul.f32 %v1340, %v1340
      %v1349 = vmul.f32 %v1341, %v1341
      %v1350 = vsel %vm518, %v1342, 0.0
      %1351 = vadd.xlane.f32.xlu0 %v1350
      %v1352 = vpop.xlane.xlu0 %1351
      %v1353 = vsel %vm518, %v1343, 0.0
      %1354 = vadd.xlane.f32.xlu0 %v1353
      %v1355 = vpop.xlane.xlu0 %1354
      %v1356 = vsel %vm518, %v1344, 0.0
      %1357 = vadd.xlane.f32.xlu0 %v1356
      %v1358 = vpop.xlane.xlu0 %1357
      %v1359 = vsel %vm518, %v1345, 0.0
      %1360 = vadd.xlane.f32.xlu0 %v1359
      %v1361 = vpop.xlane.xlu0 %1360
      %v1362 = vsel %vm518, %v1346, 0.0
      %1363 = vadd.xlane.f32.xlu0 %v1362
      %v1364 = vpop.xlane.xlu0 %1363
      %v1365 = vsel %vm518, %v1347, 0.0
      %1366 = vadd.xlane.f32.xlu0 %v1365
      %v1367 = vpop.xlane.xlu0 %1366
      %v1368 = vsel %vm518, %v1348, 0.0
      %1369 = vadd.xlane.f32.xlu0 %v1368
      %v1370 = vpop.xlane.xlu0 %1369
      %v1371 = vsel %vm518, %v1349, 0.0
      %1372 = vadd.xlane.f32.xlu0 %v1371
      %v1373 = vpop.xlane.xlu0 %1372
      %v1374 = vmul.f32 %v1352, %v1325
      %v1375 = vmul.f32 %v1355, %v1325
      %v1376 = vmul.f32 %v1358, %v1325
      %v1377 = vmul.f32 %v1361, %v1325
      %v1378 = vmul.f32 %v1364, %v1325
      %v1379 = vmul.f32 %v1367, %v1325
      %v1380 = vmul.f32 %v1370, %v1325
      %v1381 = vmul.f32 %v1373, %v1325
      %v1382 = vadd.f32 %v1374, 1e-05
      %v1383 = vadd.f32 %v1375, 1e-05
      %v1384 = vadd.f32 %v1376, 1e-05
      %v1385 = vadd.f32 %v1377, 1e-05
      %v1386 = vadd.f32 %v1378, 1e-05
      %v1387 = vadd.f32 %v1379, 1e-05
      %v1388 = vadd.f32 %v1380, 1e-05
      %v1389 = vadd.f32 %v1381, 1e-05
      %v1390 = vrsqrt.pop %v1382
      %v1391 = vrsqrt.pop %v1383
      %v1392 = vrsqrt.pop %v1384
      %v1393 = vrsqrt.pop %v1385
      %v1394 = vrsqrt.pop %v1386
      %v1395 = vrsqrt.pop %v1387
      %v1396 = vrsqrt.pop %v1388
      %v1397 = vrsqrt.pop %v1389
      %v1398 = vmul.f32 %v1334, %v1390
      %v1399 = vmul.f32 %v1335, %v1391
      %v1400 = vmul.f32 %v1336, %v1392
      %v1401 = vmul.f32 %v1337, %v1393
      %v1402 = vmul.f32 %v1338, %v1394
      %v1403 = vmul.f32 %v1339, %v1395
      %v1404 = vmul.f32 %v1340, %v1396
      %v1405 = vmul.f32 %v1341, %v1397
      %v1407 = vlaneseq
      %v1408 = vshrl.u32 %v1407, 7
      %v1409 = vsub.s32 0, %v1408
      %v1410 = vrot.slane %v450, %v1409
      %v1412 = vmul.f32 %v1398, %v1410
      %v1413 = vmul.f32 %v1399, %v1410
      %v1414 = vmul.f32 %v1400, %v1410
      %v1415 = vmul.f32 %v1401, %v1410
      %v1416 = vmul.f32 %v1402, %v1410
      %v1417 = vmul.f32 %v1403, %v1410
      %v1418 = vmul.f32 %v1404, %v1410
      %v1419 = vmul.f32 %v1405, %v1410
      %v1421 = vlaneseq
      %v1422 = vshrl.u32 %v1421, 7
      %v1423 = vsub.s32 0, %v1422
      %v1424 = vrot.slane %v451, %v1423
      %v1426 = vadd.f32 %v1412, %v1424
      %v1427 = vadd.f32 %v1413, %v1424
      %v1428 = vadd.f32 %v1414, %v1424
      %v1429 = vadd.f32 %v1415, %v1424
      %v1430 = vadd.f32 %v1416, %v1424
      %v1431 = vadd.f32 %v1417, %v1424
      %v1432 = vadd.f32 %v1418, %v1424
      %v1433 = vadd.f32 %v1419, %v1424
      %v1435 = vsel %vm518, %v1426, 0
      %v1438 = vsel %vm518, %v1427, 0
      %v1441 = vsel %vm518, %v1428, 0
      %v1444 = vsel %vm518, %v1429, 0
      %v1447 = vsel %vm518, %v1430, 0
      %v1450 = vsel %vm518, %v1431, 0
      %v1453 = vsel %vm518, %v1432, 0
      %v1456 = vsel %vm518, %v1433, 0
      %1458 = vmatprep.subr.mxu0 %v461
      %1459 = vmatpush1.msra.mxu0 %v460
      %1460 = vmatprep.subr.mxu0 %v463
      %1461 = vmatpush1.msra.mxu0 %v462
      %1462 = vmatprep.subr.mxu0 %v465
      %1463 = vmatpush1.msra.mxu0 %v464
      %1464 = vmatprep.subr.mxu0 %v467
      %1465 = vmatpush1.msra.mxu0 %v466
      %1466 = vmatprep.subr.mxu0 0.0
      %1467 = vmatpush1.msra.mxu0 0.0
      %1468 = vmatprep.subr.mxu0 0.0
      %1469 = vmatpush1.msra.mxu0 0.0
      %1470 = vmatprep.subr.mxu0 0.0
      %1471 = vmatpush1.msra.mxu0 0.0
      %1472 = vmatprep.subr.mxu0 0.0
      %1473 = vmatpush1.msra.mxu0 0.0
      %1474 = vmatprep.subr.mxu0 0.0
      %1475 = vmatpush1.msra.mxu0 0.0
      %1476 = vmatprep.subr.mxu0 0.0
      %1477 = vmatpush1.msra.mxu0 0.0
      %1478 = vmatprep.subr.mxu0 0.0
      %1479 = vmatpush1.msra.mxu0 0.0
      %1480 = vmatprep.subr.mxu0 0.0
      %1481 = vmatpush1.msra.mxu0 0.0
      %1482 = vmatprep.subr.mxu0 0.0
      %1483 = vmatpush1.msra.mxu0 0.0
      %1484 = vmatprep.subr.mxu0 0.0
      %1485 = vmatpush1.msra.mxu0 0.0
      %1486 = vmatprep.subr.mxu0 0.0
      %1487 = vmatpush1.msra.mxu0 0.0
      %1488 = vmatprep.subr.mxu0 0.0
      %1489 = vmatpush1.msra.mxu0 0.0
      %1490 = vmatprep.subr.mxu0 0.0
      %1491 = vmatpush1.msra.mxu0 0.0
      %1492 = vmatprep.subr.mxu0 0.0
      %1493 = vmatpush1.msra.mxu0 0.0
      %1494 = vmatprep.subr.mxu0 0.0
      %1495 = vmatpush1.msra.mxu0 0.0
      %1496 = vmatprep.subr.mxu0 0.0
      %1497 = vmatpush1.msra.mxu0 0.0
      %1498 = vmatprep.subr.mxu0 0.0
      %1499 = vmatpush1.msra.mxu0 0.0
      %1500 = vmatprep.subr.mxu0 0.0
      %1501 = vmatpush1.msra.mxu0 0.0
      %1502 = vmatprep.subr.mxu0 0.0
      %1503 = vmatpush1.msra.mxu0 0.0
      %1504 = vmatprep.subr.mxu0 0.0
      %1505 = vmatpush1.msra.mxu0 0.0
      %1506 = vmatprep.subr.mxu0 0.0
      %1507 = vmatpush1.msra.mxu0 0.0
      %1508 = vmatprep.subr.mxu0 0.0
      %1509 = vmatpush1.msra.mxu0 0.0
      %1510 = vmatprep.subr.mxu0 0.0
      %1511 = vmatpush1.msra.mxu0 0.0
      %1512 = vmatprep.subr.mxu0 0.0
      %1513 = vmatpush1.msra.mxu0 0.0
      %1514 = vmatprep.subr.mxu0 0.0
      %1515 = vmatpush1.msra.mxu0 0.0
      %1516 = vmatprep.subr.mxu0 0.0
      %1517 = vmatpush1.msra.mxu0 0.0
      %1518 = vmatprep.subr.mxu0 0.0
      %1519 = vmatpush1.msra.mxu0 0.0
      %1520 = vmatprep.subr.mxu0 0.0
      %1521 = vmatpush1.msra.mxu0 0.0
      %1522 = vmatprep.mubr.f32.mxu0 0.0
      %1523 = vmatmul.mubr.f32.gmra.mrb[0].mxu0 %v1435
      %v1524 = vpop.f32.mrb[0].mxu0
      %v1525 = vadd.f32 0.0, %v1524
      %v1526 = vpop.f32.mrb[0].mxu0
      %v1527 = vadd.f32 0.0, %v1526
      %1528 = vmatprep.mubr.f32.mxu0 0.0
      %1529 = vmatmul.mubr.f32.gmra.mrb[0].mxu0 %v1438
      %v1530 = vpop.f32.mrb[0].mxu0
      %v1531 = vadd.f32 0.0, %v1530
      %v1532 = vpop.f32.mrb[0].mxu0
      %v1533 = vadd.f32 0.0, %v1532
      %1534 = vmatprep.mubr.f32.mxu0 0.0
      %1535 = vmatmul.mubr.f32.gmra.mrb[0].mxu0 %v1441
      %v1536 = vpop.f32.mrb[0].mxu0
      %v1537 = vadd.f32 0.0, %v1536
      %v1538 = vpop.f32.mrb[0].mxu0
      %v1539 = vadd.f32 0.0, %v1538
      %1540 = vmatprep.mubr.f32.mxu0 0.0
      %1541 = vmatmul.mubr.f32.gmra.mrb[0].mxu0 %v1444
      %v1542 = vpop.f32.mrb[0].mxu0
      %v1543 = vadd.f32 0.0, %v1542
      %v1544 = vpop.f32.mrb[0].mxu0
      %v1545 = vadd.f32 0.0, %v1544
      %1546 = vmatprep.mubr.f32.mxu0 0.0
      %1547 = vmatmul.mubr.f32.gmra.mrb[0].mxu0 %v1447
      %v1548 = vpop.f32.mrb[0].mxu0
      %v1549 = vadd.f32 0.0, %v1548
      %v1550 = vpop.f32.mrb[0].mxu0
      %v1551 = vadd.f32 0.0, %v1550
      %1552 = vmatprep.mubr.f32.mxu0 0.0
      %1553 = vmatmul.mubr.f32.gmra.mrb[0].mxu0 %v1450
      %v1554 = vpop.f32.mrb[0].mxu0
      %v1555 = vadd.f32 0.0, %v1554
      %v1556 = vpop.f32.mrb[0].mxu0
      %v1557 = vadd.f32 0.0, %v1556
      %1558 = vmatprep.mubr.f32.mxu0 0.0
      %1559 = vmatmul.mubr.f32.gmra.mrb[0].mxu0 %v1453
      %v1560 = vpop.f32.mrb[0].mxu0
      %v1561 = vadd.f32 0.0, %v1560
      %v1562 = vpop.f32.mrb[0].mxu0
      %v1563 = vadd.f32 0.0, %v1562
      %1564 = vmatprep.mubr.f32.mxu0 0.0
      %1565 = vmatmul.mubr.f32.gmra.mrb[0].mxu0 %v1456
      %v1566 = vpop.f32.mrb[0].mxu0
      %v1567 = vadd.f32 0.0, %v1566
      %v1568 = vpop.f32.mrb[0].mxu0
      %v1569 = vadd.f32 0.0, %v1568
      %1570 = vdwg.mxu0
      %1571 = vmatprep.subr.mxu0 %v453
      %1572 = vmatpush1.msra.mxu0 %v452
      %1573 = vmatprep.subr.mxu0 %v455
      %1574 = vmatpush1.msra.mxu0 %v454
      %1575 = vmatprep.subr.mxu0 %v457
      %1576 = vmatpush1.msra.mxu0 %v456
      %1577 = vmatprep.subr.mxu0 %v459
      %1578 = vmatpush1.msra.mxu0 %v458
      %1579 = vmatprep.subr.mxu0 0.0
      %1580 = vmatpush1.msra.mxu0 0.0
      %1581 = vmatprep.subr.mxu0 0.0
      %1582 = vmatpush1.msra.mxu0 0.0
      %1583 = vmatprep.subr.mxu0 0.0
      %1584 = vmatpush1.msra.mxu0 0.0
      %1585 = vmatprep.subr.mxu0 0.0
      %1586 = vmatpush1.msra.mxu0 0.0
      %1587 = vmatprep.subr.mxu0 0.0
      %1588 = vmatpush1.msra.mxu0 0.0
      %1589 = vmatprep.subr.mxu0 0.0
      %1590 = vmatpush1.msra.mxu0 0.0
      %1591 = vmatprep.subr.mxu0 0.0
      %1592 = vmatpush1.msra.mxu0 0.0
      %1593 = vmatprep.subr.mxu0 0.0
      %1594 = vmatpush1.msra.mxu0 0.0
      %1595 = vmatprep.subr.mxu0 0.0
      %1596 = vmatpush1.msra.mxu0 0.0
      %1597 = vmatprep.subr.mxu0 0.0
      %1598 = vmatpush1.msra.mxu0 0.0
      %1599 = vmatprep.subr.mxu0 0.0
      %1600 = vmatpush1.msra.mxu0 0.0
      %1601 = vmatprep.subr.mxu0 0.0
      %1602 = vmatpush1.msra.mxu0 0.0
      %1603 = vmatprep.subr.mxu0 0.0
      %1604 = vmatpush1.msra.mxu0 0.0
      %1605 = vmatprep.subr.mxu0 0.0
      %1606 = vmatpush1.msra.mxu0 0.0
      %1607 = vmatprep.subr.mxu0 0.0
      %1608 = vmatpush1.msra.mxu0 0.0
      %1609 = vmatprep.subr.mxu0 0.0
      %1610 = vmatpush1.msra.mxu0 0.0
      %1611 = vmatprep.subr.mxu0 0.0
      %1612 = vmatpush1.msra.mxu0 0.0
      %1613 = vmatprep.subr.mxu0 0.0
      %1614 = vmatpush1.msra.mxu0 0.0
      %1615 = vmatprep.subr.mxu0 0.0
      %1616 = vmatpush1.msra.mxu0 0.0
      %1617 = vmatprep.subr.mxu0 0.0
      %1618 = vmatpush1.msra.mxu0 0.0
      %1619 = vmatprep.subr.mxu0 0.0
      %1620 = vmatpush1.msra.mxu0 0.0
      %1621 = vmatprep.subr.mxu0 0.0
      %1622 = vmatpush1.msra.mxu0 0.0
      %1623 = vmatprep.subr.mxu0 0.0
      %1624 = vmatpush1.msra.mxu0 0.0
      %1625 = vmatprep.subr.mxu0 0.0
      %1626 = vmatpush1.msra.mxu0 0.0
      %1627 = vmatprep.subr.mxu0 0.0
      %1628 = vmatpush1.msra.mxu0 0.0
      %1629 = vmatprep.subr.mxu0 0.0
      %1630 = vmatpush1.msra.mxu0 0.0
      %1631 = vmatprep.subr.mxu0 0.0
      %1632 = vmatpush1.msra.mxu0 0.0
      %1633 = vmatprep.subr.mxu0 0.0
      %1634 = vmatpush1.msra.mxu0 0.0
      %1635 = vmatprep.mubr.f32.mxu0 0.0
      %1636 = vmatmul.mubr.f32.gmra.mrb[0].mxu0 %v520
      %v1637 = vpop.f32.mrb[0].mxu0
      %v1638 = vadd.f32 %v1525, %v1637
      %v1639 = vpop.f32.mrb[0].mxu0
      %v1640 = vadd.f32 %v1527, %v1639
      %1641 = vmatprep.mubr.f32.mxu0 0.0
      %1642 = vmatmul.mubr.f32.gmra.mrb[0].mxu0 %v523
      %v1643 = vpop.f32.mrb[0].mxu0
      %v1644 = vadd.f32 %v1531, %v1643
      %v1645 = vpop.f32.mrb[0].mxu0
      %v1646 = vadd.f32 %v1533, %v1645
      %1647 = vmatprep.mubr.f32.mxu0 0.0
      %1648 = vmatmul.mubr.f32.gmra.mrb[0].mxu0 %v526
      %v1649 = vpop.f32.mrb[0].mxu0
      %v1650 = vadd.f32 %v1537, %v1649
      %v1651 = vpop.f32.mrb[0].mxu0
      %v1652 = vadd.f32 %v1539, %v1651
      %1653 = vmatprep.mubr.f32.mxu0 0.0
      %1654 = vmatmul.mubr.f32.gmra.mrb[0].mxu0 %v529
      %v1655 = vpop.f32.mrb[0].mxu0
      %v1656 = vadd.f32 %v1543, %v1655
      %v1657 = vpop.f32.mrb[0].mxu0
      %v1658 = vadd.f32 %v1545, %v1657
      %1659 = vmatprep.mubr.f32.mxu0 0.0
      %1660 = vmatmul.mubr.f32.gmra.mrb[0].mxu0 %v532
      %v1661 = vpop.f32.mrb[0].mxu0
      %v1662 = vadd.f32 %v1549, %v1661
      %v1663 = vpop.f32.mrb[0].mxu0
      %v1664 = vadd.f32 %v1551, %v1663
      %1665 = vmatprep.mubr.f32.mxu0 0.0
      %1666 = vmatmul.mubr.f32.gmra.mrb[0].mxu0 %v535
      %v1667 = vpop.f32.mrb[0].mxu0
      %v1668 = vadd.f32 %v1555, %v1667
      %v1669 = vpop.f32.mrb[0].mxu0
      %v1670 = vadd.f32 %v1557, %v1669
      %1671 = vmatprep.mubr.f32.mxu0 0.0
      %1672 = vmatmul.mubr.f32.gmra.mrb[0].mxu0 %v538
      %v1673 = vpop.f32.mrb[0].mxu0
      %v1674 = vadd.f32 %v1561, %v1673
      %v1675 = vpop.f32.mrb[0].mxu0
      %v1676 = vadd.f32 %v1563, %v1675
      %1677 = vmatprep.mubr.f32.mxu0 0.0
      %1678 = vmatmul.mubr.f32.gmra.mrb[0].mxu0 %v541
      %v1679 = vpop.f32.mrb[0].mxu0
      %v1680 = vadd.f32 %v1567, %v1679
      %v1681 = vpop.f32.mrb[0].mxu0
      %v1682 = vadd.f32 %v1569, %v1681
      %1683 = vdwg.mxu0
      %v1684 = vmul.f32 %v1638, 0.5
      %v1685 = vmul.f32 %v1640, 0.5
      %v1686 = vmul.f32 %v1644, 0.5
      %v1687 = vmul.f32 %v1646, 0.5
      %v1688 = vmul.f32 %v1650, 0.5
      %v1689 = vmul.f32 %v1652, 0.5
      %v1690 = vmul.f32 %v1656, 0.5
      %v1691 = vmul.f32 %v1658, 0.5
      %v1692 = vmul.f32 %v1662, 0.5
      %v1693 = vmul.f32 %v1664, 0.5
      %v1694 = vmul.f32 %v1668, 0.5
      %v1695 = vmul.f32 %v1670, 0.5
      %v1696 = vmul.f32 %v1674, 0.5
      %v1697 = vmul.f32 %v1676, 0.5
      %v1698 = vmul.f32 %v1680, 0.5
      %v1699 = vmul.f32 %v1682, 0.5
      %v1700 = vmul.f32 %v1638, 0.70710677
      %v1701 = vmul.f32 %v1640, 0.70710677
      %v1702 = vmul.f32 %v1644, 0.70710677
      %v1703 = vmul.f32 %v1646, 0.70710677
      %v1704 = vmul.f32 %v1650, 0.70710677
      %v1705 = vmul.f32 %v1652, 0.70710677
      %v1706 = vmul.f32 %v1656, 0.70710677
      %v1707 = vmul.f32 %v1658, 0.70710677
      %v1708 = vmul.f32 %v1662, 0.70710677
      %v1709 = vmul.f32 %v1664, 0.70710677
      %v1710 = vmul.f32 %v1668, 0.70710677
      %v1711 = vmul.f32 %v1670, 0.70710677
      %v1712 = vmul.f32 %v1674, 0.70710677
      %v1713 = vmul.f32 %v1676, 0.70710677
      %v1714 = vmul.f32 %v1680, 0.70710677
      %v1715 = vmul.f32 %v1682, 0.70710677
      %v1716 = verf.f32.pop %v1700
      %v1717 = verf.f32.pop %v1701
      %v1718 = verf.f32.pop %v1702
      %v1719 = verf.f32.pop %v1703
      %v1720 = verf.f32.pop %v1704
      %v1721 = verf.f32.pop %v1705
      %v1722 = verf.f32.pop %v1706
      %v1723 = verf.f32.pop %v1707
      %v1724 = verf.f32.pop %v1708
      %v1725 = verf.f32.pop %v1709
      %v1726 = verf.f32.pop %v1710
      %v1727 = verf.f32.pop %v1711
      %v1728 = verf.f32.pop %v1712
      %v1729 = verf.f32.pop %v1713
      %v1730 = verf.f32.pop %v1714
      %v1731 = verf.f32.pop %v1715
      %v1732 = vadd.f32 %v1716, 1.0
      %v1733 = vadd.f32 %v1717, 1.0
      %v1734 = vadd.f32 %v1718, 1.0
      %v1735 = vadd.f32 %v1719, 1.0
      %v1736 = vadd.f32 %v1720, 1.0
      %v1737 = vadd.f32 %v1721, 1.0
      %v1738 = vadd.f32 %v1722, 1.0
      %v1739 = vadd.f32 %v1723, 1.0
      %v1740 = vadd.f32 %v1724, 1.0
      %v1741 = vadd.f32 %v1725, 1.0
      %v1742 = vadd.f32 %v1726, 1.0
      %v1743 = vadd.f32 %v1727, 1.0
      %v1744 = vadd.f32 %v1728, 1.0
      %v1745 = vadd.f32 %v1729, 1.0
      %v1746 = vadd.f32 %v1730, 1.0
      %v1747 = vadd.f32 %v1731, 1.0
      %v1748 = vmul.f32 %v1684, %v1732
      %v1749 = vmul.f32 %v1685, %v1733
      %v1750 = vmul.f32 %v1686, %v1734
      %v1751 = vmul.f32 %v1687, %v1735
      %v1752 = vmul.f32 %v1688, %v1736
      %v1753 = vmul.f32 %v1689, %v1737
      %v1754 = vmul.f32 %v1690, %v1738
      %v1755 = vmul.f32 %v1691, %v1739
      %v1756 = vmul.f32 %v1692, %v1740
      %v1757 = vmul.f32 %v1693, %v1741
      %v1758 = vmul.f32 %v1694, %v1742
      %v1759 = vmul.f32 %v1695, %v1743
      %v1760 = vmul.f32 %v1696, %v1744
      %v1761 = vmul.f32 %v1697, %v1745
      %v1762 = vmul.f32 %v1698, %v1746
      %v1763 = vmul.f32 %v1699, %v1747
      %1764 = vmatprep.subr.mxu0 0.0
      %1765 = vmatpush1.msra.mxu0 %v468
      %1766 = vmatprep.subr.mxu0 0.0
      %1767 = vmatpush1.msra.mxu0 %v469
      %1768 = vmatprep.subr.mxu0 0.0
      %1769 = vmatpush1.msra.mxu0 %v470
      %1770 = vmatprep.subr.mxu0 0.0
      %1771 = vmatpush1.msra.mxu0 %v471
      %1772 = vmatprep.subr.mxu0 0.0
      %1773 = vmatpush1.msra.mxu0 %v472
      %1774 = vmatprep.subr.mxu0 0.0
      %1775 = vmatpush1.msra.mxu0 %v473
      %1776 = vmatprep.subr.mxu0 0.0
      %1777 = vmatpush1.msra.mxu0 %v474
      %1778 = vmatprep.subr.mxu0 0.0
      %1779 = vmatpush1.msra.mxu0 %v475
      %1780 = vmatprep.subr.mxu0 0.0
      %1781 = vmatpush1.msra.mxu0 %v476
      %1782 = vmatprep.subr.mxu0 0.0
      %1783 = vmatpush1.msra.mxu0 %v477
      %1784 = vmatprep.subr.mxu0 0.0
      %1785 = vmatpush1.msra.mxu0 %v478
      %1786 = vmatprep.subr.mxu0 0.0
      %1787 = vmatpush1.msra.mxu0 %v479
      %1788 = vmatprep.subr.mxu0 0.0
      %1789 = vmatpush1.msra.mxu0 %v480
      %1790 = vmatprep.subr.mxu0 0.0
      %1791 = vmatpush1.msra.mxu0 %v481
      %1792 = vmatprep.subr.mxu0 0.0
      %1793 = vmatpush1.msra.mxu0 %v482
      %1794 = vmatprep.subr.mxu0 0.0
      %1795 = vmatpush1.msra.mxu0 %v483
      %1796 = vmatprep.subr.mxu0 0.0
      %1797 = vmatpush1.msra.mxu0 %v484
      %1798 = vmatprep.subr.mxu0 0.0
      %1799 = vmatpush1.msra.mxu0 %v485
      %1800 = vmatprep.subr.mxu0 0.0
      %1801 = vmatpush1.msra.mxu0 %v486
      %1802 = vmatprep.subr.mxu0 0.0
      %1803 = vmatpush1.msra.mxu0 %v487
      %1804 = vmatprep.subr.mxu0 0.0
      %1805 = vmatpush1.msra.mxu0 %v488
      %1806 = vmatprep.subr.mxu0 0.0
      %1807 = vmatpush1.msra.mxu0 %v489
      %1808 = vmatprep.subr.mxu0 0.0
      %1809 = vmatpush1.msra.mxu0 %v490
      %1810 = vmatprep.subr.mxu0 0.0
      %1811 = vmatpush1.msra.mxu0 %v491
      %1812 = vmatprep.subr.mxu0 0.0
      %1813 = vmatpush1.msra.mxu0 %v492
      %1814 = vmatprep.subr.mxu0 0.0
      %1815 = vmatpush1.msra.mxu0 %v493
      %1816 = vmatprep.subr.mxu0 0.0
      %1817 = vmatpush1.msra.mxu0 %v494
      %1818 = vmatprep.subr.mxu0 0.0
      %1819 = vmatpush1.msra.mxu0 %v495
      %1820 = vmatprep.subr.mxu0 0.0
      %1821 = vmatpush1.msra.mxu0 %v496
      %1822 = vmatprep.subr.mxu0 0.0
      %1823 = vmatpush1.msra.mxu0 %v497
      %1824 = vmatprep.subr.mxu0 0.0
      %1825 = vmatpush1.msra.mxu0 %v498
      %1826 = vmatprep.subr.mxu0 0.0
      %1827 = vmatpush1.msra.mxu0 %v499
      %1828 = vmatprep.mubr.f32.mxu0 %v1749
      %1829 = vmatmul.mubr.f32.gmra.mrb[0].mxu0 %v1748
      %v1830 = vpop.f32.mrb[0].mxu0
      %v1831 = vadd.f32 0.0, %v1830
      %v1832 = vpop.f32.mrb[0].mxu0
      %1833 = vmatprep.mubr.f32.mxu0 %v1751
      %1834 = vmatmul.mubr.f32.gmra.mrb[0].mxu0 %v1750
      %v1835 = vpop.f32.mrb[0].mxu0
      %v1836 = vadd.f32 0.0, %v1835
      %v1837 = vpop.f32.mrb[0].mxu0
      %1838 = vmatprep.mubr.f32.mxu0 %v1753
      %1839 = vmatmul.mubr.f32.gmra.mrb[0].mxu0 %v1752
      %v1840 = vpop.f32.mrb[0].mxu0
      %v1841 = vadd.f32 0.0, %v1840
      %v1842 = vpop.f32.mrb[0].mxu0
      %1843 = vmatprep.mubr.f32.mxu0 %v1755
      %1844 = vmatmul.mubr.f32.gmra.mrb[0].mxu0 %v1754
      %v1845 = vpop.f32.mrb[0].mxu0
      %v1846 = vadd.f32 0.0, %v1845
      %v1847 = vpop.f32.mrb[0].mxu0
      %1848 = vmatprep.mubr.f32.mxu0 %v1757
      %1849 = vmatmul.mubr.f32.gmra.mrb[0].mxu0 %v1756
      %v1850 = vpop.f32.mrb[0].mxu0
      %v1851 = vadd.f32 0.0, %v1850
      %v1852 = vpop.f32.mrb[0].mxu0
      %1853 = vmatprep.mubr.f32.mxu0 %v1759
      %1854 = vmatmul.mubr.f32.gmra.mrb[0].mxu0 %v1758
      %v1855 = vpop.f32.mrb[0].mxu0
      %v1856 = vadd.f32 0.0, %v1855
      %v1857 = vpop.f32.mrb[0].mxu0
      %1858 = vmatprep.mubr.f32.mxu0 %v1761
      %1859 = vmatmul.mubr.f32.gmra.mrb[0].mxu0 %v1760
      %v1860 = vpop.f32.mrb[0].mxu0
      %v1861 = vadd.f32 0.0, %v1860
      %v1862 = vpop.f32.mrb[0].mxu0
      %1863 = vmatprep.mubr.f32.mxu0 %v1763
      %1864 = vmatmul.mubr.f32.gmra.mrb[0].mxu0 %v1762
      %v1865 = vpop.f32.mrb[0].mxu0
      %v1866 = vadd.f32 0.0, %v1865
      %v1867 = vpop.f32.mrb[0].mxu0
      %1868 = vdwg.mxu0
      %v1869 = vsel %vm518, %v1831, 0.0
      %1870 = vadd.xlane.f32.xlu0 %v1869
      %v1871 = vpop.xlane.xlu0 %1870
      %v1872 = vsel %vm518, %v1836, 0.0
      %1873 = vadd.xlane.f32.xlu0 %v1872
      %v1874 = vpop.xlane.xlu0 %1873
      %v1875 = vsel %vm518, %v1841, 0.0
      %1876 = vadd.xlane.f32.xlu0 %v1875
      %v1877 = vpop.xlane.xlu0 %1876
      %v1878 = vsel %vm518, %v1846, 0.0
      %1879 = vadd.xlane.f32.xlu0 %v1878
      %v1880 = vpop.xlane.xlu0 %1879
      %v1881 = vsel %vm518, %v1851, 0.0
      %1882 = vadd.xlane.f32.xlu0 %v1881
      %v1883 = vpop.xlane.xlu0 %1882
      %v1884 = vsel %vm518, %v1856, 0.0
      %1885 = vadd.xlane.f32.xlu0 %v1884
      %v1886 = vpop.xlane.xlu0 %1885
      %v1887 = vsel %vm518, %v1861, 0.0
      %1888 = vadd.xlane.f32.xlu0 %v1887
      %v1889 = vpop.xlane.xlu0 %1888
      %v1890 = vsel %vm518, %v1866, 0.0
      %1891 = vadd.xlane.f32.xlu0 %v1890
      %v1892 = vpop.xlane.xlu0 %1891
      %v1893 = vmul.f32 %v1871, %v1325
      %v1894 = vmul.f32 %v1874, %v1325
      %v1895 = vmul.f32 %v1877, %v1325
      %v1896 = vmul.f32 %v1880, %v1325
      %v1897 = vmul.f32 %v1883, %v1325
      %v1898 = vmul.f32 %v1886, %v1325
      %v1899 = vmul.f32 %v1889, %v1325
      %v1900 = vmul.f32 %v1892, %v1325
      %v1901 = vsub.f32 %v1831, %v1893
      %v1902 = vsub.f32 %v1836, %v1894
      %v1903 = vsub.f32 %v1841, %v1895
      %v1904 = vsub.f32 %v1846, %v1896
      %v1905 = vsub.f32 %v1851, %v1897
      %v1906 = vsub.f32 %v1856, %v1898
      %v1907 = vsub.f32 %v1861, %v1899
      %v1908 = vsub.f32 %v1866, %v1900
      %v1909 = vmul.f32 %v1901, %v1901
      %v1910 = vmul.f32 %v1902, %v1902
      %v1911 = vmul.f32 %v1903, %v1903
      %v1912 = vmul.f32 %v1904, %v1904
      %v1913 = vmul.f32 %v1905, %v1905
      %v1914 = vmul.f32 %v1906, %v1906
      %v1915 = vmul.f32 %v1907, %v1907
      %v1916 = vmul.f32 %v1908, %v1908
      %v1917 = vsel %vm518, %v1909, 0.0
      %1918 = vadd.xlane.f32.xlu0 %v1917
      %v1919 = vpop.xlane.xlu0 %1918
      %v1920 = vsel %vm518, %v1910, 0.0
      %1921 = vadd.xlane.f32.xlu0 %v1920
      %v1922 = vpop.xlane.xlu0 %1921
      %v1923 = vsel %vm518, %v1911, 0.0
      %1924 = vadd.xlane.f32.xlu0 %v1923
      %v1925 = vpop.xlane.xlu0 %1924
      %v1926 = vsel %vm518, %v1912, 0.0
      %1927 = vadd.xlane.f32.xlu0 %v1926
      %v1928 = vpop.xlane.xlu0 %1927
      %v1929 = vsel %vm518, %v1913, 0.0
      %1930 = vadd.xlane.f32.xlu0 %v1929
      %v1931 = vpop.xlane.xlu0 %1930
      %v1932 = vsel %vm518, %v1914, 0.0
      %1933 = vadd.xlane.f32.xlu0 %v1932
      %v1934 = vpop.xlane.xlu0 %1933
      %v1935 = vsel %vm518, %v1915, 0.0
      %1936 = vadd.xlane.f32.xlu0 %v1935
      %v1937 = vpop.xlane.xlu0 %1936
      %v1938 = vsel %vm518, %v1916, 0.0
      %1939 = vadd.xlane.f32.xlu0 %v1938
      %v1940 = vpop.xlane.xlu0 %1939
      %v1941 = vmul.f32 %v1919, %v1325
      %v1942 = vmul.f32 %v1922, %v1325
      %v1943 = vmul.f32 %v1925, %v1325
      %v1944 = vmul.f32 %v1928, %v1325
      %v1945 = vmul.f32 %v1931, %v1325
      %v1946 = vmul.f32 %v1934, %v1325
      %v1947 = vmul.f32 %v1937, %v1325
      %v1948 = vmul.f32 %v1940, %v1325
      %v1949 = vadd.f32 %v1941, 1e-05
      %v1950 = vadd.f32 %v1942, 1e-05
      %v1951 = vadd.f32 %v1943, 1e-05
      %v1952 = vadd.f32 %v1944, 1e-05
      %v1953 = vadd.f32 %v1945, 1e-05
      %v1954 = vadd.f32 %v1946, 1e-05
      %v1955 = vadd.f32 %v1947, 1e-05
      %v1956 = vadd.f32 %v1948, 1e-05
      %v1957 = vrsqrt.pop %v1949
      %v1958 = vrsqrt.pop %v1950
      %v1959 = vrsqrt.pop %v1951
      %v1960 = vrsqrt.pop %v1952
      %v1961 = vrsqrt.pop %v1953
      %v1962 = vrsqrt.pop %v1954
      %v1963 = vrsqrt.pop %v1955
      %v1964 = vrsqrt.pop %v1956
      %v1965 = vmul.f32 %v1901, %v1957
      %v1966 = vmul.f32 %v1902, %v1958
      %v1967 = vmul.f32 %v1903, %v1959
      %v1968 = vmul.f32 %v1904, %v1960
      %v1969 = vmul.f32 %v1905, %v1961
      %v1970 = vmul.f32 %v1906, %v1962
      %v1971 = vmul.f32 %v1907, %v1963
      %v1972 = vmul.f32 %v1908, %v1964
      %v1974 = vlaneseq
      %v1975 = vshrl.u32 %v1974, 7
      %v1976 = vsub.s32 0, %v1975
      %v1977 = vrot.slane %v500, %v1976
      %v1979 = vmul.f32 %v1965, %v1977
      %v1980 = vmul.f32 %v1966, %v1977
      %v1981 = vmul.f32 %v1967, %v1977
      %v1982 = vmul.f32 %v1968, %v1977
      %v1983 = vmul.f32 %v1969, %v1977
      %v1984 = vmul.f32 %v1970, %v1977
      %v1985 = vmul.f32 %v1971, %v1977
      %v1986 = vmul.f32 %v1972, %v1977
      %v1988 = vlaneseq
      %v1989 = vshrl.u32 %v1988, 7
      %v1990 = vsub.s32 0, %v1989
      %v1991 = vrot.slane %v501, %v1990
      %v1993 = vadd.f32 %v1979, %v1991
      %v1994 = vadd.f32 %v1980, %v1991
      %v1995 = vadd.f32 %v1981, %v1991
      %v1996 = vadd.f32 %v1982, %v1991
      %v1997 = vadd.f32 %v1983, %v1991
      %v1998 = vadd.f32 %v1984, %v1991
      %v1999 = vadd.f32 %v1985, %v1991
      %v2000 = vadd.f32 %v1986, %v1991
      %v2001 = vadd.f32 %v502, %v1993
      %v2002 = vadd.f32 %v503, %v1994
      %v2003 = vadd.f32 %v504, %v1995
      %v2004 = vadd.f32 %v505, %v1996
      %v2005 = vadd.f32 %v506, %v1997
      %v2006 = vadd.f32 %v507, %v1998
      %v2007 = vadd.f32 %v508, %v1999
      %v2008 = vadd.f32 %v509, %v2000
      %2009 = vst.msk [vmem:[%s433] sm:$0xff] %vm518, %v2001
      %2010 = vst.msk [vmem:[%s433 + $0x10] sm:$0xff] %vm518, %v2002
      %2011 = vst.msk [vmem:[%s433 + $0x20] sm:$0xff] %vm518, %v2003
      %2012 = vst.msk [vmem:[%s433 + $0x30] sm:$0xff] %vm518, %v2004
      %2013 = vst.msk [vmem:[%s433 + $0x40] sm:$0xff] %vm518, %v2005
      %2014 = vst.msk [vmem:[%s433 + $0x50] sm:$0xff] %vm518, %v2006
      %2015 = vst.msk [vmem:[%s433 + $0x60] sm:$0xff] %vm518, %v2007
      %2016 = vst.msk [vmem:[%s433 + $0x70] sm:$0xff] %vm518, %v2008
      %v2017 = vld [vmem:[%s423 + $0x8] sm:$0xff]
      %v2018 = vld [vmem:[%s423 + $0x18] sm:$0xff]
      %v2019 = vld [vmem:[%s423 + $0x28] sm:$0xff]
      %v2020 = vld [vmem:[%s423 + $0x38] sm:$0xff]
      %v2021 = vld [vmem:[%s423 + $0x48] sm:$0xff]
      %v2022 = vld [vmem:[%s423 + $0x58] sm:$0xff]
      %v2023 = vld [vmem:[%s423 + $0x68] sm:$0xff]
      %v2024 = vld [vmem:[%s423 + $0x78] sm:$0xff]
      %v2025 = vld [vmem:[%s428 + $0x8] sm:$0xff]
      %v2026 = vld [vmem:[%s428 + $0x18] sm:$0xff]
      %v2027 = vld [vmem:[%s428 + $0x28] sm:$0xff]
      %v2028 = vld [vmem:[%s428 + $0x38] sm:$0xff]
      %v2029 = vld [vmem:[%s428 + $0x48] sm:$0xff]
      %v2030 = vld [vmem:[%s428 + $0x58] sm:$0xff]
      %v2031 = vld [vmem:[%s428 + $0x68] sm:$0xff]
      %v2032 = vld [vmem:[%s428 + $0x78] sm:$0xff]
      %v2034 = vsel %vm518, %v2017, 0
      %v2037 = vsel %vm518, %v2018, 0
      %v2040 = vsel %vm518, %v2019, 0
      %v2043 = vsel %vm518, %v2020, 0
      %v2046 = vsel %vm518, %v2021, 0
      %v2049 = vsel %vm518, %v2022, 0
      %v2052 = vsel %vm518, %v2023, 0
      %v2055 = vsel %vm518, %v2024, 0
      %2057 = vmatprep.subr.mxu0 0.0
      %2058 = vmatpush1.msra.mxu0 %v438
      %2059 = vmatprep.subr.mxu0 0.0
      %2060 = vmatpush1.msra.mxu0 %v439
      %2061 = vmatprep.subr.mxu0 0.0
      %2062 = vmatpush1.msra.mxu0 %v440
      %2063 = vmatprep.subr.mxu0 0.0
      %2064 = vmatpush1.msra.mxu0 %v441
      %2065 = vmatprep.subr.mxu0 0.0
      %2066 = vmatpush1.msra.mxu0 0.0
      %2067 = vmatprep.subr.mxu0 0.0
      %2068 = vmatpush1.msra.mxu0 0.0
      %2069 = vmatprep.subr.mxu0 0.0
      %2070 = vmatpush1.msra.mxu0 0.0
      %2071 = vmatprep.subr.mxu0 0.0
      %2072 = vmatpush1.msra.mxu0 0.0
      %2073 = vmatprep.subr.mxu0 0.0
      %2074 = vmatpush1.msra.mxu0 0.0
      %2075 = vmatprep.subr.mxu0 0.0
      %2076 = vmatpush1.msra.mxu0 0.0
      %2077 = vmatprep.subr.mxu0 0.0
      %2078 = vmatpush1.msra.mxu0 0.0
      %2079 = vmatprep.subr.mxu0 0.0
      %2080 = vmatpush1.msra.mxu0 0.0
      %2081 = vmatprep.subr.mxu0 0.0
      %2082 = vmatpush1.msra.mxu0 0.0
      %2083 = vmatprep.subr.mxu0 0.0
      %2084 = vmatpush1.msra.mxu0 0.0
      %2085 = vmatprep.subr.mxu0 0.0
      %2086 = vmatpush1.msra.mxu0 0.0
      %2087 = vmatprep.subr.mxu0 0.0
      %2088 = vmatpush1.msra.mxu0 0.0
      %2089 = vmatprep.subr.mxu0 0.0
      %2090 = vmatpush1.msra.mxu0 0.0
      %2091 = vmatprep.subr.mxu0 0.0
      %2092 = vmatpush1.msra.mxu0 0.0
      %2093 = vmatprep.subr.mxu0 0.0
      %2094 = vmatpush1.msra.mxu0 0.0
      %2095 = vmatprep.subr.mxu0 0.0
      %2096 = vmatpush1.msra.mxu0 0.0
      %2097 = vmatprep.subr.mxu0 0.0
      %2098 = vmatpush1.msra.mxu0 0.0
      %2099 = vmatprep.subr.mxu0 0.0
      %2100 = vmatpush1.msra.mxu0 0.0
      %2101 = vmatprep.subr.mxu0 0.0
      %2102 = vmatpush1.msra.mxu0 0.0
      %2103 = vmatprep.subr.mxu0 0.0
      %2104 = vmatpush1.msra.mxu0 0.0
      %2105 = vmatprep.subr.mxu0 0.0
      %2106 = vmatpush1.msra.mxu0 0.0
      %2107 = vmatprep.subr.mxu0 0.0
      %2108 = vmatpush1.msra.mxu0 0.0
      %2109 = vmatprep.subr.mxu0 0.0
      %2110 = vmatpush1.msra.mxu0 0.0
      %2111 = vmatprep.subr.mxu0 0.0
      %2112 = vmatpush1.msra.mxu0 0.0
      %2113 = vmatprep.subr.mxu0 0.0
      %2114 = vmatpush1.msra.mxu0 0.0
      %2115 = vmatprep.subr.mxu0 0.0
      %2116 = vmatpush1.msra.mxu0 0.0
      %2117 = vmatprep.subr.mxu0 0.0
      %2118 = vmatpush1.msra.mxu0 0.0
      %2119 = vmatprep.subr.mxu0 0.0
      %2120 = vmatpush1.msra.mxu0 0.0
      %2121 = vmatprep.mubr.f32.mxu0 0.0
      %2122 = vmatmul.mubr.f32.gmra.mrb[0].mxu0 %v2034
      %v2123 = vpop.f32.mrb[0].mxu0
      %v2124 = vadd.f32 0.0, %v2123
      %v2125 = vpop.f32.mrb[0].mxu0
      %2126 = vmatprep.mubr.f32.mxu0 0.0
      %2127 = vmatmul.mubr.f32.gmra.mrb[0].mxu0 %v2037
      %v2128 = vpop.f32.mrb[0].mxu0
      %v2129 = vadd.f32 0.0, %v2128
      %v2130 = vpop.f32.mrb[0].mxu0
      %2131 = vmatprep.mubr.f32.mxu0 0.0
      %2132 = vmatmul.mubr.f32.gmra.mrb[0].mxu0 %v2040
      %v2133 = vpop.f32.mrb[0].mxu0
      %v2134 = vadd.f32 0.0, %v2133
      %v2135 = vpop.f32.mrb[0].mxu0
      %2136 = vmatprep.mubr.f32.mxu0 0.0
      %2137 = vmatmul.mubr.f32.gmra.mrb[0].mxu0 %v2043
      %v2138 = vpop.f32.mrb[0].mxu0
      %v2139 = vadd.f32 0.0, %v2138
      %v2140 = vpop.f32.mrb[0].mxu0
      %2141 = vmatprep.mubr.f32.mxu0 0.0
      %2142 = vmatmul.mubr.f32.gmra.mrb[0].mxu0 %v2046
      %v2143 = vpop.f32.mrb[0].mxu0
      %v2144 = vadd.f32 0.0, %v2143
      %v2145 = vpop.f32.mrb[0].mxu0
      %2146 = vmatprep.mubr.f32.mxu0 0.0
      %2147 = vmatmul.mubr.f32.gmra.mrb[0].mxu0 %v2049
      %v2148 = vpop.f32.mrb[0].mxu0
      %v2149 = vadd.f32 0.0, %v2148
      %v2150 = vpop.f32.mrb[0].mxu0
      %2151 = vmatprep.mubr.f32.mxu0 0.0
      %2152 = vmatmul.mubr.f32.gmra.mrb[0].mxu0 %v2052
      %v2153 = vpop.f32.mrb[0].mxu0
      %v2154 = vadd.f32 0.0, %v2153
      %v2155 = vpop.f32.mrb[0].mxu0
      %2156 = vmatprep.mubr.f32.mxu0 0.0
      %2157 = vmatmul.mubr.f32.gmra.mrb[0].mxu0 %v2055
      %v2158 = vpop.f32.mrb[0].mxu0
      %v2159 = vadd.f32 0.0, %v2158
      %v2160 = vpop.f32.mrb[0].mxu0
      %2161 = vdwg.mxu0
      %v2163 = vsel %vm518, %v2025, 0
      %v2166 = vsel %vm518, %v2026, 0
      %v2169 = vsel %vm518, %v2027, 0
      %v2172 = vsel %vm518, %v2028, 0
      %v2175 = vsel %vm518, %v2029, 0
      %v2178 = vsel %vm518, %v2030, 0
      %v2181 = vsel %vm518, %v2031, 0
      %v2184 = vsel %vm518, %v2032, 0
      %2186 = vmatprep.subr.mxu0 0.0
      %2187 = vmatpush1.msra.mxu0 %v442
      %2188 = vmatprep.subr.mxu0 0.0
      %2189 = vmatpush1.msra.mxu0 %v443
      %2190 = vmatprep.subr.mxu0 0.0
      %2191 = vmatpush1.msra.mxu0 %v444
      %2192 = vmatprep.subr.mxu0 0.0
      %2193 = vmatpush1.msra.mxu0 %v445
      %2194 = vmatprep.subr.mxu0 0.0
      %2195 = vmatpush1.msra.mxu0 0.0
      %2196 = vmatprep.subr.mxu0 0.0
      %2197 = vmatpush1.msra.mxu0 0.0
      %2198 = vmatprep.subr.mxu0 0.0
      %2199 = vmatpush1.msra.mxu0 0.0
      %2200 = vmatprep.subr.mxu0 0.0
      %2201 = vmatpush1.msra.mxu0 0.0
      %2202 = vmatprep.subr.mxu0 0.0
      %2203 = vmatpush1.msra.mxu0 0.0
      %2204 = vmatprep.subr.mxu0 0.0
      %2205 = vmatpush1.msra.mxu0 0.0
      %2206 = vmatprep.subr.mxu0 0.0
      %2207 = vmatpush1.msra.mxu0 0.0
      %2208 = vmatprep.subr.mxu0 0.0
      %2209 = vmatpush1.msra.mxu0 0.0
      %2210 = vmatprep.subr.mxu0 0.0
      %2211 = vmatpush1.msra.mxu0 0.0
      %2212 = vmatprep.subr.mxu0 0.0
      %2213 = vmatpush1.msra.mxu0 0.0
      %2214 = vmatprep.subr.mxu0 0.0
      %2215 = vmatpush1.msra.mxu0 0.0
      %2216 = vmatprep.subr.mxu0 0.0
      %2217 = vmatpush1.msra.mxu0 0.0
      %2218 = vmatprep.subr.mxu0 0.0
      %2219 = vmatpush1.msra.mxu0 0.0
      %2220 = vmatprep.subr.mxu0 0.0
      %2221 = vmatpush1.msra.mxu0 0.0
      %2222 = vmatprep.subr.mxu0 0.0
      %2223 = vmatpush1.msra.mxu0 0.0
      %2224 = vmatprep.subr.mxu0 0.0
      %2225 = vmatpush1.msra.mxu0 0.0
      %2226 = vmatprep.subr.mxu0 0.0
      %2227 = vmatpush1.msra.mxu0 0.0
      %2228 = vmatprep.subr.mxu0 0.0
      %2229 = vmatpush1.msra.mxu0 0.0
      %2230 = vmatprep.subr.mxu0 0.0
      %2231 = vmatpush1.msra.mxu0 0.0
      %2232 = vmatprep.subr.mxu0 0.0
      %2233 = vmatpush1.msra.mxu0 0.0
      %2234 = vmatprep.subr.mxu0 0.0
      %2235 = vmatpush1.msra.mxu0 0.0
      %2236 = vmatprep.subr.mxu0 0.0
      %2237 = vmatpush1.msra.mxu0 0.0
      %2238 = vmatprep.subr.mxu0 0.0
      %2239 = vmatpush1.msra.mxu0 0.0
      %2240 = vmatprep.subr.mxu0 0.0
      %2241 = vmatpush1.msra.mxu0 0.0
      %2242 = vmatprep.subr.mxu0 0.0
      %2243 = vmatpush1.msra.mxu0 0.0
      %2244 = vmatprep.subr.mxu0 0.0
      %2245 = vmatpush1.msra.mxu0 0.0
      %2246 = vmatprep.subr.mxu0 0.0
      %2247 = vmatpush1.msra.mxu0 0.0
      %2248 = vmatprep.subr.mxu0 0.0
      %2249 = vmatpush1.msra.mxu0 0.0
      %2250 = vmatprep.mubr.f32.mxu0 0.0
      %2251 = vmatmul.mubr.f32.gmra.mrb[0].mxu0 %v2163
      %v2252 = vpop.f32.mrb[0].mxu0
      %v2253 = vadd.f32 0.0, %v2252
      %v2254 = vpop.f32.mrb[0].mxu0
      %2255 = vmatprep.mubr.f32.mxu0 0.0
      %2256 = vmatmul.mubr.f32.gmra.mrb[0].mxu0 %v2166
      %v2257 = vpop.f32.mrb[0].mxu0
      %v2258 = vadd.f32 0.0, %v2257
      %v2259 = vpop.f32.mrb[0].mxu0
      %2260 = vmatprep.mubr.f32.mxu0 0.0
      %2261 = vmatmul.mubr.f32.gmra.mrb[0].mxu0 %v2169
      %v2262 = vpop.f32.mrb[0].mxu0
      %v2263 = vadd.f32 0.0, %v2262
      %v2264 = vpop.f32.mrb[0].mxu0
      %2265 = vmatprep.mubr.f32.mxu0 0.0
      %2266 = vmatmul.mubr.f32.gmra.mrb[0].mxu0 %v2172
      %v2267 = vpop.f32.mrb[0].mxu0
      %v2268 = vadd.f32 0.0, %v2267
      %v2269 = vpop.f32.mrb[0].mxu0
      %2270 = vmatprep.mubr.f32.mxu0 0.0
      %2271 = vmatmul.mubr.f32.gmra.mrb[0].mxu0 %v2175
      %v2272 = vpop.f32.mrb[0].mxu0
      %v2273 = vadd.f32 0.0, %v2272
      %v2274 = vpop.f32.mrb[0].mxu0
      %2275 = vmatprep.mubr.f32.mxu0 0.0
      %2276 = vmatmul.mubr.f32.gmra.mrb[0].mxu0 %v2178
      %v2277 = vpop.f32.mrb[0].mxu0
      %v2278 = vadd.f32 0.0, %v2277
      %v2279 = vpop.f32.mrb[0].mxu0
      %2280 = vmatprep.mubr.f32.mxu0 0.0
      %2281 = vmatmul.mubr.f32.gmra.mrb[0].mxu0 %v2181
      %v2282 = vpop.f32.mrb[0].mxu0
      %v2283 = vadd.f32 0.0, %v2282
      %v2284 = vpop.f32.mrb[0].mxu0
      %2285 = vmatprep.mubr.f32.mxu0 0.0
      %2286 = vmatmul.mubr.f32.gmra.mrb[0].mxu0 %v2184
      %v2287 = vpop.f32.mrb[0].mxu0
      %v2288 = vadd.f32 0.0, %v2287
      %v2289 = vpop.f32.mrb[0].mxu0
      %2290 = vdwg.mxu0
      %v2292 = vsel %vm518, %v2124, 0
      %v2295 = vsel %vm518, %v2129, 0
      %v2298 = vsel %vm518, %v2134, 0
      %v2301 = vsel %vm518, %v2139, 0
      %v2304 = vsel %vm518, %v2144, 0
      %v2307 = vsel %vm518, %v2149, 0
      %v2310 = vsel %vm518, %v2154, 0
      %v2313 = vsel %vm518, %v2159, 0
      %v2316 = vsel %vm518, %v2253, 0
      %v2319 = vsel %vm518, %v2258, 0
      %v2322 = vsel %vm518, %v2263, 0
      %v2325 = vsel %vm518, %v2268, 0
      %v2328 = vsel %vm518, %v2273, 0
      %v2331 = vsel %vm518, %v2278, 0
      %v2334 = vsel %vm518, %v2283, 0
      %v2337 = vsel %vm518, %v2288, 0
      %2339 = vmatprep.subr.mxu0 0.0
      %2340 = vmatpush1.xpose.msra.mxu0 %v2316
      %2341 = vmatprep.subr.mxu0 0.0
      %2342 = vmatpush1.xpose.msra.mxu0 %v2319
      %2343 = vmatprep.subr.mxu0 0.0
      %2344 = vmatpush1.xpose.msra.mxu0 %v2322
      %2345 = vmatprep.subr.mxu0 0.0
      %2346 = vmatpush1.xpose.msra.mxu0 %v2325
      %2347 = vmatprep.subr.mxu0 0.0
      %2348 = vmatpush1.xpose.msra.mxu0 %v2328
      %2349 = vmatprep.subr.mxu0 0.0
      %2350 = vmatpush1.xpose.msra.mxu0 %v2331
      %2351 = vmatprep.subr.mxu0 0.0
      %2352 = vmatpush1.xpose.msra.mxu0 %v2334
      %2353 = vmatprep.subr.mxu0 0.0
      %2354 = vmatpush1.xpose.msra.mxu0 %v2337
      %2355 = vmatprep.subr.mxu0 0.0
      %2356 = vmatpush1.xpose.msra.mxu0 0.0
      %2357 = vmatprep.subr.mxu0 0.0
      %2358 = vmatpush1.xpose.msra.mxu0 0.0
      %2359 = vmatprep.subr.mxu0 0.0
      %2360 = vmatpush1.xpose.msra.mxu0 0.0
      %2361 = vmatprep.subr.mxu0 0.0
      %2362 = vmatpush1.xpose.msra.mxu0 0.0
      %2363 = vmatprep.subr.mxu0 0.0
      %2364 = vmatpush1.xpose.msra.mxu0 0.0
      %2365 = vmatprep.subr.mxu0 0.0
      %2366 = vmatpush1.xpose.msra.mxu0 0.0
      %2367 = vmatprep.subr.mxu0 0.0
      %2368 = vmatpush1.xpose.msra.mxu0 0.0
      %2369 = vmatprep.subr.mxu0 0.0
      %2370 = vmatpush1.xpose.msra.mxu0 0.0
      %2371 = vmatprep.subr.mxu0 0.0
      %2372 = vmatpush1.xpose.msra.mxu0 0.0
      %2373 = vmatprep.subr.mxu0 0.0
      %2374 = vmatpush1.xpose.msra.mxu0 0.0
      %2375 = vmatprep.subr.mxu0 0.0
      %2376 = vmatpush1.xpose.msra.mxu0 0.0
      %2377 = vmatprep.subr.mxu0 0.0
      %2378 = vmatpush1.xpose.msra.mxu0 0.0
      %2379 = vmatprep.subr.mxu0 0.0
      %2380 = vmatpush1.xpose.msra.mxu0 0.0
      %2381 = vmatprep.subr.mxu0 0.0
      %2382 = vmatpush1.xpose.msra.mxu0 0.0
      %2383 = vmatprep.subr.mxu0 0.0
      %2384 = vmatpush1.xpose.msra.mxu0 0.0
      %2385 = vmatprep.subr.mxu0 0.0
      %2386 = vmatpush1.xpose.msra.mxu0 0.0
      %2387 = vmatprep.subr.mxu0 0.0
      %2388 = vmatpush1.xpose.msra.mxu0 0.0
      %2389 = vmatprep.subr.mxu0 0.0
      %2390 = vmatpush1.xpose.msra.mxu0 0.0
      %2391 = vmatprep.subr.mxu0 0.0
      %2392 = vmatpush1.xpose.msra.mxu0 0.0
      %2393 = vmatprep.subr.mxu0 0.0
      %2394 = vmatpush1.xpose.msra.mxu0 0.0
      %2395 = vmatprep.subr.mxu0 0.0
      %2396 = vmatpush1.xpose.msra.mxu0 0.0
      %2397 = vmatprep.subr.mxu0 0.0
      %2398 = vmatpush1.xpose.msra.mxu0 0.0
      %2399 = vmatprep.subr.mxu0 0.0
      %2400 = vmatpush1.xpose.msra.mxu0 0.0
      %2401 = vmatprep.subr.mxu0 0.0
      %2402 = vmatpush1.xpose.msra.mxu0 0.0
      %2403 = vmatprep.mubr.f32.mxu0 0.0
      %2404 = vmatmul.mubr.f32.gmra.mrb[0].mxu0 %v2292
      %v2405 = vpop.f32.mrb[0].mxu0
      %v2406 = vadd.f32 0.0, %v2405
      %v2407 = vpop.f32.mrb[0].mxu0
      %2408 = vmatprep.mubr.f32.mxu0 0.0
      %2409 = vmatmul.mubr.f32.gmra.mrb[0].mxu0 %v2295
      %v2410 = vpop.f32.mrb[0].mxu0
      %v2411 = vadd.f32 0.0, %v2410
      %v2412 = vpop.f32.mrb[0].mxu0
      %2413 = vmatprep.mubr.f32.mxu0 0.0
      %2414 = vmatmul.mubr.f32.gmra.mrb[0].mxu0 %v2298
      %v2415 = vpop.f32.mrb[0].mxu0
      %v2416 = vadd.f32 0.0, %v2415
      %v2417 = vpop.f32.mrb[0].mxu0
      %2418 = vmatprep.mubr.f32.mxu0 0.0
      %2419 = vmatmul.mubr.f32.gmra.mrb[0].mxu0 %v2301
      %v2420 = vpop.f32.mrb[0].mxu0
      %v2421 = vadd.f32 0.0, %v2420
      %v2422 = vpop.f32.mrb[0].mxu0
      %2423 = vmatprep.mubr.f32.mxu0 0.0
      %2424 = vmatmul.mubr.f32.gmra.mrb[0].mxu0 %v2304
      %v2425 = vpop.f32.mrb[0].mxu0
      %v2426 = vadd.f32 0.0, %v2425
      %v2427 = vpop.f32.mrb[0].mxu0
      %2428 = vmatprep.mubr.f32.mxu0 0.0
      %2429 = vmatmul.mubr.f32.gmra.mrb[0].mxu0 %v2307
      %v2430 = vpop.f32.mrb[0].mxu0
      %v2431 = vadd.f32 0.0, %v2430
      %v2432 = vpop.f32.mrb[0].mxu0
      %2433 = vmatprep.mubr.f32.mxu0 0.0
      %2434 = vmatmul.mubr.f32.gmra.mrb[0].mxu0 %v2310
      %v2435 = vpop.f32.mrb[0].mxu0
      %v2436 = vadd.f32 0.0, %v2435
      %v2437 = vpop.f32.mrb[0].mxu0
      %2438 = vmatprep.mubr.f32.mxu0 0.0
      %2439 = vmatmul.mubr.f32.gmra.mrb[0].mxu0 %v2313
      %v2440 = vpop.f32.mrb[0].mxu0
      %v2441 = vadd.f32 0.0, %v2440
      %v2442 = vpop.f32.mrb[0].mxu0
      %2443 = vdwg.mxu0
      %v2444 = vsel %vm930, %v2406, -inf
      %2445 = vmax.xlane.f32.xlu0 %v2444
      %v2446 = vpop.xlane.xlu0 %2445
      %v2447 = vsel %vm930, %v2411, -inf
      %2448 = vmax.xlane.f32.xlu0 %v2447
      %v2449 = vpop.xlane.xlu0 %2448
      %v2450 = vsel %vm930, %v2416, -inf
      %2451 = vmax.xlane.f32.xlu0 %v2450
      %v2452 = vpop.xlane.xlu0 %2451
      %v2453 = vsel %vm930, %v2421, -inf
      %2454 = vmax.xlane.f32.xlu0 %v2453
      %v2455 = vpop.xlane.xlu0 %2454
      %v2456 = vsel %vm930, %v2426, -inf
      %2457 = vmax.xlane.f32.xlu0 %v2456
      %v2458 = vpop.xlane.xlu0 %2457
      %v2459 = vsel %vm930, %v2431, -inf
      %2460 = vmax.xlane.f32.xlu0 %v2459
      %v2461 = vpop.xlane.xlu0 %2460
      %v2462 = vsel %vm930, %v2436, -inf
      %2463 = vmax.xlane.f32.xlu0 %v2462
      %v2464 = vpop.xlane.xlu0 %2463
      %v2465 = vsel %vm930, %v2441, -inf
      %2466 = vmax.xlane.f32.xlu0 %v2465
      %v2467 = vpop.xlane.xlu0 %2466
      %v2468 = vsub.f32 %v2406, %v2446
      %v2469 = vsub.f32 %v2411, %v2449
      %v2470 = vsub.f32 %v2416, %v2452
      %v2471 = vsub.f32 %v2421, %v2455
      %v2472 = vsub.f32 %v2426, %v2458
      %v2473 = vsub.f32 %v2431, %v2461
      %v2474 = vsub.f32 %v2436, %v2464
      %v2475 = vsub.f32 %v2441, %v2467
      %v2476 = vmul.f32 %v2468, 1.442695
      %v2477 = vpow.pop %v2476
      %v2478 = vmul.f32 %v2469, 1.442695
      %v2479 = vpow.pop %v2478
      %v2480 = vmul.f32 %v2470, 1.442695
      %v2481 = vpow.pop %v2480
      %v2482 = vmul.f32 %v2471, 1.442695
      %v2483 = vpow.pop %v2482
      %v2484 = vmul.f32 %v2472, 1.442695
      %v2485 = vpow.pop %v2484
      %v2486 = vmul.f32 %v2473, 1.442695
      %v2487 = vpow.pop %v2486
      %v2488 = vmul.f32 %v2474, 1.442695
      %v2489 = vpow.pop %v2488
      %v2490 = vmul.f32 %v2475, 1.442695
      %v2491 = vpow.pop %v2490
      %v2492 = vsel %vm930, %v2477, 0.0
      %2493 = vadd.xlane.f32.xlu0 %v2492
      %v2494 = vpop.xlane.xlu0 %2493
      %v2495 = vsel %vm930, %v2479, 0.0
      %2496 = vadd.xlane.f32.xlu0 %v2495
      %v2497 = vpop.xlane.xlu0 %2496
      %v2498 = vsel %vm930, %v2481, 0.0
      %2499 = vadd.xlane.f32.xlu0 %v2498
      %v2500 = vpop.xlane.xlu0 %2499
      %v2501 = vsel %vm930, %v2483, 0.0
      %2502 = vadd.xlane.f32.xlu0 %v2501
      %v2503 = vpop.xlane.xlu0 %2502
      %v2504 = vsel %vm930, %v2485, 0.0
      %2505 = vadd.xlane.f32.xlu0 %v2504
      %v2506 = vpop.xlane.xlu0 %2505
      %v2507 = vsel %vm930, %v2487, 0.0
      %2508 = vadd.xlane.f32.xlu0 %v2507
      %v2509 = vpop.xlane.xlu0 %2508
      %v2510 = vsel %vm930, %v2489, 0.0
      %2511 = vadd.xlane.f32.xlu0 %v2510
      %v2512 = vpop.xlane.xlu0 %2511
      %v2513 = vsel %vm930, %v2491, 0.0
      %2514 = vadd.xlane.f32.xlu0 %v2513
      %v2515 = vpop.xlane.xlu0 %2514
      %v2516 = vrcp.pop %v2494
      %v2517 = vrcp.pop %v2497
      %v2518 = vrcp.pop %v2500
      %v2519 = vrcp.pop %v2503
      %v2520 = vrcp.pop %v2506
      %v2521 = vrcp.pop %v2509
      %v2522 = vrcp.pop %v2512
      %v2523 = vrcp.pop %v2515
      %v2524 = vmul.f32 %v2477, %v2516
      %v2525 = vmul.f32 %v2479, %v2517
      %v2526 = vmul.f32 %v2481, %v2518
      %v2527 = vmul.f32 %v2483, %v2519
      %v2528 = vmul.f32 %v2485, %v2520
      %v2529 = vmul.f32 %v2487, %v2521
      %v2530 = vmul.f32 %v2489, %v2522
      %v2531 = vmul.f32 %v2491, %v2523
      %2532 = vrot.lane.b32.xlu0 %v2253, 96
      %v2533 = vpop.permute.xlu0 %2532
      %2534 = vrot.lane.b32.xlu0 %v2258, 96
      %v2535 = vpop.permute.xlu0 %2534
      %2536 = vrot.lane.b32.xlu0 %v2263, 96
      %v2537 = vpop.permute.xlu0 %2536
      %2538 = vrot.lane.b32.xlu0 %v2268, 96
      %v2539 = vpop.permute.xlu0 %2538
      %2540 = vrot.lane.b32.xlu0 %v2273, 96
      %v2541 = vpop.permute.xlu0 %2540
      %2542 = vrot.lane.b32.xlu0 %v2278, 96
      %v2543 = vpop.permute.xlu0 %2542
      %2544 = vrot.lane.b32.xlu0 %v2283, 96
      %v2545 = vpop.permute.xlu0 %2544
      %2546 = vrot.lane.b32.xlu0 %v2288, 96
      %v2547 = vpop.permute.xlu0 %2546
      %v2557 = vsel %vm930, %v2524, 0
      %v2560 = vsel %vm930, %v2525, 0
      %v2563 = vsel %vm930, %v2526, 0
      %v2566 = vsel %vm930, %v2527, 0
      %v2569 = vsel %vm930, %v2528, 0
      %v2572 = vsel %vm930, %v2529, 0
      %v2575 = vsel %vm930, %v2530, 0
      %v2578 = vsel %vm930, %v2531, 0
      %2580 = vmatprep.subr.mxu0 0.0
      %2581 = vmatpush1.msra.mxu0 %v2533
      %2582 = vmatprep.subr.mxu0 0.0
      %2583 = vmatpush1.msra.mxu0 %v2535
      %2584 = vmatprep.subr.mxu0 0.0
      %2585 = vmatpush1.msra.mxu0 %v2537
      %2586 = vmatprep.subr.mxu0 0.0
      %2587 = vmatpush1.msra.mxu0 %v2539
      %2588 = vmatprep.subr.mxu0 0.0
      %2589 = vmatpush1.msra.mxu0 %v2541
      %2590 = vmatprep.subr.mxu0 0.0
      %2591 = vmatpush1.msra.mxu0 %v2543
      %2592 = vmatprep.subr.mxu0 0.0
      %2593 = vmatpush1.msra.mxu0 %v2545
      %2594 = vmatprep.subr.mxu0 0.0
      %2595 = vmatpush1.msra.mxu0 %v2547
      %2596 = vmatprep.subr.mxu0 0.0
      %2597 = vmatpush1.msra.mxu0 0.0
      %2598 = vmatprep.subr.mxu0 0.0
      %2599 = vmatpush1.msra.mxu0 0.0
      %2600 = vmatprep.subr.mxu0 0.0
      %2601 = vmatpush1.msra.mxu0 0.0
      %2602 = vmatprep.subr.mxu0 0.0
      %2603 = vmatpush1.msra.mxu0 0.0
      %2604 = vmatprep.subr.mxu0 0.0
      %2605 = vmatpush1.msra.mxu0 0.0
      %2606 = vmatprep.subr.mxu0 0.0
      %2607 = vmatpush1.msra.mxu0 0.0
      %2608 = vmatprep.subr.mxu0 0.0
      %2609 = vmatpush1.msra.mxu0 0.0
      %2610 = vmatprep.subr.mxu0 0.0
      %2611 = vmatpush1.msra.mxu0 0.0
      %2612 = vmatprep.subr.mxu0 0.0
      %2613 = vmatpush1.msra.mxu0 0.0
      %2614 = vmatprep.subr.mxu0 0.0
      %2615 = vmatpush1.msra.mxu0 0.0
      %2616 = vmatprep.subr.mxu0 0.0
      %2617 = vmatpush1.msra.mxu0 0.0
      %2618 = vmatprep.subr.mxu0 0.0
      %2619 = vmatpush1.msra.mxu0 0.0
      %2620 = vmatprep.subr.mxu0 0.0
      %2621 = vmatpush1.msra.mxu0 0.0
      %2622 = vmatprep.subr.mxu0 0.0
      %2623 = vmatpush1.msra.mxu0 0.0
      %2624 = vmatprep.subr.mxu0 0.0
      %2625 = vmatpush1.msra.mxu0 0.0
      %2626 = vmatprep.subr.mxu0 0.0
      %2627 = vmatpush1.msra.mxu0 0.0
      %2628 = vmatprep.subr.mxu0 0.0
      %2629 = vmatpush1.msra.mxu0 0.0
      %2630 = vmatprep.subr.mxu0 0.0
      %2631 = vmatpush1.msra.mxu0 0.0
      %2632 = vmatprep.subr.mxu0 0.0
      %2633 = vmatpush1.msra.mxu0 0.0
      %2634 = vmatprep.subr.mxu0 0.0
      %2635 = vmatpush1.msra.mxu0 0.0
      %2636 = vmatprep.subr.mxu0 0.0
      %2637 = vmatpush1.msra.mxu0 0.0
      %2638 = vmatprep.subr.mxu0 0.0
      %2639 = vmatpush1.msra.mxu0 0.0
      %2640 = vmatprep.subr.mxu0 0.0
      %2641 = vmatpush1.msra.mxu0 0.0
      %2642 = vmatprep.subr.mxu0 0.0
      %2643 = vmatpush1.msra.mxu0 0.0
      %2644 = vmatprep.mubr.f32.mxu0 0.0
      %2645 = vmatmul.mubr.f32.gmra.mrb[0].mxu0 %v2557
      %v2646 = vpop.f32.mrb[0].mxu0
      %v2647 = vadd.f32 0.0, %v2646
      %v2648 = vpop.f32.mrb[0].mxu0
      %2649 = vmatprep.mubr.f32.mxu0 0.0
      %2650 = vmatmul.mubr.f32.gmra.mrb[0].mxu0 %v2560
      %v2651 = vpop.f32.mrb[0].mxu0
      %v2652 = vadd.f32 0.0, %v2651
      %v2653 = vpop.f32.mrb[0].mxu0
      %2654 = vmatprep.mubr.f32.mxu0 0.0
      %2655 = vmatmul.mubr.f32.gmra.mrb[0].mxu0 %v2563
      %v2656 = vpop.f32.mrb[0].mxu0
      %v2657 = vadd.f32 0.0, %v2656
      %v2658 = vpop.f32.mrb[0].mxu0
      %2659 = vmatprep.mubr.f32.mxu0 0.0
      %2660 = vmatmul.mubr.f32.gmra.mrb[0].mxu0 %v2566
      %v2661 = vpop.f32.mrb[0].mxu0
      %v2662 = vadd.f32 0.0, %v2661
      %v2663 = vpop.f32.mrb[0].mxu0
      %2664 = vmatprep.mubr.f32.mxu0 0.0
      %2665 = vmatmul.mubr.f32.gmra.mrb[0].mxu0 %v2569
      %v2666 = vpop.f32.mrb[0].mxu0
      %v2667 = vadd.f32 0.0, %v2666
      %v2668 = vpop.f32.mrb[0].mxu0
      %2669 = vmatprep.mubr.f32.mxu0 0.0
      %2670 = vmatmul.mubr.f32.gmra.mrb[0].mxu0 %v2572
      %v2671 = vpop.f32.mrb[0].mxu0
      %v2672 = vadd.f32 0.0, %v2671
      %v2673 = vpop.f32.mrb[0].mxu0
      %2674 = vmatprep.mubr.f32.mxu0 0.0
      %2675 = vmatmul.mubr.f32.gmra.mrb[0].mxu0 %v2575
      %v2676 = vpop.f32.mrb[0].mxu0
      %v2677 = vadd.f32 0.0, %v2676
      %v2678 = vpop.f32.mrb[0].mxu0
      %2679 = vmatprep.mubr.f32.mxu0 0.0
      %2680 = vmatmul.mubr.f32.gmra.mrb[0].mxu0 %v2578
      %v2681 = vpop.f32.mrb[0].mxu0
      %v2682 = vadd.f32 0.0, %v2681
      %v2683 = vpop.f32.mrb[0].mxu0
      %2684 = vdwg.mxu0
      %v2686 = vsel %vm518, %v2647, 0
      %v2689 = vsel %vm518, %v2652, 0
      %v2692 = vsel %vm518, %v2657, 0
      %v2695 = vsel %vm518, %v2662, 0
      %v2698 = vsel %vm518, %v2667, 0
      %v2701 = vsel %vm518, %v2672, 0
      %v2704 = vsel %vm518, %v2677, 0
      %v2707 = vsel %vm518, %v2682, 0
      %2709 = vmatprep.subr.mxu0 0.0
      %2710 = vmatpush1.msra.mxu0 %v446
      %2711 = vmatprep.subr.mxu0 0.0
      %2712 = vmatpush1.msra.mxu0 %v447
      %2713 = vmatprep.subr.mxu0 0.0
      %2714 = vmatpush1.msra.mxu0 %v448
      %2715 = vmatprep.subr.mxu0 0.0
      %2716 = vmatpush1.msra.mxu0 %v449
      %2717 = vmatprep.subr.mxu0 0.0
      %2718 = vmatpush1.msra.mxu0 0.0
      %2719 = vmatprep.subr.mxu0 0.0
      %2720 = vmatpush1.msra.mxu0 0.0
      %2721 = vmatprep.subr.mxu0 0.0
      %2722 = vmatpush1.msra.mxu0 0.0
      %2723 = vmatprep.subr.mxu0 0.0
      %2724 = vmatpush1.msra.mxu0 0.0
      %2725 = vmatprep.subr.mxu0 0.0
      %2726 = vmatpush1.msra.mxu0 0.0
      %2727 = vmatprep.subr.mxu0 0.0
      %2728 = vmatpush1.msra.mxu0 0.0
      %2729 = vmatprep.subr.mxu0 0.0
      %2730 = vmatpush1.msra.mxu0 0.0
      %2731 = vmatprep.subr.mxu0 0.0
      %2732 = vmatpush1.msra.mxu0 0.0
      %2733 = vmatprep.subr.mxu0 0.0
      %2734 = vmatpush1.msra.mxu0 0.0
      %2735 = vmatprep.subr.mxu0 0.0
      %2736 = vmatpush1.msra.mxu0 0.0
      %2737 = vmatprep.subr.mxu0 0.0
      %2738 = vmatpush1.msra.mxu0 0.0
      %2739 = vmatprep.subr.mxu0 0.0
      %2740 = vmatpush1.msra.mxu0 0.0
      %2741 = vmatprep.subr.mxu0 0.0
      %2742 = vmatpush1.msra.mxu0 0.0
      %2743 = vmatprep.subr.mxu0 0.0
      %2744 = vmatpush1.msra.mxu0 0.0
      %2745 = vmatprep.subr.mxu0 0.0
      %2746 = vmatpush1.msra.mxu0 0.0
      %2747 = vmatprep.subr.mxu0 0.0
      %2748 = vmatpush1.msra.mxu0 0.0
      %2749 = vmatprep.subr.mxu0 0.0
      %2750 = vmatpush1.msra.mxu0 0.0
      %2751 = vmatprep.subr.mxu0 0.0
      %2752 = vmatpush1.msra.mxu0 0.0
      %2753 = vmatprep.subr.mxu0 0.0
      %2754 = vmatpush1.msra.mxu0 0.0
      %2755 = vmatprep.subr.mxu0 0.0
      %2756 = vmatpush1.msra.mxu0 0.0
      %2757 = vmatprep.subr.mxu0 0.0
      %2758 = vmatpush1.msra.mxu0 0.0
      %2759 = vmatprep.subr.mxu0 0.0
      %2760 = vmatpush1.msra.mxu0 0.0
      %2761 = vmatprep.subr.mxu0 0.0
      %2762 = vmatpush1.msra.mxu0 0.0
      %2763 = vmatprep.subr.mxu0 0.0
      %2764 = vmatpush1.msra.mxu0 0.0
      %2765 = vmatprep.subr.mxu0 0.0
      %2766 = vmatpush1.msra.mxu0 0.0
      %2767 = vmatprep.subr.mxu0 0.0
      %2768 = vmatpush1.msra.mxu0 0.0
      %2769 = vmatprep.subr.mxu0 0.0
      %2770 = vmatpush1.msra.mxu0 0.0
      %2771 = vmatprep.subr.mxu0 0.0
      %2772 = vmatpush1.msra.mxu0 0.0
      %2773 = vmatprep.mubr.f32.mxu0 0.0
      %2774 = vmatmul.mubr.f32.gmra.mrb[0].mxu0 %v2686
      %v2775 = vpop.f32.mrb[0].mxu0
      %v2776 = vadd.f32 0.0, %v2775
      %v2777 = vpop.f32.mrb[0].mxu0
      %2778 = vmatprep.mubr.f32.mxu0 0.0
      %2779 = vmatmul.mubr.f32.gmra.mrb[0].mxu0 %v2689
      %v2780 = vpop.f32.mrb[0].mxu0
      %v2781 = vadd.f32 0.0, %v2780
      %v2782 = vpop.f32.mrb[0].mxu0
      %2783 = vmatprep.mubr.f32.mxu0 0.0
      %2784 = vmatmul.mubr.f32.gmra.mrb[0].mxu0 %v2692
      %v2785 = vpop.f32.mrb[0].mxu0
      %v2786 = vadd.f32 0.0, %v2785
      %v2787 = vpop.f32.mrb[0].mxu0
      %2788 = vmatprep.mubr.f32.mxu0 0.0
      %2789 = vmatmul.mubr.f32.gmra.mrb[0].mxu0 %v2695
      %v2790 = vpop.f32.mrb[0].mxu0
      %v2791 = vadd.f32 0.0, %v2790
      %v2792 = vpop.f32.mrb[0].mxu0
      %2793 = vmatprep.mubr.f32.mxu0 0.0
      %2794 = vmatmul.mubr.f32.gmra.mrb[0].mxu0 %v2698
      %v2795 = vpop.f32.mrb[0].mxu0
      %v2796 = vadd.f32 0.0, %v2795
      %v2797 = vpop.f32.mrb[0].mxu0
      %2798 = vmatprep.mubr.f32.mxu0 0.0
      %2799 = vmatmul.mubr.f32.gmra.mrb[0].mxu0 %v2701
      %v2800 = vpop.f32.mrb[0].mxu0
      %v2801 = vadd.f32 0.0, %v2800
      %v2802 = vpop.f32.mrb[0].mxu0
      %2803 = vmatprep.mubr.f32.mxu0 0.0
      %2804 = vmatmul.mubr.f32.gmra.mrb[0].mxu0 %v2704
      %v2805 = vpop.f32.mrb[0].mxu0
      %v2806 = vadd.f32 0.0, %v2805
      %v2807 = vpop.f32.mrb[0].mxu0
      %2808 = vmatprep.mubr.f32.mxu0 0.0
      %2809 = vmatmul.mubr.f32.gmra.mrb[0].mxu0 %v2707
      %v2810 = vpop.f32.mrb[0].mxu0
      %v2811 = vadd.f32 0.0, %v2810
      %v2812 = vpop.f32.mrb[0].mxu0
      %2813 = vdwg.mxu0
      %v2814 = vsel %vm518, %v2776, 0.0
      %2815 = vadd.xlane.f32.xlu0 %v2814
      %v2816 = vpop.xlane.xlu0 %2815
      %v2817 = vsel %vm518, %v2781, 0.0
      %2818 = vadd.xlane.f32.xlu0 %v2817
      %v2819 = vpop.xlane.xlu0 %2818
      %v2820 = vsel %vm518, %v2786, 0.0
      %2821 = vadd.xlane.f32.xlu0 %v2820
      %v2822 = vpop.xlane.xlu0 %2821
      %v2823 = vsel %vm518, %v2791, 0.0
      %2824 = vadd.xlane.f32.xlu0 %v2823
      %v2825 = vpop.xlane.xlu0 %2824
      %v2826 = vsel %vm518, %v2796, 0.0
      %2827 = vadd.xlane.f32.xlu0 %v2826
      %v2828 = vpop.xlane.xlu0 %2827
      %v2829 = vsel %vm518, %v2801, 0.0
      %2830 = vadd.xlane.f32.xlu0 %v2829
      %v2831 = vpop.xlane.xlu0 %2830
      %v2832 = vsel %vm518, %v2806, 0.0
      %2833 = vadd.xlane.f32.xlu0 %v2832
      %v2834 = vpop.xlane.xlu0 %2833
      %v2835 = vsel %vm518, %v2811, 0.0
      %2836 = vadd.xlane.f32.xlu0 %v2835
      %v2837 = vpop.xlane.xlu0 %2836
      %v2838 = vmul.f32 %v2816, %v1325
      %v2839 = vmul.f32 %v2819, %v1325
      %v2840 = vmul.f32 %v2822, %v1325
      %v2841 = vmul.f32 %v2825, %v1325
      %v2842 = vmul.f32 %v2828, %v1325
      %v2843 = vmul.f32 %v2831, %v1325
      %v2844 = vmul.f32 %v2834, %v1325
      %v2845 = vmul.f32 %v2837, %v1325
      %v2846 = vsub.f32 %v2776, %v2838
      %v2847 = vsub.f32 %v2781, %v2839
      %v2848 = vsub.f32 %v2786, %v2840
      %v2849 = vsub.f32 %v2791, %v2841
      %v2850 = vsub.f32 %v2796, %v2842
      %v2851 = vsub.f32 %v2801, %v2843
      %v2852 = vsub.f32 %v2806, %v2844
      %v2853 = vsub.f32 %v2811, %v2845
      %v2854 = vmul.f32 %v2846, %v2846
      %v2855 = vmul.f32 %v2847, %v2847
      %v2856 = vmul.f32 %v2848, %v2848
      %v2857 = vmul.f32 %v2849, %v2849
      %v2858 = vmul.f32 %v2850, %v2850
      %v2859 = vmul.f32 %v2851, %v2851
      %v2860 = vmul.f32 %v2852, %v2852
      %v2861 = vmul.f32 %v2853, %v2853
      %v2862 = vsel %vm518, %v2854, 0.0
      %2863 = vadd.xlane.f32.xlu0 %v2862
      %v2864 = vpop.xlane.xlu0 %2863
      %v2865 = vsel %vm518, %v2855, 0.0
      %2866 = vadd.xlane.f32.xlu0 %v2865
      %v2867 = vpop.xlane.xlu0 %2866
      %v2868 = vsel %vm518, %v2856, 0.0
      %2869 = vadd.xlane.f32.xlu0 %v2868
      %v2870 = vpop.xlane.xlu0 %2869
      %v2871 = vsel %vm518, %v2857, 0.0
      %2872 = vadd.xlane.f32.xlu0 %v2871
      %v2873 = vpop.xlane.xlu0 %2872
      %v2874 = vsel %vm518, %v2858, 0.0
      %2875 = vadd.xlane.f32.xlu0 %v2874
      %v2876 = vpop.xlane.xlu0 %2875
      %v2877 = vsel %vm518, %v2859, 0.0
      %2878 = vadd.xlane.f32.xlu0 %v2877
      %v2879 = vpop.xlane.xlu0 %2878
      %v2880 = vsel %vm518, %v2860, 0.0
      %2881 = vadd.xlane.f32.xlu0 %v2880
      %v2882 = vpop.xlane.xlu0 %2881
      %v2883 = vsel %vm518, %v2861, 0.0
      %2884 = vadd.xlane.f32.xlu0 %v2883
      %v2885 = vpop.xlane.xlu0 %2884
      %v2886 = vmul.f32 %v2864, %v1325
      %v2887 = vmul.f32 %v2867, %v1325
      %v2888 = vmul.f32 %v2870, %v1325
      %v2889 = vmul.f32 %v2873, %v1325
      %v2890 = vmul.f32 %v2876, %v1325
      %v2891 = vmul.f32 %v2879, %v1325
      %v2892 = vmul.f32 %v2882, %v1325
      %v2893 = vmul.f32 %v2885, %v1325
      %v2894 = vadd.f32 %v2886, 1e-05
      %v2895 = vadd.f32 %v2887, 1e-05
      %v2896 = vadd.f32 %v2888, 1e-05
      %v2897 = vadd.f32 %v2889, 1e-05
      %v2898 = vadd.f32 %v2890, 1e-05
      %v2899 = vadd.f32 %v2891, 1e-05
      %v2900 = vadd.f32 %v2892, 1e-05
      %v2901 = vadd.f32 %v2893, 1e-05
      %v2902 = vrsqrt.pop %v2894
      %v2903 = vrsqrt.pop %v2895
      %v2904 = vrsqrt.pop %v2896
      %v2905 = vrsqrt.pop %v2897
      %v2906 = vrsqrt.pop %v2898
      %v2907 = vrsqrt.pop %v2899
      %v2908 = vrsqrt.pop %v2900
      %v2909 = vrsqrt.pop %v2901
      %v2910 = vmul.f32 %v2846, %v2902
      %v2911 = vmul.f32 %v2847, %v2903
      %v2912 = vmul.f32 %v2848, %v2904
      %v2913 = vmul.f32 %v2849, %v2905
      %v2914 = vmul.f32 %v2850, %v2906
      %v2915 = vmul.f32 %v2851, %v2907
      %v2916 = vmul.f32 %v2852, %v2908
      %v2917 = vmul.f32 %v2853, %v2909
      %v2918 = vmul.f32 %v2910, %v1410
      %v2919 = vmul.f32 %v2911, %v1410
      %v2920 = vmul.f32 %v2912, %v1410
      %v2921 = vmul.f32 %v2913, %v1410
      %v2922 = vmul.f32 %v2914, %v1410
      %v2923 = vmul.f32 %v2915, %v1410
      %v2924 = vmul.f32 %v2916, %v1410
      %v2925 = vmul.f32 %v2917, %v1410
      %v2926 = vadd.f32 %v2918, %v1424
      %v2927 = vadd.f32 %v2919, %v1424
      %v2928 = vadd.f32 %v2920, %v1424
      %v2929 = vadd.f32 %v2921, %v1424
      %v2930 = vadd.f32 %v2922, %v1424
      %v2931 = vadd.f32 %v2923, %v1424
      %v2932 = vadd.f32 %v2924, %v1424
      %v2933 = vadd.f32 %v2925, %v1424
      %v2935 = vsel %vm518, %v2926, 0
      %v2938 = vsel %vm518, %v2927, 0
      %v2941 = vsel %vm518, %v2928, 0
      %v2944 = vsel %vm518, %v2929, 0
      %v2947 = vsel %vm518, %v2930, 0
      %v2950 = vsel %vm518, %v2931, 0
      %v2953 = vsel %vm518, %v2932, 0
      %v2956 = vsel %vm518, %v2933, 0
      %2958 = vmatprep.subr.mxu0 %v461
      %2959 = vmatpush1.msra.mxu0 %v460
      %2960 = vmatprep.subr.mxu0 %v463
      %2961 = vmatpush1.msra.mxu0 %v462
      %2962 = vmatprep.subr.mxu0 %v465
      %2963 = vmatpush1.msra.mxu0 %v464
      %2964 = vmatprep.subr.mxu0 %v467
      %2965 = vmatpush1.msra.mxu0 %v466
      %2966 = vmatprep.subr.mxu0 0.0
      %2967 = vmatpush1.msra.mxu0 0.0
      %2968 = vmatprep.subr.mxu0 0.0
      %2969 = vmatpush1.msra.mxu0 0.0
      %2970 = vmatprep.subr.mxu0 0.0
      %2971 = vmatpush1.msra.mxu0 0.0
      %2972 = vmatprep.subr.mxu0 0.0
      %2973 = vmatpush1.msra.mxu0 0.0
      %2974 = vmatprep.subr.mxu0 0.0
      %2975 = vmatpush1.msra.mxu0 0.0
      %2976 = vmatprep.subr.mxu0 0.0
      %2977 = vmatpush1.msra.mxu0 0.0
      %2978 = vmatprep.subr.mxu0 0.0
      %2979 = vmatpush1.msra.mxu0 0.0
      %2980 = vmatprep.subr.mxu0 0.0
      %2981 = vmatpush1.msra.mxu0 0.0
      %2982 = vmatprep.subr.mxu0 0.0
      %2983 = vmatpush1.msra.mxu0 0.0
      %2984 = vmatprep.subr.mxu0 0.0
      %2985 = vmatpush1.msra.mxu0 0.0
      %2986 = vmatprep.subr.mxu0 0.0
      %2987 = vmatpush1.msra.mxu0 0.0
      %2988 = vmatprep.subr.mxu0 0.0
      %2989 = vmatpush1.msra.mxu0 0.0
      %2990 = vmatprep.subr.mxu0 0.0
      %2991 = vmatpush1.msra.mxu0 0.0
      %2992 = vmatprep.subr.mxu0 0.0
      %2993 = vmatpush1.msra.mxu0 0.0
      %2994 = vmatprep.subr.mxu0 0.0
      %2995 = vmatpush1.msra.mxu0 0.0
      %2996 = vmatprep.subr.mxu0 0.0
      %2997 = vmatpush1.msra.mxu0 0.0
      %2998 = vmatprep.subr.mxu0 0.0
      %2999 = vmatpush1.msra.mxu0 0.0
      %3000 = vmatprep.subr.mxu0 0.0
      %3001 = vmatpush1.msra.mxu0 0.0
      %3002 = vmatprep.subr.mxu0 0.0
      %3003 = vmatpush1.msra.mxu0 0.0
      %3004 = vmatprep.subr.mxu0 0.0
      %3005 = vmatpush1.msra.mxu0 0.0
      %3006 = vmatprep.subr.mxu0 0.0
      %3007 = vmatpush1.msra.mxu0 0.0
      %3008 = vmatprep.subr.mxu0 0.0
      %3009 = vmatpush1.msra.mxu0 0.0
      %3010 = vmatprep.subr.mxu0 0.0
      %3011 = vmatpush1.msra.mxu0 0.0
      %3012 = vmatprep.subr.mxu0 0.0
      %3013 = vmatpush1.msra.mxu0 0.0
      %3014 = vmatprep.subr.mxu0 0.0
      %3015 = vmatpush1.msra.mxu0 0.0
      %3016 = vmatprep.subr.mxu0 0.0
      %3017 = vmatpush1.msra.mxu0 0.0
      %3018 = vmatprep.subr.mxu0 0.0
      %3019 = vmatpush1.msra.mxu0 0.0
      %3020 = vmatprep.subr.mxu0 0.0
      %3021 = vmatpush1.msra.mxu0 0.0
      %3022 = vmatprep.mubr.f32.mxu0 0.0
      %3023 = vmatmul.mubr.f32.gmra.mrb[0].mxu0 %v2935
      %v3024 = vpop.f32.mrb[0].mxu0
      %v3025 = vadd.f32 0.0, %v3024
      %v3026 = vpop.f32.mrb[0].mxu0
      %v3027 = vadd.f32 0.0, %v3026
      %3028 = vmatprep.mubr.f32.mxu0 0.0
      %3029 = vmatmul.mubr.f32.gmra.mrb[0].mxu0 %v2938
      %v3030 = vpop.f32.mrb[0].mxu0
      %v3031 = vadd.f32 0.0, %v3030
      %v3032 = vpop.f32.mrb[0].mxu0
      %v3033 = vadd.f32 0.0, %v3032
      %3034 = vmatprep.mubr.f32.mxu0 0.0
      %3035 = vmatmul.mubr.f32.gmra.mrb[0].mxu0 %v2941
      %v3036 = vpop.f32.mrb[0].mxu0
      %v3037 = vadd.f32 0.0, %v3036
      %v3038 = vpop.f32.mrb[0].mxu0
      %v3039 = vadd.f32 0.0, %v3038
      %3040 = vmatprep.mubr.f32.mxu0 0.0
      %3041 = vmatmul.mubr.f32.gmra.mrb[0].mxu0 %v2944
      %v3042 = vpop.f32.mrb[0].mxu0
      %v3043 = vadd.f32 0.0, %v3042
      %v3044 = vpop.f32.mrb[0].mxu0
      %v3045 = vadd.f32 0.0, %v3044
      %3046 = vmatprep.mubr.f32.mxu0 0.0
      %3047 = vmatmul.mubr.f32.gmra.mrb[0].mxu0 %v2947
      %v3048 = vpop.f32.mrb[0].mxu0
      %v3049 = vadd.f32 0.0, %v3048
      %v3050 = vpop.f32.mrb[0].mxu0
      %v3051 = vadd.f32 0.0, %v3050
      %3052 = vmatprep.mubr.f32.mxu0 0.0
      %3053 = vmatmul.mubr.f32.gmra.mrb[0].mxu0 %v2950
      %v3054 = vpop.f32.mrb[0].mxu0
      %v3055 = vadd.f32 0.0, %v3054
      %v3056 = vpop.f32.mrb[0].mxu0
      %v3057 = vadd.f32 0.0, %v3056
      %3058 = vmatprep.mubr.f32.mxu0 0.0
      %3059 = vmatmul.mubr.f32.gmra.mrb[0].mxu0 %v2953
      %v3060 = vpop.f32.mrb[0].mxu0
      %v3061 = vadd.f32 0.0, %v3060
      %v3062 = vpop.f32.mrb[0].mxu0
      %v3063 = vadd.f32 0.0, %v3062
      %3064 = vmatprep.mubr.f32.mxu0 0.0
      %3065 = vmatmul.mubr.f32.gmra.mrb[0].mxu0 %v2956
      %v3066 = vpop.f32.mrb[0].mxu0
      %v3067 = vadd.f32 0.0, %v3066
      %v3068 = vpop.f32.mrb[0].mxu0
      %v3069 = vadd.f32 0.0, %v3068
      %3070 = vdwg.mxu0
      %3071 = vmatprep.subr.mxu0 %v453
      %3072 = vmatpush1.msra.mxu0 %v452
      %3073 = vmatprep.subr.mxu0 %v455
      %3074 = vmatpush1.msra.mxu0 %v454
      %3075 = vmatprep.subr.mxu0 %v457
      %3076 = vmatpush1.msra.mxu0 %v456
      %3077 = vmatprep.subr.mxu0 %v459
      %3078 = vmatpush1.msra.mxu0 %v458
      %3079 = vmatprep.subr.mxu0 0.0
      %3080 = vmatpush1.msra.mxu0 0.0
      %3081 = vmatprep.subr.mxu0 0.0
      %3082 = vmatpush1.msra.mxu0 0.0
      %3083 = vmatprep.subr.mxu0 0.0
      %3084 = vmatpush1.msra.mxu0 0.0
      %3085 = vmatprep.subr.mxu0 0.0
      %3086 = vmatpush1.msra.mxu0 0.0
      %3087 = vmatprep.subr.mxu0 0.0
      %3088 = vmatpush1.msra.mxu0 0.0
      %3089 = vmatprep.subr.mxu0 0.0
      %3090 = vmatpush1.msra.mxu0 0.0
      %3091 = vmatprep.subr.mxu0 0.0
      %3092 = vmatpush1.msra.mxu0 0.0
      %3093 = vmatprep.subr.mxu0 0.0
      %3094 = vmatpush1.msra.mxu0 0.0
      %3095 = vmatprep.subr.mxu0 0.0
      %3096 = vmatpush1.msra.mxu0 0.0
      %3097 = vmatprep.subr.mxu0 0.0
      %3098 = vmatpush1.msra.mxu0 0.0
      %3099 = vmatprep.subr.mxu0 0.0
      %3100 = vmatpush1.msra.mxu0 0.0
      %3101 = vmatprep.subr.mxu0 0.0
      %3102 = vmatpush1.msra.mxu0 0.0
      %3103 = vmatprep.subr.mxu0 0.0
      %3104 = vmatpush1.msra.mxu0 0.0
      %3105 = vmatprep.subr.mxu0 0.0
      %3106 = vmatpush1.msra.mxu0 0.0
      %3107 = vmatprep.subr.mxu0 0.0
      %3108 = vmatpush1.msra.mxu0 0.0
      %3109 = vmatprep.subr.mxu0 0.0
      %3110 = vmatpush1.msra.mxu0 0.0
      %3111 = vmatprep.subr.mxu0 0.0
      %3112 = vmatpush1.msra.mxu0 0.0
      %3113 = vmatprep.subr.mxu0 0.0
      %3114 = vmatpush1.msra.mxu0 0.0
      %3115 = vmatprep.subr.mxu0 0.0
      %3116 = vmatpush1.msra.mxu0 0.0
      %3117 = vmatprep.subr.mxu0 0.0
      %3118 = vmatpush1.msra.mxu0 0.0
      %3119 = vmatprep.subr.mxu0 0.0
      %3120 = vmatpush1.msra.mxu0 0.0
      %3121 = vmatprep.subr.mxu0 0.0
      %3122 = vmatpush1.msra.mxu0 0.0
      %3123 = vmatprep.subr.mxu0 0.0
      %3124 = vmatpush1.msra.mxu0 0.0
      %3125 = vmatprep.subr.mxu0 0.0
      %3126 = vmatpush1.msra.mxu0 0.0
      %3127 = vmatprep.subr.mxu0 0.0
      %3128 = vmatpush1.msra.mxu0 0.0
      %3129 = vmatprep.subr.mxu0 0.0
      %3130 = vmatpush1.msra.mxu0 0.0
      %3131 = vmatprep.subr.mxu0 0.0
      %3132 = vmatpush1.msra.mxu0 0.0
      %3133 = vmatprep.subr.mxu0 0.0
      %3134 = vmatpush1.msra.mxu0 0.0
      %3135 = vmatprep.mubr.f32.mxu0 0.0
      %3136 = vmatmul.mubr.f32.gmra.mrb[0].mxu0 %v2034
      %v3137 = vpop.f32.mrb[0].mxu0
      %v3138 = vadd.f32 %v3025, %v3137
      %v3139 = vpop.f32.mrb[0].mxu0
      %v3140 = vadd.f32 %v3027, %v3139
      %3141 = vmatprep.mubr.f32.mxu0 0.0
      %3142 = vmatmul.mubr.f32.gmra.mrb[0].mxu0 %v2037
      %v3143 = vpop.f32.mrb[0].mxu0
      %v3144 = vadd.f32 %v3031, %v3143
      %v3145 = vpop.f32.mrb[0].mxu0
      %v3146 = vadd.f32 %v3033, %v3145
      %3147 = vmatprep.mubr.f32.mxu0 0.0
      %3148 = vmatmul.mubr.f32.gmra.mrb[0].mxu0 %v2040
      %v3149 = vpop.f32.mrb[0].mxu0
      %v3150 = vadd.f32 %v3037, %v3149
      %v3151 = vpop.f32.mrb[0].mxu0
      %v3152 = vadd.f32 %v3039, %v3151
      %3153 = vmatprep.mubr.f32.mxu0 0.0
      %3154 = vmatmul.mubr.f32.gmra.mrb[0].mxu0 %v2043
      %v3155 = vpop.f32.mrb[0].mxu0
      %v3156 = vadd.f32 %v3043, %v3155
      %v3157 = vpop.f32.mrb[0].mxu0
      %v3158 = vadd.f32 %v3045, %v3157
      %3159 = vmatprep.mubr.f32.mxu0 0.0
      %3160 = vmatmul.mubr.f32.gmra.mrb[0].mxu0 %v2046
      %v3161 = vpop.f32.mrb[0].mxu0
      %v3162 = vadd.f32 %v3049, %v3161
      %v3163 = vpop.f32.mrb[0].mxu0
      %v3164 = vadd.f32 %v3051, %v3163
      %3165 = vmatprep.mubr.f32.mxu0 0.0
      %3166 = vmatmul.mubr.f32.gmra.mrb[0].mxu0 %v2049
      %v3167 = vpop.f32.mrb[0].mxu0
      %v3168 = vadd.f32 %v3055, %v3167
      %v3169 = vpop.f32.mrb[0].mxu0
      %v3170 = vadd.f32 %v3057, %v3169
      %3171 = vmatprep.mubr.f32.mxu0 0.0
      %3172 = vmatmul.mubr.f32.gmra.mrb[0].mxu0 %v2052
      %v3173 = vpop.f32.mrb[0].mxu0
      %v3174 = vadd.f32 %v3061, %v3173
      %v3175 = vpop.f32.mrb[0].mxu0
      %v3176 = vadd.f32 %v3063, %v3175
      %3177 = vmatprep.mubr.f32.mxu0 0.0
      %3178 = vmatmul.mubr.f32.gmra.mrb[0].mxu0 %v2055
      %v3179 = vpop.f32.mrb[0].mxu0
      %v3180 = vadd.f32 %v3067, %v3179
      %v3181 = vpop.f32.mrb[0].mxu0
      %v3182 = vadd.f32 %v3069, %v3181
      %3183 = vdwg.mxu0
      %v3184 = vmul.f32 %v3138, 0.5
      %v3185 = vmul.f32 %v3140, 0.5
      %v3186 = vmul.f32 %v3144, 0.5
      %v3187 = vmul.f32 %v3146, 0.5
      %v3188 = vmul.f32 %v3150, 0.5
      %v3189 = vmul.f32 %v3152, 0.5
      %v3190 = vmul.f32 %v3156, 0.5
      %v3191 = vmul.f32 %v3158, 0.5
      %v3192 = vmul.f32 %v3162, 0.5
      %v3193 = vmul.f32 %v3164, 0.5
      %v3194 = vmul.f32 %v3168, 0.5
      %v3195 = vmul.f32 %v3170, 0.5
      %v3196 = vmul.f32 %v3174, 0.5
      %v3197 = vmul.f32 %v3176, 0.5
      %v3198 = vmul.f32 %v3180, 0.5
      %v3199 = vmul.f32 %v3182, 0.5
      %v3200 = vmul.f32 %v3138, 0.70710677
      %v3201 = vmul.f32 %v3140, 0.70710677
      %v3202 = vmul.f32 %v3144, 0.70710677
      %v3203 = vmul.f32 %v3146, 0.70710677
      %v3204 = vmul.f32 %v3150, 0.70710677
      %v3205 = vmul.f32 %v3152, 0.70710677
      %v3206 = vmul.f32 %v3156, 0.70710677
      %v3207 = vmul.f32 %v3158, 0.70710677
      %v3208 = vmul.f32 %v3162, 0.70710677
      %v3209 = vmul.f32 %v3164, 0.70710677
      %v3210 = vmul.f32 %v3168, 0.70710677
      %v3211 = vmul.f32 %v3170, 0.70710677
      %v3212 = vmul.f32 %v3174, 0.70710677
      %v3213 = vmul.f32 %v3176, 0.70710677
      %v3214 = vmul.f32 %v3180, 0.70710677
      %v3215 = vmul.f32 %v3182, 0.70710677
      %v3216 = verf.f32.pop %v3200
      %v3217 = verf.f32.pop %v3201
      %v3218 = verf.f32.pop %v3202
      %v3219 = verf.f32.pop %v3203
      %v3220 = verf.f32.pop %v3204
      %v3221 = verf.f32.pop %v3205
      %v3222 = verf.f32.pop %v3206
      %v3223 = verf.f32.pop %v3207
      %v3224 = verf.f32.pop %v3208
      %v3225 = verf.f32.pop %v3209
      %v3226 = verf.f32.pop %v3210
      %v3227 = verf.f32.pop %v3211
      %v3228 = verf.f32.pop %v3212
      %v3229 = verf.f32.pop %v3213
      %v3230 = verf.f32.pop %v3214
      %v3231 = verf.f32.pop %v3215
      %v3232 = vadd.f32 %v3216, 1.0
      %v3233 = vadd.f32 %v3217, 1.0
      %v3234 = vadd.f32 %v3218, 1.0
      %v3235 = vadd.f32 %v3219, 1.0
      %v3236 = vadd.f32 %v3220, 1.0
      %v3237 = vadd.f32 %v3221, 1.0
      %v3238 = vadd.f32 %v3222, 1.0
      %v3239 = vadd.f32 %v3223, 1.0
      %v3240 = vadd.f32 %v3224, 1.0
      %v3241 = vadd.f32 %v3225, 1.0
      %v3242 = vadd.f32 %v3226, 1.0
      %v3243 = vadd.f32 %v3227, 1.0
      %v3244 = vadd.f32 %v3228, 1.0
      %v3245 = vadd.f32 %v3229, 1.0
      %v3246 = vadd.f32 %v3230, 1.0
      %v3247 = vadd.f32 %v3231, 1.0
      %v3248 = vmul.f32 %v3184, %v3232
      %v3249 = vmul.f32 %v3185, %v3233
      %v3250 = vmul.f32 %v3186, %v3234
      %v3251 = vmul.f32 %v3187, %v3235
      %v3252 = vmul.f32 %v3188, %v3236
      %v3253 = vmul.f32 %v3189, %v3237
      %v3254 = vmul.f32 %v3190, %v3238
      %v3255 = vmul.f32 %v3191, %v3239
      %v3256 = vmul.f32 %v3192, %v3240
      %v3257 = vmul.f32 %v3193, %v3241
      %v3258 = vmul.f32 %v3194, %v3242
      %v3259 = vmul.f32 %v3195, %v3243
      %v3260 = vmul.f32 %v3196, %v3244
      %v3261 = vmul.f32 %v3197, %v3245
      %v3262 = vmul.f32 %v3198, %v3246
      %v3263 = vmul.f32 %v3199, %v3247
      %3264 = vmatprep.subr.mxu0 0.0
      %3265 = vmatpush1.msra.mxu0 %v468
      %3266 = vmatprep.subr.mxu0 0.0
      %3267 = vmatpush1.msra.mxu0 %v469
      %3268 = vmatprep.subr.mxu0 0.0
      %3269 = vmatpush1.msra.mxu0 %v470
      %3270 = vmatprep.subr.mxu0 0.0
      %3271 = vmatpush1.msra.mxu0 %v471
      %3272 = vmatprep.subr.mxu0 0.0
      %3273 = vmatpush1.msra.mxu0 %v472
      %3274 = vmatprep.subr.mxu0 0.0
      %3275 = vmatpush1.msra.mxu0 %v473
      %3276 = vmatprep.subr.mxu0 0.0
      %3277 = vmatpush1.msra.mxu0 %v474
      %3278 = vmatprep.subr.mxu0 0.0
      %3279 = vmatpush1.msra.mxu0 %v475
      %3280 = vmatprep.subr.mxu0 0.0
      %3281 = vmatpush1.msra.mxu0 %v476
      %3282 = vmatprep.subr.mxu0 0.0
      %3283 = vmatpush1.msra.mxu0 %v477
      %3284 = vmatprep.subr.mxu0 0.0
      %3285 = vmatpush1.msra.mxu0 %v478
      %3286 = vmatprep.subr.mxu0 0.0
      %3287 = vmatpush1.msra.mxu0 %v479
      %3288 = vmatprep.subr.mxu0 0.0
      %3289 = vmatpush1.msra.mxu0 %v480
      %3290 = vmatprep.subr.mxu0 0.0
      %3291 = vmatpush1.msra.mxu0 %v481
      %3292 = vmatprep.subr.mxu0 0.0
      %3293 = vmatpush1.msra.mxu0 %v482
      %3294 = vmatprep.subr.mxu0 0.0
      %3295 = vmatpush1.msra.mxu0 %v483
      %3296 = vmatprep.subr.mxu0 0.0
      %3297 = vmatpush1.msra.mxu0 %v484
      %3298 = vmatprep.subr.mxu0 0.0
      %3299 = vmatpush1.msra.mxu0 %v485
      %3300 = vmatprep.subr.mxu0 0.0
      %3301 = vmatpush1.msra.mxu0 %v486
      %3302 = vmatprep.subr.mxu0 0.0
      %3303 = vmatpush1.msra.mxu0 %v487
      %3304 = vmatprep.subr.mxu0 0.0
      %3305 = vmatpush1.msra.mxu0 %v488
      %3306 = vmatprep.subr.mxu0 0.0
      %3307 = vmatpush1.msra.mxu0 %v489
      %3308 = vmatprep.subr.mxu0 0.0
      %3309 = vmatpush1.msra.mxu0 %v490
      %3310 = vmatprep.subr.mxu0 0.0
      %3311 = vmatpush1.msra.mxu0 %v491
      %3312 = vmatprep.subr.mxu0 0.0
      %3313 = vmatpush1.msra.mxu0 %v492
      %3314 = vmatprep.subr.mxu0 0.0
      %3315 = vmatpush1.msra.mxu0 %v493
      %3316 = vmatprep.subr.mxu0 0.0
      %3317 = vmatpush1.msra.mxu0 %v494
      %3318 = vmatprep.subr.mxu0 0.0
      %3319 = vmatpush1.msra.mxu0 %v495
      %3320 = vmatprep.subr.mxu0 0.0
      %3321 = vmatpush1.msra.mxu0 %v496
      %3322 = vmatprep.subr.mxu0 0.0
      %3323 = vmatpush1.msra.mxu0 %v497
      %3324 = vmatprep.subr.mxu0 0.0
      %3325 = vmatpush1.msra.mxu0 %v498
      %3326 = vmatprep.subr.mxu0 0.0
      %3327 = vmatpush1.msra.mxu0 %v499
      %3328 = vmatprep.mubr.f32.mxu0 %v3249
      %3329 = vmatmul.mubr.f32.gmra.mrb[0].mxu0 %v3248
      %v3330 = vpop.f32.mrb[0].mxu0
      %v3331 = vadd.f32 0.0, %v3330
      %v3332 = vpop.f32.mrb[0].mxu0
      %3333 = vmatprep.mubr.f32.mxu0 %v3251
      %3334 = vmatmul.mubr.f32.gmra.mrb[0].mxu0 %v3250
      %v3335 = vpop.f32.mrb[0].mxu0
      %v3336 = vadd.f32 0.0, %v3335
      %v3337 = vpop.f32.mrb[0].mxu0
      %3338 = vmatprep.mubr.f32.mxu0 %v3253
      %3339 = vmatmul.mubr.f32.gmra.mrb[0].mxu0 %v3252
      %v3340 = vpop.f32.mrb[0].mxu0
      %v3341 = vadd.f32 0.0, %v3340
      %v3342 = vpop.f32.mrb[0].mxu0
      %3343 = vmatprep.mubr.f32.mxu0 %v3255
      %3344 = vmatmul.mubr.f32.gmra.mrb[0].mxu0 %v3254
      %v3345 = vpop.f32.mrb[0].mxu0
      %v3346 = vadd.f32 0.0, %v3345
      %v3347 = vpop.f32.mrb[0].mxu0
      %3348 = vmatprep.mubr.f32.mxu0 %v3257
      %3349 = vmatmul.mubr.f32.gmra.mrb[0].mxu0 %v3256
      %v3350 = vpop.f32.mrb[0].mxu0
      %v3351 = vadd.f32 0.0, %v3350
      %v3352 = vpop.f32.mrb[0].mxu0
      %3353 = vmatprep.mubr.f32.mxu0 %v3259
      %3354 = vmatmul.mubr.f32.gmra.mrb[0].mxu0 %v3258
      %v3355 = vpop.f32.mrb[0].mxu0
      %v3356 = vadd.f32 0.0, %v3355
      %v3357 = vpop.f32.mrb[0].mxu0
      %3358 = vmatprep.mubr.f32.mxu0 %v3261
      %3359 = vmatmul.mubr.f32.gmra.mrb[0].mxu0 %v3260
      %v3360 = vpop.f32.mrb[0].mxu0
      %v3361 = vadd.f32 0.0, %v3360
      %v3362 = vpop.f32.mrb[0].mxu0
      %3363 = vmatprep.mubr.f32.mxu0 %v3263
      %3364 = vmatmul.mubr.f32.gmra.mrb[0].mxu0 %v3262
      %v3365 = vpop.f32.mrb[0].mxu0
      %v3366 = vadd.f32 0.0, %v3365
      %v3367 = vpop.f32.mrb[0].mxu0
      %3368 = vdwg.mxu0
      %v3369 = vsel %vm518, %v3331, 0.0
      %3370 = vadd.xlane.f32.xlu0 %v3369
      %v3371 = vpop.xlane.xlu0 %3370
      %v3372 = vsel %vm518, %v3336, 0.0
      %3373 = vadd.xlane.f32.xlu0 %v3372
      %v3374 = vpop.xlane.xlu0 %3373
      %v3375 = vsel %vm518, %v3341, 0.0
      %3376 = vadd.xlane.f32.xlu0 %v3375
      %v3377 = vpop.xlane.xlu0 %3376
      %v3378 = vsel %vm518, %v3346, 0.0
      %3379 = vadd.xlane.f32.xlu0 %v3378
      %v3380 = vpop.xlane.xlu0 %3379
      %v3381 = vsel %vm518, %v3351, 0.0
      %3382 = vadd.xlane.f32.xlu0 %v3381
      %v3383 = vpop.xlane.xlu0 %3382
      %v3384 = vsel %vm518, %v3356, 0.0
      %3385 = vadd.xlane.f32.xlu0 %v3384
      %v3386 = vpop.xlane.xlu0 %3385
      %v3387 = vsel %vm518, %v3361, 0.0
      %3388 = vadd.xlane.f32.xlu0 %v3387
      %v3389 = vpop.xlane.xlu0 %3388
      %v3390 = vsel %vm518, %v3366, 0.0
      %3391 = vadd.xlane.f32.xlu0 %v3390
      %v3392 = vpop.xlane.xlu0 %3391
      %v3393 = vmul.f32 %v3371, %v1325
      %v3394 = vmul.f32 %v3374, %v1325
      %v3395 = vmul.f32 %v3377, %v1325
      %v3396 = vmul.f32 %v3380, %v1325
      %v3397 = vmul.f32 %v3383, %v1325
      %v3398 = vmul.f32 %v3386, %v1325
      %v3399 = vmul.f32 %v3389, %v1325
      %v3400 = vmul.f32 %v3392, %v1325
      %v3401 = vsub.f32 %v3331, %v3393
      %v3402 = vsub.f32 %v3336, %v3394
      %v3403 = vsub.f32 %v3341, %v3395
      %v3404 = vsub.f32 %v3346, %v3396
      %v3405 = vsub.f32 %v3351, %v3397
      %v3406 = vsub.f32 %v3356, %v3398
      %v3407 = vsub.f32 %v3361, %v3399
      %v3408 = vsub.f32 %v3366, %v3400
      %v3409 = vmul.f32 %v3401, %v3401
      %v3410 = vmul.f32 %v3402, %v3402
      %v3411 = vmul.f32 %v3403, %v3403
      %v3412 = vmul.f32 %v3404, %v3404
      %v3413 = vmul.f32 %v3405, %v3405
      %v3414 = vmul.f32 %v3406, %v3406
      %v3415 = vmul.f32 %v3407, %v3407
      %v3416 = vmul.f32 %v3408, %v3408
      %v3417 = vsel %vm518, %v3409, 0.0
      %3418 = vadd.xlane.f32.xlu0 %v3417
      %v3419 = vpop.xlane.xlu0 %3418
      %v3420 = vsel %vm518, %v3410, 0.0
      %3421 = vadd.xlane.f32.xlu0 %v3420
      %v3422 = vpop.xlane.xlu0 %3421
      %v3423 = vsel %vm518, %v3411, 0.0
      %3424 = vadd.xlane.f32.xlu0 %v3423
      %v3425 = vpop.xlane.xlu0 %3424
      %v3426 = vsel %vm518, %v3412, 0.0
      %3427 = vadd.xlane.f32.xlu0 %v3426
      %v3428 = vpop.xlane.xlu0 %3427
      %v3429 = vsel %vm518, %v3413, 0.0
      %3430 = vadd.xlane.f32.xlu0 %v3429
      %v3431 = vpop.xlane.xlu0 %3430
      %v3432 = vsel %vm518, %v3414, 0.0
      %3433 = vadd.xlane.f32.xlu0 %v3432
      %v3434 = vpop.xlane.xlu0 %3433
      %v3435 = vsel %vm518, %v3415, 0.0
      %3436 = vadd.xlane.f32.xlu0 %v3435
      %v3437 = vpop.xlane.xlu0 %3436
      %v3438 = vsel %vm518, %v3416, 0.0
      %3439 = vadd.xlane.f32.xlu0 %v3438
      %v3440 = vpop.xlane.xlu0 %3439
      %v3441 = vmul.f32 %v3419, %v1325
      %v3442 = vmul.f32 %v3422, %v1325
      %v3443 = vmul.f32 %v3425, %v1325
      %v3444 = vmul.f32 %v3428, %v1325
      %v3445 = vmul.f32 %v3431, %v1325
      %v3446 = vmul.f32 %v3434, %v1325
      %v3447 = vmul.f32 %v3437, %v1325
      %v3448 = vmul.f32 %v3440, %v1325
      %v3449 = vadd.f32 %v3441, 1e-05
      %v3450 = vadd.f32 %v3442, 1e-05
      %v3451 = vadd.f32 %v3443, 1e-05
      %v3452 = vadd.f32 %v3444, 1e-05
      %v3453 = vadd.f32 %v3445, 1e-05
      %v3454 = vadd.f32 %v3446, 1e-05
      %v3455 = vadd.f32 %v3447, 1e-05
      %v3456 = vadd.f32 %v3448, 1e-05
      %v3457 = vrsqrt.pop %v3449
      %v3458 = vrsqrt.pop %v3450
      %v3459 = vrsqrt.pop %v3451
      %v3460 = vrsqrt.pop %v3452
      %v3461 = vrsqrt.pop %v3453
      %v3462 = vrsqrt.pop %v3454
      %v3463 = vrsqrt.pop %v3455
      %v3464 = vrsqrt.pop %v3456
      %v3465 = vmul.f32 %v3401, %v3457
      %v3466 = vmul.f32 %v3402, %v3458
      %v3467 = vmul.f32 %v3403, %v3459
      %v3468 = vmul.f32 %v3404, %v3460
      %v3469 = vmul.f32 %v3405, %v3461
      %v3470 = vmul.f32 %v3406, %v3462
      %v3471 = vmul.f32 %v3407, %v3463
      %v3472 = vmul.f32 %v3408, %v3464
      %v3473 = vmul.f32 %v3465, %v1977
      %v3474 = vmul.f32 %v3466, %v1977
      %v3475 = vmul.f32 %v3467, %v1977
      %v3476 = vmul.f32 %v3468, %v1977
      %v3477 = vmul.f32 %v3469, %v1977
      %v3478 = vmul.f32 %v3470, %v1977
      %v3479 = vmul.f32 %v3471, %v1977
      %v3480 = vmul.f32 %v3472, %v1977
      %v3481 = vadd.f32 %v3473, %v1991
      %v3482 = vadd.f32 %v3474, %v1991
      %v3483 = vadd.f32 %v3475, %v1991
      %v3484 = vadd.f32 %v3476, %v1991
      %v3485 = vadd.f32 %v3477, %v1991
      %v3486 = vadd.f32 %v3478, %v1991
      %v3487 = vadd.f32 %v3479, %v1991
      %v3488 = vadd.f32 %v3480, %v1991
      %v3489 = vadd.f32 %v2017, %v3481
      %v3490 = vadd.f32 %v2018, %v3482
      %v3491 = vadd.f32 %v2019, %v3483
      %v3492 = vadd.f32 %v2020, %v3484
      %v3493 = vadd.f32 %v2021, %v3485
      %v3494 = vadd.f32 %v2022, %v3486
      %v3495 = vadd.f32 %v2023, %v3487
      %v3496 = vadd.f32 %v2024, %v3488
      %3497 = vst.msk [vmem:[%s433 + $0x8] sm:$0xff] %vm518, %v3489
      %3498 = vst.msk [vmem:[%s433 + $0x18] sm:$0xff] %vm518, %v3490
      %3499 = vst.msk [vmem:[%s433 + $0x28] sm:$0xff] %vm518, %v3491
      %3500 = vst.msk [vmem:[%s433 + $0x38] sm:$0xff] %vm518, %v3492
      %3501 = vst.msk [vmem:[%s433 + $0x48] sm:$0xff] %vm518, %v3493
      %3502 = vst.msk [vmem:[%s433 + $0x58] sm:$0xff] %vm518, %v3494
      %3503 = vst.msk [vmem:[%s433 + $0x68] sm:$0xff] %vm518, %v3495
      %3504 = vst.msk [vmem:[%s433 + $0x78] sm:$0xff] %vm518, %v3496
      %s3505 = scalar_lea.vmem %s423, 128
      %v3506 = vld [vmem:[%s3505] sm:$0xff]
      %v3507 = vld [vmem:[%s3505 + $0x10] sm:$0xff]
      %v3508 = vld [vmem:[%s3505 + $0x20] sm:$0xff]
      %v3509 = vld [vmem:[%s3505 + $0x30] sm:$0xff]
      %v3510 = vld [vmem:[%s3505 + $0x40] sm:$0xff]
      %v3511 = vld [vmem:[%s3505 + $0x50] sm:$0xff]
      %v3512 = vld [vmem:[%s3505 + $0x60] sm:$0xff]
      %v3513 = vld [vmem:[%s3505 + $0x70] sm:$0xff]
      %s3514 = scalar_lea.vmem %s428, 128
      %v3515 = vld [vmem:[%s3514] sm:$0xff]
      %v3516 = vld [vmem:[%s3514 + $0x10] sm:$0xff]
      %v3517 = vld [vmem:[%s3514 + $0x20] sm:$0xff]
      %v3518 = vld [vmem:[%s3514 + $0x30] sm:$0xff]
      %v3519 = vld [vmem:[%s3514 + $0x40] sm:$0xff]
      %v3520 = vld [vmem:[%s3514 + $0x50] sm:$0xff]
      %v3521 = vld [vmem:[%s3514 + $0x60] sm:$0xff]
      %v3522 = vld [vmem:[%s3514 + $0x70] sm:$0xff]
      %v3524 = vsel %vm518, %v3506, 0
      %v3527 = vsel %vm518, %v3507, 0
      %v3530 = vsel %vm518, %v3508, 0
      %v3533 = vsel %vm518, %v3509, 0
      %v3536 = vsel %vm518, %v3510, 0
      %v3539 = vsel %vm518, %v3511, 0
      %v3542 = vsel %vm518, %v3512, 0
      %v3545 = vsel %vm518, %v3513, 0
      %3547 = vmatprep.subr.mxu0 0.0
      %3548 = vmatpush1.msra.mxu0 %v438
      %3549 = vmatprep.subr.mxu0 0.0
      %3550 = vmatpush1.msra.mxu0 %v439
      %3551 = vmatprep.subr.mxu0 0.0
      %3552 = vmatpush1.msra.mxu0 %v440
      %3553 = vmatprep.subr.mxu0 0.0
      %3554 = vmatpush1.msra.mxu0 %v441
      %3555 = vmatprep.subr.mxu0 0.0
      %3556 = vmatpush1.msra.mxu0 0.0
      %3557 = vmatprep.subr.mxu0 0.0
      %3558 = vmatpush1.msra.mxu0 0.0
      %3559 = vmatprep.subr.mxu0 0.0
      %3560 = vmatpush1.msra.mxu0 0.0
      %3561 = vmatprep.subr.mxu0 0.0
      %3562 = vmatpush1.msra.mxu0 0.0
      %3563 = vmatprep.subr.mxu0 0.0
      %3564 = vmatpush1.msra.mxu0 0.0
      %3565 = vmatprep.subr.mxu0 0.0
      %3566 = vmatpush1.msra.mxu0 0.0
      %3567 = vmatprep.subr.mxu0 0.0
      %3568 = vmatpush1.msra.mxu0 0.0
      %3569 = vmatprep.subr.mxu0 0.0
      %3570 = vmatpush1.msra.mxu0 0.0
      %3571 = vmatprep.subr.mxu0 0.0
      %3572 = vmatpush1.msra.mxu0 0.0
      %3573 = vmatprep.subr.mxu0 0.0
      %3574 = vmatpush1.msra.mxu0 0.0
      %3575 = vmatprep.subr.mxu0 0.0
      %3576 = vmatpush1.msra.mxu0 0.0
      %3577 = vmatprep.subr.mxu0 0.0
      %3578 = vmatpush1.msra.mxu0 0.0
      %3579 = vmatprep.subr.mxu0 0.0
      %3580 = vmatpush1.msra.mxu0 0.0
      %3581 = vmatprep.subr.mxu0 0.0
      %3582 = vmatpush1.msra.mxu0 0.0
      %3583 = vmatprep.subr.mxu0 0.0
      %3584 = vmatpush1.msra.mxu0 0.0
      %3585 = vmatprep.subr.mxu0 0.0
      %3586 = vmatpush1.msra.mxu0 0.0
      %3587 = vmatprep.subr.mxu0 0.0
      %3588 = vmatpush1.msra.mxu0 0.0
      %3589 = vmatprep.subr.mxu0 0.0
      %3590 = vmatpush1.msra.mxu0 0.0
      %3591 = vmatprep.subr.mxu0 0.0
      %3592 = vmatpush1.msra.mxu0 0.0
      %3593 = vmatprep.subr.mxu0 0.0
      %3594 = vmatpush1.msra.mxu0 0.0
      %3595 = vmatprep.subr.mxu0 0.0
      %3596 = vmatpush1.msra.mxu0 0.0
      %3597 = vmatprep.subr.mxu0 0.0
      %3598 = vmatpush1.msra.mxu0 0.0
      %3599 = vmatprep.subr.mxu0 0.0
      %3600 = vmatpush1.msra.mxu0 0.0
      %3601 = vmatprep.subr.mxu0 0.0
      %3602 = vmatpush1.msra.mxu0 0.0
      %3603 = vmatprep.subr.mxu0 0.0
      %3604 = vmatpush1.msra.mxu0 0.0
      %3605 = vmatprep.subr.mxu0 0.0
      %3606 = vmatpush1.msra.mxu0 0.0
      %3607 = vmatprep.subr.mxu0 0.0
      %3608 = vmatpush1.msra.mxu0 0.0
      %3609 = vmatprep.subr.mxu0 0.0
      %3610 = vmatpush1.msra.mxu0 0.0
      %3611 = vmatprep.mubr.f32.mxu0 0.0
      %3612 = vmatmul.mubr.f32.gmra.mrb[0].mxu0 %v3524
      %v3613 = vpop.f32.mrb[0].mxu0
      %v3614 = vadd.f32 0.0, %v3613
      %v3615 = vpop.f32.mrb[0].mxu0
      %3616 = vmatprep.mubr.f32.mxu0 0.0
      %3617 = vmatmul.mubr.f32.gmra.mrb[0].mxu0 %v3527
      %v3618 = vpop.f32.mrb[0].mxu0
      %v3619 = vadd.f32 0.0, %v3618
      %v3620 = vpop.f32.mrb[0].mxu0
      %3621 = vmatprep.mubr.f32.mxu0 0.0
      %3622 = vmatmul.mubr.f32.gmra.mrb[0].mxu0 %v3530
      %v3623 = vpop.f32.mrb[0].mxu0
      %v3624 = vadd.f32 0.0, %v3623
      %v3625 = vpop.f32.mrb[0].mxu0
      %3626 = vmatprep.mubr.f32.mxu0 0.0
      %3627 = vmatmul.mubr.f32.gmra.mrb[0].mxu0 %v3533
      %v3628 = vpop.f32.mrb[0].mxu0
      %v3629 = vadd.f32 0.0, %v3628
      %v3630 = vpop.f32.mrb[0].mxu0
      %3631 = vmatprep.mubr.f32.mxu0 0.0
      %3632 = vmatmul.mubr.f32.gmra.mrb[0].mxu0 %v3536
      %v3633 = vpop.f32.mrb[0].mxu0
      %v3634 = vadd.f32 0.0, %v3633
      %v3635 = vpop.f32.mrb[0].mxu0
      %3636 = vmatprep.mubr.f32.mxu0 0.0
      %3637 = vmatmul.mubr.f32.gmra.mrb[0].mxu0 %v3539
      %v3638 = vpop.f32.mrb[0].mxu0
      %v3639 = vadd.f32 0.0, %v3638
      %v3640 = vpop.f32.mrb[0].mxu0
      %3641 = vmatprep.mubr.f32.mxu0 0.0
      %3642 = vmatmul.mubr.f32.gmra.mrb[0].mxu0 %v3542
      %v3643 = vpop.f32.mrb[0].mxu0
      %v3644 = vadd.f32 0.0, %v3643
      %v3645 = vpop.f32.mrb[0].mxu0
      %3646 = vmatprep.mubr.f32.mxu0 0.0
      %3647 = vmatmul.mubr.f32.gmra.mrb[0].mxu0 %v3545
      %v3648 = vpop.f32.mrb[0].mxu0
      %v3649 = vadd.f32 0.0, %v3648
      %v3650 = vpop.f32.mrb[0].mxu0
      %3651 = vdwg.mxu0
      %v3653 = vsel %vm518, %v3515, 0
      %v3656 = vsel %vm518, %v3516, 0
      %v3659 = vsel %vm518, %v3517, 0
      %v3662 = vsel %vm518, %v3518, 0
      %v3665 = vsel %vm518, %v3519, 0
      %v3668 = vsel %vm518, %v3520, 0
      %v3671 = vsel %vm518, %v3521, 0
      %v3674 = vsel %vm518, %v3522, 0
      %3676 = vmatprep.subr.mxu0 0.0
      %3677 = vmatpush1.msra.mxu0 %v442
      %3678 = vmatprep.subr.mxu0 0.0
      %3679 = vmatpush1.msra.mxu0 %v443
      %3680 = vmatprep.subr.mxu0 0.0
      %3681 = vmatpush1.msra.mxu0 %v444
      %3682 = vmatprep.subr.mxu0 0.0
      %3683 = vmatpush1.msra.mxu0 %v445
      %3684 = vmatprep.subr.mxu0 0.0
      %3685 = vmatpush1.msra.mxu0 0.0
      %3686 = vmatprep.subr.mxu0 0.0
      %3687 = vmatpush1.msra.mxu0 0.0
      %3688 = vmatprep.subr.mxu0 0.0
      %3689 = vmatpush1.msra.mxu0 0.0
      %3690 = vmatprep.subr.mxu0 0.0
      %3691 = vmatpush1.msra.mxu0 0.0
      %3692 = vmatprep.subr.mxu0 0.0
      %3693 = vmatpush1.msra.mxu0 0.0
      %3694 = vmatprep.subr.mxu0 0.0
      %3695 = vmatpush1.msra.mxu0 0.0
      %3696 = vmatprep.subr.mxu0 0.0
      %3697 = vmatpush1.msra.mxu0 0.0
      %3698 = vmatprep.subr.mxu0 0.0
      %3699 = vmatpush1.msra.mxu0 0.0
      %3700 = vmatprep.subr.mxu0 0.0
      %3701 = vmatpush1.msra.mxu0 0.0
      %3702 = vmatprep.subr.mxu0 0.0
      %3703 = vmatpush1.msra.mxu0 0.0
      %3704 = vmatprep.subr.mxu0 0.0
      %3705 = vmatpush1.msra.mxu0 0.0
      %3706 = vmatprep.subr.mxu0 0.0
      %3707 = vmatpush1.msra.mxu0 0.0
      %3708 = vmatprep.subr.mxu0 0.0
      %3709 = vmatpush1.msra.mxu0 0.0
      %3710 = vmatprep.subr.mxu0 0.0
      %3711 = vmatpush1.msra.mxu0 0.0
      %3712 = vmatprep.subr.mxu0 0.0
      %3713 = vmatpush1.msra.mxu0 0.0
      %3714 = vmatprep.subr.mxu0 0.0
      %3715 = vmatpush1.msra.mxu0 0.0
      %3716 = vmatprep.subr.mxu0 0.0
      %3717 = vmatpush1.msra.mxu0 0.0
      %3718 = vmatprep.subr.mxu0 0.0
      %3719 = vmatpush1.msra.mxu0 0.0
      %3720 = vmatprep.subr.mxu0 0.0
      %3721 = vmatpush1.msra.mxu0 0.0
      %3722 = vmatprep.subr.mxu0 0.0
      %3723 = vmatpush1.msra.mxu0 0.0
      %3724 = vmatprep.subr.mxu0 0.0
      %3725 = vmatpush1.msra.mxu0 0.0
      %3726 = vmatprep.subr.mxu0 0.0
      %3727 = vmatpush1.msra.mxu0 0.0
      %3728 = vmatprep.subr.mxu0 0.0
      %3729 = vmatpush1.msra.mxu0 0.0
      %3730 = vmatprep.subr.mxu0 0.0
      %3731 = vmatpush1.msra.mxu0 0.0
      %3732 = vmatprep.subr.mxu0 0.0
      %3733 = vmatpush1.msra.mxu0 0.0
      %3734 = vmatprep.subr.mxu0 0.0
      %3735 = vmatpush1.msra.mxu0 0.0
      %3736 = vmatprep.subr.mxu0 0.0
      %3737 = vmatpush1.msra.mxu0 0.0
      %3738 = vmatprep.subr.mxu0 0.0
      %3739 = vmatpush1.msra.mxu0 0.0
      %3740 = vmatprep.mubr.f32.mxu0 0.0
      %3741 = vmatmul.mubr.f32.gmra.mrb[0].mxu0 %v3653
      %v3742 = vpop.f32.mrb[0].mxu0
      %v3743 = vadd.f32 0.0, %v3742
      %v3744 = vpop.f32.mrb[0].mxu0
      %3745 = vmatprep.mubr.f32.mxu0 0.0
      %3746 = vmatmul.mubr.f32.gmra.mrb[0].mxu0 %v3656
      %v3747 = vpop.f32.mrb[0].mxu0
      %v3748 = vadd.f32 0.0, %v3747
      %v3749 = vpop.f32.mrb[0].mxu0
      %3750 = vmatprep.mubr.f32.mxu0 0.0
      %3751 = vmatmul.mubr.f32.gmra.mrb[0].mxu0 %v3659
      %v3752 = vpop.f32.mrb[0].mxu0
      %v3753 = vadd.f32 0.0, %v3752
      %v3754 = vpop.f32.mrb[0].mxu0
      %3755 = vmatprep.mubr.f32.mxu0 0.0
      %3756 = vmatmul.mubr.f32.gmra.mrb[0].mxu0 %v3662
      %v3757 = vpop.f32.mrb[0].mxu0
      %v3758 = vadd.f32 0.0, %v3757
      %v3759 = vpop.f32.mrb[0].mxu0
      %3760 = vmatprep.mubr.f32.mxu0 0.0
      %3761 = vmatmul.mubr.f32.gmra.mrb[0].mxu0 %v3665
      %v3762 = vpop.f32.mrb[0].mxu0
      %v3763 = vadd.f32 0.0, %v3762
      %v3764 = vpop.f32.mrb[0].mxu0
      %3765 = vmatprep.mubr.f32.mxu0 0.0
      %3766 = vmatmul.mubr.f32.gmra.mrb[0].mxu0 %v3668
      %v3767 = vpop.f32.mrb[0].mxu0
      %v3768 = vadd.f32 0.0, %v3767
      %v3769 = vpop.f32.mrb[0].mxu0
      %3770 = vmatprep.mubr.f32.mxu0 0.0
      %3771 = vmatmul.mubr.f32.gmra.mrb[0].mxu0 %v3671
      %v3772 = vpop.f32.mrb[0].mxu0
      %v3773 = vadd.f32 0.0, %v3772
      %v3774 = vpop.f32.mrb[0].mxu0
      %3775 = vmatprep.mubr.f32.mxu0 0.0
      %3776 = vmatmul.mubr.f32.gmra.mrb[0].mxu0 %v3674
      %v3777 = vpop.f32.mrb[0].mxu0
      %v3778 = vadd.f32 0.0, %v3777
      %v3779 = vpop.f32.mrb[0].mxu0
      %3780 = vdwg.mxu0
      %v3782 = vsel %vm518, %v3614, 0
      %v3785 = vsel %vm518, %v3619, 0
      %v3788 = vsel %vm518, %v3624, 0
      %v3791 = vsel %vm518, %v3629, 0
      %v3794 = vsel %vm518, %v3634, 0
      %v3797 = vsel %vm518, %v3639, 0
      %v3800 = vsel %vm518, %v3644, 0
      %v3803 = vsel %vm518, %v3649, 0
      %v3806 = vsel %vm518, %v3743, 0
      %v3809 = vsel %vm518, %v3748, 0
      %v3812 = vsel %vm518, %v3753, 0
      %v3815 = vsel %vm518, %v3758, 0
      %v3818 = vsel %vm518, %v3763, 0
      %v3821 = vsel %vm518, %v3768, 0
      %v3824 = vsel %vm518, %v3773, 0
      %v3827 = vsel %vm518, %v3778, 0
      %3829 = vmatprep.subr.mxu0 0.0
      %3830 = vmatpush1.xpose.msra.mxu0 %v3806
      %3831 = vmatprep.subr.mxu0 0.0
      %3832 = vmatpush1.xpose.msra.mxu0 %v3809
      %3833 = vmatprep.subr.mxu0 0.0
      %3834 = vmatpush1.xpose.msra.mxu0 %v3812
      %3835 = vmatprep.subr.mxu0 0.0
      %3836 = vmatpush1.xpose.msra.mxu0 %v3815
      %3837 = vmatprep.subr.mxu0 0.0
      %3838 = vmatpush1.xpose.msra.mxu0 %v3818
      %3839 = vmatprep.subr.mxu0 0.0
      %3840 = vmatpush1.xpose.msra.mxu0 %v3821
      %3841 = vmatprep.subr.mxu0 0.0
      %3842 = vmatpush1.xpose.msra.mxu0 %v3824
      %3843 = vmatprep.subr.mxu0 0.0
      %3844 = vmatpush1.xpose.msra.mxu0 %v3827
      %3845 = vmatprep.subr.mxu0 0.0
      %3846 = vmatpush1.xpose.msra.mxu0 0.0
      %3847 = vmatprep.subr.mxu0 0.0
      %3848 = vmatpush1.xpose.msra.mxu0 0.0
      %3849 = vmatprep.subr.mxu0 0.0
      %3850 = vmatpush1.xpose.msra.mxu0 0.0
      %3851 = vmatprep.subr.mxu0 0.0
      %3852 = vmatpush1.xpose.msra.mxu0 0.0
      %3853 = vmatprep.subr.mxu0 0.0
      %3854 = vmatpush1.xpose.msra.mxu0 0.0
      %3855 = vmatprep.subr.mxu0 0.0
      %3856 = vmatpush1.xpose.msra.mxu0 0.0
      %3857 = vmatprep.subr.mxu0 0.0
      %3858 = vmatpush1.xpose.msra.mxu0 0.0
      %3859 = vmatprep.subr.mxu0 0.0
      %3860 = vmatpush1.xpose.msra.mxu0 0.0
      %3861 = vmatprep.subr.mxu0 0.0
      %3862 = vmatpush1.xpose.msra.mxu0 0.0
      %3863 = vmatprep.subr.mxu0 0.0
      %3864 = vmatpush1.xpose.msra.mxu0 0.0
      %3865 = vmatprep.subr.mxu0 0.0
      %3866 = vmatpush1.xpose.msra.mxu0 0.0
      %3867 = vmatprep.subr.mxu0 0.0
      %3868 = vmatpush1.xpose.msra.mxu0 0.0
      %3869 = vmatprep.subr.mxu0 0.0
      %3870 = vmatpush1.xpose.msra.mxu0 0.0
      %3871 = vmatprep.subr.mxu0 0.0
      %3872 = vmatpush1.xpose.msra.mxu0 0.0
      %3873 = vmatprep.subr.mxu0 0.0
      %3874 = vmatpush1.xpose.msra.mxu0 0.0
      %3875 = vmatprep.subr.mxu0 0.0
      %3876 = vmatpush1.xpose.msra.mxu0 0.0
      %3877 = vmatprep.subr.mxu0 0.0
      %3878 = vmatpush1.xpose.msra.mxu0 0.0
      %3879 = vmatprep.subr.mxu0 0.0
      %3880 = vmatpush1.xpose.msra.mxu0 0.0
      %3881 = vmatprep.subr.mxu0 0.0
      %3882 = vmatpush1.xpose.msra.mxu0 0.0
      %3883 = vmatprep.subr.mxu0 0.0
      %3884 = vmatpush1.xpose.msra.mxu0 0.0
      %3885 = vmatprep.subr.mxu0 0.0
      %3886 = vmatpush1.xpose.msra.mxu0 0.0
      %3887 = vmatprep.subr.mxu0 0.0
      %3888 = vmatpush1.xpose.msra.mxu0 0.0
      %3889 = vmatprep.subr.mxu0 0.0
      %3890 = vmatpush1.xpose.msra.mxu0 0.0
      %3891 = vmatprep.subr.mxu0 0.0
      %3892 = vmatpush1.xpose.msra.mxu0 0.0
      %3893 = vmatprep.mubr.f32.mxu0 0.0
      %3894 = vmatmul.mubr.f32.gmra.mrb[0].mxu0 %v3782
      %v3895 = vpop.f32.mrb[0].mxu0
      %v3896 = vadd.f32 0.0, %v3895
      %v3897 = vpop.f32.mrb[0].mxu0
      %3898 = vmatprep.mubr.f32.mxu0 0.0
      %3899 = vmatmul.mubr.f32.gmra.mrb[0].mxu0 %v3785
      %v3900 = vpop.f32.mrb[0].mxu0
      %v3901 = vadd.f32 0.0, %v3900
      %v3902 = vpop.f32.mrb[0].mxu0
      %3903 = vmatprep.mubr.f32.mxu0 0.0
      %3904 = vmatmul.mubr.f32.gmra.mrb[0].mxu0 %v3788
      %v3905 = vpop.f32.mrb[0].mxu0
      %v3906 = vadd.f32 0.0, %v3905
      %v3907 = vpop.f32.mrb[0].mxu0
      %3908 = vmatprep.mubr.f32.mxu0 0.0
      %3909 = vmatmul.mubr.f32.gmra.mrb[0].mxu0 %v3791
      %v3910 = vpop.f32.mrb[0].mxu0
      %v3911 = vadd.f32 0.0, %v3910
      %v3912 = vpop.f32.mrb[0].mxu0
      %3913 = vmatprep.mubr.f32.mxu0 0.0
      %3914 = vmatmul.mubr.f32.gmra.mrb[0].mxu0 %v3794
      %v3915 = vpop.f32.mrb[0].mxu0
      %v3916 = vadd.f32 0.0, %v3915
      %v3917 = vpop.f32.mrb[0].mxu0
      %3918 = vmatprep.mubr.f32.mxu0 0.0
      %3919 = vmatmul.mubr.f32.gmra.mrb[0].mxu0 %v3797
      %v3920 = vpop.f32.mrb[0].mxu0
      %v3921 = vadd.f32 0.0, %v3920
      %v3922 = vpop.f32.mrb[0].mxu0
      %3923 = vmatprep.mubr.f32.mxu0 0.0
      %3924 = vmatmul.mubr.f32.gmra.mrb[0].mxu0 %v3800
      %v3925 = vpop.f32.mrb[0].mxu0
      %v3926 = vadd.f32 0.0, %v3925
      %v3927 = vpop.f32.mrb[0].mxu0
      %3928 = vmatprep.mubr.f32.mxu0 0.0
      %3929 = vmatmul.mubr.f32.gmra.mrb[0].mxu0 %v3803
      %v3930 = vpop.f32.mrb[0].mxu0
      %v3931 = vadd.f32 0.0, %v3930
      %v3932 = vpop.f32.mrb[0].mxu0
      %3933 = vdwg.mxu0
      %v3934 = vsel %vm930, %v3896, -inf
      %3935 = vmax.xlane.f32.xlu0 %v3934
      %v3936 = vpop.xlane.xlu0 %3935
      %v3937 = vsel %vm930, %v3901, -inf
      %3938 = vmax.xlane.f32.xlu0 %v3937
      %v3939 = vpop.xlane.xlu0 %3938
      %v3940 = vsel %vm930, %v3906, -inf
      %3941 = vmax.xlane.f32.xlu0 %v3940
      %v3942 = vpop.xlane.xlu0 %3941
      %v3943 = vsel %vm930, %v3911, -inf
      %3944 = vmax.xlane.f32.xlu0 %v3943
      %v3945 = vpop.xlane.xlu0 %3944
      %v3946 = vsel %vm930, %v3916, -inf
      %3947 = vmax.xlane.f32.xlu0 %v3946
      %v3948 = vpop.xlane.xlu0 %3947
      %v3949 = vsel %vm930, %v3921, -inf
      %3950 = vmax.xlane.f32.xlu0 %v3949
      %v3951 = vpop.xlane.xlu0 %3950
      %v3952 = vsel %vm930, %v3926, -inf
      %3953 = vmax.xlane.f32.xlu0 %v3952
      %v3954 = vpop.xlane.xlu0 %3953
      %v3955 = vsel %vm930, %v3931, -inf
      %3956 = vmax.xlane.f32.xlu0 %v3955
      %v3957 = vpop.xlane.xlu0 %3956
      %v3958 = vsub.f32 %v3896, %v3936
      %v3959 = vsub.f32 %v3901, %v3939
      %v3960 = vsub.f32 %v3906, %v3942
      %v3961 = vsub.f32 %v3911, %v3945
      %v3962 = vsub.f32 %v3916, %v3948
      %v3963 = vsub.f32 %v3921, %v3951
      %v3964 = vsub.f32 %v3926, %v3954
      %v3965 = vsub.f32 %v3931, %v3957
      %v3966 = vmul.f32 %v3958, 1.442695
      %v3967 = vpow.pop %v3966
      %v3968 = vmul.f32 %v3959, 1.442695
      %v3969 = vpow.pop %v3968
      %v3970 = vmul.f32 %v3960, 1.442695
      %v3971 = vpow.pop %v3970
      %v3972 = vmul.f32 %v3961, 1.442695
      %v3973 = vpow.pop %v3972
      %v3974 = vmul.f32 %v3962, 1.442695
      %v3975 = vpow.pop %v3974
      %v3976 = vmul.f32 %v3963, 1.442695
      %v3977 = vpow.pop %v3976
      %v3978 = vmul.f32 %v3964, 1.442695
      %v3979 = vpow.pop %v3978
      %v3980 = vmul.f32 %v3965, 1.442695
      %v3981 = vpow.pop %v3980
      %v3982 = vsel %vm930, %v3967, 0.0
      %3983 = vadd.xlane.f32.xlu0 %v3982
      %v3984 = vpop.xlane.xlu0 %3983
      %v3985 = vsel %vm930, %v3969, 0.0
      %3986 = vadd.xlane.f32.xlu0 %v3985
      %v3987 = vpop.xlane.xlu0 %3986
      %v3988 = vsel %vm930, %v3971, 0.0
      %3989 = vadd.xlane.f32.xlu0 %v3988
      %v3990 = vpop.xlane.xlu0 %3989
      %v3991 = vsel %vm930, %v3973, 0.0
      %3992 = vadd.xlane.f32.xlu0 %v3991
      %v3993 = vpop.xlane.xlu0 %3992
      %v3994 = vsel %vm930, %v3975, 0.0
      %3995 = vadd.xlane.f32.xlu0 %v3994
      %v3996 = vpop.xlane.xlu0 %3995
      %v3997 = vsel %vm930, %v3977, 0.0
      %3998 = vadd.xlane.f32.xlu0 %v3997
      %v3999 = vpop.xlane.xlu0 %3998
      %v4000 = vsel %vm930, %v3979, 0.0
      %4001 = vadd.xlane.f32.xlu0 %v4000
      %v4002 = vpop.xlane.xlu0 %4001
      %v4003 = vsel %vm930, %v3981, 0.0
      %4004 = vadd.xlane.f32.xlu0 %v4003
      %v4005 = vpop.xlane.xlu0 %4004
      %v4006 = vrcp.pop %v3984
      %v4007 = vrcp.pop %v3987
      %v4008 = vrcp.pop %v3990
      %v4009 = vrcp.pop %v3993
      %v4010 = vrcp.pop %v3996
      %v4011 = vrcp.pop %v3999
      %v4012 = vrcp.pop %v4002
      %v4013 = vrcp.pop %v4005
      %v4014 = vmul.f32 %v3967, %v4006
      %v4015 = vmul.f32 %v3969, %v4007
      %v4016 = vmul.f32 %v3971, %v4008
      %v4017 = vmul.f32 %v3973, %v4009
      %v4018 = vmul.f32 %v3975, %v4010
      %v4019 = vmul.f32 %v3977, %v4011
      %v4020 = vmul.f32 %v3979, %v4012
      %v4021 = vmul.f32 %v3981, %v4013
      %4022 = vrot.lane.b32.xlu0 %v3743, 96
      %v4023 = vpop.permute.xlu0 %4022
      %4024 = vrot.lane.b32.xlu0 %v3748, 96
      %v4025 = vpop.permute.xlu0 %4024
      %4026 = vrot.lane.b32.xlu0 %v3753, 96
      %v4027 = vpop.permute.xlu0 %4026
      %4028 = vrot.lane.b32.xlu0 %v3758, 96
      %v4029 = vpop.permute.xlu0 %4028
      %4030 = vrot.lane.b32.xlu0 %v3763, 96
      %v4031 = vpop.permute.xlu0 %4030
      %4032 = vrot.lane.b32.xlu0 %v3768, 96
      %v4033 = vpop.permute.xlu0 %4032
      %4034 = vrot.lane.b32.xlu0 %v3773, 96
      %v4035 = vpop.permute.xlu0 %4034
      %4036 = vrot.lane.b32.xlu0 %v3778, 96
      %v4037 = vpop.permute.xlu0 %4036
      %v4047 = vsel %vm930, %v4014, 0
      %v4050 = vsel %vm930, %v4015, 0
      %v4053 = vsel %vm930, %v4016, 0
      %v4056 = vsel %vm930, %v4017, 0
      %v4059 = vsel %vm930, %v4018, 0
      %v4062 = vsel %vm930, %v4019, 0
      %v4065 = vsel %vm930, %v4020, 0
      %v4068 = vsel %vm930, %v4021, 0
      %4070 = vmatprep.subr.mxu0 0.0
      %4071 = vmatpush1.msra.mxu0 %v4023
      %4072 = vmatprep.subr.mxu0 0.0
      %4073 = vmatpush1.msra.mxu0 %v4025
      %4074 = vmatprep.subr.mxu0 0.0
      %4075 = vmatpush1.msra.mxu0 %v4027
      %4076 = vmatprep.subr.mxu0 0.0
      %4077 = vmatpush1.msra.mxu0 %v4029
      %4078 = vmatprep.subr.mxu0 0.0
      %4079 = vmatpush1.msra.mxu0 %v4031
      %4080 = vmatprep.subr.mxu0 0.0
      %4081 = vmatpush1.msra.mxu0 %v4033
      %4082 = vmatprep.subr.mxu0 0.0
      %4083 = vmatpush1.msra.mxu0 %v4035
      %4084 = vmatprep.subr.mxu0 0.0
      %4085 = vmatpush1.msra.mxu0 %v4037
      %4086 = vmatprep.subr.mxu0 0.0
      %4087 = vmatpush1.msra.mxu0 0.0
      %4088 = vmatprep.subr.mxu0 0.0
      %4089 = vmatpush1.msra.mxu0 0.0
      %4090 = vmatprep.subr.mxu0 0.0
      %4091 = vmatpush1.msra.mxu0 0.0
      %4092 = vmatprep.subr.mxu0 0.0
      %4093 = vmatpush1.msra.mxu0 0.0
      %4094 = vmatprep.subr.mxu0 0.0
      %4095 = vmatpush1.msra.mxu0 0.0
      %4096 = vmatprep.subr.mxu0 0.0
      %4097 = vmatpush1.msra.mxu0 0.0
      %4098 = vmatprep.subr.mxu0 0.0
      %4099 = vmatpush1.msra.mxu0 0.0
      %4100 = vmatprep.subr.mxu0 0.0
      %4101 = vmatpush1.msra.mxu0 0.0
      %4102 = vmatprep.subr.mxu0 0.0
      %4103 = vmatpush1.msra.mxu0 0.0
      %4104 = vmatprep.subr.mxu0 0.0
      %4105 = vmatpush1.msra.mxu0 0.0
      %4106 = vmatprep.subr.mxu0 0.0
      %4107 = vmatpush1.msra.mxu0 0.0
      %4108 = vmatprep.subr.mxu0 0.0
      %4109 = vmatpush1.msra.mxu0 0.0
      %4110 = vmatprep.subr.mxu0 0.0
      %4111 = vmatpush1.msra.mxu0 0.0
      %4112 = vmatprep.subr.mxu0 0.0
      %4113 = vmatpush1.msra.mxu0 0.0
      %4114 = vmatprep.subr.mxu0 0.0
      %4115 = vmatpush1.msra.mxu0 0.0
      %4116 = vmatprep.subr.mxu0 0.0
      %4117 = vmatpush1.msra.mxu0 0.0
      %4118 = vmatprep.subr.mxu0 0.0
      %4119 = vmatpush1.msra.mxu0 0.0
      %4120 = vmatprep.subr.mxu0 0.0
      %4121 = vmatpush1.msra.mxu0 0.0
      %4122 = vmatprep.subr.mxu0 0.0
      %4123 = vmatpush1.msra.mxu0 0.0
      %4124 = vmatprep.subr.mxu0 0.0
      %4125 = vmatpush1.msra.mxu0 0.0
      %4126 = vmatprep.subr.mxu0 0.0
      %4127 = vmatpush1.msra.mxu0 0.0
      %4128 = vmatprep.subr.mxu0 0.0
      %4129 = vmatpush1.msra.mxu0 0.0
      %4130 = vmatprep.subr.mxu0 0.0
      %4131 = vmatpush1.msra.mxu0 0.0
      %4132 = vmatprep.subr.mxu0 0.0
      %4133 = vmatpush1.msra.mxu0 0.0
      %4134 = vmatprep.mubr.f32.mxu0 0.0
      %4135 = vmatmul.mubr.f32.gmra.mrb[0].mxu0 %v4047
      %v4136 = vpop.f32.mrb[0].mxu0
      %v4137 = vadd.f32 0.0, %v4136
      %v4138 = vpop.f32.mrb[0].mxu0
      %4139 = vmatprep.mubr.f32.mxu0 0.0
      %4140 = vmatmul.mubr.f32.gmra.mrb[0].mxu0 %v4050
      %v4141 = vpop.f32.mrb[0].mxu0
      %v4142 = vadd.f32 0.0, %v4141
      %v4143 = vpop.f32.mrb[0].mxu0
      %4144 = vmatprep.mubr.f32.mxu0 0.0
      %4145 = vmatmul.mubr.f32.gmra.mrb[0].mxu0 %v4053
      %v4146 = vpop.f32.mrb[0].mxu0
      %v4147 = vadd.f32 0.0, %v4146
      %v4148 = vpop.f32.mrb[0].mxu0
      %4149 = vmatprep.mubr.f32.mxu0 0.0
      %4150 = vmatmul.mubr.f32.gmra.mrb[0].mxu0 %v4056
      %v4151 = vpop.f32.mrb[0].mxu0
      %v4152 = vadd.f32 0.0, %v4151
      %v4153 = vpop.f32.mrb[0].mxu0
      %4154 = vmatprep.mubr.f32.mxu0 0.0
      %4155 = vmatmul.mubr.f32.gmra.mrb[0].mxu0 %v4059
      %v4156 = vpop.f32.mrb[0].mxu0
      %v4157 = vadd.f32 0.0, %v4156
      %v4158 = vpop.f32.mrb[0].mxu0
      %4159 = vmatprep.mubr.f32.mxu0 0.0
      %4160 = vmatmul.mubr.f32.gmra.mrb[0].mxu0 %v4062
      %v4161 = vpop.f32.mrb[0].mxu0
      %v4162 = vadd.f32 0.0, %v4161
      %v4163 = vpop.f32.mrb[0].mxu0
      %4164 = vmatprep.mubr.f32.mxu0 0.0
      %4165 = vmatmul.mubr.f32.gmra.mrb[0].mxu0 %v4065
      %v4166 = vpop.f32.mrb[0].mxu0
      %v4167 = vadd.f32 0.0, %v4166
      %v4168 = vpop.f32.mrb[0].mxu0
      %4169 = vmatprep.mubr.f32.mxu0 0.0
      %4170 = vmatmul.mubr.f32.gmra.mrb[0].mxu0 %v4068
      %v4171 = vpop.f32.mrb[0].mxu0
      %v4172 = vadd.f32 0.0, %v4171
      %v4173 = vpop.f32.mrb[0].mxu0
      %4174 = vdwg.mxu0
      %v4176 = vsel %vm518, %v4137, 0
      %v4179 = vsel %vm518, %v4142, 0
      %v4182 = vsel %vm518, %v4147, 0
      %v4185 = vsel %vm518, %v4152, 0
      %v4188 = vsel %vm518, %v4157, 0
      %v4191 = vsel %vm518, %v4162, 0
      %v4194 = vsel %vm518, %v4167, 0
      %v4197 = vsel %vm518, %v4172, 0
      %4199 = vmatprep.subr.mxu0 0.0
      %4200 = vmatpush1.msra.mxu0 %v446
      %4201 = vmatprep.subr.mxu0 0.0
      %4202 = vmatpush1.msra.mxu0 %v447
      %4203 = vmatprep.subr.mxu0 0.0
      %4204 = vmatpush1.msra.mxu0 %v448
      %4205 = vmatprep.subr.mxu0 0.0
      %4206 = vmatpush1.msra.mxu0 %v449
      %4207 = vmatprep.subr.mxu0 0.0
      %4208 = vmatpush1.msra.mxu0 0.0
      %4209 = vmatprep.subr.mxu0 0.0
      %4210 = vmatpush1.msra.mxu0 0.0
      %4211 = vmatprep.subr.mxu0 0.0
      %4212 = vmatpush1.msra.mxu0 0.0
      %4213 = vmatprep.subr.mxu0 0.0
      %4214 = vmatpush1.msra.mxu0 0.0
      %4215 = vmatprep.subr.mxu0 0.0
      %4216 = vmatpush1.msra.mxu0 0.0
      %4217 = vmatprep.subr.mxu0 0.0
      %4218 = vmatpush1.msra.mxu0 0.0
      %4219 = vmatprep.subr.mxu0 0.0
      %4220 = vmatpush1.msra.mxu0 0.0
      %4221 = vmatprep.subr.mxu0 0.0
      %4222 = vmatpush1.msra.mxu0 0.0
      %4223 = vmatprep.subr.mxu0 0.0
      %4224 = vmatpush1.msra.mxu0 0.0
      %4225 = vmatprep.subr.mxu0 0.0
      %4226 = vmatpush1.msra.mxu0 0.0
      %4227 = vmatprep.subr.mxu0 0.0
      %4228 = vmatpush1.msra.mxu0 0.0
      %4229 = vmatprep.subr.mxu0 0.0
      %4230 = vmatpush1.msra.mxu0 0.0
      %4231 = vmatprep.subr.mxu0 0.0
      %4232 = vmatpush1.msra.mxu0 0.0
      %4233 = vmatprep.subr.mxu0 0.0
      %4234 = vmatpush1.msra.mxu0 0.0
      %4235 = vmatprep.subr.mxu0 0.0
      %4236 = vmatpush1.msra.mxu0 0.0
      %4237 = vmatprep.subr.mxu0 0.0
      %4238 = vmatpush1.msra.mxu0 0.0
      %4239 = vmatprep.subr.mxu0 0.0
      %4240 = vmatpush1.msra.mxu0 0.0
      %4241 = vmatprep.subr.mxu0 0.0
      %4242 = vmatpush1.msra.mxu0 0.0
      %4243 = vmatprep.subr.mxu0 0.0
      %4244 = vmatpush1.msra.mxu0 0.0
      %4245 = vmatprep.subr.mxu0 0.0
      %4246 = vmatpush1.msra.mxu0 0.0
      %4247 = vmatprep.subr.mxu0 0.0
      %4248 = vmatpush1.msra.mxu0 0.0
      %4249 = vmatprep.subr.mxu0 0.0
      %4250 = vmatpush1.msra.mxu0 0.0
      %4251 = vmatprep.subr.mxu0 0.0
      %4252 = vmatpush1.msra.mxu0 0.0
      %4253 = vmatprep.subr.mxu0 0.0
      %4254 = vmatpush1.msra.mxu0 0.0
      %4255 = vmatprep.subr.mxu0 0.0
      %4256 = vmatpush1.msra.mxu0 0.0
      %4257 = vmatprep.subr.mxu0 0.0
      %4258 = vmatpush1.msra.mxu0 0.0
      %4259 = vmatprep.subr.mxu0 0.0
      %4260 = vmatpush1.msra.mxu0 0.0
      %4261 = vmatprep.subr.mxu0 0.0
      %4262 = vmatpush1.msra.mxu0 0.0
      %4263 = vmatprep.mubr.f32.mxu0 0.0
      %4264 = vmatmul.mubr.f32.gmra.mrb[0].mxu0 %v4176
      %v4265 = vpop.f32.mrb[0].mxu0
      %v4266 = vadd.f32 0.0, %v4265
      %v4267 = vpop.f32.mrb[0].mxu0
      %4268 = vmatprep.mubr.f32.mxu0 0.0
      %4269 = vmatmul.mubr.f32.gmra.mrb[0].mxu0 %v4179
      %v4270 = vpop.f32.mrb[0].mxu0
      %v4271 = vadd.f32 0.0, %v4270
      %v4272 = vpop.f32.mrb[0].mxu0
      %4273 = vmatprep.mubr.f32.mxu0 0.0
      %4274 = vmatmul.mubr.f32.gmra.mrb[0].mxu0 %v4182
      %v4275 = vpop.f32.mrb[0].mxu0
      %v4276 = vadd.f32 0.0, %v4275
      %v4277 = vpop.f32.mrb[0].mxu0
      %4278 = vmatprep.mubr.f32.mxu0 0.0
      %4279 = vmatmul.mubr.f32.gmra.mrb[0].mxu0 %v4185
      %v4280 = vpop.f32.mrb[0].mxu0
      %v4281 = vadd.f32 0.0, %v4280
      %v4282 = vpop.f32.mrb[0].mxu0
      %4283 = vmatprep.mubr.f32.mxu0 0.0
      %4284 = vmatmul.mubr.f32.gmra.mrb[0].mxu0 %v4188
      %v4285 = vpop.f32.mrb[0].mxu0
      %v4286 = vadd.f32 0.0, %v4285
      %v4287 = vpop.f32.mrb[0].mxu0
      %4288 = vmatprep.mubr.f32.mxu0 0.0
      %4289 = vmatmul.mubr.f32.gmra.mrb[0].mxu0 %v4191
      %v4290 = vpop.f32.mrb[0].mxu0
      %v4291 = vadd.f32 0.0, %v4290
      %v4292 = vpop.f32.mrb[0].mxu0
      %4293 = vmatprep.mubr.f32.mxu0 0.0
      %4294 = vmatmul.mubr.f32.gmra.mrb[0].mxu0 %v4194
      %v4295 = vpop.f32.mrb[0].mxu0
      %v4296 = vadd.f32 0.0, %v4295
      %v4297 = vpop.f32.mrb[0].mxu0
      %4298 = vmatprep.mubr.f32.mxu0 0.0
      %4299 = vmatmul.mubr.f32.gmra.mrb[0].mxu0 %v4197
      %v4300 = vpop.f32.mrb[0].mxu0
      %v4301 = vadd.f32 0.0, %v4300
      %v4302 = vpop.f32.mrb[0].mxu0
      %4303 = vdwg.mxu0
      %v4304 = vsel %vm518, %v4266, 0.0
      %4305 = vadd.xlane.f32.xlu0 %v4304
      %v4306 = vpop.xlane.xlu0 %4305
      %v4307 = vsel %vm518, %v4271, 0.0
      %4308 = vadd.xlane.f32.xlu0 %v4307
      %v4309 = vpop.xlane.xlu0 %4308
      %v4310 = vsel %vm518, %v4276, 0.0
      %4311 = vadd.xlane.f32.xlu0 %v4310
      %v4312 = vpop.xlane.xlu0 %4311
      %v4313 = vsel %vm518, %v4281, 0.0
      %4314 = vadd.xlane.f32.xlu0 %v4313
      %v4315 = vpop.xlane.xlu0 %4314
      %v4316 = vsel %vm518, %v4286, 0.0
      %4317 = vadd.xlane.f32.xlu0 %v4316
      %v4318 = vpop.xlane.xlu0 %4317
      %v4319 = vsel %vm518, %v4291, 0.0
      %4320 = vadd.xlane.f32.xlu0 %v4319
      %v4321 = vpop.xlane.xlu0 %4320
      %v4322 = vsel %vm518, %v4296, 0.0
      %4323 = vadd.xlane.f32.xlu0 %v4322
      %v4324 = vpop.xlane.xlu0 %4323
      %v4325 = vsel %vm518, %v4301, 0.0
      %4326 = vadd.xlane.f32.xlu0 %v4325
      %v4327 = vpop.xlane.xlu0 %4326
      %v4328 = vmul.f32 %v4306, %v1325
      %v4329 = vmul.f32 %v4309, %v1325
      %v4330 = vmul.f32 %v4312, %v1325
      %v4331 = vmul.f32 %v4315, %v1325
      %v4332 = vmul.f32 %v4318, %v1325
      %v4333 = vmul.f32 %v4321, %v1325
      %v4334 = vmul.f32 %v4324, %v1325
      %v4335 = vmul.f32 %v4327, %v1325
      %v4336 = vsub.f32 %v4266, %v4328
      %v4337 = vsub.f32 %v4271, %v4329
      %v4338 = vsub.f32 %v4276, %v4330
      %v4339 = vsub.f32 %v4281, %v4331
      %v4340 = vsub.f32 %v4286, %v4332
      %v4341 = vsub.f32 %v4291, %v4333
      %v4342 = vsub.f32 %v4296, %v4334
      %v4343 = vsub.f32 %v4301, %v4335
      %v4344 = vmul.f32 %v4336, %v4336
      %v4345 = vmul.f32 %v4337, %v4337
      %v4346 = vmul.f32 %v4338, %v4338
      %v4347 = vmul.f32 %v4339, %v4339
      %v4348 = vmul.f32 %v4340, %v4340
      %v4349 = vmul.f32 %v4341, %v4341
      %v4350 = vmul.f32 %v4342, %v4342
      %v4351 = vmul.f32 %v4343, %v4343
      %v4352 = vsel %vm518, %v4344, 0.0
      %4353 = vadd.xlane.f32.xlu0 %v4352
      %v4354 = vpop.xlane.xlu0 %4353
      %v4355 = vsel %vm518, %v4345, 0.0
      %4356 = vadd.xlane.f32.xlu0 %v4355
      %v4357 = vpop.xlane.xlu0 %4356
      %v4358 = vsel %vm518, %v4346, 0.0
      %4359 = vadd.xlane.f32.xlu0 %v4358
      %v4360 = vpop.xlane.xlu0 %4359
      %v4361 = vsel %vm518, %v4347, 0.0
      %4362 = vadd.xlane.f32.xlu0 %v4361
      %v4363 = vpop.xlane.xlu0 %4362
      %v4364 = vsel %vm518, %v4348, 0.0
      %4365 = vadd.xlane.f32.xlu0 %v4364
      %v4366 = vpop.xlane.xlu0 %4365
      %v4367 = vsel %vm518, %v4349, 0.0
      %4368 = vadd.xlane.f32.xlu0 %v4367
      %v4369 = vpop.xlane.xlu0 %4368
      %v4370 = vsel %vm518, %v4350, 0.0
      %4371 = vadd.xlane.f32.xlu0 %v4370
      %v4372 = vpop.xlane.xlu0 %4371
      %v4373 = vsel %vm518, %v4351, 0.0
      %4374 = vadd.xlane.f32.xlu0 %v4373
      %v4375 = vpop.xlane.xlu0 %4374
      %v4376 = vmul.f32 %v4354, %v1325
      %v4377 = vmul.f32 %v4357, %v1325
      %v4378 = vmul.f32 %v4360, %v1325
      %v4379 = vmul.f32 %v4363, %v1325
      %v4380 = vmul.f32 %v4366, %v1325
      %v4381 = vmul.f32 %v4369, %v1325
      %v4382 = vmul.f32 %v4372, %v1325
      %v4383 = vmul.f32 %v4375, %v1325
      %v4384 = vadd.f32 %v4376, 1e-05
      %v4385 = vadd.f32 %v4377, 1e-05
      %v4386 = vadd.f32 %v4378, 1e-05
      %v4387 = vadd.f32 %v4379, 1e-05
      %v4388 = vadd.f32 %v4380, 1e-05
      %v4389 = vadd.f32 %v4381, 1e-05
      %v4390 = vadd.f32 %v4382, 1e-05
      %v4391 = vadd.f32 %v4383, 1e-05
      %v4392 = vrsqrt.pop %v4384
      %v4393 = vrsqrt.pop %v4385
      %v4394 = vrsqrt.pop %v4386
      %v4395 = vrsqrt.pop %v4387
      %v4396 = vrsqrt.pop %v4388
      %v4397 = vrsqrt.pop %v4389
      %v4398 = vrsqrt.pop %v4390
      %v4399 = vrsqrt.pop %v4391
      %v4400 = vmul.f32 %v4336, %v4392
      %v4401 = vmul.f32 %v4337, %v4393
      %v4402 = vmul.f32 %v4338, %v4394
      %v4403 = vmul.f32 %v4339, %v4395
      %v4404 = vmul.f32 %v4340, %v4396
      %v4405 = vmul.f32 %v4341, %v4397
      %v4406 = vmul.f32 %v4342, %v4398
      %v4407 = vmul.f32 %v4343, %v4399
      %v4408 = vmul.f32 %v4400, %v1410
      %v4409 = vmul.f32 %v4401, %v1410
      %v4410 = vmul.f32 %v4402, %v1410
      %v4411 = vmul.f32 %v4403, %v1410
      %v4412 = vmul.f32 %v4404, %v1410
      %v4413 = vmul.f32 %v4405, %v1410
      %v4414 = vmul.f32 %v4406, %v1410
      %v4415 = vmul.f32 %v4407, %v1410
      %v4416 = vadd.f32 %v4408, %v1424
      %v4417 = vadd.f32 %v4409, %v1424
      %v4418 = vadd.f32 %v4410, %v1424
      %v4419 = vadd.f32 %v4411, %v1424
      %v4420 = vadd.f32 %v4412, %v1424
      %v4421 = vadd.f32 %v4413, %v1424
      %v4422 = vadd.f32 %v4414, %v1424
      %v4423 = vadd.f32 %v4415, %v1424
      %v4425 = vsel %vm518, %v4416, 0
      %v4428 = vsel %vm518, %v4417, 0
      %v4431 = vsel %vm518, %v4418, 0
      %v4434 = vsel %vm518, %v4419, 0
      %v4437 = vsel %vm518, %v4420, 0
      %v4440 = vsel %vm518, %v4421, 0
      %v4443 = vsel %vm518, %v4422, 0
      %v4446 = vsel %vm518, %v4423, 0
      %4448 = vmatprep.subr.mxu0 %v461
      %4449 = vmatpush1.msra.mxu0 %v460
      %4450 = vmatprep.subr.mxu0 %v463
      %4451 = vmatpush1.msra.mxu0 %v462
      %4452 = vmatprep.subr.mxu0 %v465
      %4453 = vmatpush1.msra.mxu0 %v464
      %4454 = vmatprep.subr.mxu0 %v467
      %4455 = vmatpush1.msra.mxu0 %v466
      %4456 = vmatprep.subr.mxu0 0.0
      %4457 = vmatpush1.msra.mxu0 0.0
      %4458 = vmatprep.subr.mxu0 0.0
      %4459 = vmatpush1.msra.mxu0 0.0
      %4460 = vmatprep.subr.mxu0 0.0
      %4461 = vmatpush1.msra.mxu0 0.0
      %4462 = vmatprep.subr.mxu0 0.0
      %4463 = vmatpush1.msra.mxu0 0.0
      %4464 = vmatprep.subr.mxu0 0.0
      %4465 = vmatpush1.msra.mxu0 0.0
      %4466 = vmatprep.subr.mxu0 0.0
      %4467 = vmatpush1.msra.mxu0 0.0
      %4468 = vmatprep.subr.mxu0 0.0
      %4469 = vmatpush1.msra.mxu0 0.0
      %4470 = vmatprep.subr.mxu0 0.0
      %4471 = vmatpush1.msra.mxu0 0.0
      %4472 = vmatprep.subr.mxu0 0.0
      %4473 = vmatpush1.msra.mxu0 0.0
      %4474 = vmatprep.subr.mxu0 0.0
      %4475 = vmatpush1.msra.mxu0 0.0
      %4476 = vmatprep.subr.mxu0 0.0
      %4477 = vmatpush1.msra.mxu0 0.0
      %4478 = vmatprep.subr.mxu0 0.0
      %4479 = vmatpush1.msra.mxu0 0.0
      %4480 = vmatprep.subr.mxu0 0.0
      %4481 = vmatpush1.msra.mxu0 0.0
      %4482 = vmatprep.subr.mxu0 0.0
      %4483 = vmatpush1.msra.mxu0 0.0
      %4484 = vmatprep.subr.mxu0 0.0
      %4485 = vmatpush1.msra.mxu0 0.0
      %4486 = vmatprep.subr.mxu0 0.0
      %4487 = vmatpush1.msra.mxu0 0.0
      %4488 = vmatprep.subr.mxu0 0.0
      %4489 = vmatpush1.msra.mxu0 0.0
      %4490 = vmatprep.subr.mxu0 0.0
      %4491 = vmatpush1.msra.mxu0 0.0
      %4492 = vmatprep.subr.mxu0 0.0
      %4493 = vmatpush1.msra.mxu0 0.0
      %4494 = vmatprep.subr.mxu0 0.0
      %4495 = vmatpush1.msra.mxu0 0.0
      %4496 = vmatprep.subr.mxu0 0.0
      %4497 = vmatpush1.msra.mxu0 0.0
      %4498 = vmatprep.subr.mxu0 0.0
      %4499 = vmatpush1.msra.mxu0 0.0
      %4500 = vmatprep.subr.mxu0 0.0
      %4501 = vmatpush1.msra.mxu0 0.0
      %4502 = vmatprep.subr.mxu0 0.0
      %4503 = vmatpush1.msra.mxu0 0.0
      %4504 = vmatprep.subr.mxu0 0.0
      %4505 = vmatpush1.msra.mxu0 0.0
      %4506 = vmatprep.subr.mxu0 0.0
      %4507 = vmatpush1.msra.mxu0 0.0
      %4508 = vmatprep.subr.mxu0 0.0
      %4509 = vmatpush1.msra.mxu0 0.0
      %4510 = vmatprep.subr.mxu0 0.0
      %4511 = vmatpush1.msra.mxu0 0.0
      %4512 = vmatprep.mubr.f32.mxu0 0.0
      %4513 = vmatmul.mubr.f32.gmra.mrb[0].mxu0 %v4425
      %v4514 = vpop.f32.mrb[0].mxu0
      %v4515 = vadd.f32 0.0, %v4514
      %v4516 = vpop.f32.mrb[0].mxu0
      %v4517 = vadd.f32 0.0, %v4516
      %4518 = vmatprep.mubr.f32.mxu0 0.0
      %4519 = vmatmul.mubr.f32.gmra.mrb[0].mxu0 %v4428
      %v4520 = vpop.f32.mrb[0].mxu0
      %v4521 = vadd.f32 0.0, %v4520
      %v4522 = vpop.f32.mrb[0].mxu0
      %v4523 = vadd.f32 0.0, %v4522
      %4524 = vmatprep.mubr.f32.mxu0 0.0
      %4525 = vmatmul.mubr.f32.gmra.mrb[0].mxu0 %v4431
      %v4526 = vpop.f32.mrb[0].mxu0
      %v4527 = vadd.f32 0.0, %v4526
      %v4528 = vpop.f32.mrb[0].mxu0
      %v4529 = vadd.f32 0.0, %v4528
      %4530 = vmatprep.mubr.f32.mxu0 0.0
      %4531 = vmatmul.mubr.f32.gmra.mrb[0].mxu0 %v4434
      %v4532 = vpop.f32.mrb[0].mxu0
      %v4533 = vadd.f32 0.0, %v4532
      %v4534 = vpop.f32.mrb[0].mxu0
      %v4535 = vadd.f32 0.0, %v4534
      %4536 = vmatprep.mubr.f32.mxu0 0.0
      %4537 = vmatmul.mubr.f32.gmra.mrb[0].mxu0 %v4437
      %v4538 = vpop.f32.mrb[0].mxu0
      %v4539 = vadd.f32 0.0, %v4538
      %v4540 = vpop.f32.mrb[0].mxu0
      %v4541 = vadd.f32 0.0, %v4540
      %4542 = vmatprep.mubr.f32.mxu0 0.0
      %4543 = vmatmul.mubr.f32.gmra.mrb[0].mxu0 %v4440
      %v4544 = vpop.f32.mrb[0].mxu0
      %v4545 = vadd.f32 0.0, %v4544
      %v4546 = vpop.f32.mrb[0].mxu0
      %v4547 = vadd.f32 0.0, %v4546
      %4548 = vmatprep.mubr.f32.mxu0 0.0
      %4549 = vmatmul.mubr.f32.gmra.mrb[0].mxu0 %v4443
      %v4550 = vpop.f32.mrb[0].mxu0
      %v4551 = vadd.f32 0.0, %v4550
      %v4552 = vpop.f32.mrb[0].mxu0
      %v4553 = vadd.f32 0.0, %v4552
      %4554 = vmatprep.mubr.f32.mxu0 0.0
      %4555 = vmatmul.mubr.f32.gmra.mrb[0].mxu0 %v4446
      %v4556 = vpop.f32.mrb[0].mxu0
      %v4557 = vadd.f32 0.0, %v4556
      %v4558 = vpop.f32.mrb[0].mxu0
      %v4559 = vadd.f32 0.0, %v4558
      %4560 = vdwg.mxu0
      %4561 = vmatprep.subr.mxu0 %v453
      %4562 = vmatpush1.msra.mxu0 %v452
      %4563 = vmatprep.subr.mxu0 %v455
      %4564 = vmatpush1.msra.mxu0 %v454
      %4565 = vmatprep.subr.mxu0 %v457
      %4566 = vmatpush1.msra.mxu0 %v456
      %4567 = vmatprep.subr.mxu0 %v459
      %4568 = vmatpush1.msra.mxu0 %v458
      %4569 = vmatprep.subr.mxu0 0.0
      %4570 = vmatpush1.msra.mxu0 0.0
      %4571 = vmatprep.subr.mxu0 0.0
      %4572 = vmatpush1.msra.mxu0 0.0
      %4573 = vmatprep.subr.mxu0 0.0
      %4574 = vmatpush1.msra.mxu0 0.0
      %4575 = vmatprep.subr.mxu0 0.0
      %4576 = vmatpush1.msra.mxu0 0.0
      %4577 = vmatprep.subr.mxu0 0.0
      %4578 = vmatpush1.msra.mxu0 0.0
      %4579 = vmatprep.subr.mxu0 0.0
      %4580 = vmatpush1.msra.mxu0 0.0
      %4581 = vmatprep.subr.mxu0 0.0
      %4582 = vmatpush1.msra.mxu0 0.0
      %4583 = vmatprep.subr.mxu0 0.0
      %4584 = vmatpush1.msra.mxu0 0.0
      %4585 = vmatprep.subr.mxu0 0.0
      %4586 = vmatpush1.msra.mxu0 0.0
      %4587 = vmatprep.subr.mxu0 0.0
      %4588 = vmatpush1.msra.mxu0 0.0
      %4589 = vmatprep.subr.mxu0 0.0
      %4590 = vmatpush1.msra.mxu0 0.0
      %4591 = vmatprep.subr.mxu0 0.0
      %4592 = vmatpush1.msra.mxu0 0.0
      %4593 = vmatprep.subr.mxu0 0.0
      %4594 = vmatpush1.msra.mxu0 0.0
      %4595 = vmatprep.subr.mxu0 0.0
      %4596 = vmatpush1.msra.mxu0 0.0
      %4597 = vmatprep.subr.mxu0 0.0
      %4598 = vmatpush1.msra.mxu0 0.0
      %4599 = vmatprep.subr.mxu0 0.0
      %4600 = vmatpush1.msra.mxu0 0.0
      %4601 = vmatprep.subr.mxu0 0.0
      %4602 = vmatpush1.msra.mxu0 0.0
      %4603 = vmatprep.subr.mxu0 0.0
      %4604 = vmatpush1.msra.mxu0 0.0
      %4605 = vmatprep.subr.mxu0 0.0
      %4606 = vmatpush1.msra.mxu0 0.0
      %4607 = vmatprep.subr.mxu0 0.0
      %4608 = vmatpush1.msra.mxu0 0.0
      %4609 = vmatprep.subr.mxu0 0.0
      %4610 = vmatpush1.msra.mxu0 0.0
      %4611 = vmatprep.subr.mxu0 0.0
      %4612 = vmatpush1.msra.mxu0 0.0
      %4613 = vmatprep.subr.mxu0 0.0
      %4614 = vmatpush1.msra.mxu0 0.0
      %4615 = vmatprep.subr.mxu0 0.0
      %4616 = vmatpush1.msra.mxu0 0.0
      %4617 = vmatprep.subr.mxu0 0.0
      %4618 = vmatpush1.msra.mxu0 0.0
      %4619 = vmatprep.subr.mxu0 0.0
      %4620 = vmatpush1.msra.mxu0 0.0
      %4621 = vmatprep.subr.mxu0 0.0
      %4622 = vmatpush1.msra.mxu0 0.0
      %4623 = vmatprep.subr.mxu0 0.0
      %4624 = vmatpush1.msra.mxu0 0.0
      %4625 = vmatprep.mubr.f32.mxu0 0.0
      %4626 = vmatmul.mubr.f32.gmra.mrb[0].mxu0 %v3524
      %v4627 = vpop.f32.mrb[0].mxu0
      %v4628 = vadd.f32 %v4515, %v4627
      %v4629 = vpop.f32.mrb[0].mxu0
      %v4630 = vadd.f32 %v4517, %v4629
      %4631 = vmatprep.mubr.f32.mxu0 0.0
      %4632 = vmatmul.mubr.f32.gmra.mrb[0].mxu0 %v3527
      %v4633 = vpop.f32.mrb[0].mxu0
      %v4634 = vadd.f32 %v4521, %v4633
      %v4635 = vpop.f32.mrb[0].mxu0
      %v4636 = vadd.f32 %v4523, %v4635
      %4637 = vmatprep.mubr.f32.mxu0 0.0
      %4638 = vmatmul.mubr.f32.gmra.mrb[0].mxu0 %v3530
      %v4639 = vpop.f32.mrb[0].mxu0
      %v4640 = vadd.f32 %v4527, %v4639
      %v4641 = vpop.f32.mrb[0].mxu0
      %v4642 = vadd.f32 %v4529, %v4641
      %4643 = vmatprep.mubr.f32.mxu0 0.0
      %4644 = vmatmul.mubr.f32.gmra.mrb[0].mxu0 %v3533
      %v4645 = vpop.f32.mrb[0].mxu0
      %v4646 = vadd.f32 %v4533, %v4645
      %v4647 = vpop.f32.mrb[0].mxu0
      %v4648 = vadd.f32 %v4535, %v4647
      %4649 = vmatprep.mubr.f32.mxu0 0.0
      %4650 = vmatmul.mubr.f32.gmra.mrb[0].mxu0 %v3536
      %v4651 = vpop.f32.mrb[0].mxu0
      %v4652 = vadd.f32 %v4539, %v4651
      %v4653 = vpop.f32.mrb[0].mxu0
      %v4654 = vadd.f32 %v4541, %v4653
      %4655 = vmatprep.mubr.f32.mxu0 0.0
      %4656 = vmatmul.mubr.f32.gmra.mrb[0].mxu0 %v3539
      %v4657 = vpop.f32.mrb[0].mxu0
      %v4658 = vadd.f32 %v4545, %v4657
      %v4659 = vpop.f32.mrb[0].mxu0
      %v4660 = vadd.f32 %v4547, %v4659
      %4661 = vmatprep.mubr.f32.mxu0 0.0
      %4662 = vmatmul.mubr.f32.gmra.mrb[0].mxu0 %v3542
      %v4663 = vpop.f32.mrb[0].mxu0
      %v4664 = vadd.f32 %v4551, %v4663
      %v4665 = vpop.f32.mrb[0].mxu0
      %v4666 = vadd.f32 %v4553, %v4665
      %4667 = vmatprep.mubr.f32.mxu0 0.0
      %4668 = vmatmul.mubr.f32.gmra.mrb[0].mxu0 %v3545
      %v4669 = vpop.f32.mrb[0].mxu0
      %v4670 = vadd.f32 %v4557, %v4669
      %v4671 = vpop.f32.mrb[0].mxu0
      %v4672 = vadd.f32 %v4559, %v4671
      %4673 = vdwg.mxu0
      %v4674 = vmul.f32 %v4628, 0.5
      %v4675 = vmul.f32 %v4630, 0.5
      %v4676 = vmul.f32 %v4634, 0.5
      %v4677 = vmul.f32 %v4636, 0.5
      %v4678 = vmul.f32 %v4640, 0.5
      %v4679 = vmul.f32 %v4642, 0.5
      %v4680 = vmul.f32 %v4646, 0.5
      %v4681 = vmul.f32 %v4648, 0.5
      %v4682 = vmul.f32 %v4652, 0.5
      %v4683 = vmul.f32 %v4654, 0.5
      %v4684 = vmul.f32 %v4658, 0.5
      %v4685 = vmul.f32 %v4660, 0.5
      %v4686 = vmul.f32 %v4664, 0.5
      %v4687 = vmul.f32 %v4666, 0.5
      %v4688 = vmul.f32 %v4670, 0.5
      %v4689 = vmul.f32 %v4672, 0.5
      %v4690 = vmul.f32 %v4628, 0.70710677
      %v4691 = vmul.f32 %v4630, 0.70710677
      %v4692 = vmul.f32 %v4634, 0.70710677
      %v4693 = vmul.f32 %v4636, 0.70710677
      %v4694 = vmul.f32 %v4640, 0.70710677
      %v4695 = vmul.f32 %v4642, 0.70710677
      %v4696 = vmul.f32 %v4646, 0.70710677
      %v4697 = vmul.f32 %v4648, 0.70710677
      %v4698 = vmul.f32 %v4652, 0.70710677
      %v4699 = vmul.f32 %v4654, 0.70710677
      %v4700 = vmul.f32 %v4658, 0.70710677
      %v4701 = vmul.f32 %v4660, 0.70710677
      %v4702 = vmul.f32 %v4664, 0.70710677
      %v4703 = vmul.f32 %v4666, 0.70710677
      %v4704 = vmul.f32 %v4670, 0.70710677
      %v4705 = vmul.f32 %v4672, 0.70710677
      %v4706 = verf.f32.pop %v4690
      %v4707 = verf.f32.pop %v4691
      %v4708 = verf.f32.pop %v4692
      %v4709 = verf.f32.pop %v4693
      %v4710 = verf.f32.pop %v4694
      %v4711 = verf.f32.pop %v4695
      %v4712 = verf.f32.pop %v4696
      %v4713 = verf.f32.pop %v4697
      %v4714 = verf.f32.pop %v4698
      %v4715 = verf.f32.pop %v4699
      %v4716 = verf.f32.pop %v4700
      %v4717 = verf.f32.pop %v4701
      %v4718 = verf.f32.pop %v4702
      %v4719 = verf.f32.pop %v4703
      %v4720 = verf.f32.pop %v4704
      %v4721 = verf.f32.pop %v4705
      %v4722 = vadd.f32 %v4706, 1.0
      %v4723 = vadd.f32 %v4707, 1.0
      %v4724 = vadd.f32 %v4708, 1.0
      %v4725 = vadd.f32 %v4709, 1.0
      %v4726 = vadd.f32 %v4710, 1.0
      %v4727 = vadd.f32 %v4711, 1.0
      %v4728 = vadd.f32 %v4712, 1.0
      %v4729 = vadd.f32 %v4713, 1.0
      %v4730 = vadd.f32 %v4714, 1.0
      %v4731 = vadd.f32 %v4715, 1.0
      %v4732 = vadd.f32 %v4716, 1.0
      %v4733 = vadd.f32 %v4717, 1.0
      %v4734 = vadd.f32 %v4718, 1.0
      %v4735 = vadd.f32 %v4719, 1.0
      %v4736 = vadd.f32 %v4720, 1.0
      %v4737 = vadd.f32 %v4721, 1.0
      %v4738 = vmul.f32 %v4674, %v4722
      %v4739 = vmul.f32 %v4675, %v4723
      %v4740 = vmul.f32 %v4676, %v4724
      %v4741 = vmul.f32 %v4677, %v4725
      %v4742 = vmul.f32 %v4678, %v4726
      %v4743 = vmul.f32 %v4679, %v4727
      %v4744 = vmul.f32 %v4680, %v4728
      %v4745 = vmul.f32 %v4681, %v4729
      %v4746 = vmul.f32 %v4682, %v4730
      %v4747 = vmul.f32 %v4683, %v4731
      %v4748 = vmul.f32 %v4684, %v4732
      %v4749 = vmul.f32 %v4685, %v4733
      %v4750 = vmul.f32 %v4686, %v4734
      %v4751 = vmul.f32 %v4687, %v4735
      %v4752 = vmul.f32 %v4688, %v4736
      %v4753 = vmul.f32 %v4689, %v4737
      %4754 = vmatprep.subr.mxu0 0.0
      %4755 = vmatpush1.msra.mxu0 %v468
      %4756 = vmatprep.subr.mxu0 0.0
      %4757 = vmatpush1.msra.mxu0 %v469
      %4758 = vmatprep.subr.mxu0 0.0
      %4759 = vmatpush1.msra.mxu0 %v470
      %4760 = vmatprep.subr.mxu0 0.0
      %4761 = vmatpush1.msra.mxu0 %v471
      %4762 = vmatprep.subr.mxu0 0.0
      %4763 = vmatpush1.msra.mxu0 %v472
      %4764 = vmatprep.subr.mxu0 0.0
      %4765 = vmatpush1.msra.mxu0 %v473
      %4766 = vmatprep.subr.mxu0 0.0
      %4767 = vmatpush1.msra.mxu0 %v474
      %4768 = vmatprep.subr.mxu0 0.0
      %4769 = vmatpush1.msra.mxu0 %v475
      %4770 = vmatprep.subr.mxu0 0.0
      %4771 = vmatpush1.msra.mxu0 %v476
      %4772 = vmatprep.subr.mxu0 0.0
      %4773 = vmatpush1.msra.mxu0 %v477
      %4774 = vmatprep.subr.mxu0 0.0
      %4775 = vmatpush1.msra.mxu0 %v478
      %4776 = vmatprep.subr.mxu0 0.0
      %4777 = vmatpush1.msra.mxu0 %v479
      %4778 = vmatprep.subr.mxu0 0.0
      %4779 = vmatpush1.msra.mxu0 %v480
      %4780 = vmatprep.subr.mxu0 0.0
      %4781 = vmatpush1.msra.mxu0 %v481
      %4782 = vmatprep.subr.mxu0 0.0
      %4783 = vmatpush1.msra.mxu0 %v482
      %4784 = vmatprep.subr.mxu0 0.0
      %4785 = vmatpush1.msra.mxu0 %v483
      %4786 = vmatprep.subr.mxu0 0.0
      %4787 = vmatpush1.msra.mxu0 %v484
      %4788 = vmatprep.subr.mxu0 0.0
      %4789 = vmatpush1.msra.mxu0 %v485
      %4790 = vmatprep.subr.mxu0 0.0
      %4791 = vmatpush1.msra.mxu0 %v486
      %4792 = vmatprep.subr.mxu0 0.0
      %4793 = vmatpush1.msra.mxu0 %v487
      %4794 = vmatprep.subr.mxu0 0.0
      %4795 = vmatpush1.msra.mxu0 %v488
      %4796 = vmatprep.subr.mxu0 0.0
      %4797 = vmatpush1.msra.mxu0 %v489
      %4798 = vmatprep.subr.mxu0 0.0
      %4799 = vmatpush1.msra.mxu0 %v490
      %4800 = vmatprep.subr.mxu0 0.0
      %4801 = vmatpush1.msra.mxu0 %v491
      %4802 = vmatprep.subr.mxu0 0.0
      %4803 = vmatpush1.msra.mxu0 %v492
      %4804 = vmatprep.subr.mxu0 0.0
      %4805 = vmatpush1.msra.mxu0 %v493
      %4806 = vmatprep.subr.mxu0 0.0
      %4807 = vmatpush1.msra.mxu0 %v494
      %4808 = vmatprep.subr.mxu0 0.0
      %4809 = vmatpush1.msra.mxu0 %v495
      %4810 = vmatprep.subr.mxu0 0.0
      %4811 = vmatpush1.msra.mxu0 %v496
      %4812 = vmatprep.subr.mxu0 0.0
      %4813 = vmatpush1.msra.mxu0 %v497
      %4814 = vmatprep.subr.mxu0 0.0
      %4815 = vmatpush1.msra.mxu0 %v498
      %4816 = vmatprep.subr.mxu0 0.0
      %4817 = vmatpush1.msra.mxu0 %v499
      %4818 = vmatprep.mubr.f32.mxu0 %v4739
      %4819 = vmatmul.mubr.f32.gmra.mrb[0].mxu0 %v4738
      %v4820 = vpop.f32.mrb[0].mxu0
      %v4821 = vadd.f32 0.0, %v4820
      %v4822 = vpop.f32.mrb[0].mxu0
      %4823 = vmatprep.mubr.f32.mxu0 %v4741
      %4824 = vmatmul.mubr.f32.gmra.mrb[0].mxu0 %v4740
      %v4825 = vpop.f32.mrb[0].mxu0
      %v4826 = vadd.f32 0.0, %v4825
      %v4827 = vpop.f32.mrb[0].mxu0
      %4828 = vmatprep.mubr.f32.mxu0 %v4743
      %4829 = vmatmul.mubr.f32.gmra.mrb[0].mxu0 %v4742
      %v4830 = vpop.f32.mrb[0].mxu0
      %v4831 = vadd.f32 0.0, %v4830
      %v4832 = vpop.f32.mrb[0].mxu0
      %4833 = vmatprep.mubr.f32.mxu0 %v4745
      %4834 = vmatmul.mubr.f32.gmra.mrb[0].mxu0 %v4744
      %v4835 = vpop.f32.mrb[0].mxu0
      %v4836 = vadd.f32 0.0, %v4835
      %v4837 = vpop.f32.mrb[0].mxu0
      %4838 = vmatprep.mubr.f32.mxu0 %v4747
      %4839 = vmatmul.mubr.f32.gmra.mrb[0].mxu0 %v4746
      %v4840 = vpop.f32.mrb[0].mxu0
      %v4841 = vadd.f32 0.0, %v4840
      %v4842 = vpop.f32.mrb[0].mxu0
      %4843 = vmatprep.mubr.f32.mxu0 %v4749
      %4844 = vmatmul.mubr.f32.gmra.mrb[0].mxu0 %v4748
      %v4845 = vpop.f32.mrb[0].mxu0
      %v4846 = vadd.f32 0.0, %v4845
      %v4847 = vpop.f32.mrb[0].mxu0
      %4848 = vmatprep.mubr.f32.mxu0 %v4751
      %4849 = vmatmul.mubr.f32.gmra.mrb[0].mxu0 %v4750
      %v4850 = vpop.f32.mrb[0].mxu0
      %v4851 = vadd.f32 0.0, %v4850
      %v4852 = vpop.f32.mrb[0].mxu0
      %4853 = vmatprep.mubr.f32.mxu0 %v4753
      %4854 = vmatmul.mubr.f32.gmra.mrb[0].mxu0 %v4752
      %v4855 = vpop.f32.mrb[0].mxu0
      %v4856 = vadd.f32 0.0, %v4855
      %v4857 = vpop.f32.mrb[0].mxu0
      %4858 = vdwg.mxu0
      %v4859 = vsel %vm518, %v4821, 0.0
      %4860 = vadd.xlane.f32.xlu0 %v4859
      %v4861 = vpop.xlane.xlu0 %4860
      %v4862 = vsel %vm518, %v4826, 0.0
      %4863 = vadd.xlane.f32.xlu0 %v4862
      %v4864 = vpop.xlane.xlu0 %4863
      %v4865 = vsel %vm518, %v4831, 0.0
      %4866 = vadd.xlane.f32.xlu0 %v4865
      %v4867 = vpop.xlane.xlu0 %4866
      %v4868 = vsel %vm518, %v4836, 0.0
      %4869 = vadd.xlane.f32.xlu0 %v4868
      %v4870 = vpop.xlane.xlu0 %4869
      %v4871 = vsel %vm518, %v4841, 0.0
      %4872 = vadd.xlane.f32.xlu0 %v4871
      %v4873 = vpop.xlane.xlu0 %4872
      %v4874 = vsel %vm518, %v4846, 0.0
      %4875 = vadd.xlane.f32.xlu0 %v4874
      %v4876 = vpop.xlane.xlu0 %4875
      %v4877 = vsel %vm518, %v4851, 0.0
      %4878 = vadd.xlane.f32.xlu0 %v4877
      %v4879 = vpop.xlane.xlu0 %4878
      %v4880 = vsel %vm518, %v4856, 0.0
      %4881 = vadd.xlane.f32.xlu0 %v4880
      %v4882 = vpop.xlane.xlu0 %4881
      %v4883 = vmul.f32 %v4861, %v1325
      %v4884 = vmul.f32 %v4864, %v1325
      %v4885 = vmul.f32 %v4867, %v1325
      %v4886 = vmul.f32 %v4870, %v1325
      %v4887 = vmul.f32 %v4873, %v1325
      %v4888 = vmul.f32 %v4876, %v1325
      %v4889 = vmul.f32 %v4879, %v1325
      %v4890 = vmul.f32 %v4882, %v1325
      %v4891 = vsub.f32 %v4821, %v4883
      %v4892 = vsub.f32 %v4826, %v4884
      %v4893 = vsub.f32 %v4831, %v4885
      %v4894 = vsub.f32 %v4836, %v4886
      %v4895 = vsub.f32 %v4841, %v4887
      %v4896 = vsub.f32 %v4846, %v4888
      %v4897 = vsub.f32 %v4851, %v4889
      %v4898 = vsub.f32 %v4856, %v4890
      %v4899 = vmul.f32 %v4891, %v4891
      %v4900 = vmul.f32 %v4892, %v4892
      %v4901 = vmul.f32 %v4893, %v4893
      %v4902 = vmul.f32 %v4894, %v4894
      %v4903 = vmul.f32 %v4895, %v4895
      %v4904 = vmul.f32 %v4896, %v4896
      %v4905 = vmul.f32 %v4897, %v4897
      %v4906 = vmul.f32 %v4898, %v4898
      %v4907 = vsel %vm518, %v4899, 0.0
      %4908 = vadd.xlane.f32.xlu0 %v4907
      %v4909 = vpop.xlane.xlu0 %4908
      %v4910 = vsel %vm518, %v4900, 0.0
      %4911 = vadd.xlane.f32.xlu0 %v4910
      %v4912 = vpop.xlane.xlu0 %4911
      %v4913 = vsel %vm518, %v4901, 0.0
      %4914 = vadd.xlane.f32.xlu0 %v4913
      %v4915 = vpop.xlane.xlu0 %4914
      %v4916 = vsel %vm518, %v4902, 0.0
      %4917 = vadd.xlane.f32.xlu0 %v4916
      %v4918 = vpop.xlane.xlu0 %4917
      %v4919 = vsel %vm518, %v4903, 0.0
      %4920 = vadd.xlane.f32.xlu0 %v4919
      %v4921 = vpop.xlane.xlu0 %4920
      %v4922 = vsel %vm518, %v4904, 0.0
      %4923 = vadd.xlane.f32.xlu0 %v4922
      %v4924 = vpop.xlane.xlu0 %4923
      %v4925 = vsel %vm518, %v4905, 0.0
      %4926 = vadd.xlane.f32.xlu0 %v4925
      %v4927 = vpop.xlane.xlu0 %4926
      %v4928 = vsel %vm518, %v4906, 0.0
      %4929 = vadd.xlane.f32.xlu0 %v4928
      %v4930 = vpop.xlane.xlu0 %4929
      %v4931 = vmul.f32 %v4909, %v1325
      %v4932 = vmul.f32 %v4912, %v1325
      %v4933 = vmul.f32 %v4915, %v1325
      %v4934 = vmul.f32 %v4918, %v1325
      %v4935 = vmul.f32 %v4921, %v1325
      %v4936 = vmul.f32 %v4924, %v1325
      %v4937 = vmul.f32 %v4927, %v1325
      %v4938 = vmul.f32 %v4930, %v1325
      %v4939 = vadd.f32 %v4931, 1e-05
      %v4940 = vadd.f32 %v4932, 1e-05
      %v4941 = vadd.f32 %v4933, 1e-05
      %v4942 = vadd.f32 %v4934, 1e-05
      %v4943 = vadd.f32 %v4935, 1e-05
      %v4944 = vadd.f32 %v4936, 1e-05
      %v4945 = vadd.f32 %v4937, 1e-05
      %v4946 = vadd.f32 %v4938, 1e-05
      %v4947 = vrsqrt.pop %v4939
      %v4948 = vrsqrt.pop %v4940
      %v4949 = vrsqrt.pop %v4941
      %v4950 = vrsqrt.pop %v4942
      %v4951 = vrsqrt.pop %v4943
      %v4952 = vrsqrt.pop %v4944
      %v4953 = vrsqrt.pop %v4945
      %v4954 = vrsqrt.pop %v4946
      %v4955 = vmul.f32 %v4891, %v4947
      %v4956 = vmul.f32 %v4892, %v4948
      %v4957 = vmul.f32 %v4893, %v4949
      %v4958 = vmul.f32 %v4894, %v4950
      %v4959 = vmul.f32 %v4895, %v4951
      %v4960 = vmul.f32 %v4896, %v4952
      %v4961 = vmul.f32 %v4897, %v4953
      %v4962 = vmul.f32 %v4898, %v4954
      %v4963 = vmul.f32 %v4955, %v1977
      %v4964 = vmul.f32 %v4956, %v1977
      %v4965 = vmul.f32 %v4957, %v1977
      %v4966 = vmul.f32 %v4958, %v1977
      %v4967 = vmul.f32 %v4959, %v1977
      %v4968 = vmul.f32 %v4960, %v1977
      %v4969 = vmul.f32 %v4961, %v1977
      %v4970 = vmul.f32 %v4962, %v1977
      %v4971 = vadd.f32 %v4963, %v1991
      %v4972 = vadd.f32 %v4964, %v1991
      %v4973 = vadd.f32 %v4965, %v1991
      %v4974 = vadd.f32 %v4966, %v1991
      %v4975 = vadd.f32 %v4967, %v1991
      %v4976 = vadd.f32 %v4968, %v1991
      %v4977 = vadd.f32 %v4969, %v1991
      %v4978 = vadd.f32 %v4970, %v1991
      %v4979 = vadd.f32 %v3506, %v4971
      %v4980 = vadd.f32 %v3507, %v4972
      %v4981 = vadd.f32 %v3508, %v4973
      %v4982 = vadd.f32 %v3509, %v4974
      %v4983 = vadd.f32 %v3510, %v4975
      %v4984 = vadd.f32 %v3511, %v4976
      %v4985 = vadd.f32 %v3512, %v4977
      %v4986 = vadd.f32 %v3513, %v4978
      %s4987 = scalar_lea.vmem %s433, 128
      %4988 = vst.msk [vmem:[%s4987] sm:$0xff] %vm518, %v4979
      %4989 = vst.msk [vmem:[%s4987 + $0x10] sm:$0xff] %vm518, %v4980
      %4990 = vst.msk [vmem:[%s4987 + $0x20] sm:$0xff] %vm518, %v4981
      %4991 = vst.msk [vmem:[%s4987 + $0x30] sm:$0xff] %vm518, %v4982
      %4992 = vst.msk [vmem:[%s4987 + $0x40] sm:$0xff] %vm518, %v4983
      %4993 = vst.msk [vmem:[%s4987 + $0x50] sm:$0xff] %vm518, %v4984
      %4994 = vst.msk [vmem:[%s4987 + $0x60] sm:$0xff] %vm518, %v4985
      %4995 = vst.msk [vmem:[%s4987 + $0x70] sm:$0xff] %vm518, %v4986
      %v4996 = vld [vmem:[%s3505 + $0x8] sm:$0xff]
      %v4997 = vld [vmem:[%s3505 + $0x18] sm:$0xff]
      %v4998 = vld [vmem:[%s3505 + $0x28] sm:$0xff]
      %v4999 = vld [vmem:[%s3505 + $0x38] sm:$0xff]
      %v5000 = vld [vmem:[%s3505 + $0x48] sm:$0xff]
      %v5001 = vld [vmem:[%s3505 + $0x58] sm:$0xff]
      %v5002 = vld [vmem:[%s3505 + $0x68] sm:$0xff]
      %v5003 = vld [vmem:[%s3505 + $0x78] sm:$0xff]
      %v5004 = vld [vmem:[%s3514 + $0x8] sm:$0xff]
      %v5005 = vld [vmem:[%s3514 + $0x18] sm:$0xff]
      %v5006 = vld [vmem:[%s3514 + $0x28] sm:$0xff]
      %v5007 = vld [vmem:[%s3514 + $0x38] sm:$0xff]
      %v5008 = vld [vmem:[%s3514 + $0x48] sm:$0xff]
      %v5009 = vld [vmem:[%s3514 + $0x58] sm:$0xff]
      %v5010 = vld [vmem:[%s3514 + $0x68] sm:$0xff]
      %v5011 = vld [vmem:[%s3514 + $0x78] sm:$0xff]
      %v5013 = vsel %vm518, %v4996, 0
      %v5016 = vsel %vm518, %v4997, 0
      %v5019 = vsel %vm518, %v4998, 0
      %v5022 = vsel %vm518, %v4999, 0
      %v5025 = vsel %vm518, %v5000, 0
      %v5028 = vsel %vm518, %v5001, 0
      %v5031 = vsel %vm518, %v5002, 0
      %v5034 = vsel %vm518, %v5003, 0
      %5036 = vmatprep.subr.mxu0 0.0
      %5037 = vmatpush1.msra.mxu0 %v438
      %5038 = vmatprep.subr.mxu0 0.0
      %5039 = vmatpush1.msra.mxu0 %v439
      %5040 = vmatprep.subr.mxu0 0.0
      %5041 = vmatpush1.msra.mxu0 %v440
      %5042 = vmatprep.subr.mxu0 0.0
      %5043 = vmatpush1.msra.mxu0 %v441
      %5044 = vmatprep.subr.mxu0 0.0
      %5045 = vmatpush1.msra.mxu0 0.0
      %5046 = vmatprep.subr.mxu0 0.0
      %5047 = vmatpush1.msra.mxu0 0.0
      %5048 = vmatprep.subr.mxu0 0.0
      %5049 = vmatpush1.msra.mxu0 0.0
      %5050 = vmatprep.subr.mxu0 0.0
      %5051 = vmatpush1.msra.mxu0 0.0
      %5052 = vmatprep.subr.mxu0 0.0
      %5053 = vmatpush1.msra.mxu0 0.0
      %5054 = vmatprep.subr.mxu0 0.0
      %5055 = vmatpush1.msra.mxu0 0.0
      %5056 = vmatprep.subr.mxu0 0.0
      %5057 = vmatpush1.msra.mxu0 0.0
      %5058 = vmatprep.subr.mxu0 0.0
      %5059 = vmatpush1.msra.mxu0 0.0
      %5060 = vmatprep.subr.mxu0 0.0
      %5061 = vmatpush1.msra.mxu0 0.0
      %5062 = vmatprep.subr.mxu0 0.0
      %5063 = vmatpush1.msra.mxu0 0.0
      %5064 = vmatprep.subr.mxu0 0.0
      %5065 = vmatpush1.msra.mxu0 0.0
      %5066 = vmatprep.subr.mxu0 0.0
      %5067 = vmatpush1.msra.mxu0 0.0
      %5068 = vmatprep.subr.mxu0 0.0
      %5069 = vmatpush1.msra.mxu0 0.0
      %5070 = vmatprep.subr.mxu0 0.0
      %5071 = vmatpush1.msra.mxu0 0.0
      %5072 = vmatprep.subr.mxu0 0.0
      %5073 = vmatpush1.msra.mxu0 0.0
      %5074 = vmatprep.subr.mxu0 0.0
      %5075 = vmatpush1.msra.mxu0 0.0
      %5076 = vmatprep.subr.mxu0 0.0
      %5077 = vmatpush1.msra.mxu0 0.0
      %5078 = vmatprep.subr.mxu0 0.0
      %5079 = vmatpush1.msra.mxu0 0.0
      %5080 = vmatprep.subr.mxu0 0.0
      %5081 = vmatpush1.msra.mxu0 0.0
      %5082 = vmatprep.subr.mxu0 0.0
      %5083 = vmatpush1.msra.mxu0 0.0
      %5084 = vmatprep.subr.mxu0 0.0
      %5085 = vmatpush1.msra.mxu0 0.0
      %5086 = vmatprep.subr.mxu0 0.0
      %5087 = vmatpush1.msra.mxu0 0.0
      %5088 = vmatprep.subr.mxu0 0.0
      %5089 = vmatpush1.msra.mxu0 0.0
      %5090 = vmatprep.subr.mxu0 0.0
      %5091 = vmatpush1.msra.mxu0 0.0
      %5092 = vmatprep.subr.mxu0 0.0
      %5093 = vmatpush1.msra.mxu0 0.0
      %5094 = vmatprep.subr.mxu0 0.0
      %5095 = vmatpush1.msra.mxu0 0.0
      %5096 = vmatprep.subr.mxu0 0.0
      %5097 = vmatpush1.msra.mxu0 0.0
      %5098 = vmatprep.subr.mxu0 0.0
      %5099 = vmatpush1.msra.mxu0 0.0
      %5100 = vmatprep.mubr.f32.mxu0 0.0
      %5101 = vmatmul.mubr.f32.gmra.mrb[0].mxu0 %v5013
      %v5102 = vpop.f32.mrb[0].mxu0
      %v5103 = vadd.f32 0.0, %v5102
      %v5104 = vpop.f32.mrb[0].mxu0
      %5105 = vmatprep.mubr.f32.mxu0 0.0
      %5106 = vmatmul.mubr.f32.gmra.mrb[0].mxu0 %v5016
      %v5107 = vpop.f32.mrb[0].mxu0
      %v5108 = vadd.f32 0.0, %v5107
      %v5109 = vpop.f32.mrb[0].mxu0
      %5110 = vmatprep.mubr.f32.mxu0 0.0
      %5111 = vmatmul.mubr.f32.gmra.mrb[0].mxu0 %v5019
      %v5112 = vpop.f32.mrb[0].mxu0
      %v5113 = vadd.f32 0.0, %v5112
      %v5114 = vpop.f32.mrb[0].mxu0
      %5115 = vmatprep.mubr.f32.mxu0 0.0
      %5116 = vmatmul.mubr.f32.gmra.mrb[0].mxu0 %v5022
      %v5117 = vpop.f32.mrb[0].mxu0
      %v5118 = vadd.f32 0.0, %v5117
      %v5119 = vpop.f32.mrb[0].mxu0
      %5120 = vmatprep.mubr.f32.mxu0 0.0
      %5121 = vmatmul.mubr.f32.gmra.mrb[0].mxu0 %v5025
      %v5122 = vpop.f32.mrb[0].mxu0
      %v5123 = vadd.f32 0.0, %v5122
      %v5124 = vpop.f32.mrb[0].mxu0
      %5125 = vmatprep.mubr.f32.mxu0 0.0
      %5126 = vmatmul.mubr.f32.gmra.mrb[0].mxu0 %v5028
      %v5127 = vpop.f32.mrb[0].mxu0
      %v5128 = vadd.f32 0.0, %v5127
      %v5129 = vpop.f32.mrb[0].mxu0
      %5130 = vmatprep.mubr.f32.mxu0 0.0
      %5131 = vmatmul.mubr.f32.gmra.mrb[0].mxu0 %v5031
      %v5132 = vpop.f32.mrb[0].mxu0
      %v5133 = vadd.f32 0.0, %v5132
      %v5134 = vpop.f32.mrb[0].mxu0
      %5135 = vmatprep.mubr.f32.mxu0 0.0
      %5136 = vmatmul.mubr.f32.gmra.mrb[0].mxu0 %v5034
      %v5137 = vpop.f32.mrb[0].mxu0
      %v5138 = vadd.f32 0.0, %v5137
      %v5139 = vpop.f32.mrb[0].mxu0
      %5140 = vdwg.mxu0
      %v5142 = vsel %vm518, %v5004, 0
      %v5145 = vsel %vm518, %v5005, 0
      %v5148 = vsel %vm518, %v5006, 0
      %v5151 = vsel %vm518, %v5007, 0
      %v5154 = vsel %vm518, %v5008, 0
      %v5157 = vsel %vm518, %v5009, 0
      %v5160 = vsel %vm518, %v5010, 0
      %v5163 = vsel %vm518, %v5011, 0
      %5165 = vmatprep.subr.mxu0 0.0
      %5166 = vmatpush1.msra.mxu0 %v442
      %5167 = vmatprep.subr.mxu0 0.0
      %5168 = vmatpush1.msra.mxu0 %v443
      %5169 = vmatprep.subr.mxu0 0.0
      %5170 = vmatpush1.msra.mxu0 %v444
      %5171 = vmatprep.subr.mxu0 0.0
      %5172 = vmatpush1.msra.mxu0 %v445
      %5173 = vmatprep.subr.mxu0 0.0
      %5174 = vmatpush1.msra.mxu0 0.0
      %5175 = vmatprep.subr.mxu0 0.0
      %5176 = vmatpush1.msra.mxu0 0.0
      %5177 = vmatprep.subr.mxu0 0.0
      %5178 = vmatpush1.msra.mxu0 0.0
      %5179 = vmatprep.subr.mxu0 0.0
      %5180 = vmatpush1.msra.mxu0 0.0
      %5181 = vmatprep.subr.mxu0 0.0
      %5182 = vmatpush1.msra.mxu0 0.0
      %5183 = vmatprep.subr.mxu0 0.0
      %5184 = vmatpush1.msra.mxu0 0.0
      %5185 = vmatprep.subr.mxu0 0.0
      %5186 = vmatpush1.msra.mxu0 0.0
      %5187 = vmatprep.subr.mxu0 0.0
      %5188 = vmatpush1.msra.mxu0 0.0
      %5189 = vmatprep.subr.mxu0 0.0
      %5190 = vmatpush1.msra.mxu0 0.0
      %5191 = vmatprep.subr.mxu0 0.0
      %5192 = vmatpush1.msra.mxu0 0.0
      %5193 = vmatprep.subr.mxu0 0.0
      %5194 = vmatpush1.msra.mxu0 0.0
      %5195 = vmatprep.subr.mxu0 0.0
      %5196 = vmatpush1.msra.mxu0 0.0
      %5197 = vmatprep.subr.mxu0 0.0
      %5198 = vmatpush1.msra.mxu0 0.0
      %5199 = vmatprep.subr.mxu0 0.0
      %5200 = vmatpush1.msra.mxu0 0.0
      %5201 = vmatprep.subr.mxu0 0.0
      %5202 = vmatpush1.msra.mxu0 0.0
      %5203 = vmatprep.subr.mxu0 0.0
      %5204 = vmatpush1.msra.mxu0 0.0
      %5205 = vmatprep.subr.mxu0 0.0
      %5206 = vmatpush1.msra.mxu0 0.0
      %5207 = vmatprep.subr.mxu0 0.0
      %5208 = vmatpush1.msra.mxu0 0.0
      %5209 = vmatprep.subr.mxu0 0.0
      %5210 = vmatpush1.msra.mxu0 0.0
      %5211 = vmatprep.subr.mxu0 0.0
      %5212 = vmatpush1.msra.mxu0 0.0
      %5213 = vmatprep.subr.mxu0 0.0
      %5214 = vmatpush1.msra.mxu0 0.0
      %5215 = vmatprep.subr.mxu0 0.0
      %5216 = vmatpush1.msra.mxu0 0.0
      %5217 = vmatprep.subr.mxu0 0.0
      %5218 = vmatpush1.msra.mxu0 0.0
      %5219 = vmatprep.subr.mxu0 0.0
      %5220 = vmatpush1.msra.mxu0 0.0
      %5221 = vmatprep.subr.mxu0 0.0
      %5222 = vmatpush1.msra.mxu0 0.0
      %5223 = vmatprep.subr.mxu0 0.0
      %5224 = vmatpush1.msra.mxu0 0.0
      %5225 = vmatprep.subr.mxu0 0.0
      %5226 = vmatpush1.msra.mxu0 0.0
      %5227 = vmatprep.subr.mxu0 0.0
      %5228 = vmatpush1.msra.mxu0 0.0
      %5229 = vmatprep.mubr.f32.mxu0 0.0
      %5230 = vmatmul.mubr.f32.gmra.mrb[0].mxu0 %v5142
      %v5231 = vpop.f32.mrb[0].mxu0
      %v5232 = vadd.f32 0.0, %v5231
      %v5233 = vpop.f32.mrb[0].mxu0
      %5234 = vmatprep.mubr.f32.mxu0 0.0
      %5235 = vmatmul.mubr.f32.gmra.mrb[0].mxu0 %v5145
      %v5236 = vpop.f32.mrb[0].mxu0
      %v5237 = vadd.f32 0.0, %v5236
      %v5238 = vpop.f32.mrb[0].mxu0
      %5239 = vmatprep.mubr.f32.mxu0 0.0
      %5240 = vmatmul.mubr.f32.gmra.mrb[0].mxu0 %v5148
      %v5241 = vpop.f32.mrb[0].mxu0
      %v5242 = vadd.f32 0.0, %v5241
      %v5243 = vpop.f32.mrb[0].mxu0
      %5244 = vmatprep.mubr.f32.mxu0 0.0
      %5245 = vmatmul.mubr.f32.gmra.mrb[0].mxu0 %v5151
      %v5246 = vpop.f32.mrb[0].mxu0
      %v5247 = vadd.f32 0.0, %v5246
      %v5248 = vpop.f32.mrb[0].mxu0
      %5249 = vmatprep.mubr.f32.mxu0 0.0
      %5250 = vmatmul.mubr.f32.gmra.mrb[0].mxu0 %v5154
      %v5251 = vpop.f32.mrb[0].mxu0
      %v5252 = vadd.f32 0.0, %v5251
      %v5253 = vpop.f32.mrb[0].mxu0
      %5254 = vmatprep.mubr.f32.mxu0 0.0
      %5255 = vmatmul.mubr.f32.gmra.mrb[0].mxu0 %v5157
      %v5256 = vpop.f32.mrb[0].mxu0
      %v5257 = vadd.f32 0.0, %v5256
      %v5258 = vpop.f32.mrb[0].mxu0
      %5259 = vmatprep.mubr.f32.mxu0 0.0
      %5260 = vmatmul.mubr.f32.gmra.mrb[0].mxu0 %v5160
      %v5261 = vpop.f32.mrb[0].mxu0
      %v5262 = vadd.f32 0.0, %v5261
      %v5263 = vpop.f32.mrb[0].mxu0
      %5264 = vmatprep.mubr.f32.mxu0 0.0
      %5265 = vmatmul.mubr.f32.gmra.mrb[0].mxu0 %v5163
      %v5266 = vpop.f32.mrb[0].mxu0
      %v5267 = vadd.f32 0.0, %v5266
      %v5268 = vpop.f32.mrb[0].mxu0
      %5269 = vdwg.mxu0
      %v5271 = vsel %vm518, %v5103, 0
      %v5274 = vsel %vm518, %v5108, 0
      %v5277 = vsel %vm518, %v5113, 0
      %v5280 = vsel %vm518, %v5118, 0
      %v5283 = vsel %vm518, %v5123, 0
      %v5286 = vsel %vm518, %v5128, 0
      %v5289 = vsel %vm518, %v5133, 0
      %v5292 = vsel %vm518, %v5138, 0
      %v5295 = vsel %vm518, %v5232, 0
      %v5298 = vsel %vm518, %v5237, 0
      %v5301 = vsel %vm518, %v5242, 0
      %v5304 = vsel %vm518, %v5247, 0
      %v5307 = vsel %vm518, %v5252, 0
      %v5310 = vsel %vm518, %v5257, 0
      %v5313 = vsel %vm518, %v5262, 0
      %v5316 = vsel %vm518, %v5267, 0
      %5318 = vmatprep.subr.mxu0 0.0
      %5319 = vmatpush1.xpose.msra.mxu0 %v5295
      %5320 = vmatprep.subr.mxu0 0.0
      %5321 = vmatpush1.xpose.msra.mxu0 %v5298
      %5322 = vmatprep.subr.mxu0 0.0
      %5323 = vmatpush1.xpose.msra.mxu0 %v5301
      %5324 = vmatprep.subr.mxu0 0.0
      %5325 = vmatpush1.xpose.msra.mxu0 %v5304
      %5326 = vmatprep.subr.mxu0 0.0
      %5327 = vmatpush1.xpose.msra.mxu0 %v5307
      %5328 = vmatprep.subr.mxu0 0.0
      %5329 = vmatpush1.xpose.msra.mxu0 %v5310
      %5330 = vmatprep.subr.mxu0 0.0
      %5331 = vmatpush1.xpose.msra.mxu0 %v5313
      %5332 = vmatprep.subr.mxu0 0.0
      %5333 = vmatpush1.xpose.msra.mxu0 %v5316
      %5334 = vmatprep.subr.mxu0 0.0
      %5335 = vmatpush1.xpose.msra.mxu0 0.0
      %5336 = vmatprep.subr.mxu0 0.0
      %5337 = vmatpush1.xpose.msra.mxu0 0.0
      %5338 = vmatprep.subr.mxu0 0.0
      %5339 = vmatpush1.xpose.msra.mxu0 0.0
      %5340 = vmatprep.subr.mxu0 0.0
      %5341 = vmatpush1.xpose.msra.mxu0 0.0
      %5342 = vmatprep.subr.mxu0 0.0
      %5343 = vmatpush1.xpose.msra.mxu0 0.0
      %5344 = vmatprep.subr.mxu0 0.0
      %5345 = vmatpush1.xpose.msra.mxu0 0.0
      %5346 = vmatprep.subr.mxu0 0.0
      %5347 = vmatpush1.xpose.msra.mxu0 0.0
      %5348 = vmatprep.subr.mxu0 0.0
      %5349 = vmatpush1.xpose.msra.mxu0 0.0
      %5350 = vmatprep.subr.mxu0 0.0
      %5351 = vmatpush1.xpose.msra.mxu0 0.0
      %5352 = vmatprep.subr.mxu0 0.0
      %5353 = vmatpush1.xpose.msra.mxu0 0.0
      %5354 = vmatprep.subr.mxu0 0.0
      %5355 = vmatpush1.xpose.msra.mxu0 0.0
      %5356 = vmatprep.subr.mxu0 0.0
      %5357 = vmatpush1.xpose.msra.mxu0 0.0
      %5358 = vmatprep.subr.mxu0 0.0
      %5359 = vmatpush1.xpose.msra.mxu0 0.0
      %5360 = vmatprep.subr.mxu0 0.0
      %5361 = vmatpush1.xpose.msra.mxu0 0.0
      %5362 = vmatprep.subr.mxu0 0.0
      %5363 = vmatpush1.xpose.msra.mxu0 0.0
      %5364 = vmatprep.subr.mxu0 0.0
      %5365 = vmatpush1.xpose.msra.mxu0 0.0
      %5366 = vmatprep.subr.mxu0 0.0
      %5367 = vmatpush1.xpose.msra.mxu0 0.0
      %5368 = vmatprep.subr.mxu0 0.0
      %5369 = vmatpush1.xpose.msra.mxu0 0.0
      %5370 = vmatprep.subr.mxu0 0.0
      %5371 = vmatpush1.xpose.msra.mxu0 0.0
      %5372 = vmatprep.subr.mxu0 0.0
      %5373 = vmatpush1.xpose.msra.mxu0 0.0
      %5374 = vmatprep.subr.mxu0 0.0
      %5375 = vmatpush1.xpose.msra.mxu0 0.0
      %5376 = vmatprep.subr.mxu0 0.0
      %5377 = vmatpush1.xpose.msra.mxu0 0.0
      %5378 = vmatprep.subr.mxu0 0.0
      %5379 = vmatpush1.xpose.msra.mxu0 0.0
      %5380 = vmatprep.subr.mxu0 0.0
      %5381 = vmatpush1.xpose.msra.mxu0 0.0
      %5382 = vmatprep.mubr.f32.mxu0 0.0
      %5383 = vmatmul.mubr.f32.gmra.mrb[0].mxu0 %v5271
      %v5384 = vpop.f32.mrb[0].mxu0
      %v5385 = vadd.f32 0.0, %v5384
      %v5386 = vpop.f32.mrb[0].mxu0
      %5387 = vmatprep.mubr.f32.mxu0 0.0
      %5388 = vmatmul.mubr.f32.gmra.mrb[0].mxu0 %v5274
      %v5389 = vpop.f32.mrb[0].mxu0
      %v5390 = vadd.f32 0.0, %v5389
      %v5391 = vpop.f32.mrb[0].mxu0
      %5392 = vmatprep.mubr.f32.mxu0 0.0
      %5393 = vmatmul.mubr.f32.gmra.mrb[0].mxu0 %v5277
      %v5394 = vpop.f32.mrb[0].mxu0
      %v5395 = vadd.f32 0.0, %v5394
      %v5396 = vpop.f32.mrb[0].mxu0
      %5397 = vmatprep.mubr.f32.mxu0 0.0
      %5398 = vmatmul.mubr.f32.gmra.mrb[0].mxu0 %v5280
      %v5399 = vpop.f32.mrb[0].mxu0
      %v5400 = vadd.f32 0.0, %v5399
      %v5401 = vpop.f32.mrb[0].mxu0
      %5402 = vmatprep.mubr.f32.mxu0 0.0
      %5403 = vmatmul.mubr.f32.gmra.mrb[0].mxu0 %v5283
      %v5404 = vpop.f32.mrb[0].mxu0
      %v5405 = vadd.f32 0.0, %v5404
      %v5406 = vpop.f32.mrb[0].mxu0
      %5407 = vmatprep.mubr.f32.mxu0 0.0
      %5408 = vmatmul.mubr.f32.gmra.mrb[0].mxu0 %v5286
      %v5409 = vpop.f32.mrb[0].mxu0
      %v5410 = vadd.f32 0.0, %v5409
      %v5411 = vpop.f32.mrb[0].mxu0
      %5412 = vmatprep.mubr.f32.mxu0 0.0
      %5413 = vmatmul.mubr.f32.gmra.mrb[0].mxu0 %v5289
      %v5414 = vpop.f32.mrb[0].mxu0
      %v5415 = vadd.f32 0.0, %v5414
      %v5416 = vpop.f32.mrb[0].mxu0
      %5417 = vmatprep.mubr.f32.mxu0 0.0
      %5418 = vmatmul.mubr.f32.gmra.mrb[0].mxu0 %v5292
      %v5419 = vpop.f32.mrb[0].mxu0
      %v5420 = vadd.f32 0.0, %v5419
      %v5421 = vpop.f32.mrb[0].mxu0
      %5422 = vdwg.mxu0
      %v5423 = vsel %vm930, %v5385, -inf
      %5424 = vmax.xlane.f32.xlu0 %v5423
      %v5425 = vpop.xlane.xlu0 %5424
      %v5426 = vsel %vm930, %v5390, -inf
      %5427 = vmax.xlane.f32.xlu0 %v5426
      %v5428 = vpop.xlane.xlu0 %5427
      %v5429 = vsel %vm930, %v5395, -inf
      %5430 = vmax.xlane.f32.xlu0 %v5429
      %v5431 = vpop.xlane.xlu0 %5430
      %v5432 = vsel %vm930, %v5400, -inf
      %5433 = vmax.xlane.f32.xlu0 %v5432
      %v5434 = vpop.xlane.xlu0 %5433
      %v5435 = vsel %vm930, %v5405, -inf
      %5436 = vmax.xlane.f32.xlu0 %v5435
      %v5437 = vpop.xlane.xlu0 %5436
      %v5438 = vsel %vm930, %v5410, -inf
      %5439 = vmax.xlane.f32.xlu0 %v5438
      %v5440 = vpop.xlane.xlu0 %5439
      %v5441 = vsel %vm930, %v5415, -inf
      %5442 = vmax.xlane.f32.xlu0 %v5441
      %v5443 = vpop.xlane.xlu0 %5442
      %v5444 = vsel %vm930, %v5420, -inf
      %5445 = vmax.xlane.f32.xlu0 %v5444
      %v5446 = vpop.xlane.xlu0 %5445
      %v5447 = vsub.f32 %v5385, %v5425
      %v5448 = vsub.f32 %v5390, %v5428
      %v5449 = vsub.f32 %v5395, %v5431
      %v5450 = vsub.f32 %v5400, %v5434
      %v5451 = vsub.f32 %v5405, %v5437
      %v5452 = vsub.f32 %v5410, %v5440
      %v5453 = vsub.f32 %v5415, %v5443
      %v5454 = vsub.f32 %v5420, %v5446
      %v5455 = vmul.f32 %v5447, 1.442695
      %v5456 = vpow.pop %v5455
      %v5457 = vmul.f32 %v5448, 1.442695
      %v5458 = vpow.pop %v5457
      %v5459 = vmul.f32 %v5449, 1.442695
      %v5460 = vpow.pop %v5459
      %v5461 = vmul.f32 %v5450, 1.442695
      %v5462 = vpow.pop %v5461
      %v5463 = vmul.f32 %v5451, 1.442695
      %v5464 = vpow.pop %v5463
      %v5465 = vmul.f32 %v5452, 1.442695
      %v5466 = vpow.pop %v5465
      %v5467 = vmul.f32 %v5453, 1.442695
      %v5468 = vpow.pop %v5467
      %v5469 = vmul.f32 %v5454, 1.442695
      %v5470 = vpow.pop %v5469
      %v5471 = vsel %vm930, %v5456, 0.0
      %5472 = vadd.xlane.f32.xlu0 %v5471
      %v5473 = vpop.xlane.xlu0 %5472
      %v5474 = vsel %vm930, %v5458, 0.0
      %5475 = vadd.xlane.f32.xlu0 %v5474
      %v5476 = vpop.xlane.xlu0 %5475
      %v5477 = vsel %vm930, %v5460, 0.0
      %5478 = vadd.xlane.f32.xlu0 %v5477
      %v5479 = vpop.xlane.xlu0 %5478
      %v5480 = vsel %vm930, %v5462, 0.0
      %5481 = vadd.xlane.f32.xlu0 %v5480
      %v5482 = vpop.xlane.xlu0 %5481
      %v5483 = vsel %vm930, %v5464, 0.0
      %5484 = vadd.xlane.f32.xlu0 %v5483
      %v5485 = vpop.xlane.xlu0 %5484
      %v5486 = vsel %vm930, %v5466, 0.0
      %5487 = vadd.xlane.f32.xlu0 %v5486
      %v5488 = vpop.xlane.xlu0 %5487
      %v5489 = vsel %vm930, %v5468, 0.0
      %5490 = vadd.xlane.f32.xlu0 %v5489
      %v5491 = vpop.xlane.xlu0 %5490
      %v5492 = vsel %vm930, %v5470, 0.0
      %5493 = vadd.xlane.f32.xlu0 %v5492
      %v5494 = vpop.xlane.xlu0 %5493
      %v5495 = vrcp.pop %v5473
      %v5496 = vrcp.pop %v5476
      %v5497 = vrcp.pop %v5479
      %v5498 = vrcp.pop %v5482
      %v5499 = vrcp.pop %v5485
      %v5500 = vrcp.pop %v5488
      %v5501 = vrcp.pop %v5491
      %v5502 = vrcp.pop %v5494
      %v5503 = vmul.f32 %v5456, %v5495
      %v5504 = vmul.f32 %v5458, %v5496
      %v5505 = vmul.f32 %v5460, %v5497
      %v5506 = vmul.f32 %v5462, %v5498
      %v5507 = vmul.f32 %v5464, %v5499
      %v5508 = vmul.f32 %v5466, %v5500
      %v5509 = vmul.f32 %v5468, %v5501
      %v5510 = vmul.f32 %v5470, %v5502
      %5511 = vrot.lane.b32.xlu0 %v5232, 96
      %v5512 = vpop.permute.xlu0 %5511
      %5513 = vrot.lane.b32.xlu0 %v5237, 96
      %v5514 = vpop.permute.xlu0 %5513
      %5515 = vrot.lane.b32.xlu0 %v5242, 96
      %v5516 = vpop.permute.xlu0 %5515
      %5517 = vrot.lane.b32.xlu0 %v5247, 96
      %v5518 = vpop.permute.xlu0 %5517
      %5519 = vrot.lane.b32.xlu0 %v5252, 96
      %v5520 = vpop.permute.xlu0 %5519
      %5521 = vrot.lane.b32.xlu0 %v5257, 96
      %v5522 = vpop.permute.xlu0 %5521
      %5523 = vrot.lane.b32.xlu0 %v5262, 96
      %v5524 = vpop.permute.xlu0 %5523
      %5525 = vrot.lane.b32.xlu0 %v5267, 96
      %v5526 = vpop.permute.xlu0 %5525
      %v5536 = vsel %vm930, %v5503, 0
      %v5539 = vsel %vm930, %v5504, 0
      %v5542 = vsel %vm930, %v5505, 0
      %v5545 = vsel %vm930, %v5506, 0
      %v5548 = vsel %vm930, %v5507, 0
      %v5551 = vsel %vm930, %v5508, 0
      %v5554 = vsel %vm930, %v5509, 0
      %v5557 = vsel %vm930, %v5510, 0
      %5559 = vmatprep.subr.mxu0 0.0
      %5560 = vmatpush1.msra.mxu0 %v5512
      %5561 = vmatprep.subr.mxu0 0.0
      %5562 = vmatpush1.msra.mxu0 %v5514
      %5563 = vmatprep.subr.mxu0 0.0
      %5564 = vmatpush1.msra.mxu0 %v5516
      %5565 = vmatprep.subr.mxu0 0.0
      %5566 = vmatpush1.msra.mxu0 %v5518
      %5567 = vmatprep.subr.mxu0 0.0
      %5568 = vmatpush1.msra.mxu0 %v5520
      %5569 = vmatprep.subr.mxu0 0.0
      %5570 = vmatpush1.msra.mxu0 %v5522
      %5571 = vmatprep.subr.mxu0 0.0
      %5572 = vmatpush1.msra.mxu0 %v5524
      %5573 = vmatprep.subr.mxu0 0.0
      %5574 = vmatpush1.msra.mxu0 %v5526
      %5575 = vmatprep.subr.mxu0 0.0
      %5576 = vmatpush1.msra.mxu0 0.0
      %5577 = vmatprep.subr.mxu0 0.0
      %5578 = vmatpush1.msra.mxu0 0.0
      %5579 = vmatprep.subr.mxu0 0.0
      %5580 = vmatpush1.msra.mxu0 0.0
      %5581 = vmatprep.subr.mxu0 0.0
      %5582 = vmatpush1.msra.mxu0 0.0
      %5583 = vmatprep.subr.mxu0 0.0
      %5584 = vmatpush1.msra.mxu0 0.0
      %5585 = vmatprep.subr.mxu0 0.0
      %5586 = vmatpush1.msra.mxu0 0.0
      %5587 = vmatprep.subr.mxu0 0.0
      %5588 = vmatpush1.msra.mxu0 0.0
      %5589 = vmatprep.subr.mxu0 0.0
      %5590 = vmatpush1.msra.mxu0 0.0
      %5591 = vmatprep.subr.mxu0 0.0
      %5592 = vmatpush1.msra.mxu0 0.0
      %5593 = vmatprep.subr.mxu0 0.0
      %5594 = vmatpush1.msra.mxu0 0.0
      %5595 = vmatprep.subr.mxu0 0.0
      %5596 = vmatpush1.msra.mxu0 0.0
      %5597 = vmatprep.subr.mxu0 0.0
      %5598 = vmatpush1.msra.mxu0 0.0
      %5599 = vmatprep.subr.mxu0 0.0
      %5600 = vmatpush1.msra.mxu0 0.0
      %5601 = vmatprep.subr.mxu0 0.0
      %5602 = vmatpush1.msra.mxu0 0.0
      %5603 = vmatprep.subr.mxu0 0.0
      %5604 = vmatpush1.msra.mxu0 0.0
      %5605 = vmatprep.subr.mxu0 0.0
      %5606 = vmatpush1.msra.mxu0 0.0
      %5607 = vmatprep.subr.mxu0 0.0
      %5608 = vmatpush1.msra.mxu0 0.0
      %5609 = vmatprep.subr.mxu0 0.0
      %5610 = vmatpush1.msra.mxu0 0.0
      %5611 = vmatprep.subr.mxu0 0.0
      %5612 = vmatpush1.msra.mxu0 0.0
      %5613 = vmatprep.subr.mxu0 0.0
      %5614 = vmatpush1.msra.mxu0 0.0
      %5615 = vmatprep.subr.mxu0 0.0
      %5616 = vmatpush1.msra.mxu0 0.0
      %5617 = vmatprep.subr.mxu0 0.0
      %5618 = vmatpush1.msra.mxu0 0.0
      %5619 = vmatprep.subr.mxu0 0.0
      %5620 = vmatpush1.msra.mxu0 0.0
      %5621 = vmatprep.subr.mxu0 0.0
      %5622 = vmatpush1.msra.mxu0 0.0
      %5623 = vmatprep.mubr.f32.mxu0 0.0
      %5624 = vmatmul.mubr.f32.gmra.mrb[0].mxu0 %v5536
      %v5625 = vpop.f32.mrb[0].mxu0
      %v5626 = vadd.f32 0.0, %v5625
      %v5627 = vpop.f32.mrb[0].mxu0
      %5628 = vmatprep.mubr.f32.mxu0 0.0
      %5629 = vmatmul.mubr.f32.gmra.mrb[0].mxu0 %v5539
      %v5630 = vpop.f32.mrb[0].mxu0
      %v5631 = vadd.f32 0.0, %v5630
      %v5632 = vpop.f32.mrb[0].mxu0
      %5633 = vmatprep.mubr.f32.mxu0 0.0
      %5634 = vmatmul.mubr.f32.gmra.mrb[0].mxu0 %v5542
      %v5635 = vpop.f32.mrb[0].mxu0
      %v5636 = vadd.f32 0.0, %v5635
      %v5637 = vpop.f32.mrb[0].mxu0
      %5638 = vmatprep.mubr.f32.mxu0 0.0
      %5639 = vmatmul.mubr.f32.gmra.mrb[0].mxu0 %v5545
      %v5640 = vpop.f32.mrb[0].mxu0
      %v5641 = vadd.f32 0.0, %v5640
      %v5642 = vpop.f32.mrb[0].mxu0
      %5643 = vmatprep.mubr.f32.mxu0 0.0
      %5644 = vmatmul.mubr.f32.gmra.mrb[0].mxu0 %v5548
      %v5645 = vpop.f32.mrb[0].mxu0
      %v5646 = vadd.f32 0.0, %v5645
      %v5647 = vpop.f32.mrb[0].mxu0
      %5648 = vmatprep.mubr.f32.mxu0 0.0
      %5649 = vmatmul.mubr.f32.gmra.mrb[0].mxu0 %v5551
      %v5650 = vpop.f32.mrb[0].mxu0
      %v5651 = vadd.f32 0.0, %v5650
      %v5652 = vpop.f32.mrb[0].mxu0
      %5653 = vmatprep.mubr.f32.mxu0 0.0
      %5654 = vmatmul.mubr.f32.gmra.mrb[0].mxu0 %v5554
      %v5655 = vpop.f32.mrb[0].mxu0
      %v5656 = vadd.f32 0.0, %v5655
      %v5657 = vpop.f32.mrb[0].mxu0
      %5658 = vmatprep.mubr.f32.mxu0 0.0
      %5659 = vmatmul.mubr.f32.gmra.mrb[0].mxu0 %v5557
      %v5660 = vpop.f32.mrb[0].mxu0
      %v5661 = vadd.f32 0.0, %v5660
      %v5662 = vpop.f32.mrb[0].mxu0
      %5663 = vdwg.mxu0
      %v5665 = vsel %vm518, %v5626, 0
      %v5668 = vsel %vm518, %v5631, 0
      %v5671 = vsel %vm518, %v5636, 0
      %v5674 = vsel %vm518, %v5641, 0
      %v5677 = vsel %vm518, %v5646, 0
      %v5680 = vsel %vm518, %v5651, 0
      %v5683 = vsel %vm518, %v5656, 0
      %v5686 = vsel %vm518, %v5661, 0
      %5688 = vmatprep.subr.mxu0 0.0
      %5689 = vmatpush1.msra.mxu0 %v446
      %5690 = vmatprep.subr.mxu0 0.0
      %5691 = vmatpush1.msra.mxu0 %v447
      %5692 = vmatprep.subr.mxu0 0.0
      %5693 = vmatpush1.msra.mxu0 %v448
      %5694 = vmatprep.subr.mxu0 0.0
      %5695 = vmatpush1.msra.mxu0 %v449
      %5696 = vmatprep.subr.mxu0 0.0
      %5697 = vmatpush1.msra.mxu0 0.0
      %5698 = vmatprep.subr.mxu0 0.0
      %5699 = vmatpush1.msra.mxu0 0.0
      %5700 = vmatprep.subr.mxu0 0.0
      %5701 = vmatpush1.msra.mxu0 0.0
      %5702 = vmatprep.subr.mxu0 0.0
      %5703 = vmatpush1.msra.mxu0 0.0
      %5704 = vmatprep.subr.mxu0 0.0
      %5705 = vmatpush1.msra.mxu0 0.0
      %5706 = vmatprep.subr.mxu0 0.0
      %5707 = vmatpush1.msra.mxu0 0.0
      %5708 = vmatprep.subr.mxu0 0.0
      %5709 = vmatpush1.msra.mxu0 0.0
      %5710 = vmatprep.subr.mxu0 0.0
      %5711 = vmatpush1.msra.mxu0 0.0
      %5712 = vmatprep.subr.mxu0 0.0
      %5713 = vmatpush1.msra.mxu0 0.0
      %5714 = vmatprep.subr.mxu0 0.0
      %5715 = vmatpush1.msra.mxu0 0.0
      %5716 = vmatprep.subr.mxu0 0.0
      %5717 = vmatpush1.msra.mxu0 0.0
      %5718 = vmatprep.subr.mxu0 0.0
      %5719 = vmatpush1.msra.mxu0 0.0
      %5720 = vmatprep.subr.mxu0 0.0
      %5721 = vmatpush1.msra.mxu0 0.0
      %5722 = vmatprep.subr.mxu0 0.0
      %5723 = vmatpush1.msra.mxu0 0.0
      %5724 = vmatprep.subr.mxu0 0.0
      %5725 = vmatpush1.msra.mxu0 0.0
      %5726 = vmatprep.subr.mxu0 0.0
      %5727 = vmatpush1.msra.mxu0 0.0
      %5728 = vmatprep.subr.mxu0 0.0
      %5729 = vmatpush1.msra.mxu0 0.0
      %5730 = vmatprep.subr.mxu0 0.0
      %5731 = vmatpush1.msra.mxu0 0.0
      %5732 = vmatprep.subr.mxu0 0.0
      %5733 = vmatpush1.msra.mxu0 0.0
      %5734 = vmatprep.subr.mxu0 0.0
      %5735 = vmatpush1.msra.mxu0 0.0
      %5736 = vmatprep.subr.mxu0 0.0
      %5737 = vmatpush1.msra.mxu0 0.0
      %5738 = vmatprep.subr.mxu0 0.0
      %5739 = vmatpush1.msra.mxu0 0.0
      %5740 = vmatprep.subr.mxu0 0.0
      %5741 = vmatpush1.msra.mxu0 0.0
      %5742 = vmatprep.subr.mxu0 0.0
      %5743 = vmatpush1.msra.mxu0 0.0
      %5744 = vmatprep.subr.mxu0 0.0
      %5745 = vmatpush1.msra.mxu0 0.0
      %5746 = vmatprep.subr.mxu0 0.0
      %5747 = vmatpush1.msra.mxu0 0.0
      %5748 = vmatprep.subr.mxu0 0.0
      %5749 = vmatpush1.msra.mxu0 0.0
      %5750 = vmatprep.subr.mxu0 0.0
      %5751 = vmatpush1.msra.mxu0 0.0
      %5752 = vmatprep.mubr.f32.mxu0 0.0
      %5753 = vmatmul.mubr.f32.gmra.mrb[0].mxu0 %v5665
      %v5754 = vpop.f32.mrb[0].mxu0
      %v5755 = vadd.f32 0.0, %v5754
      %v5756 = vpop.f32.mrb[0].mxu0
      %5757 = vmatprep.mubr.f32.mxu0 0.0
      %5758 = vmatmul.mubr.f32.gmra.mrb[0].mxu0 %v5668
      %v5759 = vpop.f32.mrb[0].mxu0
      %v5760 = vadd.f32 0.0, %v5759
      %v5761 = vpop.f32.mrb[0].mxu0
      %5762 = vmatprep.mubr.f32.mxu0 0.0
      %5763 = vmatmul.mubr.f32.gmra.mrb[0].mxu0 %v5671
      %v5764 = vpop.f32.mrb[0].mxu0
      %v5765 = vadd.f32 0.0, %v5764
      %v5766 = vpop.f32.mrb[0].mxu0
      %5767 = vmatprep.mubr.f32.mxu0 0.0
      %5768 = vmatmul.mubr.f32.gmra.mrb[0].mxu0 %v5674
      %v5769 = vpop.f32.mrb[0].mxu0
      %v5770 = vadd.f32 0.0, %v5769
      %v5771 = vpop.f32.mrb[0].mxu0
      %5772 = vmatprep.mubr.f32.mxu0 0.0
      %5773 = vmatmul.mubr.f32.gmra.mrb[0].mxu0 %v5677
      %v5774 = vpop.f32.mrb[0].mxu0
      %v5775 = vadd.f32 0.0, %v5774
      %v5776 = vpop.f32.mrb[0].mxu0
      %5777 = vmatprep.mubr.f32.mxu0 0.0
      %5778 = vmatmul.mubr.f32.gmra.mrb[0].mxu0 %v5680
      %v5779 = vpop.f32.mrb[0].mxu0
      %v5780 = vadd.f32 0.0, %v5779
      %v5781 = vpop.f32.mrb[0].mxu0
      %5782 = vmatprep.mubr.f32.mxu0 0.0
      %5783 = vmatmul.mubr.f32.gmra.mrb[0].mxu0 %v5683
      %v5784 = vpop.f32.mrb[0].mxu0
      %v5785 = vadd.f32 0.0, %v5784
      %v5786 = vpop.f32.mrb[0].mxu0
      %5787 = vmatprep.mubr.f32.mxu0 0.0
      %5788 = vmatmul.mubr.f32.gmra.mrb[0].mxu0 %v5686
      %v5789 = vpop.f32.mrb[0].mxu0
      %v5790 = vadd.f32 0.0, %v5789
      %v5791 = vpop.f32.mrb[0].mxu0
      %5792 = vdwg.mxu0
      %v5793 = vsel %vm518, %v5755, 0.0
      %5794 = vadd.xlane.f32.xlu0 %v5793
      %v5795 = vpop.xlane.xlu0 %5794
      %v5796 = vsel %vm518, %v5760, 0.0
      %5797 = vadd.xlane.f32.xlu0 %v5796
      %v5798 = vpop.xlane.xlu0 %5797
      %v5799 = vsel %vm518, %v5765, 0.0
      %5800 = vadd.xlane.f32.xlu0 %v5799
      %v5801 = vpop.xlane.xlu0 %5800
      %v5802 = vsel %vm518, %v5770, 0.0
      %5803 = vadd.xlane.f32.xlu0 %v5802
      %v5804 = vpop.xlane.xlu0 %5803
      %v5805 = vsel %vm518, %v5775, 0.0
      %5806 = vadd.xlane.f32.xlu0 %v5805
      %v5807 = vpop.xlane.xlu0 %5806
      %v5808 = vsel %vm518, %v5780, 0.0
      %5809 = vadd.xlane.f32.xlu0 %v5808
      %v5810 = vpop.xlane.xlu0 %5809
      %v5811 = vsel %vm518, %v5785, 0.0
      %5812 = vadd.xlane.f32.xlu0 %v5811
      %v5813 = vpop.xlane.xlu0 %5812
      %v5814 = vsel %vm518, %v5790, 0.0
      %5815 = vadd.xlane.f32.xlu0 %v5814
      %v5816 = vpop.xlane.xlu0 %5815
      %v5817 = vmul.f32 %v5795, %v1325
      %v5818 = vmul.f32 %v5798, %v1325
      %v5819 = vmul.f32 %v5801, %v1325
      %v5820 = vmul.f32 %v5804, %v1325
      %v5821 = vmul.f32 %v5807, %v1325
      %v5822 = vmul.f32 %v5810, %v1325
      %v5823 = vmul.f32 %v5813, %v1325
      %v5824 = vmul.f32 %v5816, %v1325
      %v5825 = vsub.f32 %v5755, %v5817
      %v5826 = vsub.f32 %v5760, %v5818
      %v5827 = vsub.f32 %v5765, %v5819
      %v5828 = vsub.f32 %v5770, %v5820
      %v5829 = vsub.f32 %v5775, %v5821
      %v5830 = vsub.f32 %v5780, %v5822
      %v5831 = vsub.f32 %v5785, %v5823
      %v5832 = vsub.f32 %v5790, %v5824
      %v5833 = vmul.f32 %v5825, %v5825
      %v5834 = vmul.f32 %v5826, %v5826
      %v5835 = vmul.f32 %v5827, %v5827
      %v5836 = vmul.f32 %v5828, %v5828
      %v5837 = vmul.f32 %v5829, %v5829
      %v5838 = vmul.f32 %v5830, %v5830
      %v5839 = vmul.f32 %v5831, %v5831
      %v5840 = vmul.f32 %v5832, %v5832
      %v5841 = vsel %vm518, %v5833, 0.0
      %5842 = vadd.xlane.f32.xlu0 %v5841
      %v5843 = vpop.xlane.xlu0 %5842
      %v5844 = vsel %vm518, %v5834, 0.0
      %5845 = vadd.xlane.f32.xlu0 %v5844
      %v5846 = vpop.xlane.xlu0 %5845
      %v5847 = vsel %vm518, %v5835, 0.0
      %5848 = vadd.xlane.f32.xlu0 %v5847
      %v5849 = vpop.xlane.xlu0 %5848
      %v5850 = vsel %vm518, %v5836, 0.0
      %5851 = vadd.xlane.f32.xlu0 %v5850
      %v5852 = vpop.xlane.xlu0 %5851
      %v5853 = vsel %vm518, %v5837, 0.0
      %5854 = vadd.xlane.f32.xlu0 %v5853
      %v5855 = vpop.xlane.xlu0 %5854
      %v5856 = vsel %vm518, %v5838, 0.0
      %5857 = vadd.xlane.f32.xlu0 %v5856
      %v5858 = vpop.xlane.xlu0 %5857
      %v5859 = vsel %vm518, %v5839, 0.0
      %5860 = vadd.xlane.f32.xlu0 %v5859
      %v5861 = vpop.xlane.xlu0 %5860
      %v5862 = vsel %vm518, %v5840, 0.0
      %5863 = vadd.xlane.f32.xlu0 %v5862
      %v5864 = vpop.xlane.xlu0 %5863
      %v5865 = vmul.f32 %v5843, %v1325
      %v5866 = vmul.f32 %v5846, %v1325
      %v5867 = vmul.f32 %v5849, %v1325
      %v5868 = vmul.f32 %v5852, %v1325
      %v5869 = vmul.f32 %v5855, %v1325
      %v5870 = vmul.f32 %v5858, %v1325
      %v5871 = vmul.f32 %v5861, %v1325
      %v5872 = vmul.f32 %v5864, %v1325
      %v5873 = vadd.f32 %v5865, 1e-05
      %v5874 = vadd.f32 %v5866, 1e-05
      %v5875 = vadd.f32 %v5867, 1e-05
      %v5876 = vadd.f32 %v5868, 1e-05
      %v5877 = vadd.f32 %v5869, 1e-05
      %v5878 = vadd.f32 %v5870, 1e-05
      %v5879 = vadd.f32 %v5871, 1e-05
      %v5880 = vadd.f32 %v5872, 1e-05
      %v5881 = vrsqrt.pop %v5873
      %v5882 = vrsqrt.pop %v5874
      %v5883 = vrsqrt.pop %v5875
      %v5884 = vrsqrt.pop %v5876
      %v5885 = vrsqrt.pop %v5877
      %v5886 = vrsqrt.pop %v5878
      %v5887 = vrsqrt.pop %v5879
      %v5888 = vrsqrt.pop %v5880
      %v5889 = vmul.f32 %v5825, %v5881
      %v5890 = vmul.f32 %v5826, %v5882
      %v5891 = vmul.f32 %v5827, %v5883
      %v5892 = vmul.f32 %v5828, %v5884
      %v5893 = vmul.f32 %v5829, %v5885
      %v5894 = vmul.f32 %v5830, %v5886
      %v5895 = vmul.f32 %v5831, %v5887
      %v5896 = vmul.f32 %v5832, %v5888
      %v5897 = vmul.f32 %v5889, %v1410
      %v5898 = vmul.f32 %v5890, %v1410
      %v5899 = vmul.f32 %v5891, %v1410
      %v5900 = vmul.f32 %v5892, %v1410
      %v5901 = vmul.f32 %v5893, %v1410
      %v5902 = vmul.f32 %v5894, %v1410
      %v5903 = vmul.f32 %v5895, %v1410
      %v5904 = vmul.f32 %v5896, %v1410
      %v5905 = vadd.f32 %v5897, %v1424
      %v5906 = vadd.f32 %v5898, %v1424
      %v5907 = vadd.f32 %v5899, %v1424
      %v5908 = vadd.f32 %v5900, %v1424
      %v5909 = vadd.f32 %v5901, %v1424
      %v5910 = vadd.f32 %v5902, %v1424
      %v5911 = vadd.f32 %v5903, %v1424
      %v5912 = vadd.f32 %v5904, %v1424
      %v5914 = vsel %vm518, %v5905, 0
      %v5917 = vsel %vm518, %v5906, 0
      %v5920 = vsel %vm518, %v5907, 0
      %v5923 = vsel %vm518, %v5908, 0
      %v5926 = vsel %vm518, %v5909, 0
      %v5929 = vsel %vm518, %v5910, 0
      %v5932 = vsel %vm518, %v5911, 0
      %v5935 = vsel %vm518, %v5912, 0
      %5937 = vmatprep.subr.mxu0 %v461
      %5938 = vmatpush1.msra.mxu0 %v460
      %5939 = vmatprep.subr.mxu0 %v463
      %5940 = vmatpush1.msra.mxu0 %v462
      %5941 = vmatprep.subr.mxu0 %v465
      %5942 = vmatpush1.msra.mxu0 %v464
      %5943 = vmatprep.subr.mxu0 %v467
      %5944 = vmatpush1.msra.mxu0 %v466
      %5945 = vmatprep.subr.mxu0 0.0
      %5946 = vmatpush1.msra.mxu0 0.0
      %5947 = vmatprep.subr.mxu0 0.0
      %5948 = vmatpush1.msra.mxu0 0.0
      %5949 = vmatprep.subr.mxu0 0.0
      %5950 = vmatpush1.msra.mxu0 0.0
      %5951 = vmatprep.subr.mxu0 0.0
      %5952 = vmatpush1.msra.mxu0 0.0
      %5953 = vmatprep.subr.mxu0 0.0
      %5954 = vmatpush1.msra.mxu0 0.0
      %5955 = vmatprep.subr.mxu0 0.0
      %5956 = vmatpush1.msra.mxu0 0.0
      %5957 = vmatprep.subr.mxu0 0.0
      %5958 = vmatpush1.msra.mxu0 0.0
      %5959 = vmatprep.subr.mxu0 0.0
      %5960 = vmatpush1.msra.mxu0 0.0
      %5961 = vmatprep.subr.mxu0 0.0
      %5962 = vmatpush1.msra.mxu0 0.0
      %5963 = vmatprep.subr.mxu0 0.0
      %5964 = vmatpush1.msra.mxu0 0.0
      %5965 = vmatprep.subr.mxu0 0.0
      %5966 = vmatpush1.msra.mxu0 0.0
      %5967 = vmatprep.subr.mxu0 0.0
      %5968 = vmatpush1.msra.mxu0 0.0
      %5969 = vmatprep.subr.mxu0 0.0
      %5970 = vmatpush1.msra.mxu0 0.0
      %5971 = vmatprep.subr.mxu0 0.0
      %5972 = vmatpush1.msra.mxu0 0.0
      %5973 = vmatprep.subr.mxu0 0.0
      %5974 = vmatpush1.msra.mxu0 0.0
      %5975 = vmatprep.subr.mxu0 0.0
      %5976 = vmatpush1.msra.mxu0 0.0
      %5977 = vmatprep.subr.mxu0 0.0
      %5978 = vmatpush1.msra.mxu0 0.0
      %5979 = vmatprep.subr.mxu0 0.0
      %5980 = vmatpush1.msra.mxu0 0.0
      %5981 = vmatprep.subr.mxu0 0.0
      %5982 = vmatpush1.msra.mxu0 0.0
      %5983 = vmatprep.subr.mxu0 0.0
      %5984 = vmatpush1.msra.mxu0 0.0
      %5985 = vmatprep.subr.mxu0 0.0
      %5986 = vmatpush1.msra.mxu0 0.0
      %5987 = vmatprep.subr.mxu0 0.0
      %5988 = vmatpush1.msra.mxu0 0.0
      %5989 = vmatprep.subr.mxu0 0.0
      %5990 = vmatpush1.msra.mxu0 0.0
      %5991 = vmatprep.subr.mxu0 0.0
      %5992 = vmatpush1.msra.mxu0 0.0
      %5993 = vmatprep.subr.mxu0 0.0
      %5994 = vmatpush1.msra.mxu0 0.0
      %5995 = vmatprep.subr.mxu0 0.0
      %5996 = vmatpush1.msra.mxu0 0.0
      %5997 = vmatprep.subr.mxu0 0.0
      %5998 = vmatpush1.msra.mxu0 0.0
      %5999 = vmatprep.subr.mxu0 0.0
      %6000 = vmatpush1.msra.mxu0 0.0
      %6001 = vmatprep.mubr.f32.mxu0 0.0
      %6002 = vmatmul.mubr.f32.gmra.mrb[0].mxu0 %v5914
      %v6003 = vpop.f32.mrb[0].mxu0
      %v6004 = vadd.f32 0.0, %v6003
      %v6005 = vpop.f32.mrb[0].mxu0
      %v6006 = vadd.f32 0.0, %v6005
      %6007 = vmatprep.mubr.f32.mxu0 0.0
      %6008 = vmatmul.mubr.f32.gmra.mrb[0].mxu0 %v5917
      %v6009 = vpop.f32.mrb[0].mxu0
      %v6010 = vadd.f32 0.0, %v6009
      %v6011 = vpop.f32.mrb[0].mxu0
      %v6012 = vadd.f32 0.0, %v6011
      %6013 = vmatprep.mubr.f32.mxu0 0.0
      %6014 = vmatmul.mubr.f32.gmra.mrb[0].mxu0 %v5920
      %v6015 = vpop.f32.mrb[0].mxu0
      %v6016 = vadd.f32 0.0, %v6015
      %v6017 = vpop.f32.mrb[0].mxu0
      %v6018 = vadd.f32 0.0, %v6017
      %6019 = vmatprep.mubr.f32.mxu0 0.0
      %6020 = vmatmul.mubr.f32.gmra.mrb[0].mxu0 %v5923
      %v6021 = vpop.f32.mrb[0].mxu0
      %v6022 = vadd.f32 0.0, %v6021
      %v6023 = vpop.f32.mrb[0].mxu0
      %v6024 = vadd.f32 0.0, %v6023
      %6025 = vmatprep.mubr.f32.mxu0 0.0
      %6026 = vmatmul.mubr.f32.gmra.mrb[0].mxu0 %v5926
      %v6027 = vpop.f32.mrb[0].mxu0
      %v6028 = vadd.f32 0.0, %v6027
      %v6029 = vpop.f32.mrb[0].mxu0
      %v6030 = vadd.f32 0.0, %v6029
      %6031 = vmatprep.mubr.f32.mxu0 0.0
      %6032 = vmatmul.mubr.f32.gmra.mrb[0].mxu0 %v5929
      %v6033 = vpop.f32.mrb[0].mxu0
      %v6034 = vadd.f32 0.0, %v6033
      %v6035 = vpop.f32.mrb[0].mxu0
      %v6036 = vadd.f32 0.0, %v6035
      %6037 = vmatprep.mubr.f32.mxu0 0.0
      %6038 = vmatmul.mubr.f32.gmra.mrb[0].mxu0 %v5932
      %v6039 = vpop.f32.mrb[0].mxu0
      %v6040 = vadd.f32 0.0, %v6039
      %v6041 = vpop.f32.mrb[0].mxu0
      %v6042 = vadd.f32 0.0, %v6041
      %6043 = vmatprep.mubr.f32.mxu0 0.0
      %6044 = vmatmul.mubr.f32.gmra.mrb[0].mxu0 %v5935
      %v6045 = vpop.f32.mrb[0].mxu0
      %v6046 = vadd.f32 0.0, %v6045
      %v6047 = vpop.f32.mrb[0].mxu0
      %v6048 = vadd.f32 0.0, %v6047
      %6049 = vdwg.mxu0
      %6050 = vmatprep.subr.mxu0 %v453
      %6051 = vmatpush1.msra.mxu0 %v452
      %6052 = vmatprep.subr.mxu0 %v455
      %6053 = vmatpush1.msra.mxu0 %v454
      %6054 = vmatprep.subr.mxu0 %v457
      %6055 = vmatpush1.msra.mxu0 %v456
      %6056 = vmatprep.subr.mxu0 %v459
      %6057 = vmatpush1.msra.mxu0 %v458
      %6058 = vmatprep.subr.mxu0 0.0
      %6059 = vmatpush1.msra.mxu0 0.0
      %6060 = vmatprep.subr.mxu0 0.0
      %6061 = vmatpush1.msra.mxu0 0.0
      %6062 = vmatprep.subr.mxu0 0.0
      %6063 = vmatpush1.msra.mxu0 0.0
      %6064 = vmatprep.subr.mxu0 0.0
      %6065 = vmatpush1.msra.mxu0 0.0
      %6066 = vmatprep.subr.mxu0 0.0
      %6067 = vmatpush1.msra.mxu0 0.0
      %6068 = vmatprep.subr.mxu0 0.0
      %6069 = vmatpush1.msra.mxu0 0.0
      %6070 = vmatprep.subr.mxu0 0.0
      %6071 = vmatpush1.msra.mxu0 0.0
      %6072 = vmatprep.subr.mxu0 0.0
      %6073 = vmatpush1.msra.mxu0 0.0
      %6074 = vmatprep.subr.mxu0 0.0
      %6075 = vmatpush1.msra.mxu0 0.0
      %6076 = vmatprep.subr.mxu0 0.0
      %6077 = vmatpush1.msra.mxu0 0.0
      %6078 = vmatprep.subr.mxu0 0.0
      %6079 = vmatpush1.msra.mxu0 0.0
      %6080 = vmatprep.subr.mxu0 0.0
      %6081 = vmatpush1.msra.mxu0 0.0
      %6082 = vmatprep.subr.mxu0 0.0
      %6083 = vmatpush1.msra.mxu0 0.0
      %6084 = vmatprep.subr.mxu0 0.0
      %6085 = vmatpush1.msra.mxu0 0.0
      %6086 = vmatprep.subr.mxu0 0.0
      %6087 = vmatpush1.msra.mxu0 0.0
      %6088 = vmatprep.subr.mxu0 0.0
      %6089 = vmatpush1.msra.mxu0 0.0
      %6090 = vmatprep.subr.mxu0 0.0
      %6091 = vmatpush1.msra.mxu0 0.0
      %6092 = vmatprep.subr.mxu0 0.0
      %6093 = vmatpush1.msra.mxu0 0.0
      %6094 = vmatprep.subr.mxu0 0.0
      %6095 = vmatpush1.msra.mxu0 0.0
      %6096 = vmatprep.subr.mxu0 0.0
      %6097 = vmatpush1.msra.mxu0 0.0
      %6098 = vmatprep.subr.mxu0 0.0
      %6099 = vmatpush1.msra.mxu0 0.0
      %6100 = vmatprep.subr.mxu0 0.0
      %6101 = vmatpush1.msra.mxu0 0.0
      %6102 = vmatprep.subr.mxu0 0.0
      %6103 = vmatpush1.msra.mxu0 0.0
      %6104 = vmatprep.subr.mxu0 0.0
      %6105 = vmatpush1.msra.mxu0 0.0
      %6106 = vmatprep.subr.mxu0 0.0
      %6107 = vmatpush1.msra.mxu0 0.0
      %6108 = vmatprep.subr.mxu0 0.0
      %6109 = vmatpush1.msra.mxu0 0.0
      %6110 = vmatprep.subr.mxu0 0.0
      %6111 = vmatpush1.msra.mxu0 0.0
      %6112 = vmatprep.subr.mxu0 0.0
      %6113 = vmatpush1.msra.mxu0 0.0
      %6114 = vmatprep.mubr.f32.mxu0 0.0
      %6115 = vmatmul.mubr.f32.gmra.mrb[0].mxu0 %v5013
      %v6116 = vpop.f32.mrb[0].mxu0
      %v6117 = vadd.f32 %v6004, %v6116
      %v6118 = vpop.f32.mrb[0].mxu0
      %v6119 = vadd.f32 %v6006, %v6118
      %6120 = vmatprep.mubr.f32.mxu0 0.0
      %6121 = vmatmul.mubr.f32.gmra.mrb[0].mxu0 %v5016
      %v6122 = vpop.f32.mrb[0].mxu0
      %v6123 = vadd.f32 %v6010, %v6122
      %v6124 = vpop.f32.mrb[0].mxu0
      %v6125 = vadd.f32 %v6012, %v6124
      %6126 = vmatprep.mubr.f32.mxu0 0.0
      %6127 = vmatmul.mubr.f32.gmra.mrb[0].mxu0 %v5019
      %v6128 = vpop.f32.mrb[0].mxu0
      %v6129 = vadd.f32 %v6016, %v6128
      %v6130 = vpop.f32.mrb[0].mxu0
      %v6131 = vadd.f32 %v6018, %v6130
      %6132 = vmatprep.mubr.f32.mxu0 0.0
      %6133 = vmatmul.mubr.f32.gmra.mrb[0].mxu0 %v5022
      %v6134 = vpop.f32.mrb[0].mxu0
      %v6135 = vadd.f32 %v6022, %v6134
      %v6136 = vpop.f32.mrb[0].mxu0
      %v6137 = vadd.f32 %v6024, %v6136
      %6138 = vmatprep.mubr.f32.mxu0 0.0
      %6139 = vmatmul.mubr.f32.gmra.mrb[0].mxu0 %v5025
      %v6140 = vpop.f32.mrb[0].mxu0
      %v6141 = vadd.f32 %v6028, %v6140
      %v6142 = vpop.f32.mrb[0].mxu0
      %v6143 = vadd.f32 %v6030, %v6142
      %6144 = vmatprep.mubr.f32.mxu0 0.0
      %6145 = vmatmul.mubr.f32.gmra.mrb[0].mxu0 %v5028
      %v6146 = vpop.f32.mrb[0].mxu0
      %v6147 = vadd.f32 %v6034, %v6146
      %v6148 = vpop.f32.mrb[0].mxu0
      %v6149 = vadd.f32 %v6036, %v6148
      %6150 = vmatprep.mubr.f32.mxu0 0.0
      %6151 = vmatmul.mubr.f32.gmra.mrb[0].mxu0 %v5031
      %v6152 = vpop.f32.mrb[0].mxu0
      %v6153 = vadd.f32 %v6040, %v6152
      %v6154 = vpop.f32.mrb[0].mxu0
      %v6155 = vadd.f32 %v6042, %v6154
      %6156 = vmatprep.mubr.f32.mxu0 0.0
      %6157 = vmatmul.mubr.f32.gmra.mrb[0].mxu0 %v5034
      %v6158 = vpop.f32.mrb[0].mxu0
      %v6159 = vadd.f32 %v6046, %v6158
      %v6160 = vpop.f32.mrb[0].mxu0
      %v6161 = vadd.f32 %v6048, %v6160
      %6162 = vdwg.mxu0
      %v6163 = vmul.f32 %v6117, 0.5
      %v6164 = vmul.f32 %v6119, 0.5
      %v6165 = vmul.f32 %v6123, 0.5
      %v6166 = vmul.f32 %v6125, 0.5
      %v6167 = vmul.f32 %v6129, 0.5
      %v6168 = vmul.f32 %v6131, 0.5
      %v6169 = vmul.f32 %v6135, 0.5
      %v6170 = vmul.f32 %v6137, 0.5
      %v6171 = vmul.f32 %v6141, 0.5
      %v6172 = vmul.f32 %v6143, 0.5
      %v6173 = vmul.f32 %v6147, 0.5
      %v6174 = vmul.f32 %v6149, 0.5
      %v6175 = vmul.f32 %v6153, 0.5
      %v6176 = vmul.f32 %v6155, 0.5
      %v6177 = vmul.f32 %v6159, 0.5
      %v6178 = vmul.f32 %v6161, 0.5
      %v6179 = vmul.f32 %v6117, 0.70710677
      %v6180 = vmul.f32 %v6119, 0.70710677
      %v6181 = vmul.f32 %v6123, 0.70710677
      %v6182 = vmul.f32 %v6125, 0.70710677
      %v6183 = vmul.f32 %v6129, 0.70710677
      %v6184 = vmul.f32 %v6131, 0.70710677
      %v6185 = vmul.f32 %v6135, 0.70710677
      %v6186 = vmul.f32 %v6137, 0.70710677
      %v6187 = vmul.f32 %v6141, 0.70710677
      %v6188 = vmul.f32 %v6143, 0.70710677
      %v6189 = vmul.f32 %v6147, 0.70710677
      %v6190 = vmul.f32 %v6149, 0.70710677
      %v6191 = vmul.f32 %v6153, 0.70710677
      %v6192 = vmul.f32 %v6155, 0.70710677
      %v6193 = vmul.f32 %v6159, 0.70710677
      %v6194 = vmul.f32 %v6161, 0.70710677
      %v6195 = verf.f32.pop %v6179
      %v6196 = verf.f32.pop %v6180
      %v6197 = verf.f32.pop %v6181
      %v6198 = verf.f32.pop %v6182
      %v6199 = verf.f32.pop %v6183
      %v6200 = verf.f32.pop %v6184
      %v6201 = verf.f32.pop %v6185
      %v6202 = verf.f32.pop %v6186
      %v6203 = verf.f32.pop %v6187
      %v6204 = verf.f32.pop %v6188
      %v6205 = verf.f32.pop %v6189
      %v6206 = verf.f32.pop %v6190
      %v6207 = verf.f32.pop %v6191
      %v6208 = verf.f32.pop %v6192
      %v6209 = verf.f32.pop %v6193
      %v6210 = verf.f32.pop %v6194
      %v6211 = vadd.f32 %v6195, 1.0
      %v6212 = vadd.f32 %v6196, 1.0
      %v6213 = vadd.f32 %v6197, 1.0
      %v6214 = vadd.f32 %v6198, 1.0
      %v6215 = vadd.f32 %v6199, 1.0
      %v6216 = vadd.f32 %v6200, 1.0
      %v6217 = vadd.f32 %v6201, 1.0
      %v6218 = vadd.f32 %v6202, 1.0
      %v6219 = vadd.f32 %v6203, 1.0
      %v6220 = vadd.f32 %v6204, 1.0
      %v6221 = vadd.f32 %v6205, 1.0
      %v6222 = vadd.f32 %v6206, 1.0
      %v6223 = vadd.f32 %v6207, 1.0
      %v6224 = vadd.f32 %v6208, 1.0
      %v6225 = vadd.f32 %v6209, 1.0
      %v6226 = vadd.f32 %v6210, 1.0
      %v6227 = vmul.f32 %v6163, %v6211
      %v6228 = vmul.f32 %v6164, %v6212
      %v6229 = vmul.f32 %v6165, %v6213
      %v6230 = vmul.f32 %v6166, %v6214
      %v6231 = vmul.f32 %v6167, %v6215
      %v6232 = vmul.f32 %v6168, %v6216
      %v6233 = vmul.f32 %v6169, %v6217
      %v6234 = vmul.f32 %v6170, %v6218
      %v6235 = vmul.f32 %v6171, %v6219
      %v6236 = vmul.f32 %v6172, %v6220
      %v6237 = vmul.f32 %v6173, %v6221
      %v6238 = vmul.f32 %v6174, %v6222
      %v6239 = vmul.f32 %v6175, %v6223
      %v6240 = vmul.f32 %v6176, %v6224
      %v6241 = vmul.f32 %v6177, %v6225
      %v6242 = vmul.f32 %v6178, %v6226
      %6243 = vmatprep.subr.mxu0 0.0
      %6244 = vmatpush1.msra.mxu0 %v468
      %6245 = vmatprep.subr.mxu0 0.0
      %6246 = vmatpush1.msra.mxu0 %v469
      %6247 = vmatprep.subr.mxu0 0.0
      %6248 = vmatpush1.msra.mxu0 %v470
      %6249 = vmatprep.subr.mxu0 0.0
      %6250 = vmatpush1.msra.mxu0 %v471
      %6251 = vmatprep.subr.mxu0 0.0
      %6252 = vmatpush1.msra.mxu0 %v472
      %6253 = vmatprep.subr.mxu0 0.0
      %6254 = vmatpush1.msra.mxu0 %v473
      %6255 = vmatprep.subr.mxu0 0.0
      %6256 = vmatpush1.msra.mxu0 %v474
      %6257 = vmatprep.subr.mxu0 0.0
      %6258 = vmatpush1.msra.mxu0 %v475
      %6259 = vmatprep.subr.mxu0 0.0
      %6260 = vmatpush1.msra.mxu0 %v476
      %6261 = vmatprep.subr.mxu0 0.0
      %6262 = vmatpush1.msra.mxu0 %v477
      %6263 = vmatprep.subr.mxu0 0.0
      %6264 = vmatpush1.msra.mxu0 %v478
      %6265 = vmatprep.subr.mxu0 0.0
      %6266 = vmatpush1.msra.mxu0 %v479
      %6267 = vmatprep.subr.mxu0 0.0
      %6268 = vmatpush1.msra.mxu0 %v480
      %6269 = vmatprep.subr.mxu0 0.0
      %6270 = vmatpush1.msra.mxu0 %v481
      %6271 = vmatprep.subr.mxu0 0.0
      %6272 = vmatpush1.msra.mxu0 %v482
      %6273 = vmatprep.subr.mxu0 0.0
      %6274 = vmatpush1.msra.mxu0 %v483
      %6275 = vmatprep.subr.mxu0 0.0
      %6276 = vmatpush1.msra.mxu0 %v484
      %6277 = vmatprep.subr.mxu0 0.0
      %6278 = vmatpush1.msra.mxu0 %v485
      %6279 = vmatprep.subr.mxu0 0.0
      %6280 = vmatpush1.msra.mxu0 %v486
      %6281 = vmatprep.subr.mxu0 0.0
      %6282 = vmatpush1.msra.mxu0 %v487
      %6283 = vmatprep.subr.mxu0 0.0
      %6284 = vmatpush1.msra.mxu0 %v488
      %6285 = vmatprep.subr.mxu0 0.0
      %6286 = vmatpush1.msra.mxu0 %v489
      %6287 = vmatprep.subr.mxu0 0.0
      %6288 = vmatpush1.msra.mxu0 %v490
      %6289 = vmatprep.subr.mxu0 0.0
      %6290 = vmatpush1.msra.mxu0 %v491
      %6291 = vmatprep.subr.mxu0 0.0
      %6292 = vmatpush1.msra.mxu0 %v492
      %6293 = vmatprep.subr.mxu0 0.0
      %6294 = vmatpush1.msra.mxu0 %v493
      %6295 = vmatprep.subr.mxu0 0.0
      %6296 = vmatpush1.msra.mxu0 %v494
      %6297 = vmatprep.subr.mxu0 0.0
      %6298 = vmatpush1.msra.mxu0 %v495
      %6299 = vmatprep.subr.mxu0 0.0
      %6300 = vmatpush1.msra.mxu0 %v496
      %6301 = vmatprep.subr.mxu0 0.0
      %6302 = vmatpush1.msra.mxu0 %v497
      %6303 = vmatprep.subr.mxu0 0.0
      %6304 = vmatpush1.msra.mxu0 %v498
      %6305 = vmatprep.subr.mxu0 0.0
      %6306 = vmatpush1.msra.mxu0 %v499
      %6307 = vmatprep.mubr.f32.mxu0 %v6228
      %6308 = vmatmul.mubr.f32.gmra.mrb[0].mxu0 %v6227
      %v6309 = vpop.f32.mrb[0].mxu0
      %v6310 = vadd.f32 0.0, %v6309
      %v6311 = vpop.f32.mrb[0].mxu0
      %6312 = vmatprep.mubr.f32.mxu0 %v6230
      %6313 = vmatmul.mubr.f32.gmra.mrb[0].mxu0 %v6229
      %v6314 = vpop.f32.mrb[0].mxu0
      %v6315 = vadd.f32 0.0, %v6314
      %v6316 = vpop.f32.mrb[0].mxu0
      %6317 = vmatprep.mubr.f32.mxu0 %v6232
      %6318 = vmatmul.mubr.f32.gmra.mrb[0].mxu0 %v6231
      %v6319 = vpop.f32.mrb[0].mxu0
      %v6320 = vadd.f32 0.0, %v6319
      %v6321 = vpop.f32.mrb[0].mxu0
      %6322 = vmatprep.mubr.f32.mxu0 %v6234
      %6323 = vmatmul.mubr.f32.gmra.mrb[0].mxu0 %v6233
      %v6324 = vpop.f32.mrb[0].mxu0
      %v6325 = vadd.f32 0.0, %v6324
      %v6326 = vpop.f32.mrb[0].mxu0
      %6327 = vmatprep.mubr.f32.mxu0 %v6236
      %6328 = vmatmul.mubr.f32.gmra.mrb[0].mxu0 %v6235
      %v6329 = vpop.f32.mrb[0].mxu0
      %v6330 = vadd.f32 0.0, %v6329
      %v6331 = vpop.f32.mrb[0].mxu0
      %6332 = vmatprep.mubr.f32.mxu0 %v6238
      %6333 = vmatmul.mubr.f32.gmra.mrb[0].mxu0 %v6237
      %v6334 = vpop.f32.mrb[0].mxu0
      %v6335 = vadd.f32 0.0, %v6334
      %v6336 = vpop.f32.mrb[0].mxu0
      %6337 = vmatprep.mubr.f32.mxu0 %v6240
      %6338 = vmatmul.mubr.f32.gmra.mrb[0].mxu0 %v6239
      %v6339 = vpop.f32.mrb[0].mxu0
      %v6340 = vadd.f32 0.0, %v6339
      %v6341 = vpop.f32.mrb[0].mxu0
      %6342 = vmatprep.mubr.f32.mxu0 %v6242
      %6343 = vmatmul.mubr.f32.gmra.mrb[0].mxu0 %v6241
      %v6344 = vpop.f32.mrb[0].mxu0
      %v6345 = vadd.f32 0.0, %v6344
      %v6346 = vpop.f32.mrb[0].mxu0
      %6347 = vdwg.mxu0
      %v6348 = vsel %vm518, %v6310, 0.0
      %6349 = vadd.xlane.f32.xlu0 %v6348
      %v6350 = vpop.xlane.xlu0 %6349
      %v6351 = vsel %vm518, %v6315, 0.0
      %6352 = vadd.xlane.f32.xlu0 %v6351
      %v6353 = vpop.xlane.xlu0 %6352
      %v6354 = vsel %vm518, %v6320, 0.0
      %6355 = vadd.xlane.f32.xlu0 %v6354
      %v6356 = vpop.xlane.xlu0 %6355
      %v6357 = vsel %vm518, %v6325, 0.0
      %6358 = vadd.xlane.f32.xlu0 %v6357
      %v6359 = vpop.xlane.xlu0 %6358
      %v6360 = vsel %vm518, %v6330, 0.0
      %6361 = vadd.xlane.f32.xlu0 %v6360
      %v6362 = vpop.xlane.xlu0 %6361
      %v6363 = vsel %vm518, %v6335, 0.0
      %6364 = vadd.xlane.f32.xlu0 %v6363
      %v6365 = vpop.xlane.xlu0 %6364
      %v6366 = vsel %vm518, %v6340, 0.0
      %6367 = vadd.xlane.f32.xlu0 %v6366
      %v6368 = vpop.xlane.xlu0 %6367
      %v6369 = vsel %vm518, %v6345, 0.0
      %6370 = vadd.xlane.f32.xlu0 %v6369
      %v6371 = vpop.xlane.xlu0 %6370
      %v6372 = vmul.f32 %v6350, %v1325
      %v6373 = vmul.f32 %v6353, %v1325
      %v6374 = vmul.f32 %v6356, %v1325
      %v6375 = vmul.f32 %v6359, %v1325
      %v6376 = vmul.f32 %v6362, %v1325
      %v6377 = vmul.f32 %v6365, %v1325
      %v6378 = vmul.f32 %v6368, %v1325
      %v6379 = vmul.f32 %v6371, %v1325
      %v6380 = vsub.f32 %v6310, %v6372
      %v6381 = vsub.f32 %v6315, %v6373
      %v6382 = vsub.f32 %v6320, %v6374
      %v6383 = vsub.f32 %v6325, %v6375
      %v6384 = vsub.f32 %v6330, %v6376
      %v6385 = vsub.f32 %v6335, %v6377
      %v6386 = vsub.f32 %v6340, %v6378
      %v6387 = vsub.f32 %v6345, %v6379
      %v6388 = vmul.f32 %v6380, %v6380
      %v6389 = vmul.f32 %v6381, %v6381
      %v6390 = vmul.f32 %v6382, %v6382
      %v6391 = vmul.f32 %v6383, %v6383
      %v6392 = vmul.f32 %v6384, %v6384
      %v6393 = vmul.f32 %v6385, %v6385
      %v6394 = vmul.f32 %v6386, %v6386
      %v6395 = vmul.f32 %v6387, %v6387
      %v6396 = vsel %vm518, %v6388, 0.0
      %6397 = vadd.xlane.f32.xlu0 %v6396
      %v6398 = vpop.xlane.xlu0 %6397
      %v6399 = vsel %vm518, %v6389, 0.0
      %6400 = vadd.xlane.f32.xlu0 %v6399
      %v6401 = vpop.xlane.xlu0 %6400
      %v6402 = vsel %vm518, %v6390, 0.0
      %6403 = vadd.xlane.f32.xlu0 %v6402
      %v6404 = vpop.xlane.xlu0 %6403
      %v6405 = vsel %vm518, %v6391, 0.0
      %6406 = vadd.xlane.f32.xlu0 %v6405
      %v6407 = vpop.xlane.xlu0 %6406
      %v6408 = vsel %vm518, %v6392, 0.0
      %6409 = vadd.xlane.f32.xlu0 %v6408
      %v6410 = vpop.xlane.xlu0 %6409
      %v6411 = vsel %vm518, %v6393, 0.0
      %6412 = vadd.xlane.f32.xlu0 %v6411
      %v6413 = vpop.xlane.xlu0 %6412
      %v6414 = vsel %vm518, %v6394, 0.0
      %6415 = vadd.xlane.f32.xlu0 %v6414
      %v6416 = vpop.xlane.xlu0 %6415
      %v6417 = vsel %vm518, %v6395, 0.0
      %6418 = vadd.xlane.f32.xlu0 %v6417
      %v6419 = vpop.xlane.xlu0 %6418
      %v6420 = vmul.f32 %v6398, %v1325
      %v6421 = vmul.f32 %v6401, %v1325
      %v6422 = vmul.f32 %v6404, %v1325
      %v6423 = vmul.f32 %v6407, %v1325
      %v6424 = vmul.f32 %v6410, %v1325
      %v6425 = vmul.f32 %v6413, %v1325
      %v6426 = vmul.f32 %v6416, %v1325
      %v6427 = vmul.f32 %v6419, %v1325
      %v6428 = vadd.f32 %v6420, 1e-05
      %v6429 = vadd.f32 %v6421, 1e-05
      %v6430 = vadd.f32 %v6422, 1e-05
      %v6431 = vadd.f32 %v6423, 1e-05
      %v6432 = vadd.f32 %v6424, 1e-05
      %v6433 = vadd.f32 %v6425, 1e-05
      %v6434 = vadd.f32 %v6426, 1e-05
      %v6435 = vadd.f32 %v6427, 1e-05
      %v6436 = vrsqrt.pop %v6428
      %v6437 = vrsqrt.pop %v6429
      %v6438 = vrsqrt.pop %v6430
      %v6439 = vrsqrt.pop %v6431
      %v6440 = vrsqrt.pop %v6432
      %v6441 = vrsqrt.pop %v6433
      %v6442 = vrsqrt.pop %v6434
      %v6443 = vrsqrt.pop %v6435
      %v6444 = vmul.f32 %v6380, %v6436
      %v6445 = vmul.f32 %v6381, %v6437
      %v6446 = vmul.f32 %v6382, %v6438
      %v6447 = vmul.f32 %v6383, %v6439
      %v6448 = vmul.f32 %v6384, %v6440
      %v6449 = vmul.f32 %v6385, %v6441
      %v6450 = vmul.f32 %v6386, %v6442
      %v6451 = vmul.f32 %v6387, %v6443
      %v6452 = vmul.f32 %v6444, %v1977
      %v6453 = vmul.f32 %v6445, %v1977
      %v6454 = vmul.f32 %v6446, %v1977
      %v6455 = vmul.f32 %v6447, %v1977
      %v6456 = vmul.f32 %v6448, %v1977
      %v6457 = vmul.f32 %v6449, %v1977
      %v6458 = vmul.f32 %v6450, %v1977
      %v6459 = vmul.f32 %v6451, %v1977
      %v6460 = vadd.f32 %v6452, %v1991
      %v6461 = vadd.f32 %v6453, %v1991
      %v6462 = vadd.f32 %v6454, %v1991
      %v6463 = vadd.f32 %v6455, %v1991
      %v6464 = vadd.f32 %v6456, %v1991
      %v6465 = vadd.f32 %v6457, %v1991
      %v6466 = vadd.f32 %v6458, %v1991
      %v6467 = vadd.f32 %v6459, %v1991
      %v6468 = vadd.f32 %v4996, %v6460
      %v6469 = vadd.f32 %v4997, %v6461
      %v6470 = vadd.f32 %v4998, %v6462
      %v6471 = vadd.f32 %v4999, %v6463
      %v6472 = vadd.f32 %v5000, %v6464
      %v6473 = vadd.f32 %v5001, %v6465
      %v6474 = vadd.f32 %v5002, %v6466
      %v6475 = vadd.f32 %v5003, %v6467
      %6476 = vst.msk [vmem:[%s4987 + $0x8] sm:$0xff] %vm518, %v6468
      %6477 = vst.msk [vmem:[%s4987 + $0x18] sm:$0xff] %vm518, %v6469
      %6478 = vst.msk [vmem:[%s4987 + $0x28] sm:$0xff] %vm518, %v6470
      %6479 = vst.msk [vmem:[%s4987 + $0x38] sm:$0xff] %vm518, %v6471
      %6480 = vst.msk [vmem:[%s4987 + $0x48] sm:$0xff] %vm518, %v6472
      %6481 = vst.msk [vmem:[%s4987 + $0x58] sm:$0xff] %vm518, %v6473
      %6482 = vst.msk [vmem:[%s4987 + $0x68] sm:$0xff] %vm518, %v6474
      %6483 = vst.msk [vmem:[%s4987 + $0x78] sm:$0xff] %vm518, %v6475
      %p6484 = scmp.lt.s32.totalorder %s23, 1
      %s6485 = scalar_select %p6484, %s23, 1
      %s6486 = smul.addr %s6485, 32
      %s6487 = smul.addr %s6486, 8
      %s6488 = scalar_lea.vmem %s12, %s6487
      // Predicated region
      $region69: #{transformer_layer_forward.1} parent=67 // pred_check
        %p6489 = pneg %p303
      $region70: #{transformer_layer_forward.1} parent=67 // pred_check_branch
        %6491 = sbr.rel (%p6489) target = $region72
      $region71: #{transformer_layer_forward.1} parent=67 // pred_region
        _
      $region72: #{transformer_layer_forward.1} parent=67 // pred_fallthru
        _
    $region68: #{transformer_layer_forward.1} parent=5 // pred_fallthru
      _
    %p6492 = scmp.le.s32.totalorder 2, %s18
    // Predicated region
    $region73: #{transformer_layer_forward.1} parent=5 // pred_check
      %p6493 = pneg %p6492
    $region74: #{transformer_layer_forward.1} parent=5 // pred_check_branch
      %6495 = sbr.rel (%p6493) target = $region76
    $region75: #{transformer_layer_forward.1} parent=5 // pred_region
      %s6496 = ssub.s32 %s18, 2
      // Predicated region
      $region77: #{transformer_layer_forward.1} parent=75 // pred_check
        %p6497 = pneg %p309
      $region78: #{transformer_layer_forward.1} parent=75 // pred_check_branch
        %6499 = sbr.rel (%p6497) target = $region80
      $region79: #{transformer_layer_forward.1} parent=75 // pred_region
        %p6500 = scmp.lt.s32.totalorder %s24, 1
        %s6501 = scalar_select %p6500, %s24, 1
        %s6502 = smul.addr %s6501, 32
        %s6503 = smul.addr %s6502, 8
        %s6504 = scalar_lea.vmem %s12, %s6503
      $region80: #{transformer_layer_forward.1} parent=75 // pred_fallthru
        _
    $region76: #{transformer_layer_forward.1} parent=5 // pred_fallthru
      _
  $region6: #{transformer_layer_forward.1} parent=0 // loop_footer
    %s22 = sadd.s32 1, %s18
  $region7: #{transformer_layer_forward.1} parent=0 // loop_footer_branch
    %17 = sbr.rel target = $region3
  $region8: #{transformer_layer_forward.1} parent=0 // loop_exit
    _

</llo_original>
